<compile_context>
chip_gen: v6e
topology: v6e:2x2x1
jax: 0.10.0
libtpu: 0.0.40
codegen_flags: <defaults>
</compile_context>

<pallas_src>
import math

import jax
import jax.numpy as jnp
from jax.experimental import pallas as pl
from jax.experimental.pallas import tpu as pltpu


# ----------------------------- model constants ------------------------------

IMG, PATCH, DIM, DEPTH, HEADS, MLP_DIM, NUM_CLASSES = 28, 4, 64, 2, 4, 128, 10
NUM_PATCHES = (IMG // PATCH) ** 2          # 49
PATCH_DIM = PATCH * PATCH                  # 16
SEQ = NUM_PATCHES + 1                      # 50 (cls + patches)
SEQ_PAD = 64                               # padded seq (f32 & bf16 tile aligned)
HEAD_DIM = DIM // HEADS                    # 16
HEAD_PAD = 128                             # lane-dense classifier output width
QKV_W = 2 * DIM + HEADS * DIM              # 384 fused columns: Q | K | Vo_h*
VEC_W = QKV_W                              # width of the packed small-vector rows


# ----------------------------- fused ViT kernel -----------------------------

def _vit_kernel(p_ref, pw_ref, base_ref, wqkv_ref, w1_ref, w2_ref, hw_ref,
                vecs_ref, o_ref):
    f32, bf16 = jnp.float32, jnp.bfloat16
    B = p_ref.shape[0] // SEQ_PAD          # static (from ref shape)

    def ln(x, g, b, eps=1e-5):
        mean = jnp.mean(x, axis=-1, keepdims=True)
        xc = x - mean
        var = jnp.mean(xc * xc, axis=-1, keepdims=True)
        return xc * jax.lax.rsqrt(var + eps) * g + b

    def mm(a, w):
        # bf16 MXU matmul with f32 accumulation.
        return jax.lax.dot_general(
            a.astype(bf16), w.astype(bf16),
            (((1,), (0,)), ((), ())), preferred_element_type=f32)

    # 0 for valid key columns, -1e9 for the padded ones (precomputed row).
    key_mask = vecs_ref[DEPTH, 3:4, :SEQ_PAD]                 # (1, SEQ_PAD)

    # ---- patch embedding + cls token + positional embedding ----------------
    # base row 0 holds cls_token + pos[0]; rows 1..49 hold patch_bias + pos;
    # rows 50..63 are zero (pad).  Patches input has zero rows in those slots.
    base = base_ref[...]                                      # (SEQ_PAD, DIM)
    tok = mm(p_ref[...], pw_ref[...]) + jnp.concatenate([base] * B, axis=0)

    # ---- transformer encoder layers (post-LN, ReLU FFN, eval mode) ---------
    for l in range(DEPTH):
        x = tok
        bqkv  = vecs_ref[l, 0:1, :]                           # (1, QKV_W)
        abias = vecs_ref[l, 1:2, :DIM]                        # bv@Wo + bo
        ln1g  = vecs_ref[l, 2:3, :DIM]
        ln1b  = vecs_ref[l, 3:4, :DIM]
        b1    = vecs_ref[l, 4:5, :MLP_DIM]
        b2    = vecs_ref[l, 5:6, :DIM]
        ln2g  = vecs_ref[l, 6:7, :DIM]
        ln2b  = vecs_ref[l, 7:8, :DIM]

        # Fused Q/K/Vo projection (softmax scale folded into the Q columns,
        # Wo folded into the Vo columns; bias is zero on the Vo columns).
        qkv = (mm(x, wqkv_ref[l]) + bqkv).astype(bf16)        # (B*SEQ_PAD, QKV_W)

        parts = []
        for b in range(B):
            r = b * SEQ_PAD
            qkv_b = qkv[r:r + SEQ_PAD, :]                     # tile-aligned slice
            acc = None
            for h in range(HEADS):
                q_h = qkv_b[:, h * HEAD_DIM:(h + 1) * HEAD_DIM]
                k_h = qkv_b[:, DIM + h * HEAD_DIM:DIM + (h + 1) * HEAD_DIM]
                vo_h = qkv_b[:, 2 * DIM + h * DIM:2 * DIM + (h + 1) * DIM]
                # QK^T contracting the last dims (same pattern as the official
                # Pallas flash-attention kernel; no explicit K transpose).
                s = jax.lax.dot_general(
                    q_h, k_h, (((1,), (1,)), ((), ())),
                    preferred_element_type=f32)               # (SEQ_PAD, SEQ_PAD)
                s = s + key_mask
                s = s - jnp.max(s, axis=-1, keepdims=True)
                pexp = jnp.exp(s)
                pexp = pexp * pl.reciprocal(
                    jnp.sum(pexp, axis=-1, keepdims=True), approx=True)
                pv = jax.lax.dot_general(
                    pexp.astype(bf16), vo_h, (((1,), (0,)), ((), ())),
                    preferred_element_type=f32)               # (SEQ_PAD, DIM)
                acc = pv if acc is None else acc + pv
            parts.append(acc)
        attn = jnp.concatenate(parts, axis=0) + abias         # (B*SEQ_PAD, DIM)

        h1 = ln(x + attn, ln1g, ln1b)                         # norm1(x + attn)
        ff = jnp.maximum(mm(h1, w1_ref[l]) + b1, 0.0)         # linear1 + relu
        ff = mm(ff, w2_ref[l]) + b2                           # linear2
        tok = ln(h1 + ff, ln2g, ln2b)                         # norm2(h1 + ff)

    # ---- classifier head on the cls tokens ----------------------------------
    # Take 8 aligned rows per batch item (row 0 = cls); only row 0 of each
    # 8-row group is read back in the wrapper.  Output is lane-dense (…,128).
    hg    = vecs_ref[DEPTH, 0:1, :DIM]
    hb    = vecs_ref[DEPTH, 1:2, :DIM]
    hbias = vecs_ref[DEPTH, 2:3, :HEAD_PAD]
    cls = jnp.concatenate(
        [tok[b * SEQ_PAD:b * SEQ_PAD + 8, :] for b in range(B)], axis=0)
    o_ref[...] = mm(ln(cls, hg, hb), hw_ref[...]) + hbias     # (8*B, HEAD_PAD)


# ----------------------------- parameters -----------------------------------

def init_params(key):
    keys = iter(jax.random.split(key, 64))

    def nrm(shape, scale=0.02):
        return (scale * jax.random.normal(next(keys), shape)).astype(jnp.float32)

    params = {
        "patch_w": nrm((PATCH_DIM, DIM)),
        "patch_b": nrm((DIM,)),
        "pos_embed": nrm((1, SEQ, DIM), 1.0),    # torch.randn
        "cls_token": nrm((1, 1, DIM), 1.0),      # torch.randn
        "head_ln_g": jnp.ones((DIM,), jnp.float32),
        "head_ln_b": jnp.zeros((DIM,), jnp.float32),
        "head_w": nrm((DIM, NUM_CLASSES)),
        "head_b": nrm((NUM_CLASSES,)),
        "layers": [],
    }
    for _ in range(DEPTH):
        params["layers"].append({
            "wq": nrm((DIM, DIM)), "bq": nrm((DIM,)),
            "wk": nrm((DIM, DIM)), "bk": nrm((DIM,)),
            "wv": nrm((DIM, DIM)), "bv": nrm((DIM,)),
            "wo": nrm((DIM, DIM)), "bo": nrm((DIM,)),
            "ln1_g": jnp.ones((DIM,), jnp.float32),
            "ln1_b": jnp.zeros((DIM,), jnp.float32),
            "w1": nrm((DIM, MLP_DIM)), "b1": nrm((MLP_DIM,)),
            "w2": nrm((MLP_DIM, DIM)), "b2": nrm((DIM,)),
            "ln2_g": jnp.ones((DIM,), jnp.float32),
            "ln2_b": jnp.zeros((DIM,), jnp.float32),
        })
    return params


def pack_params(p):
    """Pack PyTorch-layout params into the fused, kernel-friendly layout."""
    scale = 1.0 / math.sqrt(HEAD_DIM)
    layers = p["layers"]

    # Fused projection: [Wq*scale | Wk | Wv_h @ Wo_h  for each head].
    wqkv = []
    for lp in layers:
        cols = [lp["wq"] * scale, lp["wk"]]
        for h in range(HEADS):
            sl = slice(h * HEAD_DIM, (h + 1) * HEAD_DIM)
            cols.append(lp["wv"][:, sl] @ lp["wo"][sl, :])     # (DIM, DIM)
        wqkv.append(jnp.concatenate(cols, axis=1))             # (DIM, QKV_W)
    wqkv = jnp.stack(wqkv)

    # All small vectors packed into one f32 array (one DMA).
    vecs = jnp.zeros((DEPTH + 1, 8, VEC_W), jnp.float32)
    for l, lp in enumerate(layers):
        vecs = vecs.at[l, 0, :2 * DIM].set(
            jnp.concatenate([lp["bq"] * scale, lp["bk"]]))     # Q/K bias (Vo part 0)
        vecs = vecs.at[l, 1, :DIM].set(lp["bv"] @ lp["wo"] + lp["bo"])  # attn bias
        vecs = vecs.at[l, 2, :DIM].set(lp["ln1_g"])
        vecs = vecs.at[l, 3, :DIM].set(lp["ln1_b"])
        vecs = vecs.at[l, 4, :MLP_DIM].set(lp["b1"])
        vecs = vecs.at[l, 5, :DIM].set(lp["b2"])
        vecs = vecs.at[l, 6, :DIM].set(lp["ln2_g"])
        vecs = vecs.at[l, 7, :DIM].set(lp["ln2_b"])
    vecs = vecs.at[DEPTH, 0, :DIM].set(p["head_ln_g"])
    vecs = vecs.at[DEPTH, 1, :DIM].set(p["head_ln_b"])
    vecs = vecs.at[DEPTH, 2, :NUM_CLASSES].set(p["head_b"])
    key_mask = jnp.where(jnp.arange(VEC_W) < SEQ, 0.0, -1e9).astype(jnp.float32)
    vecs = vecs.at[DEPTH, 3, :].set(key_mask)                  # first SEQ_PAD used

    # base[0] = cls_token + pos[0]; base[1:SEQ] = patch_bias + pos[1:]; pad = 0.
    base = jnp.zeros((SEQ_PAD, DIM), jnp.float32)
    base = base.at[:SEQ].set(p["pos_embed"][0])
    base = base.at[0].add(p["cls_token"][0, 0])
    base = base.at[1:SEQ].add(p["patch_b"])

    head_w = jnp.zeros((DIM, HEAD_PAD), jnp.float32).at[:, :NUM_CLASSES].set(
        p["head_w"])

    return {
        "pw": p["patch_w"].astype(jnp.bfloat16),
        "base": base,
        "wqkv": wqkv.astype(jnp.bfloat16),
        "w1": jnp.stack([lp["w1"] for lp in layers]).astype(jnp.bfloat16),
        "w2": jnp.stack([lp["w2"] for lp in layers]).astype(jnp.bfloat16),
        "hw": head_w.astype(jnp.bfloat16),
        "vecs": vecs,
    }


# ----------------------------- forward wrapper ------------------------------

_WEIGHT_ORDER = ["pw", "base", "wqkv", "w1", "w2", "hw", "vecs"]


def vit_forward(x, kp):
    B = x.shape[0]

    # Patchify: matches x.view(B,1,28,28).unfold(2,4,4).unfold(3,4,4).view(B,49,16)
    x = x.reshape(B, 1, IMG // PATCH, PATCH, IMG // PATCH, PATCH)
    patches = x.transpose(0, 1, 2, 4, 3, 5).reshape(B, NUM_PATCHES, PATCH_DIM)
    # Prepend one zero row (cls slot), append pad rows, then stack the batch
    # along the sublane axis so the whole model runs in a single grid step.
    padded = jnp.pad(patches, ((0, 0), (1, SEQ_PAD - SEQ), (0, 0)))
    padded = padded.reshape(B * SEQ_PAD, PATCH_DIM).astype(jnp.bfloat16)

    weights = [kp[name] for name in _WEIGHT_ORDER]

    def const_spec(a):
        nd = a.ndim
        return pl.BlockSpec(a.shape, lambda i, _nd=nd: (0,) * _nd)

    in_specs = [pl.BlockSpec((B * SEQ_PAD, PATCH_DIM), lambda i: (0, 0))]
    in_specs += [const_spec(a) for a in weights]

    out = pl.pallas_call(
        _vit_kernel,
        out_shape=jax.ShapeDtypeStruct((B * 8, HEAD_PAD), jnp.float32),
        grid=(1,),
        in_specs=in_specs,
        out_specs=pl.BlockSpec((B * 8, HEAD_PAD), lambda i: (0, 0)),
        compiler_params=pltpu.CompilerParams(
            dimension_semantics=("arbitrary",)),
    )(padded, *weights)

    # Row 0 of each 8-row group is the cls-token logits row.
    return out.reshape(B, 8, HEAD_PAD)[:, 0, :NUM_CLASSES]     # (B, 10)


# --------------------------------- main --------------------------------------

if __name__ == "__main__":
    key = jax.random.PRNGKey(0)
    k_param, k_x = jax.random.split(key)
    params = init_params(k_param)
    packed = pack_params(params)
    x = jax.random.normal(k_x, (2, 1, IMG, IMG), dtype=jnp.float32)

    fwd = jax.jit(vit_forward)
    out = jax.block_until_ready(fwd(x, packed))
    assert out.shape == (2, NUM_CLASSES)
    assert bool(jnp.all(jnp.isfinite(out)))
    print("KERNEL_OK")
</pallas_src>

<mosaic_0001>
module attributes {stable_mosaic.version = 11 : i64} {
  func.func @_vit_kernel(%arg0: i32, %arg1: memref<128x16xbf16, #tpu.memory_space<vmem>>, %arg2: memref<16x64xbf16, #tpu.memory_space<vmem>>, %arg3: memref<64x64xf32, #tpu.memory_space<vmem>>, %arg4: memref<2x64x384xbf16, #tpu.memory_space<vmem>>, %arg5: memref<2x64x128xbf16, #tpu.memory_space<vmem>>, %arg6: memref<2x128x64xbf16, #tpu.memory_space<vmem>>, %arg7: memref<64x128xbf16, #tpu.memory_space<vmem>>, %arg8: memref<3x8x384xf32, #tpu.memory_space<vmem>>, %arg9: memref<16x128xf32, #tpu.memory_space<vmem>>) attributes {dimension_semantics = [#tpu.dimension_semantics<arbitrary>], iteration_bounds = array<i64: 1>, scalar_prefetch = 0 : i64, scratch_operands = 0 : i64, tpu.core_type = #tpu.core_type<tc>, window_params = [{pipeline_mode = #tpu.pipeline_mode<synchronous>, transform_indices = @transform_0, window_bounds = array<i64: 128, 16>}, {pipeline_mode = #tpu.pipeline_mode<synchronous>, transform_indices = @transform_1, window_bounds = array<i64: 16, 64>}, {pipeline_mode = #tpu.pipeline_mode<synchronous>, transform_indices = @transform_2, window_bounds = array<i64: 64, 64>}, {pipeline_mode = #tpu.pipeline_mode<synchronous>, transform_indices = @transform_3, window_bounds = array<i64: 2, 64, 384>}, {pipeline_mode = #tpu.pipeline_mode<synchronous>, transform_indices = @transform_4, window_bounds = array<i64: 2, 64, 128>}, {pipeline_mode = #tpu.pipeline_mode<synchronous>, transform_indices = @transform_5, window_bounds = array<i64: 2, 128, 64>}, {pipeline_mode = #tpu.pipeline_mode<synchronous>, transform_indices = @transform_6, window_bounds = array<i64: 64, 128>}, {pipeline_mode = #tpu.pipeline_mode<synchronous>, transform_indices = @transform_7, window_bounds = array<i64: 3, 8, 384>}, {pipeline_mode = #tpu.pipeline_mode<synchronous>, transform_indices = @transform_8, window_bounds = array<i64: 16, 128>}]} {
    %c2 = arith.constant 2 : index
    %c3 = arith.constant 3 : index
    %c0 = arith.constant 0 : index
    %0 = vector.load %arg8[%c2, %c3, %c0] : memref<3x8x384xf32, #tpu.memory_space<vmem>>, vector<1x1x64xf32>
    %1 = vector.shape_cast %0 : vector<1x1x64xf32> to vector<1x64xf32>
    %c0_0 = arith.constant 0 : index
    %c0_1 = arith.constant 0 : index
    %2 = vector.load %arg3[%c0_0, %c0_1] : memref<64x64xf32, #tpu.memory_space<vmem>>, vector<64x64xf32>
    %c0_2 = arith.constant 0 : index
    %c0_3 = arith.constant 0 : index
    %3 = vector.load %arg1[%c0_2, %c0_3] : memref<128x16xbf16, #tpu.memory_space<vmem>>, vector<128x16xbf16>
    %c0_4 = arith.constant 0 : index
    %c0_5 = arith.constant 0 : index
    %4 = vector.load %arg2[%c0_4, %c0_5] : memref<16x64xbf16, #tpu.memory_space<vmem>>, vector<16x64xbf16>
    %cst = arith.constant dense<0.000000e+00> : vector<128x64xf32>
    %5 = tpu.matmul %3, %4, %cst {dimension_numbers = #tpu.dot_dimension_numbers<[1], [0], [0], [1], [0, 0, 1, 1], [], []>} : vector<128x16xbf16>, vector<16x64xbf16>, vector<128x64xf32> -> vector<128x64xf32>
    %6 = tpu.concatenate %2, %2 in 0 : vector<64x64xf32>, vector<64x64xf32> -> vector<128x64xf32>
    %7 = arith.addf %5, %6 : vector<128x64xf32>
    %c0_6 = arith.constant 0 : index
    %c0_7 = arith.constant 0 : index
    %c0_8 = arith.constant 0 : index
    %8 = vector.load %arg8[%c0_6, %c0_7, %c0_8] : memref<3x8x384xf32, #tpu.memory_space<vmem>>, vector<1x1x384xf32>
    %9 = vector.shape_cast %8 : vector<1x1x384xf32> to vector<1x384xf32>
    %c0_9 = arith.constant 0 : index
    %c1 = arith.constant 1 : index
    %c0_10 = arith.constant 0 : index
    %10 = vector.load %arg8[%c0_9, %c1, %c0_10] : memref<3x8x384xf32, #tpu.memory_space<vmem>>, vector<1x1x64xf32>
    %11 = vector.shape_cast %10 : vector<1x1x64xf32> to vector<1x64xf32>
    %c0_11 = arith.constant 0 : index
    %c2_12 = arith.constant 2 : index
    %c0_13 = arith.constant 0 : index
    %12 = vector.load %arg8[%c0_11, %c2_12, %c0_13] : memref<3x8x384xf32, #tpu.memory_space<vmem>>, vector<1x1x64xf32>
    %13 = vector.shape_cast %12 : vector<1x1x64xf32> to vector<1x64xf32>
    %c0_14 = arith.constant 0 : index
    %c3_15 = arith.constant 3 : index
    %c0_16 = arith.constant 0 : index
    %14 = vector.load %arg8[%c0_14, %c3_15, %c0_16] : memref<3x8x384xf32, #tpu.memory_space<vmem>>, vector<1x1x64xf32>
    %15 = vector.shape_cast %14 : vector<1x1x64xf32> to vector<1x64xf32>
    %c0_17 = arith.constant 0 : index
    %c4 = arith.constant 4 : index
    %c0_18 = arith.constant 0 : index
    %16 = vector.load %arg8[%c0_17, %c4, %c0_18] : memref<3x8x384xf32, #tpu.memory_space<vmem>>, vector<1x1x128xf32>
    %17 = vector.shape_cast %16 : vector<1x1x128xf32> to vector<1x128xf32>
    %c0_19 = arith.constant 0 : index
    %c5 = arith.constant 5 : index
    %c0_20 = arith.constant 0 : index
    %18 = vector.load %arg8[%c0_19, %c5, %c0_20] : memref<3x8x384xf32, #tpu.memory_space<vmem>>, vector<1x1x64xf32>
    %19 = vector.shape_cast %18 : vector<1x1x64xf32> to vector<1x64xf32>
    %c0_21 = arith.constant 0 : index
    %c6 = arith.constant 6 : index
    %c0_22 = arith.constant 0 : index
    %20 = vector.load %arg8[%c0_21, %c6, %c0_22] : memref<3x8x384xf32, #tpu.memory_space<vmem>>, vector<1x1x64xf32>
    %21 = vector.shape_cast %20 : vector<1x1x64xf32> to vector<1x64xf32>
    %c0_23 = arith.constant 0 : index
    %c7 = arith.constant 7 : index
    %c0_24 = arith.constant 0 : index
    %22 = vector.load %arg8[%c0_23, %c7, %c0_24] : memref<3x8x384xf32, #tpu.memory_space<vmem>>, vector<1x1x64xf32>
    %23 = vector.shape_cast %22 : vector<1x1x64xf32> to vector<1x64xf32>
    %c0_25 = arith.constant 0 : index
    %c0_26 = arith.constant 0 : index
    %c0_27 = arith.constant 0 : index
    %24 = vector.load %arg4[%c0_25, %c0_26, %c0_27] : memref<2x64x384xbf16, #tpu.memory_space<vmem>>, vector<1x64x384xbf16>
    %25 = vector.shape_cast %24 : vector<1x64x384xbf16> to vector<64x384xbf16>
    %26 = arith.truncf %7 : vector<128x64xf32> to vector<128x64xbf16>
    %cst_28 = arith.constant dense<0.000000e+00> : vector<128x384xf32>
    %27 = tpu.matmul %26, %25, %cst_28 {dimension_numbers = #tpu.dot_dimension_numbers<[1], [0], [0], [1], [0, 0, 1, 1], [], []>} : vector<128x64xbf16>, vector<64x384xbf16>, vector<128x384xf32> -> vector<128x384xf32>
    %28 = vector.broadcast %9 : vector<1x384xf32> to vector<128x384xf32>
    %29 = arith.addf %27, %28 : vector<128x384xf32>
    %30 = arith.truncf %29 : vector<128x384xf32> to vector<128x384xbf16>
    %31 = vector.extract_strided_slice %30 {offsets = [0, 0], sizes = [64, 384], strides = [1, 1]} : vector<128x384xbf16> to vector<64x384xbf16>
    %32 = vector.extract_strided_slice %31 {offsets = [0, 0], sizes = [64, 16], strides = [1, 1]} : vector<64x384xbf16> to vector<64x16xbf16>
    %33 = vector.extract_strided_slice %31 {offsets = [0, 64], sizes = [64, 16], strides = [1, 1]} : vector<64x384xbf16> to vector<64x16xbf16>
    %34 = vector.extract_strided_slice %31 {offsets = [0, 128], sizes = [64, 64], strides = [1, 1]} : vector<64x384xbf16> to vector<64x64xbf16>
    %cst_29 = arith.constant dense<0.000000e+00> : vector<64x64xf32>
    %35 = tpu.matmul %32, %33, %cst_29 {dimension_numbers = #tpu.dot_dimension_numbers<[1], [1], [0], [0], [0, 0, 1, 0], [], []>} : vector<64x16xbf16>, vector<64x16xbf16>, vector<64x64xf32> -> vector<64x64xf32>
    %36 = vector.broadcast %1 : vector<1x64xf32> to vector<64x64xf32>
    %37 = arith.addf %35, %36 : vector<64x64xf32>
    %cst_30 = arith.constant dense<0xFF800000> : vector<64xf32>
    %38 = vector.multi_reduction <maximumf>, %37, %cst_30 [1] : vector<64x64xf32> to vector<64xf32>
    %39 = vector.shape_cast %38 : vector<64xf32> to vector<64x1xf32>
    %40 = vector.broadcast %39 : vector<64x1xf32> to vector<64x64xf32>
    %41 = arith.subf %37, %40 : vector<64x64xf32>
    %42 = math.exp %41 : vector<64x64xf32>
    %cst_31 = arith.constant dense<0.000000e+00> : vector<64xf32>
    %43 = vector.multi_reduction <add>, %42, %cst_31 [1] : vector<64x64xf32> to vector<64xf32>
    %44 = vector.shape_cast %43 : vector<64xf32> to vector<64x1xf32>
    %45 = tpu.reciprocal %44 {approx = true} : vector<64x1xf32> -> vector<64x1xf32>
    %46 = vector.broadcast %45 : vector<64x1xf32> to vector<64x64xf32>
    %47 = arith.mulf %42, %46 : vector<64x64xf32>
    %48 = arith.truncf %47 : vector<64x64xf32> to vector<64x64xbf16>
    %cst_32 = arith.constant dense<0.000000e+00> : vector<64x64xf32>
    %49 = tpu.matmul %48, %34, %cst_32 {dimension_numbers = #tpu.dot_dimension_numbers<[1], [0], [0], [1], [0, 0, 1, 1], [], []>} : vector<64x64xbf16>, vector<64x64xbf16>, vector<64x64xf32> -> vector<64x64xf32>
    %50 = vector.extract_strided_slice %31 {offsets = [0, 16], sizes = [64, 16], strides = [1, 1]} : vector<64x384xbf16> to vector<64x16xbf16>
    %51 = vector.extract_strided_slice %31 {offsets = [0, 80], sizes = [64, 16], strides = [1, 1]} : vector<64x384xbf16> to vector<64x16xbf16>
    %52 = vector.extract_strided_slice %31 {offsets = [0, 192], sizes = [64, 64], strides = [1, 1]} : vector<64x384xbf16> to vector<64x64xbf16>
    %cst_33 = arith.constant dense<0.000000e+00> : vector<64x64xf32>
    %53 = tpu.matmul %50, %51, %cst_33 {dimension_numbers = #tpu.dot_dimension_numbers<[1], [1], [0], [0], [0, 0, 1, 0], [], []>} : vector<64x16xbf16>, vector<64x16xbf16>, vector<64x64xf32> -> vector<64x64xf32>
    %54 = vector.broadcast %1 : vector<1x64xf32> to vector<64x64xf32>
    %55 = arith.addf %53, %54 : vector<64x64xf32>
    %cst_34 = arith.constant dense<0xFF800000> : vector<64xf32>
    %56 = vector.multi_reduction <maximumf>, %55, %cst_34 [1] : vector<64x64xf32> to vector<64xf32>
    %57 = vector.shape_cast %56 : vector<64xf32> to vector<64x1xf32>
    %58 = vector.broadcast %57 : vector<64x1xf32> to vector<64x64xf32>
    %59 = arith.subf %55, %58 : vector<64x64xf32>
    %60 = math.exp %59 : vector<64x64xf32>
    %cst_35 = arith.constant dense<0.000000e+00> : vector<64xf32>
    %61 = vector.multi_reduction <add>, %60, %cst_35 [1] : vector<64x64xf32> to vector<64xf32>
    %62 = vector.shape_cast %61 : vector<64xf32> to vector<64x1xf32>
    %63 = tpu.reciprocal %62 {approx = true} : vector<64x1xf32> -> vector<64x1xf32>
    %64 = vector.broadcast %63 : vector<64x1xf32> to vector<64x64xf32>
    %65 = arith.mulf %60, %64 : vector<64x64xf32>
    %66 = arith.truncf %65 : vector<64x64xf32> to vector<64x64xbf16>
    %cst_36 = arith.constant dense<0.000000e+00> : vector<64x64xf32>
    %67 = tpu.matmul %66, %52, %cst_36 {dimension_numbers = #tpu.dot_dimension_numbers<[1], [0], [0], [1], [0, 0, 1, 1], [], []>} : vector<64x64xbf16>, vector<64x64xbf16>, vector<64x64xf32> -> vector<64x64xf32>
    %68 = arith.addf %49, %67 : vector<64x64xf32>
    %69 = vector.extract_strided_slice %31 {offsets = [0, 32], sizes = [64, 16], strides = [1, 1]} : vector<64x384xbf16> to vector<64x16xbf16>
    %70 = vector.extract_strided_slice %31 {offsets = [0, 96], sizes = [64, 16], strides = [1, 1]} : vector<64x384xbf16> to vector<64x16xbf16>
    %71 = vector.extract_strided_slice %31 {offsets = [0, 256], sizes = [64, 64], strides = [1, 1]} : vector<64x384xbf16> to vector<64x64xbf16>
    %cst_37 = arith.constant dense<0.000000e+00> : vector<64x64xf32>
    %72 = tpu.matmul %69, %70, %cst_37 {dimension_numbers = #tpu.dot_dimension_numbers<[1], [1], [0], [0], [0, 0, 1, 0], [], []>} : vector<64x16xbf16>, vector<64x16xbf16>, vector<64x64xf32> -> vector<64x64xf32>
    %73 = vector.broadcast %1 : vector<1x64xf32> to vector<64x64xf32>
    %74 = arith.addf %72, %73 : vector<64x64xf32>
    %cst_38 = arith.constant dense<0xFF800000> : vector<64xf32>
    %75 = vector.multi_reduction <maximumf>, %74, %cst_38 [1] : vector<64x64xf32> to vector<64xf32>
    %76 = vector.shape_cast %75 : vector<64xf32> to vector<64x1xf32>
    %77 = vector.broadcast %76 : vector<64x1xf32> to vector<64x64xf32>
    %78 = arith.subf %74, %77 : vector<64x64xf32>
    %79 = math.exp %78 : vector<64x64xf32>
    %cst_39 = arith.constant dense<0.000000e+00> : vector<64xf32>
    %80 = vector.multi_reduction <add>, %79, %cst_39 [1] : vector<64x64xf32> to vector<64xf32>
    %81 = vector.shape_cast %80 : vector<64xf32> to vector<64x1xf32>
    %82 = tpu.reciprocal %81 {approx = true} : vector<64x1xf32> -> vector<64x1xf32>
    %83 = vector.broadcast %82 : vector<64x1xf32> to vector<64x64xf32>
    %84 = arith.mulf %79, %83 : vector<64x64xf32>
    %85 = arith.truncf %84 : vector<64x64xf32> to vector<64x64xbf16>
    %cst_40 = arith.constant dense<0.000000e+00> : vector<64x64xf32>
    %86 = tpu.matmul %85, %71, %cst_40 {dimension_numbers = #tpu.dot_dimension_numbers<[1], [0], [0], [1], [0, 0, 1, 1], [], []>} : vector<64x64xbf16>, vector<64x64xbf16>, vector<64x64xf32> -> vector<64x64xf32>
    %87 = arith.addf %68, %86 : vector<64x64xf32>
    %88 = vector.extract_strided_slice %31 {offsets = [0, 48], sizes = [64, 16], strides = [1, 1]} : vector<64x384xbf16> to vector<64x16xbf16>
    %89 = vector.extract_strided_slice %31 {offsets = [0, 112], sizes = [64, 16], strides = [1, 1]} : vector<64x384xbf16> to vector<64x16xbf16>
    %90 = vector.extract_strided_slice %31 {offsets = [0, 320], sizes = [64, 64], strides = [1, 1]} : vector<64x384xbf16> to vector<64x64xbf16>
    %cst_41 = arith.constant dense<0.000000e+00> : vector<64x64xf32>
    %91 = tpu.matmul %88, %89, %cst_41 {dimension_numbers = #tpu.dot_dimension_numbers<[1], [1], [0], [0], [0, 0, 1, 0], [], []>} : vector<64x16xbf16>, vector<64x16xbf16>, vector<64x64xf32> -> vector<64x64xf32>
    %92 = vector.broadcast %1 : vector<1x64xf32> to vector<64x64xf32>
    %93 = arith.addf %91, %92 : vector<64x64xf32>
    %cst_42 = arith.constant dense<0xFF800000> : vector<64xf32>
    %94 = vector.multi_reduction <maximumf>, %93, %cst_42 [1] : vector<64x64xf32> to vector<64xf32>
    %95 = vector.shape_cast %94 : vector<64xf32> to vector<64x1xf32>
    %96 = vector.broadcast %95 : vector<64x1xf32> to vector<64x64xf32>
    %97 = arith.subf %93, %96 : vector<64x64xf32>
    %98 = math.exp %97 : vector<64x64xf32>
    %cst_43 = arith.constant dense<0.000000e+00> : vector<64xf32>
    %99 = vector.multi_reduction <add>, %98, %cst_43 [1] : vector<64x64xf32> to vector<64xf32>
    %100 = vector.shape_cast %99 : vector<64xf32> to vector<64x1xf32>
    %101 = tpu.reciprocal %100 {approx = true} : vector<64x1xf32> -> vector<64x1xf32>
    %102 = vector.broadcast %101 : vector<64x1xf32> to vector<64x64xf32>
    %103 = arith.mulf %98, %102 : vector<64x64xf32>
    %104 = arith.truncf %103 : vector<64x64xf32> to vector<64x64xbf16>
    %cst_44 = arith.constant dense<0.000000e+00> : vector<64x64xf32>
    %105 = tpu.matmul %104, %90, %cst_44 {dimension_numbers = #tpu.dot_dimension_numbers<[1], [0], [0], [1], [0, 0, 1, 1], [], []>} : vector<64x64xbf16>, vector<64x64xbf16>, vector<64x64xf32> -> vector<64x64xf32>
    %106 = arith.addf %87, %105 : vector<64x64xf32>
    %107 = vector.extract_strided_slice %30 {offsets = [64, 0], sizes = [64, 384], strides = [1, 1]} : vector<128x384xbf16> to vector<64x384xbf16>
    %108 = vector.extract_strided_slice %107 {offsets = [0, 0], sizes = [64, 16], strides = [1, 1]} : vector<64x384xbf16> to vector<64x16xbf16>
    %109 = vector.extract_strided_slice %107 {offsets = [0, 64], sizes = [64, 16], strides = [1, 1]} : vector<64x384xbf16> to vector<64x16xbf16>
    %110 = vector.extract_strided_slice %107 {offsets = [0, 128], sizes = [64, 64], strides = [1, 1]} : vector<64x384xbf16> to vector<64x64xbf16>
    %cst_45 = arith.constant dense<0.000000e+00> : vector<64x64xf32>
    %111 = tpu.matmul %108, %109, %cst_45 {dimension_numbers = #tpu.dot_dimension_numbers<[1], [1], [0], [0], [0, 0, 1, 0], [], []>} : vector<64x16xbf16>, vector<64x16xbf16>, vector<64x64xf32> -> vector<64x64xf32>
    %112 = vector.broadcast %1 : vector<1x64xf32> to vector<64x64xf32>
    %113 = arith.addf %111, %112 : vector<64x64xf32>
    %cst_46 = arith.constant dense<0xFF800000> : vector<64xf32>
    %114 = vector.multi_reduction <maximumf>, %113, %cst_46 [1] : vector<64x64xf32> to vector<64xf32>
    %115 = vector.shape_cast %114 : vector<64xf32> to vector<64x1xf32>
    %116 = vector.broadcast %115 : vector<64x1xf32> to vector<64x64xf32>
    %117 = arith.subf %113, %116 : vector<64x64xf32>
    %118 = math.exp %117 : vector<64x64xf32>
    %cst_47 = arith.constant dense<0.000000e+00> : vector<64xf32>
    %119 = vector.multi_reduction <add>, %118, %cst_47 [1] : vector<64x64xf32> to vector<64xf32>
    %120 = vector.shape_cast %119 : vector<64xf32> to vector<64x1xf32>
    %121 = tpu.reciprocal %120 {approx = true} : vector<64x1xf32> -> vector<64x1xf32>
    %122 = vector.broadcast %121 : vector<64x1xf32> to vector<64x64xf32>
    %123 = arith.mulf %118, %122 : vector<64x64xf32>
    %124 = arith.truncf %123 : vector<64x64xf32> to vector<64x64xbf16>
    %cst_48 = arith.constant dense<0.000000e+00> : vector<64x64xf32>
    %125 = tpu.matmul %124, %110, %cst_48 {dimension_numbers = #tpu.dot_dimension_numbers<[1], [0], [0], [1], [0, 0, 1, 1], [], []>} : vector<64x64xbf16>, vector<64x64xbf16>, vector<64x64xf32> -> vector<64x64xf32>
    %126 = vector.extract_strided_slice %107 {offsets = [0, 16], sizes = [64, 16], strides = [1, 1]} : vector<64x384xbf16> to vector<64x16xbf16>
    %127 = vector.extract_strided_slice %107 {offsets = [0, 80], sizes = [64, 16], strides = [1, 1]} : vector<64x384xbf16> to vector<64x16xbf16>
    %128 = vector.extract_strided_slice %107 {offsets = [0, 192], sizes = [64, 64], strides = [1, 1]} : vector<64x384xbf16> to vector<64x64xbf16>
    %cst_49 = arith.constant dense<0.000000e+00> : vector<64x64xf32>
    %129 = tpu.matmul %126, %127, %cst_49 {dimension_numbers = #tpu.dot_dimension_numbers<[1], [1], [0], [0], [0, 0, 1, 0], [], []>} : vector<64x16xbf16>, vector<64x16xbf16>, vector<64x64xf32> -> vector<64x64xf32>
    %130 = vector.broadcast %1 : vector<1x64xf32> to vector<64x64xf32>
    %131 = arith.addf %129, %130 : vector<64x64xf32>
    %cst_50 = arith.constant dense<0xFF800000> : vector<64xf32>
    %132 = vector.multi_reduction <maximumf>, %131, %cst_50 [1] : vector<64x64xf32> to vector<64xf32>
    %133 = vector.shape_cast %132 : vector<64xf32> to vector<64x1xf32>
    %134 = vector.broadcast %133 : vector<64x1xf32> to vector<64x64xf32>
    %135 = arith.subf %131, %134 : vector<64x64xf32>
    %136 = math.exp %135 : vector<64x64xf32>
    %cst_51 = arith.constant dense<0.000000e+00> : vector<64xf32>
    %137 = vector.multi_reduction <add>, %136, %cst_51 [1] : vector<64x64xf32> to vector<64xf32>
    %138 = vector.shape_cast %137 : vector<64xf32> to vector<64x1xf32>
    %139 = tpu.reciprocal %138 {approx = true} : vector<64x1xf32> -> vector<64x1xf32>
    %140 = vector.broadcast %139 : vector<64x1xf32> to vector<64x64xf32>
    %141 = arith.mulf %136, %140 : vector<64x64xf32>
    %142 = arith.truncf %141 : vector<64x64xf32> to vector<64x64xbf16>
    %cst_52 = arith.constant dense<0.000000e+00> : vector<64x64xf32>
    %143 = tpu.matmul %142, %128, %cst_52 {dimension_numbers = #tpu.dot_dimension_numbers<[1], [0], [0], [1], [0, 0, 1, 1], [], []>} : vector<64x64xbf16>, vector<64x64xbf16>, vector<64x64xf32> -> vector<64x64xf32>
    %144 = arith.addf %125, %143 : vector<64x64xf32>
    %145 = vector.extract_strided_slice %107 {offsets = [0, 32], sizes = [64, 16], strides = [1, 1]} : vector<64x384xbf16> to vector<64x16xbf16>
    %146 = vector.extract_strided_slice %107 {offsets = [0, 96], sizes = [64, 16], strides = [1, 1]} : vector<64x384xbf16> to vector<64x16xbf16>
    %147 = vector.extract_strided_slice %107 {offsets = [0, 256], sizes = [64, 64], strides = [1, 1]} : vector<64x384xbf16> to vector<64x64xbf16>
    %cst_53 = arith.constant dense<0.000000e+00> : vector<64x64xf32>
    %148 = tpu.matmul %145, %146, %cst_53 {dimension_numbers = #tpu.dot_dimension_numbers<[1], [1], [0], [0], [0, 0, 1, 0], [], []>} : vector<64x16xbf16>, vector<64x16xbf16>, vector<64x64xf32> -> vector<64x64xf32>
    %149 = vector.broadcast %1 : vector<1x64xf32> to vector<64x64xf32>
    %150 = arith.addf %148, %149 : vector<64x64xf32>
    %cst_54 = arith.constant dense<0xFF800000> : vector<64xf32>
    %151 = vector.multi_reduction <maximumf>, %150, %cst_54 [1] : vector<64x64xf32> to vector<64xf32>
    %152 = vector.shape_cast %151 : vector<64xf32> to vector<64x1xf32>
    %153 = vector.broadcast %152 : vector<64x1xf32> to vector<64x64xf32>
    %154 = arith.subf %150, %153 : vector<64x64xf32>
    %155 = math.exp %154 : vector<64x64xf32>
    %cst_55 = arith.constant dense<0.000000e+00> : vector<64xf32>
    %156 = vector.multi_reduction <add>, %155, %cst_55 [1] : vector<64x64xf32> to vector<64xf32>
    %157 = vector.shape_cast %156 : vector<64xf32> to vector<64x1xf32>
    %158 = tpu.reciprocal %157 {approx = true} : vector<64x1xf32> -> vector<64x1xf32>
    %159 = vector.broadcast %158 : vector<64x1xf32> to vector<64x64xf32>
    %160 = arith.mulf %155, %159 : vector<64x64xf32>
    %161 = arith.truncf %160 : vector<64x64xf32> to vector<64x64xbf16>
    %cst_56 = arith.constant dense<0.000000e+00> : vector<64x64xf32>
    %162 = tpu.matmul %161, %147, %cst_56 {dimension_numbers = #tpu.dot_dimension_numbers<[1], [0], [0], [1], [0, 0, 1, 1], [], []>} : vector<64x64xbf16>, vector<64x64xbf16>, vector<64x64xf32> -> vector<64x64xf32>
    %163 = arith.addf %144, %162 : vector<64x64xf32>
    %164 = vector.extract_strided_slice %107 {offsets = [0, 48], sizes = [64, 16], strides = [1, 1]} : vector<64x384xbf16> to vector<64x16xbf16>
    %165 = vector.extract_strided_slice %107 {offsets = [0, 112], sizes = [64, 16], strides = [1, 1]} : vector<64x384xbf16> to vector<64x16xbf16>
    %166 = vector.extract_strided_slice %107 {offsets = [0, 320], sizes = [64, 64], strides = [1, 1]} : vector<64x384xbf16> to vector<64x64xbf16>
    %cst_57 = arith.constant dense<0.000000e+00> : vector<64x64xf32>
    %167 = tpu.matmul %164, %165, %cst_57 {dimension_numbers = #tpu.dot_dimension_numbers<[1], [1], [0], [0], [0, 0, 1, 0], [], []>} : vector<64x16xbf16>, vector<64x16xbf16>, vector<64x64xf32> -> vector<64x64xf32>
    %168 = vector.broadcast %1 : vector<1x64xf32> to vector<64x64xf32>
    %169 = arith.addf %167, %168 : vector<64x64xf32>
    %cst_58 = arith.constant dense<0xFF800000> : vector<64xf32>
    %170 = vector.multi_reduction <maximumf>, %169, %cst_58 [1] : vector<64x64xf32> to vector<64xf32>
    %171 = vector.shape_cast %170 : vector<64xf32> to vector<64x1xf32>
    %172 = vector.broadcast %171 : vector<64x1xf32> to vector<64x64xf32>
    %173 = arith.subf %169, %172 : vector<64x64xf32>
    %174 = math.exp %173 : vector<64x64xf32>
    %cst_59 = arith.constant dense<0.000000e+00> : vector<64xf32>
    %175 = vector.multi_reduction <add>, %174, %cst_59 [1] : vector<64x64xf32> to vector<64xf32>
    %176 = vector.shape_cast %175 : vector<64xf32> to vector<64x1xf32>
    %177 = tpu.reciprocal %176 {approx = true} : vector<64x1xf32> -> vector<64x1xf32>
    %178 = vector.broadcast %177 : vector<64x1xf32> to vector<64x64xf32>
    %179 = arith.mulf %174, %178 : vector<64x64xf32>
    %180 = arith.truncf %179 : vector<64x64xf32> to vector<64x64xbf16>
    %cst_60 = arith.constant dense<0.000000e+00> : vector<64x64xf32>
    %181 = tpu.matmul %180, %166, %cst_60 {dimension_numbers = #tpu.dot_dimension_numbers<[1], [0], [0], [1], [0, 0, 1, 1], [], []>} : vector<64x64xbf16>, vector<64x64xbf16>, vector<64x64xf32> -> vector<64x64xf32>
    %182 = arith.addf %163, %181 : vector<64x64xf32>
    %183 = tpu.concatenate %106, %182 in 0 : vector<64x64xf32>, vector<64x64xf32> -> vector<128x64xf32>
    %184 = vector.broadcast %11 : vector<1x64xf32> to vector<128x64xf32>
    %185 = arith.addf %183, %184 : vector<128x64xf32>
    %186 = arith.addf %7, %185 : vector<128x64xf32>
    %cst_61 = arith.constant dense<0.000000e+00> : vector<128xf32>
    %187 = vector.multi_reduction <add>, %186, %cst_61 [1] : vector<128x64xf32> to vector<128xf32>
    %188 = vector.shape_cast %187 : vector<128xf32> to vector<128x1xf32>
    %cst_62 = arith.constant 6.400000e+01 : f32
    %189 = vector.broadcast %cst_62 : f32 to vector<128x1xf32>
    %190 = arith.divf %188, %189 : vector<128x1xf32>
    %191 = vector.broadcast %190 : vector<128x1xf32> to vector<128x64xf32>
    %192 = arith.subf %186, %191 : vector<128x64xf32>
    %193 = arith.mulf %192, %192 : vector<128x64xf32>
    %cst_63 = arith.constant dense<0.000000e+00> : vector<128xf32>
    %194 = vector.multi_reduction <add>, %193, %cst_63 [1] : vector<128x64xf32> to vector<128xf32>
    %195 = vector.shape_cast %194 : vector<128xf32> to vector<128x1xf32>
    %cst_64 = arith.constant 6.400000e+01 : f32
    %196 = vector.broadcast %cst_64 : f32 to vector<128x1xf32>
    %197 = arith.divf %195, %196 : vector<128x1xf32>
    %cst_65 = arith.constant 9.99999974E-6 : f32
    %198 = vector.broadcast %cst_65 : f32 to vector<128x1xf32>
    %199 = arith.addf %197, %198 : vector<128x1xf32>
    %200 = math.rsqrt %199 : vector<128x1xf32>
    %201 = vector.broadcast %200 : vector<128x1xf32> to vector<128x64xf32>
    %202 = arith.mulf %192, %201 : vector<128x64xf32>
    %203 = vector.broadcast %13 : vector<1x64xf32> to vector<128x64xf32>
    %204 = arith.mulf %202, %203 : vector<128x64xf32>
    %205 = vector.broadcast %15 : vector<1x64xf32> to vector<128x64xf32>
    %206 = arith.addf %204, %205 : vector<128x64xf32>
    %c0_66 = arith.constant 0 : index
    %c0_67 = arith.constant 0 : index
    %c0_68 = arith.constant 0 : index
    %207 = vector.load %arg5[%c0_66, %c0_67, %c0_68] : memref<2x64x128xbf16, #tpu.memory_space<vmem>>, vector<1x64x128xbf16>
    %208 = vector.shape_cast %207 : vector<1x64x128xbf16> to vector<64x128xbf16>
    %209 = arith.truncf %206 : vector<128x64xf32> to vector<128x64xbf16>
    %cst_69 = arith.constant dense<0.000000e+00> : vector<128x128xf32>
    %210 = tpu.matmul %209, %208, %cst_69 {dimension_numbers = #tpu.dot_dimension_numbers<[1], [0], [0], [1], [0, 0, 1, 1], [], []>} : vector<128x64xbf16>, vector<64x128xbf16>, vector<128x128xf32> -> vector<128x128xf32>
    %211 = vector.broadcast %17 : vector<1x128xf32> to vector<128x128xf32>
    %212 = arith.addf %210, %211 : vector<128x128xf32>
    %cst_70 = arith.constant 0.000000e+00 : f32
    %213 = vector.broadcast %cst_70 : f32 to vector<128x128xf32>
    %214 = arith.maximumf %212, %213 : vector<128x128xf32>
    %c0_71 = arith.constant 0 : index
    %c0_72 = arith.constant 0 : index
    %c0_73 = arith.constant 0 : index
    %215 = vector.load %arg6[%c0_71, %c0_72, %c0_73] : memref<2x128x64xbf16, #tpu.memory_space<vmem>>, vector<1x128x64xbf16>
    %216 = vector.shape_cast %215 : vector<1x128x64xbf16> to vector<128x64xbf16>
    %217 = arith.truncf %214 : vector<128x128xf32> to vector<128x128xbf16>
    %cst_74 = arith.constant dense<0.000000e+00> : vector<128x64xf32>
    %218 = tpu.matmul %217, %216, %cst_74 {dimension_numbers = #tpu.dot_dimension_numbers<[1], [0], [0], [1], [0, 0, 1, 1], [], []>} : vector<128x128xbf16>, vector<128x64xbf16>, vector<128x64xf32> -> vector<128x64xf32>
    %219 = vector.broadcast %19 : vector<1x64xf32> to vector<128x64xf32>
    %220 = arith.addf %218, %219 : vector<128x64xf32>
    %221 = arith.addf %206, %220 : vector<128x64xf32>
    %cst_75 = arith.constant dense<0.000000e+00> : vector<128xf32>
    %222 = vector.multi_reduction <add>, %221, %cst_75 [1] : vector<128x64xf32> to vector<128xf32>
    %223 = vector.shape_cast %222 : vector<128xf32> to vector<128x1xf32>
    %cst_76 = arith.constant 6.400000e+01 : f32
    %224 = vector.broadcast %cst_76 : f32 to vector<128x1xf32>
    %225 = arith.divf %223, %224 : vector<128x1xf32>
    %226 = vector.broadcast %225 : vector<128x1xf32> to vector<128x64xf32>
    %227 = arith.subf %221, %226 : vector<128x64xf32>
    %228 = arith.mulf %227, %227 : vector<128x64xf32>
    %cst_77 = arith.constant dense<0.000000e+00> : vector<128xf32>
    %229 = vector.multi_reduction <add>, %228, %cst_77 [1] : vector<128x64xf32> to vector<128xf32>
    %230 = vector.shape_cast %229 : vector<128xf32> to vector<128x1xf32>
    %cst_78 = arith.constant 6.400000e+01 : f32
    %231 = vector.broadcast %cst_78 : f32 to vector<128x1xf32>
    %232 = arith.divf %230, %231 : vector<128x1xf32>
    %cst_79 = arith.constant 9.99999974E-6 : f32
    %233 = vector.broadcast %cst_79 : f32 to vector<128x1xf32>
    %234 = arith.addf %232, %233 : vector<128x1xf32>
    %235 = math.rsqrt %234 : vector<128x1xf32>
    %236 = vector.broadcast %235 : vector<128x1xf32> to vector<128x64xf32>
    %237 = arith.mulf %227, %236 : vector<128x64xf32>
    %238 = vector.broadcast %21 : vector<1x64xf32> to vector<128x64xf32>
    %239 = arith.mulf %237, %238 : vector<128x64xf32>
    %240 = vector.broadcast %23 : vector<1x64xf32> to vector<128x64xf32>
    %241 = arith.addf %239, %240 : vector<128x64xf32>
    %c1_80 = arith.constant 1 : index
    %c0_81 = arith.constant 0 : index
    %c0_82 = arith.constant 0 : index
    %242 = vector.load %arg8[%c1_80, %c0_81, %c0_82] : memref<3x8x384xf32, #tpu.memory_space<vmem>>, vector<1x1x384xf32>
    %243 = vector.shape_cast %242 : vector<1x1x384xf32> to vector<1x384xf32>
    %c1_83 = arith.constant 1 : index
    %c1_84 = arith.constant 1 : index
    %c0_85 = arith.constant 0 : index
    %244 = vector.load %arg8[%c1_83, %c1_84, %c0_85] : memref<3x8x384xf32, #tpu.memory_space<vmem>>, vector<1x1x64xf32>
    %245 = vector.shape_cast %244 : vector<1x1x64xf32> to vector<1x64xf32>
    %c1_86 = arith.constant 1 : index
    %c2_87 = arith.constant 2 : index
    %c0_88 = arith.constant 0 : index
    %246 = vector.load %arg8[%c1_86, %c2_87, %c0_88] : memref<3x8x384xf32, #tpu.memory_space<vmem>>, vector<1x1x64xf32>
    %247 = vector.shape_cast %246 : vector<1x1x64xf32> to vector<1x64xf32>
    %c1_89 = arith.constant 1 : index
    %c3_90 = arith.constant 3 : index
    %c0_91 = arith.constant 0 : index
    %248 = vector.load %arg8[%c1_89, %c3_90, %c0_91] : memref<3x8x384xf32, #tpu.memory_space<vmem>>, vector<1x1x64xf32>
    %249 = vector.shape_cast %248 : vector<1x1x64xf32> to vector<1x64xf32>
    %c1_92 = arith.constant 1 : index
    %c4_93 = arith.constant 4 : index
    %c0_94 = arith.constant 0 : index
    %250 = vector.load %arg8[%c1_92, %c4_93, %c0_94] : memref<3x8x384xf32, #tpu.memory_space<vmem>>, vector<1x1x128xf32>
    %251 = vector.shape_cast %250 : vector<1x1x128xf32> to vector<1x128xf32>
    %c1_95 = arith.constant 1 : index
    %c5_96 = arith.constant 5 : index
    %c0_97 = arith.constant 0 : index
    %252 = vector.load %arg8[%c1_95, %c5_96, %c0_97] : memref<3x8x384xf32, #tpu.memory_space<vmem>>, vector<1x1x64xf32>
    %253 = vector.shape_cast %252 : vector<1x1x64xf32> to vector<1x64xf32>
    %c1_98 = arith.constant 1 : index
    %c6_99 = arith.constant 6 : index
    %c0_100 = arith.constant 0 : index
    %254 = vector.load %arg8[%c1_98, %c6_99, %c0_100] : memref<3x8x384xf32, #tpu.memory_space<vmem>>, vector<1x1x64xf32>
    %255 = vector.shape_cast %254 : vector<1x1x64xf32> to vector<1x64xf32>
    %c1_101 = arith.constant 1 : index
    %c7_102 = arith.constant 7 : index
    %c0_103 = arith.constant 0 : index
    %256 = vector.load %arg8[%c1_101, %c7_102, %c0_103] : memref<3x8x384xf32, #tpu.memory_space<vmem>>, vector<1x1x64xf32>
    %257 = vector.shape_cast %256 : vector<1x1x64xf32> to vector<1x64xf32>
    %c1_104 = arith.constant 1 : index
    %c0_105 = arith.constant 0 : index
    %c0_106 = arith.constant 0 : index
    %258 = vector.load %arg4[%c1_104, %c0_105, %c0_106] : memref<2x64x384xbf16, #tpu.memory_space<vmem>>, vector<1x64x384xbf16>
    %259 = vector.shape_cast %258 : vector<1x64x384xbf16> to vector<64x384xbf16>
    %260 = arith.truncf %241 : vector<128x64xf32> to vector<128x64xbf16>
    %cst_107 = arith.constant dense<0.000000e+00> : vector<128x384xf32>
    %261 = tpu.matmul %260, %259, %cst_107 {dimension_numbers = #tpu.dot_dimension_numbers<[1], [0], [0], [1], [0, 0, 1, 1], [], []>} : vector<128x64xbf16>, vector<64x384xbf16>, vector<128x384xf32> -> vector<128x384xf32>
    %262 = vector.broadcast %243 : vector<1x384xf32> to vector<128x384xf32>
    %263 = arith.addf %261, %262 : vector<128x384xf32>
    %264 = arith.truncf %263 : vector<128x384xf32> to vector<128x384xbf16>
    %265 = vector.extract_strided_slice %264 {offsets = [0, 0], sizes = [64, 384], strides = [1, 1]} : vector<128x384xbf16> to vector<64x384xbf16>
    %266 = vector.extract_strided_slice %265 {offsets = [0, 0], sizes = [64, 16], strides = [1, 1]} : vector<64x384xbf16> to vector<64x16xbf16>
    %267 = vector.extract_strided_slice %265 {offsets = [0, 64], sizes = [64, 16], strides = [1, 1]} : vector<64x384xbf16> to vector<64x16xbf16>
    %268 = vector.extract_strided_slice %265 {offsets = [0, 128], sizes = [64, 64], strides = [1, 1]} : vector<64x384xbf16> to vector<64x64xbf16>
    %cst_108 = arith.constant dense<0.000000e+00> : vector<64x64xf32>
    %269 = tpu.matmul %266, %267, %cst_108 {dimension_numbers = #tpu.dot_dimension_numbers<[1], [1], [0], [0], [0, 0, 1, 0], [], []>} : vector<64x16xbf16>, vector<64x16xbf16>, vector<64x64xf32> -> vector<64x64xf32>
    %270 = vector.broadcast %1 : vector<1x64xf32> to vector<64x64xf32>
    %271 = arith.addf %269, %270 : vector<64x64xf32>
    %cst_109 = arith.constant dense<0xFF800000> : vector<64xf32>
    %272 = vector.multi_reduction <maximumf>, %271, %cst_109 [1] : vector<64x64xf32> to vector<64xf32>
    %273 = vector.shape_cast %272 : vector<64xf32> to vector<64x1xf32>
    %274 = vector.broadcast %273 : vector<64x1xf32> to vector<64x64xf32>
    %275 = arith.subf %271, %274 : vector<64x64xf32>
    %276 = math.exp %275 : vector<64x64xf32>
    %cst_110 = arith.constant dense<0.000000e+00> : vector<64xf32>
    %277 = vector.multi_reduction <add>, %276, %cst_110 [1] : vector<64x64xf32> to vector<64xf32>
    %278 = vector.shape_cast %277 : vector<64xf32> to vector<64x1xf32>
    %279 = tpu.reciprocal %278 {approx = true} : vector<64x1xf32> -> vector<64x1xf32>
    %280 = vector.broadcast %279 : vector<64x1xf32> to vector<64x64xf32>
    %281 = arith.mulf %276, %280 : vector<64x64xf32>
    %282 = arith.truncf %281 : vector<64x64xf32> to vector<64x64xbf16>
    %cst_111 = arith.constant dense<0.000000e+00> : vector<64x64xf32>
    %283 = tpu.matmul %282, %268, %cst_111 {dimension_numbers = #tpu.dot_dimension_numbers<[1], [0], [0], [1], [0, 0, 1, 1], [], []>} : vector<64x64xbf16>, vector<64x64xbf16>, vector<64x64xf32> -> vector<64x64xf32>
    %284 = vector.extract_strided_slice %265 {offsets = [0, 16], sizes = [64, 16], strides = [1, 1]} : vector<64x384xbf16> to vector<64x16xbf16>
    %285 = vector.extract_strided_slice %265 {offsets = [0, 80], sizes = [64, 16], strides = [1, 1]} : vector<64x384xbf16> to vector<64x16xbf16>
    %286 = vector.extract_strided_slice %265 {offsets = [0, 192], sizes = [64, 64], strides = [1, 1]} : vector<64x384xbf16> to vector<64x64xbf16>
    %cst_112 = arith.constant dense<0.000000e+00> : vector<64x64xf32>
    %287 = tpu.matmul %284, %285, %cst_112 {dimension_numbers = #tpu.dot_dimension_numbers<[1], [1], [0], [0], [0, 0, 1, 0], [], []>} : vector<64x16xbf16>, vector<64x16xbf16>, vector<64x64xf32> -> vector<64x64xf32>
    %288 = vector.broadcast %1 : vector<1x64xf32> to vector<64x64xf32>
    %289 = arith.addf %287, %288 : vector<64x64xf32>
    %cst_113 = arith.constant dense<0xFF800000> : vector<64xf32>
    %290 = vector.multi_reduction <maximumf>, %289, %cst_113 [1] : vector<64x64xf32> to vector<64xf32>
    %291 = vector.shape_cast %290 : vector<64xf32> to vector<64x1xf32>
    %292 = vector.broadcast %291 : vector<64x1xf32> to vector<64x64xf32>
    %293 = arith.subf %289, %292 : vector<64x64xf32>
    %294 = math.exp %293 : vector<64x64xf32>
    %cst_114 = arith.constant dense<0.000000e+00> : vector<64xf32>
    %295 = vector.multi_reduction <add>, %294, %cst_114 [1] : vector<64x64xf32> to vector<64xf32>
    %296 = vector.shape_cast %295 : vector<64xf32> to vector<64x1xf32>
    %297 = tpu.reciprocal %296 {approx = true} : vector<64x1xf32> -> vector<64x1xf32>
    %298 = vector.broadcast %297 : vector<64x1xf32> to vector<64x64xf32>
    %299 = arith.mulf %294, %298 : vector<64x64xf32>
    %300 = arith.truncf %299 : vector<64x64xf32> to vector<64x64xbf16>
    %cst_115 = arith.constant dense<0.000000e+00> : vector<64x64xf32>
    %301 = tpu.matmul %300, %286, %cst_115 {dimension_numbers = #tpu.dot_dimension_numbers<[1], [0], [0], [1], [0, 0, 1, 1], [], []>} : vector<64x64xbf16>, vector<64x64xbf16>, vector<64x64xf32> -> vector<64x64xf32>
    %302 = arith.addf %283, %301 : vector<64x64xf32>
    %303 = vector.extract_strided_slice %265 {offsets = [0, 32], sizes = [64, 16], strides = [1, 1]} : vector<64x384xbf16> to vector<64x16xbf16>
    %304 = vector.extract_strided_slice %265 {offsets = [0, 96], sizes = [64, 16], strides = [1, 1]} : vector<64x384xbf16> to vector<64x16xbf16>
    %305 = vector.extract_strided_slice %265 {offsets = [0, 256], sizes = [64, 64], strides = [1, 1]} : vector<64x384xbf16> to vector<64x64xbf16>
    %cst_116 = arith.constant dense<0.000000e+00> : vector<64x64xf32>
    %306 = tpu.matmul %303, %304, %cst_116 {dimension_numbers = #tpu.dot_dimension_numbers<[1], [1], [0], [0], [0, 0, 1, 0], [], []>} : vector<64x16xbf16>, vector<64x16xbf16>, vector<64x64xf32> -> vector<64x64xf32>
    %307 = vector.broadcast %1 : vector<1x64xf32> to vector<64x64xf32>
    %308 = arith.addf %306, %307 : vector<64x64xf32>
    %cst_117 = arith.constant dense<0xFF800000> : vector<64xf32>
    %309 = vector.multi_reduction <maximumf>, %308, %cst_117 [1] : vector<64x64xf32> to vector<64xf32>
    %310 = vector.shape_cast %309 : vector<64xf32> to vector<64x1xf32>
    %311 = vector.broadcast %310 : vector<64x1xf32> to vector<64x64xf32>
    %312 = arith.subf %308, %311 : vector<64x64xf32>
    %313 = math.exp %312 : vector<64x64xf32>
    %cst_118 = arith.constant dense<0.000000e+00> : vector<64xf32>
    %314 = vector.multi_reduction <add>, %313, %cst_118 [1] : vector<64x64xf32> to vector<64xf32>
    %315 = vector.shape_cast %314 : vector<64xf32> to vector<64x1xf32>
    %316 = tpu.reciprocal %315 {approx = true} : vector<64x1xf32> -> vector<64x1xf32>
    %317 = vector.broadcast %316 : vector<64x1xf32> to vector<64x64xf32>
    %318 = arith.mulf %313, %317 : vector<64x64xf32>
    %319 = arith.truncf %318 : vector<64x64xf32> to vector<64x64xbf16>
    %cst_119 = arith.constant dense<0.000000e+00> : vector<64x64xf32>
    %320 = tpu.matmul %319, %305, %cst_119 {dimension_numbers = #tpu.dot_dimension_numbers<[1], [0], [0], [1], [0, 0, 1, 1], [], []>} : vector<64x64xbf16>, vector<64x64xbf16>, vector<64x64xf32> -> vector<64x64xf32>
    %321 = arith.addf %302, %320 : vector<64x64xf32>
    %322 = vector.extract_strided_slice %265 {offsets = [0, 48], sizes = [64, 16], strides = [1, 1]} : vector<64x384xbf16> to vector<64x16xbf16>
    %323 = vector.extract_strided_slice %265 {offsets = [0, 112], sizes = [64, 16], strides = [1, 1]} : vector<64x384xbf16> to vector<64x16xbf16>
    %324 = vector.extract_strided_slice %265 {offsets = [0, 320], sizes = [64, 64], strides = [1, 1]} : vector<64x384xbf16> to vector<64x64xbf16>
    %cst_120 = arith.constant dense<0.000000e+00> : vector<64x64xf32>
    %325 = tpu.matmul %322, %323, %cst_120 {dimension_numbers = #tpu.dot_dimension_numbers<[1], [1], [0], [0], [0, 0, 1, 0], [], []>} : vector<64x16xbf16>, vector<64x16xbf16>, vector<64x64xf32> -> vector<64x64xf32>
    %326 = vector.broadcast %1 : vector<1x64xf32> to vector<64x64xf32>
    %327 = arith.addf %325, %326 : vector<64x64xf32>
    %cst_121 = arith.constant dense<0xFF800000> : vector<64xf32>
    %328 = vector.multi_reduction <maximumf>, %327, %cst_121 [1] : vector<64x64xf32> to vector<64xf32>
    %329 = vector.shape_cast %328 : vector<64xf32> to vector<64x1xf32>
    %330 = vector.broadcast %329 : vector<64x1xf32> to vector<64x64xf32>
    %331 = arith.subf %327, %330 : vector<64x64xf32>
    %332 = math.exp %331 : vector<64x64xf32>
    %cst_122 = arith.constant dense<0.000000e+00> : vector<64xf32>
    %333 = vector.multi_reduction <add>, %332, %cst_122 [1] : vector<64x64xf32> to vector<64xf32>
    %334 = vector.shape_cast %333 : vector<64xf32> to vector<64x1xf32>
    %335 = tpu.reciprocal %334 {approx = true} : vector<64x1xf32> -> vector<64x1xf32>
    %336 = vector.broadcast %335 : vector<64x1xf32> to vector<64x64xf32>
    %337 = arith.mulf %332, %336 : vector<64x64xf32>
    %338 = arith.truncf %337 : vector<64x64xf32> to vector<64x64xbf16>
    %cst_123 = arith.constant dense<0.000000e+00> : vector<64x64xf32>
    %339 = tpu.matmul %338, %324, %cst_123 {dimension_numbers = #tpu.dot_dimension_numbers<[1], [0], [0], [1], [0, 0, 1, 1], [], []>} : vector<64x64xbf16>, vector<64x64xbf16>, vector<64x64xf32> -> vector<64x64xf32>
    %340 = arith.addf %321, %339 : vector<64x64xf32>
    %341 = vector.extract_strided_slice %264 {offsets = [64, 0], sizes = [64, 384], strides = [1, 1]} : vector<128x384xbf16> to vector<64x384xbf16>
    %342 = vector.extract_strided_slice %341 {offsets = [0, 0], sizes = [64, 16], strides = [1, 1]} : vector<64x384xbf16> to vector<64x16xbf16>
    %343 = vector.extract_strided_slice %341 {offsets = [0, 64], sizes = [64, 16], strides = [1, 1]} : vector<64x384xbf16> to vector<64x16xbf16>
    %344 = vector.extract_strided_slice %341 {offsets = [0, 128], sizes = [64, 64], strides = [1, 1]} : vector<64x384xbf16> to vector<64x64xbf16>
    %cst_124 = arith.constant dense<0.000000e+00> : vector<64x64xf32>
    %345 = tpu.matmul %342, %343, %cst_124 {dimension_numbers = #tpu.dot_dimension_numbers<[1], [1], [0], [0], [0, 0, 1, 0], [], []>} : vector<64x16xbf16>, vector<64x16xbf16>, vector<64x64xf32> -> vector<64x64xf32>
    %346 = vector.broadcast %1 : vector<1x64xf32> to vector<64x64xf32>
    %347 = arith.addf %345, %346 : vector<64x64xf32>
    %cst_125 = arith.constant dense<0xFF800000> : vector<64xf32>
    %348 = vector.multi_reduction <maximumf>, %347, %cst_125 [1] : vector<64x64xf32> to vector<64xf32>
    %349 = vector.shape_cast %348 : vector<64xf32> to vector<64x1xf32>
    %350 = vector.broadcast %349 : vector<64x1xf32> to vector<64x64xf32>
    %351 = arith.subf %347, %350 : vector<64x64xf32>
    %352 = math.exp %351 : vector<64x64xf32>
    %cst_126 = arith.constant dense<0.000000e+00> : vector<64xf32>
    %353 = vector.multi_reduction <add>, %352, %cst_126 [1] : vector<64x64xf32> to vector<64xf32>
    %354 = vector.shape_cast %353 : vector<64xf32> to vector<64x1xf32>
    %355 = tpu.reciprocal %354 {approx = true} : vector<64x1xf32> -> vector<64x1xf32>
    %356 = vector.broadcast %355 : vector<64x1xf32> to vector<64x64xf32>
    %357 = arith.mulf %352, %356 : vector<64x64xf32>
    %358 = arith.truncf %357 : vector<64x64xf32> to vector<64x64xbf16>
    %cst_127 = arith.constant dense<0.000000e+00> : vector<64x64xf32>
    %359 = tpu.matmul %358, %344, %cst_127 {dimension_numbers = #tpu.dot_dimension_numbers<[1], [0], [0], [1], [0, 0, 1, 1], [], []>} : vector<64x64xbf16>, vector<64x64xbf16>, vector<64x64xf32> -> vector<64x64xf32>
    %360 = vector.extract_strided_slice %341 {offsets = [0, 16], sizes = [64, 16], strides = [1, 1]} : vector<64x384xbf16> to vector<64x16xbf16>
    %361 = vector.extract_strided_slice %341 {offsets = [0, 80], sizes = [64, 16], strides = [1, 1]} : vector<64x384xbf16> to vector<64x16xbf16>
    %362 = vector.extract_strided_slice %341 {offsets = [0, 192], sizes = [64, 64], strides = [1, 1]} : vector<64x384xbf16> to vector<64x64xbf16>
    %cst_128 = arith.constant dense<0.000000e+00> : vector<64x64xf32>
    %363 = tpu.matmul %360, %361, %cst_128 {dimension_numbers = #tpu.dot_dimension_numbers<[1], [1], [0], [0], [0, 0, 1, 0], [], []>} : vector<64x16xbf16>, vector<64x16xbf16>, vector<64x64xf32> -> vector<64x64xf32>
    %364 = vector.broadcast %1 : vector<1x64xf32> to vector<64x64xf32>
    %365 = arith.addf %363, %364 : vector<64x64xf32>
    %cst_129 = arith.constant dense<0xFF800000> : vector<64xf32>
    %366 = vector.multi_reduction <maximumf>, %365, %cst_129 [1] : vector<64x64xf32> to vector<64xf32>
    %367 = vector.shape_cast %366 : vector<64xf32> to vector<64x1xf32>
    %368 = vector.broadcast %367 : vector<64x1xf32> to vector<64x64xf32>
    %369 = arith.subf %365, %368 : vector<64x64xf32>
    %370 = math.exp %369 : vector<64x64xf32>
    %cst_130 = arith.constant dense<0.000000e+00> : vector<64xf32>
    %371 = vector.multi_reduction <add>, %370, %cst_130 [1] : vector<64x64xf32> to vector<64xf32>
    %372 = vector.shape_cast %371 : vector<64xf32> to vector<64x1xf32>
    %373 = tpu.reciprocal %372 {approx = true} : vector<64x1xf32> -> vector<64x1xf32>
    %374 = vector.broadcast %373 : vector<64x1xf32> to vector<64x64xf32>
    %375 = arith.mulf %370, %374 : vector<64x64xf32>
    %376 = arith.truncf %375 : vector<64x64xf32> to vector<64x64xbf16>
    %cst_131 = arith.constant dense<0.000000e+00> : vector<64x64xf32>
    %377 = tpu.matmul %376, %362, %cst_131 {dimension_numbers = #tpu.dot_dimension_numbers<[1], [0], [0], [1], [0, 0, 1, 1], [], []>} : vector<64x64xbf16>, vector<64x64xbf16>, vector<64x64xf32> -> vector<64x64xf32>
    %378 = arith.addf %359, %377 : vector<64x64xf32>
    %379 = vector.extract_strided_slice %341 {offsets = [0, 32], sizes = [64, 16], strides = [1, 1]} : vector<64x384xbf16> to vector<64x16xbf16>
    %380 = vector.extract_strided_slice %341 {offsets = [0, 96], sizes = [64, 16], strides = [1, 1]} : vector<64x384xbf16> to vector<64x16xbf16>
    %381 = vector.extract_strided_slice %341 {offsets = [0, 256], sizes = [64, 64], strides = [1, 1]} : vector<64x384xbf16> to vector<64x64xbf16>
    %cst_132 = arith.constant dense<0.000000e+00> : vector<64x64xf32>
    %382 = tpu.matmul %379, %380, %cst_132 {dimension_numbers = #tpu.dot_dimension_numbers<[1], [1], [0], [0], [0, 0, 1, 0], [], []>} : vector<64x16xbf16>, vector<64x16xbf16>, vector<64x64xf32> -> vector<64x64xf32>
    %383 = vector.broadcast %1 : vector<1x64xf32> to vector<64x64xf32>
    %384 = arith.addf %382, %383 : vector<64x64xf32>
    %cst_133 = arith.constant dense<0xFF800000> : vector<64xf32>
    %385 = vector.multi_reduction <maximumf>, %384, %cst_133 [1] : vector<64x64xf32> to vector<64xf32>
    %386 = vector.shape_cast %385 : vector<64xf32> to vector<64x1xf32>
    %387 = vector.broadcast %386 : vector<64x1xf32> to vector<64x64xf32>
    %388 = arith.subf %384, %387 : vector<64x64xf32>
    %389 = math.exp %388 : vector<64x64xf32>
    %cst_134 = arith.constant dense<0.000000e+00> : vector<64xf32>
    %390 = vector.multi_reduction <add>, %389, %cst_134 [1] : vector<64x64xf32> to vector<64xf32>
    %391 = vector.shape_cast %390 : vector<64xf32> to vector<64x1xf32>
    %392 = tpu.reciprocal %391 {approx = true} : vector<64x1xf32> -> vector<64x1xf32>
    %393 = vector.broadcast %392 : vector<64x1xf32> to vector<64x64xf32>
    %394 = arith.mulf %389, %393 : vector<64x64xf32>
    %395 = arith.truncf %394 : vector<64x64xf32> to vector<64x64xbf16>
    %cst_135 = arith.constant dense<0.000000e+00> : vector<64x64xf32>
    %396 = tpu.matmul %395, %381, %cst_135 {dimension_numbers = #tpu.dot_dimension_numbers<[1], [0], [0], [1], [0, 0, 1, 1], [], []>} : vector<64x64xbf16>, vector<64x64xbf16>, vector<64x64xf32> -> vector<64x64xf32>
    %397 = arith.addf %378, %396 : vector<64x64xf32>
    %398 = vector.extract_strided_slice %341 {offsets = [0, 48], sizes = [64, 16], strides = [1, 1]} : vector<64x384xbf16> to vector<64x16xbf16>
    %399 = vector.extract_strided_slice %341 {offsets = [0, 112], sizes = [64, 16], strides = [1, 1]} : vector<64x384xbf16> to vector<64x16xbf16>
    %400 = vector.extract_strided_slice %341 {offsets = [0, 320], sizes = [64, 64], strides = [1, 1]} : vector<64x384xbf16> to vector<64x64xbf16>
    %cst_136 = arith.constant dense<0.000000e+00> : vector<64x64xf32>
    %401 = tpu.matmul %398, %399, %cst_136 {dimension_numbers = #tpu.dot_dimension_numbers<[1], [1], [0], [0], [0, 0, 1, 0], [], []>} : vector<64x16xbf16>, vector<64x16xbf16>, vector<64x64xf32> -> vector<64x64xf32>
    %402 = vector.broadcast %1 : vector<1x64xf32> to vector<64x64xf32>
    %403 = arith.addf %401, %402 : vector<64x64xf32>
    %cst_137 = arith.constant dense<0xFF800000> : vector<64xf32>
    %404 = vector.multi_reduction <maximumf>, %403, %cst_137 [1] : vector<64x64xf32> to vector<64xf32>
    %405 = vector.shape_cast %404 : vector<64xf32> to vector<64x1xf32>
    %406 = vector.broadcast %405 : vector<64x1xf32> to vector<64x64xf32>
    %407 = arith.subf %403, %406 : vector<64x64xf32>
    %408 = math.exp %407 : vector<64x64xf32>
    %cst_138 = arith.constant dense<0.000000e+00> : vector<64xf32>
    %409 = vector.multi_reduction <add>, %408, %cst_138 [1] : vector<64x64xf32> to vector<64xf32>
    %410 = vector.shape_cast %409 : vector<64xf32> to vector<64x1xf32>
    %411 = tpu.reciprocal %410 {approx = true} : vector<64x1xf32> -> vector<64x1xf32>
    %412 = vector.broadcast %411 : vector<64x1xf32> to vector<64x64xf32>
    %413 = arith.mulf %408, %412 : vector<64x64xf32>
    %414 = arith.truncf %413 : vector<64x64xf32> to vector<64x64xbf16>
    %cst_139 = arith.constant dense<0.000000e+00> : vector<64x64xf32>
    %415 = tpu.matmul %414, %400, %cst_139 {dimension_numbers = #tpu.dot_dimension_numbers<[1], [0], [0], [1], [0, 0, 1, 1], [], []>} : vector<64x64xbf16>, vector<64x64xbf16>, vector<64x64xf32> -> vector<64x64xf32>
    %416 = arith.addf %397, %415 : vector<64x64xf32>
    %417 = tpu.concatenate %340, %416 in 0 : vector<64x64xf32>, vector<64x64xf32> -> vector<128x64xf32>
    %418 = vector.broadcast %245 : vector<1x64xf32> to vector<128x64xf32>
    %419 = arith.addf %417, %418 : vector<128x64xf32>
    %420 = arith.addf %241, %419 : vector<128x64xf32>
    %cst_140 = arith.constant dense<0.000000e+00> : vector<128xf32>
    %421 = vector.multi_reduction <add>, %420, %cst_140 [1] : vector<128x64xf32> to vector<128xf32>
    %422 = vector.shape_cast %421 : vector<128xf32> to vector<128x1xf32>
    %cst_141 = arith.constant 6.400000e+01 : f32
    %423 = vector.broadcast %cst_141 : f32 to vector<128x1xf32>
    %424 = arith.divf %422, %423 : vector<128x1xf32>
    %425 = vector.broadcast %424 : vector<128x1xf32> to vector<128x64xf32>
    %426 = arith.subf %420, %425 : vector<128x64xf32>
    %427 = arith.mulf %426, %426 : vector<128x64xf32>
    %cst_142 = arith.constant dense<0.000000e+00> : vector<128xf32>
    %428 = vector.multi_reduction <add>, %427, %cst_142 [1] : vector<128x64xf32> to vector<128xf32>
    %429 = vector.shape_cast %428 : vector<128xf32> to vector<128x1xf32>
    %cst_143 = arith.constant 6.400000e+01 : f32
    %430 = vector.broadcast %cst_143 : f32 to vector<128x1xf32>
    %431 = arith.divf %429, %430 : vector<128x1xf32>
    %cst_144 = arith.constant 9.99999974E-6 : f32
    %432 = vector.broadcast %cst_144 : f32 to vector<128x1xf32>
    %433 = arith.addf %431, %432 : vector<128x1xf32>
    %434 = math.rsqrt %433 : vector<128x1xf32>
    %435 = vector.broadcast %434 : vector<128x1xf32> to vector<128x64xf32>
    %436 = arith.mulf %426, %435 : vector<128x64xf32>
    %437 = vector.broadcast %247 : vector<1x64xf32> to vector<128x64xf32>
    %438 = arith.mulf %436, %437 : vector<128x64xf32>
    %439 = vector.broadcast %249 : vector<1x64xf32> to vector<128x64xf32>
    %440 = arith.addf %438, %439 : vector<128x64xf32>
    %c1_145 = arith.constant 1 : index
    %c0_146 = arith.constant 0 : index
    %c0_147 = arith.constant 0 : index
    %441 = vector.load %arg5[%c1_145, %c0_146, %c0_147] : memref<2x64x128xbf16, #tpu.memory_space<vmem>>, vector<1x64x128xbf16>
    %442 = vector.shape_cast %441 : vector<1x64x128xbf16> to vector<64x128xbf16>
    %443 = arith.truncf %440 : vector<128x64xf32> to vector<128x64xbf16>
    %cst_148 = arith.constant dense<0.000000e+00> : vector<128x128xf32>
    %444 = tpu.matmul %443, %442, %cst_148 {dimension_numbers = #tpu.dot_dimension_numbers<[1], [0], [0], [1], [0, 0, 1, 1], [], []>} : vector<128x64xbf16>, vector<64x128xbf16>, vector<128x128xf32> -> vector<128x128xf32>
    %445 = vector.broadcast %251 : vector<1x128xf32> to vector<128x128xf32>
    %446 = arith.addf %444, %445 : vector<128x128xf32>
    %cst_149 = arith.constant 0.000000e+00 : f32
    %447 = vector.broadcast %cst_149 : f32 to vector<128x128xf32>
    %448 = arith.maximumf %446, %447 : vector<128x128xf32>
    %c1_150 = arith.constant 1 : index
    %c0_151 = arith.constant 0 : index
    %c0_152 = arith.constant 0 : index
    %449 = vector.load %arg6[%c1_150, %c0_151, %c0_152] : memref<2x128x64xbf16, #tpu.memory_space<vmem>>, vector<1x128x64xbf16>
    %450 = vector.shape_cast %449 : vector<1x128x64xbf16> to vector<128x64xbf16>
    %451 = arith.truncf %448 : vector<128x128xf32> to vector<128x128xbf16>
    %cst_153 = arith.constant dense<0.000000e+00> : vector<128x64xf32>
    %452 = tpu.matmul %451, %450, %cst_153 {dimension_numbers = #tpu.dot_dimension_numbers<[1], [0], [0], [1], [0, 0, 1, 1], [], []>} : vector<128x128xbf16>, vector<128x64xbf16>, vector<128x64xf32> -> vector<128x64xf32>
    %453 = vector.broadcast %253 : vector<1x64xf32> to vector<128x64xf32>
    %454 = arith.addf %452, %453 : vector<128x64xf32>
    %455 = arith.addf %440, %454 : vector<128x64xf32>
    %cst_154 = arith.constant dense<0.000000e+00> : vector<128xf32>
    %456 = vector.multi_reduction <add>, %455, %cst_154 [1] : vector<128x64xf32> to vector<128xf32>
    %457 = vector.shape_cast %456 : vector<128xf32> to vector<128x1xf32>
    %cst_155 = arith.constant 6.400000e+01 : f32
    %458 = vector.broadcast %cst_155 : f32 to vector<128x1xf32>
    %459 = arith.divf %457, %458 : vector<128x1xf32>
    %460 = vector.broadcast %459 : vector<128x1xf32> to vector<128x64xf32>
    %461 = arith.subf %455, %460 : vector<128x64xf32>
    %462 = arith.mulf %461, %461 : vector<128x64xf32>
    %cst_156 = arith.constant dense<0.000000e+00> : vector<128xf32>
    %463 = vector.multi_reduction <add>, %462, %cst_156 [1] : vector<128x64xf32> to vector<128xf32>
    %464 = vector.shape_cast %463 : vector<128xf32> to vector<128x1xf32>
    %cst_157 = arith.constant 6.400000e+01 : f32
    %465 = vector.broadcast %cst_157 : f32 to vector<128x1xf32>
    %466 = arith.divf %464, %465 : vector<128x1xf32>
    %cst_158 = arith.constant 9.99999974E-6 : f32
    %467 = vector.broadcast %cst_158 : f32 to vector<128x1xf32>
    %468 = arith.addf %466, %467 : vector<128x1xf32>
    %469 = math.rsqrt %468 : vector<128x1xf32>
    %470 = vector.broadcast %469 : vector<128x1xf32> to vector<128x64xf32>
    %471 = arith.mulf %461, %470 : vector<128x64xf32>
    %472 = vector.broadcast %255 : vector<1x64xf32> to vector<128x64xf32>
    %473 = arith.mulf %471, %472 : vector<128x64xf32>
    %474 = vector.broadcast %257 : vector<1x64xf32> to vector<128x64xf32>
    %475 = arith.addf %473, %474 : vector<128x64xf32>
    %c2_159 = arith.constant 2 : index
    %c0_160 = arith.constant 0 : index
    %c0_161 = arith.constant 0 : index
    %476 = vector.load %arg8[%c2_159, %c0_160, %c0_161] : memref<3x8x384xf32, #tpu.memory_space<vmem>>, vector<1x1x64xf32>
    %477 = vector.shape_cast %476 : vector<1x1x64xf32> to vector<1x64xf32>
    %c2_162 = arith.constant 2 : index
    %c1_163 = arith.constant 1 : index
    %c0_164 = arith.constant 0 : index
    %478 = vector.load %arg8[%c2_162, %c1_163, %c0_164] : memref<3x8x384xf32, #tpu.memory_space<vmem>>, vector<1x1x64xf32>
    %479 = vector.shape_cast %478 : vector<1x1x64xf32> to vector<1x64xf32>
    %c2_165 = arith.constant 2 : index
    %c2_166 = arith.constant 2 : index
    %c0_167 = arith.constant 0 : index
    %480 = vector.load %arg8[%c2_165, %c2_166, %c0_167] : memref<3x8x384xf32, #tpu.memory_space<vmem>>, vector<1x1x128xf32>
    %481 = vector.shape_cast %480 : vector<1x1x128xf32> to vector<1x128xf32>
    %482 = vector.extract_strided_slice %475 {offsets = [0, 0], sizes = [8, 64], strides = [1, 1]} : vector<128x64xf32> to vector<8x64xf32>
    %483 = vector.extract_strided_slice %475 {offsets = [64, 0], sizes = [8, 64], strides = [1, 1]} : vector<128x64xf32> to vector<8x64xf32>
    %484 = tpu.concatenate %482, %483 in 0 : vector<8x64xf32>, vector<8x64xf32> -> vector<16x64xf32>
    %cst_168 = arith.constant dense<0.000000e+00> : vector<16xf32>
    %485 = vector.multi_reduction <add>, %484, %cst_168 [1] : vector<16x64xf32> to vector<16xf32>
    %486 = vector.shape_cast %485 : vector<16xf32> to vector<16x1xf32>
    %cst_169 = arith.constant 6.400000e+01 : f32
    %487 = vector.broadcast %cst_169 : f32 to vector<16x1xf32>
    %488 = arith.divf %486, %487 : vector<16x1xf32>
    %489 = vector.broadcast %488 : vector<16x1xf32> to vector<16x64xf32>
    %490 = arith.subf %484, %489 : vector<16x64xf32>
    %491 = arith.mulf %490, %490 : vector<16x64xf32>
    %cst_170 = arith.constant dense<0.000000e+00> : vector<16xf32>
    %492 = vector.multi_reduction <add>, %491, %cst_170 [1] : vector<16x64xf32> to vector<16xf32>
    %493 = vector.shape_cast %492 : vector<16xf32> to vector<16x1xf32>
    %cst_171 = arith.constant 6.400000e+01 : f32
    %494 = vector.broadcast %cst_171 : f32 to vector<16x1xf32>
    %495 = arith.divf %493, %494 : vector<16x1xf32>
    %cst_172 = arith.constant 9.99999974E-6 : f32
    %496 = vector.broadcast %cst_172 : f32 to vector<16x1xf32>
    %497 = arith.addf %495, %496 : vector<16x1xf32>
    %498 = math.rsqrt %497 : vector<16x1xf32>
    %499 = vector.broadcast %498 : vector<16x1xf32> to vector<16x64xf32>
    %500 = arith.mulf %490, %499 : vector<16x64xf32>
    %501 = vector.broadcast %477 : vector<1x64xf32> to vector<16x64xf32>
    %502 = arith.mulf %500, %501 : vector<16x64xf32>
    %503 = vector.broadcast %479 : vector<1x64xf32> to vector<16x64xf32>
    %504 = arith.addf %502, %503 : vector<16x64xf32>
    %c0_173 = arith.constant 0 : index
    %c0_174 = arith.constant 0 : index
    %505 = vector.load %arg7[%c0_173, %c0_174] : memref<64x128xbf16, #tpu.memory_space<vmem>>, vector<64x128xbf16>
    %506 = arith.truncf %504 : vector<16x64xf32> to vector<16x64xbf16>
    %cst_175 = arith.constant dense<0.000000e+00> : vector<16x128xf32>
    %507 = tpu.matmul %506, %505, %cst_175 {dimension_numbers = #tpu.dot_dimension_numbers<[1], [0], [0], [1], [0, 0, 1, 1], [], []>} : vector<16x64xbf16>, vector<64x128xbf16>, vector<16x128xf32> -> vector<16x128xf32>
    %508 = vector.broadcast %481 : vector<1x128xf32> to vector<16x128xf32>
    %509 = arith.addf %507, %508 : vector<16x128xf32>
    %c0_176 = arith.constant 0 : index
    %c0_177 = arith.constant 0 : index
    %510 = vector.load %arg9[%c0_176, %c0_177] : memref<16x128xf32, #tpu.memory_space<vmem>>, vector<16x128xf32>
    tpu.vector_store %arg9[%c0_176, %c0_177], %509 {strides = array<i32>} : memref<16x128xf32, #tpu.memory_space<vmem>>, vector<16x128xf32>,
    return
  }
  func.func @transform_0(%arg0: i32) -> (i32, i32) {
    %c0_i32 = arith.constant 0 : i32
    %c0_i32_0 = arith.constant 0 : i32
    %c0_i32_1 = arith.constant 0 : i32
    return %c0_i32, %c0_i32_0 : i32, i32
  }
  func.func @transform_1(%arg0: i32) -> (i32, i32) {
    %c0_i32 = arith.constant 0 : i32
    %c0_i32_0 = arith.constant 0 : i32
    %c0_i32_1 = arith.constant 0 : i32
    return %c0_i32, %c0_i32_0 : i32, i32
  }
  func.func @transform_2(%arg0: i32) -> (i32, i32) {
    %c0_i32 = arith.constant 0 : i32
    %c0_i32_0 = arith.constant 0 : i32
    %c0_i32_1 = arith.constant 0 : i32
    return %c0_i32, %c0_i32_0 : i32, i32
  }
  func.func @transform_3(%arg0: i32) -> (i32, i32, i32) {
    %c0_i32 = arith.constant 0 : i32
    %c0_i32_0 = arith.constant 0 : i32
    %c0_i32_1 = arith.constant 0 : i32
    %c0_i32_2 = arith.constant 0 : i32
    return %c0_i32, %c0_i32_0, %c0_i32_1 : i32, i32, i32
  }
  func.func @transform_4(%arg0: i32) -> (i32, i32, i32) {
    %c0_i32 = arith.constant 0 : i32
    %c0_i32_0 = arith.constant 0 : i32
    %c0_i32_1 = arith.constant 0 : i32
    %c0_i32_2 = arith.constant 0 : i32
    return %c0_i32, %c0_i32_0, %c0_i32_1 : i32, i32, i32
  }
  func.func @transform_5(%arg0: i32) -> (i32, i32, i32) {
    %c0_i32 = arith.constant 0 : i32
    %c0_i32_0 = arith.constant 0 : i32
    %c0_i32_1 = arith.constant 0 : i32
    %c0_i32_2 = arith.constant 0 : i32
    return %c0_i32, %c0_i32_0, %c0_i32_1 : i32, i32, i32
  }
  func.func @transform_6(%arg0: i32) -> (i32, i32) {
    %c0_i32 = arith.constant 0 : i32
    %c0_i32_0 = arith.constant 0 : i32
    %c0_i32_1 = arith.constant 0 : i32
    return %c0_i32, %c0_i32_0 : i32, i32
  }
  func.func @transform_7(%arg0: i32) -> (i32, i32, i32) {
    %c0_i32 = arith.constant 0 : i32
    %c0_i32_0 = arith.constant 0 : i32
    %c0_i32_1 = arith.constant 0 : i32
    %c0_i32_2 = arith.constant 0 : i32
    return %c0_i32, %c0_i32_0, %c0_i32_1 : i32, i32, i32
  }
  func.func @transform_8(%arg0: i32) -> (i32, i32) {
    %c0_i32 = arith.constant 0 : i32
    %c0_i32_0 = arith.constant 0 : i32
    %c0_i32_1 = arith.constant 0 : i32
    return %c0_i32, %c0_i32_0 : i32, i32
  }
}

</mosaic_0001>

<llo_original>
// kernel: vit_forward.1
$region0: #{vit_forward.1}
  #allocation0 [shape = 'u32[]', space=smem, size = 0x4, offset = 0x4, fixed_abs, tag = 'smem constant byte address 0x4 - core index']
  #allocation1 [shape = 'u32[144,128]{1,0:T(1,128)}', space=vmem, size = 0x12000, scoped, tag = 'internal scratch']
  %s0 = inlined_call_operand.vmem [shape: bf16[128,16], index: 0, kind: input, shape index: {}]
  %s1 = inlined_call_operand.vmem [shape: bf16[16,64], index: 1, kind: input, shape index: {}]
  %s2 = inlined_call_operand.vmem [shape: f32[64,64], index: 2, kind: input, shape index: {}]
  %s3 = inlined_call_operand.vmem [shape: bf16[2,64,384], index: 3, kind: input, shape index: {}]
  %s4 = inlined_call_operand.vmem [shape: bf16[2,64,128], index: 4, kind: input, shape index: {}]
  %s5 = inlined_call_operand.vmem [shape: bf16[2,128,64], index: 5, kind: input, shape index: {}]
  %s6 = inlined_call_operand.vmem [shape: bf16[64,128], index: 6, kind: input, shape index: {}]
  %s7 = inlined_call_operand.vmem [shape: f32[3,8,384], index: 7, kind: input, shape index: {}]
  %s8 = inlined_call_operand.vmem [shape: f32[16,128], index: 8, kind: output, shape index: {}]
  %s9 = sld [smem:[#allocation0]]
  $region42: #{vit_forward.1} parent=0
    _
  %s11 = ssub.s32 1, %s9
  %s12 = scalar_select 0, %s11, %s9
  // Predicated region
  $region2: #{vit_forward.1} parent=0 // pred_check
    _
  $region3: #{vit_forward.1} parent=0 // pred_check_branch
    %14 = sbr.rel (0) target = $region5
  $region4: #{vit_forward.1} parent=0 // pred_region
    _
  $region5: #{vit_forward.1} parent=0 // pred_fallthru
    _
  // Predicated region
  $region6: #{vit_forward.1} parent=0 // pred_check
    _
  $region7: #{vit_forward.1} parent=0 // pred_check_branch
    %16 = sbr.rel (0) target = $region9
  $region8: #{vit_forward.1} parent=0 // pred_region
    _
  $region9: #{vit_forward.1} parent=0 // pred_fallthru
    _
  // Predicated region
  $region10: #{vit_forward.1} parent=0 // pred_check
    _
  $region11: #{vit_forward.1} parent=0 // pred_check_branch
    %18 = sbr.rel (0) target = $region13
  $region12: #{vit_forward.1} parent=0 // pred_region
    _
  $region13: #{vit_forward.1} parent=0 // pred_fallthru
    _
  // Predicated region
  $region14: #{vit_forward.1} parent=0 // pred_check
    _
  $region15: #{vit_forward.1} parent=0 // pred_check_branch
    %20 = sbr.rel (0) target = $region17
  $region16: #{vit_forward.1} parent=0 // pred_region
    _
  $region17: #{vit_forward.1} parent=0 // pred_fallthru
    _
  // Predicated region
  $region18: #{vit_forward.1} parent=0 // pred_check
    _
  $region19: #{vit_forward.1} parent=0 // pred_check_branch
    %22 = sbr.rel (0) target = $region21
  $region20: #{vit_forward.1} parent=0 // pred_region
    _
  $region21: #{vit_forward.1} parent=0 // pred_fallthru
    _
  // Predicated region
  $region22: #{vit_forward.1} parent=0 // pred_check
    _
  $region23: #{vit_forward.1} parent=0 // pred_check_branch
    %24 = sbr.rel (0) target = $region25
  $region24: #{vit_forward.1} parent=0 // pred_region
    _
  $region25: #{vit_forward.1} parent=0 // pred_fallthru
    _
  // Predicated region
  $region26: #{vit_forward.1} parent=0 // pred_check
    _
  $region27: #{vit_forward.1} parent=0 // pred_check_branch
    %26 = sbr.rel (0) target = $region29
  $region28: #{vit_forward.1} parent=0 // pred_region
    _
  $region29: #{vit_forward.1} parent=0 // pred_fallthru
    _
  // Predicated region
  $region30: #{vit_forward.1} parent=0 // pred_check
    _
  $region31: #{vit_forward.1} parent=0 // pred_check_branch
    %28 = sbr.rel (0) target = $region33
  $region32: #{vit_forward.1} parent=0 // pred_region
    _
  $region33: #{vit_forward.1} parent=0 // pred_fallthru
    _
  %s30 = scalar_lea.vmem %s7, 48
  %v31 = vld [vmem:[%s30 + $0x3] ss:$0 sm:$0xff]
  %v32 = vld [vmem:[%s2] sm:$0xff]
  %v33 = vld [vmem:[%s2 + $0x8] sm:$0xff]
  %v34 = vld [vmem:[%s2 + $0x10] sm:$0xff]
  %v35 = vld [vmem:[%s2 + $0x18] sm:$0xff]
  %v36 = vld [vmem:[%s2 + $0x20] sm:$0xff]
  %v37 = vld [vmem:[%s2 + $0x28] sm:$0xff]
  %v38 = vld [vmem:[%s2 + $0x30] sm:$0xff]
  %v39 = vld [vmem:[%s2 + $0x38] sm:$0xff]
  %v40 = vld [vmem:[%s0] sm:$0xf]
  %v41 = vld [vmem:[%s0 + $0x4] sm:$0xf]
  %v42 = vld [vmem:[%s0 + $0x8] sm:$0xf]
  %v43 = vld [vmem:[%s0 + $0xc] sm:$0xf]
  %v44 = vld [vmem:[%s0 + $0x10] sm:$0xf]
  %v45 = vld [vmem:[%s0 + $0x14] sm:$0xf]
  %v46 = vld [vmem:[%s0 + $0x18] sm:$0xf]
  %v47 = vld [vmem:[%s0 + $0x1c] sm:$0xf]
  %v48 = vld [vmem:[%s0 + $0x20] sm:$0xf]
  %v49 = vld [vmem:[%s0 + $0x24] sm:$0xf]
  %v50 = vld [vmem:[%s0 + $0x28] sm:$0xf]
  %v51 = vld [vmem:[%s0 + $0x2c] sm:$0xf]
  %v52 = vld [vmem:[%s0 + $0x30] sm:$0xf]
  %v53 = vld [vmem:[%s0 + $0x34] sm:$0xf]
  %v54 = vld [vmem:[%s0 + $0x38] sm:$0xf]
  %v55 = vld [vmem:[%s0 + $0x3c] sm:$0xf]
  %v56 = vld [vmem:[%s1] sm:$0xf]
  %v57 = vld [vmem:[%s1 + $0x4] sm:$0xf]
  %v74 = vunpack.c.l.b16 %v40
  %v75 = vunpack.c.l.b16 %v41
  %v76 = vunpack.c.l.b16 %v42
  %v77 = vunpack.c.l.b16 %v43
  %v78 = vunpack.c.l.b16 %v44
  %v79 = vunpack.c.l.b16 %v45
  %v80 = vunpack.c.l.b16 %v46
  %v81 = vunpack.c.l.b16 %v47
  %v82 = vunpack.c.l.b16 %v48
  %v83 = vunpack.c.l.b16 %v49
  %v84 = vunpack.c.l.b16 %v50
  %v85 = vunpack.c.l.b16 %v51
  %v86 = vunpack.c.l.b16 %v52
  %v87 = vunpack.c.l.b16 %v53
  %v88 = vunpack.c.l.b16 %v54
  %v89 = vunpack.c.l.b16 %v55
  %v90 = vpack.c.b16 %v75, %v74
  %v91 = vpack.c.b16 %v77, %v76
  %v92 = vpack.c.b16 %v79, %v78
  %v93 = vpack.c.b16 %v81, %v80
  %v94 = vpack.c.b16 %v83, %v82
  %v95 = vpack.c.b16 %v85, %v84
  %v96 = vpack.c.b16 %v87, %v86
  %v97 = vpack.c.b16 %v89, %v88
  %v100 = vunpack.c.l.b16 %v56
  %v101 = vunpack.c.l.b16 %v57
  %v102 = vpack.c.b16 %v101, %v100
  %vm104 = vcmask 130048
  %v106 = vsel %vm104, %v90, 0
  %v109 = vsel %vm104, %v91, 0
  %v112 = vsel %vm104, %v92, 0
  %v115 = vsel %vm104, %v93, 0
  %v118 = vsel %vm104, %v94, 0
  %v121 = vsel %vm104, %v95, 0
  %v124 = vsel %vm104, %v96, 0
  %v127 = vsel %vm104, %v97, 0
  %129 = vmatprep.subr.bf16.mxu0 0
  %130 = vmatpush1.bf16.msra.mxu0 0
  %131 = vmatprep.subr.bf16.mxu0 0
  %132 = vmatpush1.bf16.msra.mxu0 0
  %133 = vmatprep.subr.bf16.mxu0 0
  %134 = vmatpush1.bf16.msra.mxu0 0
  %135 = vmatprep.subr.bf16.mxu0 0
  %136 = vmatpush1.bf16.msra.mxu0 0
  %137 = vmatprep.subr.bf16.mxu0 0
  %138 = vmatpush1.bf16.msra.mxu0 0
  %139 = vmatprep.subr.bf16.mxu0 0
  %140 = vmatpush1.bf16.msra.mxu0 0
  %141 = vmatprep.subr.bf16.mxu0 0
  %142 = vmatpush1.bf16.msra.mxu0 0
  %143 = vmatprep.subr.bf16.mxu0 0
  %144 = vmatpush1.bf16.msra.mxu0 %v102
  %145 = vmatprep.subr.bf16.mxu0 0
  %146 = vmatpush2.bf16.msra.mxu0 0
  %147 = vmatprep.subr.bf16.mxu0 0
  %148 = vmatpush2.bf16.msra.mxu0 0
  %149 = vmatprep.subr.bf16.mxu0 0
  %150 = vmatpush2.bf16.msra.mxu0 0
  %151 = vmatprep.subr.bf16.mxu0 0
  %152 = vmatpush2.bf16.msra.mxu0 0
  %153 = vmatprep.subr.bf16.mxu0 0
  %154 = vmatpush2.bf16.msra.mxu0 0
  %155 = vmatprep.subr.bf16.mxu0 0
  %156 = vmatpush2.bf16.msra.mxu0 0
  %157 = vmatprep.subr.bf16.mxu0 0
  %158 = vmatpush2.bf16.msra.mxu0 0
  %159 = vmatprep.subr.bf16.mxu0 0
  %160 = vmatpush2.bf16.msra.mxu0 0
  %161 = vmatprep.mubr.bf16.mxu0 0
  %162 = vmatmul.mubr.bf16.gmra.mxu0 %v106
  %v163 = vpop.f32.mrf.mxu0
  %v164 = vadd.f32 %v32, %v163
  %v165 = vpop.f32.mrf.mxu0
  %v166 = vpop.f32.mrf.mxu0
  %v167 = vadd.f32 %v33, %v166
  %v168 = vpop.f32.mrf.mxu0
  %169 = vmatprep.mubr.bf16.mxu0 0
  %170 = vmatmul.mubr.bf16.gmra.mxu0 %v109
  %v171 = vpop.f32.mrf.mxu0
  %v172 = vadd.f32 %v34, %v171
  %v173 = vpop.f32.mrf.mxu0
  %v174 = vpop.f32.mrf.mxu0
  %v175 = vadd.f32 %v35, %v174
  %v176 = vpop.f32.mrf.mxu0
  %177 = vmatprep.mubr.bf16.mxu0 0
  %178 = vmatmul.mubr.bf16.gmra.mxu0 %v112
  %v179 = vpop.f32.mrf.mxu0
  %v180 = vadd.f32 %v36, %v179
  %v181 = vpop.f32.mrf.mxu0
  %v182 = vpop.f32.mrf.mxu0
  %v183 = vadd.f32 %v37, %v182
  %v184 = vpop.f32.mrf.mxu0
  %185 = vmatprep.mubr.bf16.mxu0 0
  %186 = vmatmul.mubr.bf16.gmra.mxu0 %v115
  %v187 = vpop.f32.mrf.mxu0
  %v188 = vadd.f32 %v38, %v187
  %v189 = vpop.f32.mrf.mxu0
  %v190 = vpop.f32.mrf.mxu0
  %v191 = vadd.f32 %v39, %v190
  %v192 = vpop.f32.mrf.mxu0
  %193 = vmatprep.mubr.bf16.mxu0 0
  %194 = vmatmul.mubr.bf16.gmra.mxu0 %v118
  %v195 = vpop.f32.mrf.mxu0
  %v196 = vadd.f32 %v32, %v195
  %v197 = vpop.f32.mrf.mxu0
  %v198 = vpop.f32.mrf.mxu0
  %v199 = vadd.f32 %v33, %v198
  %v200 = vpop.f32.mrf.mxu0
  %201 = vmatprep.mubr.bf16.mxu0 0
  %202 = vmatmul.mubr.bf16.gmra.mxu0 %v121
  %v203 = vpop.f32.mrf.mxu0
  %v204 = vadd.f32 %v34, %v203
  %v205 = vpop.f32.mrf.mxu0
  %v206 = vpop.f32.mrf.mxu0
  %v207 = vadd.f32 %v35, %v206
  %v208 = vpop.f32.mrf.mxu0
  %209 = vmatprep.mubr.bf16.mxu0 0
  %210 = vmatmul.mubr.bf16.gmra.mxu0 %v124
  %v211 = vpop.f32.mrf.mxu0
  %v212 = vadd.f32 %v36, %v211
  %v213 = vpop.f32.mrf.mxu0
  %v214 = vpop.f32.mrf.mxu0
  %v215 = vadd.f32 %v37, %v214
  %v216 = vpop.f32.mrf.mxu0
  %217 = vmatprep.mubr.bf16.mxu0 0
  %218 = vmatmul.mubr.bf16.gmra.mxu0 %v127
  %v219 = vpop.f32.mrf.mxu0
  %v220 = vadd.f32 %v38, %v219
  %v221 = vpop.f32.mrf.mxu0
  %v222 = vpop.f32.mrf.mxu0
  %v223 = vadd.f32 %v39, %v222
  %v224 = vpop.f32.mrf.mxu0
  %225 = vdwg.mxu0
  %v226 = vld [vmem:[%s7] ss:$8 sm:$0x7]
  %v227 = vld [vmem:[%s7 + $0x1] ss:$0 sm:$0xff]
  %v228 = vld [vmem:[%s7 + $0x2] ss:$0 sm:$0xff]
  %v229 = vld [vmem:[%s7 + $0x3] ss:$0 sm:$0xff]
  %v230 = vld [vmem:[%s7 + $0x4] ss:$0 sm:$0xff]
  %v231 = vld [vmem:[%s7 + $0x5] ss:$0 sm:$0xff]
  %v232 = vld [vmem:[%s7 + $0x6] ss:$0 sm:$0xff]
  %v233 = vld [vmem:[%s7 + $0x7] ss:$0 sm:$0xff]
  %v234 = vld [vmem:[%s3] sm:$0xff]
  %v235 = vld [vmem:[%s3 + $0x8] sm:$0xf]
  %v236 = vld [vmem:[%s3 + $0xc] sm:$0xff]
  %v237 = vld [vmem:[%s3 + $0x14] sm:$0xf]
  %v238 = vld [vmem:[%s3 + $0x18] sm:$0xff]
  %v239 = vld [vmem:[%s3 + $0x20] sm:$0xf]
  %v240 = vld [vmem:[%s3 + $0x24] sm:$0xff]
  %v241 = vld [vmem:[%s3 + $0x2c] sm:$0xf]
  %v242 = vld [vmem:[%s3 + $0x30] sm:$0xff]
  %v243 = vld [vmem:[%s3 + $0x38] sm:$0xf]
  %v244 = vld [vmem:[%s3 + $0x3c] sm:$0xff]
  %v245 = vld [vmem:[%s3 + $0x44] sm:$0xf]
  %v246 = vld [vmem:[%s3 + $0x48] sm:$0xff]
  %v247 = vld [vmem:[%s3 + $0x50] sm:$0xf]
  %v248 = vld [vmem:[%s3 + $0x54] sm:$0xff]
  %v249 = vld [vmem:[%s3 + $0x5c] sm:$0xf]
  %v250 = vpack.c.bf16 %v167, %v164
  %v251 = vpack.c.bf16 %v175, %v172
  %v252 = vpack.c.bf16 %v183, %v180
  %v253 = vpack.c.bf16 %v191, %v188
  %v254 = vpack.c.bf16 %v199, %v196
  %v255 = vpack.c.bf16 %v207, %v204
  %v256 = vpack.c.bf16 %v215, %v212
  %v257 = vpack.c.bf16 %v223, %v220
  %v259 = vlaneseq
  %v260 = vshrl.u32 %v259, 7
  %v261 = vsub.s32 0, %v260
  %v262 = vrot.slane %v226, %v261
  %v263 = vlaneseq
  %v264 = vshrl.u32 %v263, 7
  %v265 = vsub.s32 1, %v264
  %v266 = vrot.slane %v226, %v265
  %v267 = vlaneseq
  %v268 = vshrl.u32 %v267, 7
  %v269 = vsub.s32 2, %v268
  %v270 = vrot.slane %v226, %v269
  %v290 = vunpack.c.l.b16 %v234
  %v291 = vunpack.c.h.b16 %v234
  %v292 = vunpack.c.l.b16 %v235
  %v293 = vunpack.c.l.b16 %v236
  %v294 = vunpack.c.h.b16 %v236
  %v295 = vunpack.c.l.b16 %v237
  %v296 = vunpack.c.l.b16 %v238
  %v297 = vunpack.c.h.b16 %v238
  %v298 = vunpack.c.l.b16 %v239
  %v299 = vunpack.c.l.b16 %v240
  %v300 = vunpack.c.h.b16 %v240
  %v301 = vunpack.c.l.b16 %v241
  %v302 = vunpack.c.l.b16 %v242
  %v303 = vunpack.c.h.b16 %v242
  %v304 = vunpack.c.l.b16 %v243
  %v305 = vunpack.c.l.b16 %v244
  %v306 = vunpack.c.h.b16 %v244
  %v307 = vunpack.c.l.b16 %v245
  %v308 = vunpack.c.l.b16 %v246
  %v309 = vunpack.c.h.b16 %v246
  %v310 = vunpack.c.l.b16 %v247
  %v311 = vunpack.c.l.b16 %v248
  %v312 = vunpack.c.h.b16 %v248
  %v313 = vunpack.c.l.b16 %v249
  %v314 = vpack.c.b16 %v293, %v290
  %v315 = vpack.c.b16 %v294, %v291
  %v316 = vpack.c.b16 %v295, %v292
  %v317 = vpack.c.b16 %v299, %v296
  %v318 = vpack.c.b16 %v300, %v297
  %v319 = vpack.c.b16 %v301, %v298
  %v320 = vpack.c.b16 %v305, %v302
  %v321 = vpack.c.b16 %v306, %v303
  %v322 = vpack.c.b16 %v307, %v304
  %v323 = vpack.c.b16 %v311, %v308
  %v324 = vpack.c.b16 %v312, %v309
  %v325 = vpack.c.b16 %v313, %v310
  %vm338 = vcmask 523264
  %v340 = vsel %vm338, %v250, 0
  %v343 = vsel %vm338, %v251, 0
  %v346 = vsel %vm338, %v252, 0
  %v349 = vsel %vm338, %v253, 0
  %v352 = vsel %vm338, %v254, 0
  %v355 = vsel %vm338, %v255, 0
  %v358 = vsel %vm338, %v256, 0
  %v361 = vsel %vm338, %v257, 0
  %363 = vmatprep.subr.bf16.mxu0 0
  %364 = vmatpush1.bf16.msra.mxu0 0
  %365 = vmatprep.subr.bf16.mxu0 0
  %366 = vmatpush1.bf16.msra.mxu0 0
  %367 = vmatprep.subr.bf16.mxu0 0
  %368 = vmatpush1.bf16.msra.mxu0 0
  %369 = vmatprep.subr.bf16.mxu0 0
  %370 = vmatpush1.bf16.msra.mxu0 0
  %371 = vmatprep.subr.bf16.mxu0 %v324
  %372 = vmatpush1.bf16.msra.mxu0 %v323
  %373 = vmatprep.subr.bf16.mxu0 %v321
  %374 = vmatpush1.bf16.msra.mxu0 %v320
  %375 = vmatprep.subr.bf16.mxu0 %v318
  %376 = vmatpush1.bf16.msra.mxu0 %v317
  %377 = vmatprep.subr.bf16.mxu0 %v315
  %378 = vmatpush1.bf16.msra.mxu0 %v314
  %379 = vmatprep.subr.bf16.mxu0 0
  %380 = vmatpush2.bf16.msra.mxu0 0
  %381 = vmatprep.subr.bf16.mxu0 0
  %382 = vmatpush2.bf16.msra.mxu0 0
  %383 = vmatprep.subr.bf16.mxu0 0
  %384 = vmatpush2.bf16.msra.mxu0 0
  %385 = vmatprep.subr.bf16.mxu0 0
  %386 = vmatpush2.bf16.msra.mxu0 0
  %387 = vmatprep.subr.bf16.mxu0 0
  %388 = vmatpush2.bf16.msra.mxu0 0
  %389 = vmatprep.subr.bf16.mxu0 0
  %390 = vmatpush2.bf16.msra.mxu0 0
  %391 = vmatprep.subr.bf16.mxu0 0
  %392 = vmatpush2.bf16.msra.mxu0 0
  %393 = vmatprep.subr.bf16.mxu0 0
  %394 = vmatpush2.bf16.msra.mxu0 0
  %395 = vmatprep.mubr.bf16.mxu0 0
  %396 = vmatmul.mubr.bf16.gmra.mxu0 %v340
  %v397 = vpop.f32.mrf.mxu0
  %v398 = vadd.f32 %v262, %v397
  %v399 = vpop.f32.mrf.mxu0
  %v400 = vadd.f32 %v266, %v399
  %v401 = vpop.f32.mrf.mxu0
  %v402 = vadd.f32 %v262, %v401
  %v403 = vpop.f32.mrf.mxu0
  %v404 = vadd.f32 %v266, %v403
  %405 = vmatprep.mubr.bf16.mxu0 0
  %406 = vmatmul.mubr.bf16.gmra.mxu0 %v343
  %v407 = vpop.f32.mrf.mxu0
  %v408 = vadd.f32 %v262, %v407
  %v409 = vpop.f32.mrf.mxu0
  %v410 = vadd.f32 %v266, %v409
  %v411 = vpop.f32.mrf.mxu0
  %v412 = vadd.f32 %v262, %v411
  %v413 = vpop.f32.mrf.mxu0
  %v414 = vadd.f32 %v266, %v413
  %415 = vmatprep.mubr.bf16.mxu0 0
  %416 = vmatmul.mubr.bf16.gmra.mxu0 %v346
  %v417 = vpop.f32.mrf.mxu0
  %v418 = vadd.f32 %v262, %v417
  %v419 = vpop.f32.mrf.mxu0
  %v420 = vadd.f32 %v266, %v419
  %v421 = vpop.f32.mrf.mxu0
  %v422 = vadd.f32 %v262, %v421
  %v423 = vpop.f32.mrf.mxu0
  %v424 = vadd.f32 %v266, %v423
  %425 = vmatprep.mubr.bf16.mxu0 0
  %426 = vmatmul.mubr.bf16.gmra.mxu0 %v349
  %v427 = vpop.f32.mrf.mxu0
  %v428 = vadd.f32 %v262, %v427
  %v429 = vpop.f32.mrf.mxu0
  %v430 = vadd.f32 %v266, %v429
  %v431 = vpop.f32.mrf.mxu0
  %v432 = vadd.f32 %v262, %v431
  %v433 = vpop.f32.mrf.mxu0
  %v434 = vadd.f32 %v266, %v433
  %435 = vmatprep.mubr.bf16.mxu0 0
  %436 = vmatmul.mubr.bf16.gmra.mxu0 %v352
  %v437 = vpop.f32.mrf.mxu0
  %v438 = vadd.f32 %v262, %v437
  %v439 = vpop.f32.mrf.mxu0
  %v440 = vadd.f32 %v266, %v439
  %v441 = vpop.f32.mrf.mxu0
  %v442 = vadd.f32 %v262, %v441
  %v443 = vpop.f32.mrf.mxu0
  %v444 = vadd.f32 %v266, %v443
  %445 = vmatprep.mubr.bf16.mxu0 0
  %446 = vmatmul.mubr.bf16.gmra.mxu0 %v355
  %v447 = vpop.f32.mrf.mxu0
  %v448 = vadd.f32 %v262, %v447
  %v449 = vpop.f32.mrf.mxu0
  %v450 = vadd.f32 %v266, %v449
  %v451 = vpop.f32.mrf.mxu0
  %v452 = vadd.f32 %v262, %v451
  %v453 = vpop.f32.mrf.mxu0
  %v454 = vadd.f32 %v266, %v453
  %455 = vmatprep.mubr.bf16.mxu0 0
  %456 = vmatmul.mubr.bf16.gmra.mxu0 %v358
  %v457 = vpop.f32.mrf.mxu0
  %v458 = vadd.f32 %v262, %v457
  %v459 = vpop.f32.mrf.mxu0
  %v460 = vadd.f32 %v266, %v459
  %v461 = vpop.f32.mrf.mxu0
  %v462 = vadd.f32 %v262, %v461
  %v463 = vpop.f32.mrf.mxu0
  %v464 = vadd.f32 %v266, %v463
  %465 = vmatprep.mubr.bf16.mxu0 0
  %466 = vmatmul.mubr.bf16.gmra.mxu0 %v361
  %v467 = vpop.f32.mrf.mxu0
  %v468 = vadd.f32 %v262, %v467
  %v469 = vpop.f32.mrf.mxu0
  %v470 = vadd.f32 %v266, %v469
  %v471 = vpop.f32.mrf.mxu0
  %v472 = vadd.f32 %v262, %v471
  %v473 = vpop.f32.mrf.mxu0
  %v474 = vadd.f32 %v266, %v473
  %475 = vdwg.mxu0
  %476 = vmatprep.subr.bf16.mxu0 0
  %477 = vmatpush1.bf16.msra.mxu0 0
  %478 = vmatprep.subr.bf16.mxu0 0
  %479 = vmatpush1.bf16.msra.mxu0 0
  %480 = vmatprep.subr.bf16.mxu0 0
  %481 = vmatpush1.bf16.msra.mxu0 0
  %482 = vmatprep.subr.bf16.mxu0 0
  %483 = vmatpush1.bf16.msra.mxu0 0
  %484 = vmatprep.subr.bf16.mxu0 0
  %485 = vmatpush1.bf16.msra.mxu0 %v325
  %486 = vmatprep.subr.bf16.mxu0 0
  %487 = vmatpush1.bf16.msra.mxu0 %v322
  %488 = vmatprep.subr.bf16.mxu0 0
  %489 = vmatpush1.bf16.msra.mxu0 %v319
  %490 = vmatprep.subr.bf16.mxu0 0
  %491 = vmatpush1.bf16.msra.mxu0 %v316
  %492 = vmatprep.subr.bf16.mxu0 0
  %493 = vmatpush2.bf16.msra.mxu0 0
  %494 = vmatprep.subr.bf16.mxu0 0
  %495 = vmatpush2.bf16.msra.mxu0 0
  %496 = vmatprep.subr.bf16.mxu0 0
  %497 = vmatpush2.bf16.msra.mxu0 0
  %498 = vmatprep.subr.bf16.mxu0 0
  %499 = vmatpush2.bf16.msra.mxu0 0
  %500 = vmatprep.subr.bf16.mxu0 0
  %501 = vmatpush2.bf16.msra.mxu0 0
  %502 = vmatprep.subr.bf16.mxu0 0
  %503 = vmatpush2.bf16.msra.mxu0 0
  %504 = vmatprep.subr.bf16.mxu0 0
  %505 = vmatpush2.bf16.msra.mxu0 0
  %506 = vmatprep.subr.bf16.mxu0 0
  %507 = vmatpush2.bf16.msra.mxu0 0
  %508 = vmatprep.mubr.bf16.mxu0 0
  %509 = vmatmul.mubr.bf16.gmra.mxu0 %v340
  %v510 = vpop.f32.mrf.mxu0
  %v511 = vadd.f32 %v270, %v510
  %v512 = vpop.f32.mrf.mxu0
  %v513 = vpop.f32.mrf.mxu0
  %v514 = vadd.f32 %v270, %v513
  %v515 = vpop.f32.mrf.mxu0
  %516 = vmatprep.mubr.bf16.mxu0 0
  %517 = vmatmul.mubr.bf16.gmra.mxu0 %v343
  %v518 = vpop.f32.mrf.mxu0
  %v519 = vadd.f32 %v270, %v518
  %v520 = vpop.f32.mrf.mxu0
  %v521 = vpop.f32.mrf.mxu0
  %v522 = vadd.f32 %v270, %v521
  %v523 = vpop.f32.mrf.mxu0
  %524 = vmatprep.mubr.bf16.mxu0 0
  %525 = vmatmul.mubr.bf16.gmra.mxu0 %v346
  %v526 = vpop.f32.mrf.mxu0
  %v527 = vadd.f32 %v270, %v526
  %v528 = vpop.f32.mrf.mxu0
  %v529 = vpop.f32.mrf.mxu0
  %v530 = vadd.f32 %v270, %v529
  %v531 = vpop.f32.mrf.mxu0
  %532 = vmatprep.mubr.bf16.mxu0 0
  %533 = vmatmul.mubr.bf16.gmra.mxu0 %v349
  %v534 = vpop.f32.mrf.mxu0
  %v535 = vadd.f32 %v270, %v534
  %v536 = vpop.f32.mrf.mxu0
  %v537 = vpop.f32.mrf.mxu0
  %v538 = vadd.f32 %v270, %v537
  %v539 = vpop.f32.mrf.mxu0
  %540 = vmatprep.mubr.bf16.mxu0 0
  %541 = vmatmul.mubr.bf16.gmra.mxu0 %v352
  %v542 = vpop.f32.mrf.mxu0
  %v543 = vadd.f32 %v270, %v542
  %v544 = vpop.f32.mrf.mxu0
  %v545 = vpop.f32.mrf.mxu0
  %v546 = vadd.f32 %v270, %v545
  %v547 = vpop.f32.mrf.mxu0
  %548 = vmatprep.mubr.bf16.mxu0 0
  %549 = vmatmul.mubr.bf16.gmra.mxu0 %v355
  %v550 = vpop.f32.mrf.mxu0
  %v551 = vadd.f32 %v270, %v550
  %v552 = vpop.f32.mrf.mxu0
  %v553 = vpop.f32.mrf.mxu0
  %v554 = vadd.f32 %v270, %v553
  %v555 = vpop.f32.mrf.mxu0
  %556 = vmatprep.mubr.bf16.mxu0 0
  %557 = vmatmul.mubr.bf16.gmra.mxu0 %v358
  %v558 = vpop.f32.mrf.mxu0
  %v559 = vadd.f32 %v270, %v558
  %v560 = vpop.f32.mrf.mxu0
  %v561 = vpop.f32.mrf.mxu0
  %v562 = vadd.f32 %v270, %v561
  %v563 = vpop.f32.mrf.mxu0
  %564 = vmatprep.mubr.bf16.mxu0 0
  %565 = vmatmul.mubr.bf16.gmra.mxu0 %v361
  %v566 = vpop.f32.mrf.mxu0
  %v567 = vadd.f32 %v270, %v566
  %v568 = vpop.f32.mrf.mxu0
  %v569 = vpop.f32.mrf.mxu0
  %v570 = vadd.f32 %v270, %v569
  %v571 = vpop.f32.mrf.mxu0
  %572 = vdwg.mxu0
  %v573 = vpack.c.bf16 %v402, %v398
  %v574 = vpack.c.bf16 %v404, %v400
  %v575 = vpack.c.bf16 %v514, %v511
  %v576 = vpack.c.bf16 %v412, %v408
  %v577 = vpack.c.bf16 %v414, %v410
  %v578 = vpack.c.bf16 %v522, %v519
  %v579 = vpack.c.bf16 %v422, %v418
  %v580 = vpack.c.bf16 %v424, %v420
  %v581 = vpack.c.bf16 %v530, %v527
  %v582 = vpack.c.bf16 %v432, %v428
  %v583 = vpack.c.bf16 %v434, %v430
  %v584 = vpack.c.bf16 %v538, %v535
  %v585 = vpack.c.bf16 %v442, %v438
  %v586 = vpack.c.bf16 %v444, %v440
  %v587 = vpack.c.bf16 %v546, %v543
  %v588 = vpack.c.bf16 %v452, %v448
  %v589 = vpack.c.bf16 %v454, %v450
  %v590 = vpack.c.bf16 %v554, %v551
  %v591 = vpack.c.bf16 %v462, %v458
  %v592 = vpack.c.bf16 %v464, %v460
  %v593 = vpack.c.bf16 %v562, %v559
  %v594 = vpack.c.bf16 %v472, %v468
  %v595 = vpack.c.bf16 %v474, %v470
  %v596 = vpack.c.bf16 %v570, %v567
  %601 = vrot.lane.b32.xlu0 %v573, 64
  %v602 = vpop.permute.xlu0 %601
  %603 = vrot.lane.b32.xlu0 %v576, 64
  %v604 = vpop.permute.xlu0 %603
  %605 = vrot.lane.b32.xlu0 %v579, 64
  %v606 = vpop.permute.xlu0 %605
  %607 = vrot.lane.b32.xlu0 %v582, 64
  %v608 = vpop.permute.xlu0 %607
  %v610 = vsel %vm104, %v573, 0
  %v613 = vsel %vm104, %v576, 0
  %v616 = vsel %vm104, %v579, 0
  %v619 = vsel %vm104, %v582, 0
  %v622 = vsel %vm104, %v602, 0
  %v625 = vsel %vm104, %v604, 0
  %v628 = vsel %vm104, %v606, 0
  %v631 = vsel %vm104, %v608, 0
  %633 = vmatprep.subr.bf16.mxu0 0
  %634 = vmatpush1.bf16.xpose.msra.mxu0 0
  %635 = vmatprep.subr.bf16.mxu0 0
  %636 = vmatpush1.bf16.xpose.msra.mxu0 0
  %637 = vmatprep.subr.bf16.mxu0 0
  %638 = vmatpush1.bf16.xpose.msra.mxu0 0
  %639 = vmatprep.subr.bf16.mxu0 0
  %640 = vmatpush1.bf16.xpose.msra.mxu0 0
  %641 = vmatprep.subr.bf16.mxu0 0
  %642 = vmatpush1.bf16.xpose.msra.mxu0 %v631
  %643 = vmatprep.subr.bf16.mxu0 0
  %644 = vmatpush1.bf16.xpose.msra.mxu0 %v628
  %645 = vmatprep.subr.bf16.mxu0 0
  %646 = vmatpush1.bf16.xpose.msra.mxu0 %v625
  %647 = vmatprep.subr.bf16.mxu0 0
  %648 = vmatpush1.bf16.xpose.msra.mxu0 %v622
  %649 = vmatprep.subr.bf16.mxu0 0
  %650 = vmatpush2.bf16.xpose.msra.mxu0 0
  %651 = vmatprep.subr.bf16.mxu0 0
  %652 = vmatpush2.bf16.xpose.msra.mxu0 0
  %653 = vmatprep.subr.bf16.mxu0 0
  %654 = vmatpush2.bf16.xpose.msra.mxu0 0
  %655 = vmatprep.subr.bf16.mxu0 0
  %656 = vmatpush2.bf16.xpose.msra.mxu0 0
  %657 = vmatprep.subr.bf16.mxu0 0
  %658 = vmatpush2.bf16.xpose.msra.mxu0 0
  %659 = vmatprep.subr.bf16.mxu0 0
  %660 = vmatpush2.bf16.xpose.msra.mxu0 0
  %661 = vmatprep.subr.bf16.mxu0 0
  %662 = vmatpush2.bf16.xpose.msra.mxu0 0
  %663 = vmatprep.subr.bf16.mxu0 0
  %664 = vmatpush2.bf16.xpose.msra.mxu0 0
  %665 = vmatprep.mubr.bf16.mxu0 0
  %666 = vmatmul.mubr.bf16.gmra.mxu0 %v610
  %v667 = vpop.f32.mrf.mxu0
  %v668 = vadd.f32 %v31, %v667
  %v669 = vpop.f32.mrf.mxu0
  %v670 = vpop.f32.mrf.mxu0
  %v671 = vadd.f32 %v31, %v670
  %v672 = vpop.f32.mrf.mxu0
  %673 = vmatprep.mubr.bf16.mxu0 0
  %674 = vmatmul.mubr.bf16.gmra.mxu0 %v613
  %v675 = vpop.f32.mrf.mxu0
  %v676 = vadd.f32 %v31, %v675
  %v677 = vpop.f32.mrf.mxu0
  %v678 = vpop.f32.mrf.mxu0
  %v679 = vadd.f32 %v31, %v678
  %v680 = vpop.f32.mrf.mxu0
  %681 = vmatprep.mubr.bf16.mxu0 0
  %682 = vmatmul.mubr.bf16.gmra.mxu0 %v616
  %v683 = vpop.f32.mrf.mxu0
  %v684 = vadd.f32 %v31, %v683
  %v685 = vpop.f32.mrf.mxu0
  %v686 = vpop.f32.mrf.mxu0
  %v687 = vadd.f32 %v31, %v686
  %v688 = vpop.f32.mrf.mxu0
  %689 = vmatprep.mubr.bf16.mxu0 0
  %690 = vmatmul.mubr.bf16.gmra.mxu0 %v619
  %v691 = vpop.f32.mrf.mxu0
  %v692 = vadd.f32 %v31, %v691
  %v693 = vpop.f32.mrf.mxu0
  %v694 = vpop.f32.mrf.mxu0
  %v695 = vadd.f32 %v31, %v694
  %v696 = vpop.f32.mrf.mxu0
  %697 = vdwg.mxu0
  %v698 = vsel %vm338, %v668, -inf
  %699 = vmax.xlane.f32.xlu0 %v698
  %v700 = vpop.xlane.xlu0 %699
  %v701 = vsel %vm338, %v671, -inf
  %702 = vmax.xlane.f32.xlu0 %v701
  %v703 = vpop.xlane.xlu0 %702
  %v704 = vsel %vm338, %v676, -inf
  %705 = vmax.xlane.f32.xlu0 %v704
  %v706 = vpop.xlane.xlu0 %705
  %v707 = vsel %vm338, %v679, -inf
  %708 = vmax.xlane.f32.xlu0 %v707
  %v709 = vpop.xlane.xlu0 %708
  %v710 = vsel %vm338, %v684, -inf
  %711 = vmax.xlane.f32.xlu0 %v710
  %v712 = vpop.xlane.xlu0 %711
  %v713 = vsel %vm338, %v687, -inf
  %714 = vmax.xlane.f32.xlu0 %v713
  %v715 = vpop.xlane.xlu0 %714
  %v716 = vsel %vm338, %v692, -inf
  %717 = vmax.xlane.f32.xlu0 %v716
  %v718 = vpop.xlane.xlu0 %717
  %v719 = vsel %vm338, %v695, -inf
  %720 = vmax.xlane.f32.xlu0 %v719
  %v721 = vpop.xlane.xlu0 %720
  %v722 = vsub.f32 %v668, %v700
  %v723 = vsub.f32 %v671, %v703
  %v724 = vsub.f32 %v676, %v706
  %v725 = vsub.f32 %v679, %v709
  %v726 = vsub.f32 %v684, %v712
  %v727 = vsub.f32 %v687, %v715
  %v728 = vsub.f32 %v692, %v718
  %v729 = vsub.f32 %v695, %v721
  %v730 = vmul.f32 %v722, 1.442695
  %v731 = vpow.pop %v730
  %v732 = vmul.f32 %v723, 1.442695
  %v733 = vpow.pop %v732
  %v734 = vmul.f32 %v724, 1.442695
  %v735 = vpow.pop %v734
  %v736 = vmul.f32 %v725, 1.442695
  %v737 = vpow.pop %v736
  %v738 = vmul.f32 %v726, 1.442695
  %v739 = vpow.pop %v738
  %v740 = vmul.f32 %v727, 1.442695
  %v741 = vpow.pop %v740
  %v742 = vmul.f32 %v728, 1.442695
  %v743 = vpow.pop %v742
  %v744 = vmul.f32 %v729, 1.442695
  %v745 = vpow.pop %v744
  %v746 = vsel %vm338, %v731, 0.0
  %747 = vadd.xlane.f32.xlu0 %v746
  %v748 = vpop.xlane.xlu0 %747
  %v749 = vsel %vm338, %v733, 0.0
  %750 = vadd.xlane.f32.xlu0 %v749
  %v751 = vpop.xlane.xlu0 %750
  %v752 = vsel %vm338, %v735, 0.0
  %753 = vadd.xlane.f32.xlu0 %v752
  %v754 = vpop.xlane.xlu0 %753
  %v755 = vsel %vm338, %v737, 0.0
  %756 = vadd.xlane.f32.xlu0 %v755
  %v757 = vpop.xlane.xlu0 %756
  %v758 = vsel %vm338, %v739, 0.0
  %759 = vadd.xlane.f32.xlu0 %v758
  %v760 = vpop.xlane.xlu0 %759
  %v761 = vsel %vm338, %v741, 0.0
  %762 = vadd.xlane.f32.xlu0 %v761
  %v763 = vpop.xlane.xlu0 %762
  %v764 = vsel %vm338, %v743, 0.0
  %765 = vadd.xlane.f32.xlu0 %v764
  %v766 = vpop.xlane.xlu0 %765
  %v767 = vsel %vm338, %v745, 0.0
  %768 = vadd.xlane.f32.xlu0 %v767
  %v769 = vpop.xlane.xlu0 %768
  %v770 = vrcp.pop %v748
  %v771 = vrcp.pop %v751
  %v772 = vrcp.pop %v754
  %v773 = vrcp.pop %v757
  %v774 = vrcp.pop %v760
  %v775 = vrcp.pop %v763
  %v776 = vrcp.pop %v766
  %v777 = vrcp.pop %v769
  %v778 = vmul.f32 %v731, %v770
  %v779 = vmul.f32 %v733, %v771
  %v780 = vmul.f32 %v735, %v772
  %v781 = vmul.f32 %v737, %v773
  %v782 = vmul.f32 %v739, %v774
  %v783 = vmul.f32 %v741, %v775
  %v784 = vmul.f32 %v743, %v776
  %v785 = vmul.f32 %v745, %v777
  %v786 = vpack.c.bf16 %v779, %v778
  %v787 = vpack.c.bf16 %v781, %v780
  %v788 = vpack.c.bf16 %v783, %v782
  %v789 = vpack.c.bf16 %v785, %v784
  %790 = vrot.lane.b32.xlu0 %v573, 112
  %v791 = vpop.permute.xlu0 %790
  %792 = vrot.lane.b32.xlu0 %v576, 112
  %v793 = vpop.permute.xlu0 %792
  %794 = vrot.lane.b32.xlu0 %v579, 112
  %v795 = vpop.permute.xlu0 %794
  %796 = vrot.lane.b32.xlu0 %v582, 112
  %v797 = vpop.permute.xlu0 %796
  %798 = vrot.lane.b32.xlu0 %v573, 48
  %v799 = vpop.permute.xlu0 %798
  %800 = vrot.lane.b32.xlu0 %v576, 48
  %v801 = vpop.permute.xlu0 %800
  %802 = vrot.lane.b32.xlu0 %v579, 48
  %v803 = vpop.permute.xlu0 %802
  %804 = vrot.lane.b32.xlu0 %v582, 48
  %v805 = vpop.permute.xlu0 %804
  %v807 = vsel %vm104, %v791, 0
  %v810 = vsel %vm104, %v793, 0
  %v813 = vsel %vm104, %v795, 0
  %v816 = vsel %vm104, %v797, 0
  %v819 = vsel %vm104, %v799, 0
  %v822 = vsel %vm104, %v801, 0
  %v825 = vsel %vm104, %v803, 0
  %v828 = vsel %vm104, %v805, 0
  %830 = vmatprep.subr.bf16.mxu0 0
  %831 = vmatpush1.bf16.xpose.msra.mxu0 0
  %832 = vmatprep.subr.bf16.mxu0 0
  %833 = vmatpush1.bf16.xpose.msra.mxu0 0
  %834 = vmatprep.subr.bf16.mxu0 0
  %835 = vmatpush1.bf16.xpose.msra.mxu0 0
  %836 = vmatprep.subr.bf16.mxu0 0
  %837 = vmatpush1.bf16.xpose.msra.mxu0 0
  %838 = vmatprep.subr.bf16.mxu0 0
  %839 = vmatpush1.bf16.xpose.msra.mxu0 %v828
  %840 = vmatprep.subr.bf16.mxu0 0
  %841 = vmatpush1.bf16.xpose.msra.mxu0 %v825
  %842 = vmatprep.subr.bf16.mxu0 0
  %843 = vmatpush1.bf16.xpose.msra.mxu0 %v822
  %844 = vmatprep.subr.bf16.mxu0 0
  %845 = vmatpush1.bf16.xpose.msra.mxu0 %v819
  %846 = vmatprep.subr.bf16.mxu0 0
  %847 = vmatpush2.bf16.xpose.msra.mxu0 0
  %848 = vmatprep.subr.bf16.mxu0 0
  %849 = vmatpush2.bf16.xpose.msra.mxu0 0
  %850 = vmatprep.subr.bf16.mxu0 0
  %851 = vmatpush2.bf16.xpose.msra.mxu0 0
  %852 = vmatprep.subr.bf16.mxu0 0
  %853 = vmatpush2.bf16.xpose.msra.mxu0 0
  %854 = vmatprep.subr.bf16.mxu0 0
  %855 = vmatpush2.bf16.xpose.msra.mxu0 0
  %856 = vmatprep.subr.bf16.mxu0 0
  %857 = vmatpush2.bf16.xpose.msra.mxu0 0
  %858 = vmatprep.subr.bf16.mxu0 0
  %859 = vmatpush2.bf16.xpose.msra.mxu0 0
  %860 = vmatprep.subr.bf16.mxu0 0
  %861 = vmatpush2.bf16.xpose.msra.mxu0 0
  %862 = vmatprep.mubr.bf16.mxu0 0
  %863 = vmatmul.mubr.bf16.gmra.mxu0 %v807
  %v864 = vpop.f32.mrf.mxu0
  %v865 = vadd.f32 %v31, %v864
  %v866 = vpop.f32.mrf.mxu0
  %v867 = vpop.f32.mrf.mxu0
  %v868 = vadd.f32 %v31, %v867
  %v869 = vpop.f32.mrf.mxu0
  %870 = vmatprep.mubr.bf16.mxu0 0
  %871 = vmatmul.mubr.bf16.gmra.mxu0 %v810
  %v872 = vpop.f32.mrf.mxu0
  %v873 = vadd.f32 %v31, %v872
  %v874 = vpop.f32.mrf.mxu0
  %v875 = vpop.f32.mrf.mxu0
  %v876 = vadd.f32 %v31, %v875
  %v877 = vpop.f32.mrf.mxu0
  %878 = vmatprep.mubr.bf16.mxu0 0
  %879 = vmatmul.mubr.bf16.gmra.mxu0 %v813
  %v880 = vpop.f32.mrf.mxu0
  %v881 = vadd.f32 %v31, %v880
  %v882 = vpop.f32.mrf.mxu0
  %v883 = vpop.f32.mrf.mxu0
  %v884 = vadd.f32 %v31, %v883
  %v885 = vpop.f32.mrf.mxu0
  %886 = vmatprep.mubr.bf16.mxu0 0
  %887 = vmatmul.mubr.bf16.gmra.mxu0 %v816
  %v888 = vpop.f32.mrf.mxu0
  %v889 = vadd.f32 %v31, %v888
  %v890 = vpop.f32.mrf.mxu0
  %v891 = vpop.f32.mrf.mxu0
  %v892 = vadd.f32 %v31, %v891
  %v893 = vpop.f32.mrf.mxu0
  %894 = vdwg.mxu0
  %v895 = vsel %vm338, %v865, -inf
  %896 = vmax.xlane.f32.xlu0 %v895
  %v897 = vpop.xlane.xlu0 %896
  %v898 = vsel %vm338, %v868, -inf
  %899 = vmax.xlane.f32.xlu0 %v898
  %v900 = vpop.xlane.xlu0 %899
  %v901 = vsel %vm338, %v873, -inf
  %902 = vmax.xlane.f32.xlu0 %v901
  %v903 = vpop.xlane.xlu0 %902
  %v904 = vsel %vm338, %v876, -inf
  %905 = vmax.xlane.f32.xlu0 %v904
  %v906 = vpop.xlane.xlu0 %905
  %v907 = vsel %vm338, %v881, -inf
  %908 = vmax.xlane.f32.xlu0 %v907
  %v909 = vpop.xlane.xlu0 %908
  %v910 = vsel %vm338, %v884, -inf
  %911 = vmax.xlane.f32.xlu0 %v910
  %v912 = vpop.xlane.xlu0 %911
  %v913 = vsel %vm338, %v889, -inf
  %914 = vmax.xlane.f32.xlu0 %v913
  %v915 = vpop.xlane.xlu0 %914
  %v916 = vsel %vm338, %v892, -inf
  %917 = vmax.xlane.f32.xlu0 %v916
  %v918 = vpop.xlane.xlu0 %917
  %v919 = vsub.f32 %v865, %v897
  %v920 = vsub.f32 %v868, %v900
  %v921 = vsub.f32 %v873, %v903
  %v922 = vsub.f32 %v876, %v906
  %v923 = vsub.f32 %v881, %v909
  %v924 = vsub.f32 %v884, %v912
  %v925 = vsub.f32 %v889, %v915
  %v926 = vsub.f32 %v892, %v918
  %v927 = vmul.f32 %v919, 1.442695
  %v928 = vpow.pop %v927
  %v929 = vmul.f32 %v920, 1.442695
  %v930 = vpow.pop %v929
  %v931 = vmul.f32 %v921, 1.442695
  %v932 = vpow.pop %v931
  %v933 = vmul.f32 %v922, 1.442695
  %v934 = vpow.pop %v933
  %v935 = vmul.f32 %v923, 1.442695
  %v936 = vpow.pop %v935
  %v937 = vmul.f32 %v924, 1.442695
  %v938 = vpow.pop %v937
  %v939 = vmul.f32 %v925, 1.442695
  %v940 = vpow.pop %v939
  %v941 = vmul.f32 %v926, 1.442695
  %v942 = vpow.pop %v941
  %v943 = vsel %vm338, %v928, 0.0
  %944 = vadd.xlane.f32.xlu0 %v943
  %v945 = vpop.xlane.xlu0 %944
  %v946 = vsel %vm338, %v930, 0.0
  %947 = vadd.xlane.f32.xlu0 %v946
  %v948 = vpop.xlane.xlu0 %947
  %v949 = vsel %vm338, %v932, 0.0
  %950 = vadd.xlane.f32.xlu0 %v949
  %v951 = vpop.xlane.xlu0 %950
  %v952 = vsel %vm338, %v934, 0.0
  %953 = vadd.xlane.f32.xlu0 %v952
  %v954 = vpop.xlane.xlu0 %953
  %v955 = vsel %vm338, %v936, 0.0
  %956 = vadd.xlane.f32.xlu0 %v955
  %v957 = vpop.xlane.xlu0 %956
  %v958 = vsel %vm338, %v938, 0.0
  %959 = vadd.xlane.f32.xlu0 %v958
  %v960 = vpop.xlane.xlu0 %959
  %v961 = vsel %vm338, %v940, 0.0
  %962 = vadd.xlane.f32.xlu0 %v961
  %v963 = vpop.xlane.xlu0 %962
  %v964 = vsel %vm338, %v942, 0.0
  %965 = vadd.xlane.f32.xlu0 %v964
  %v966 = vpop.xlane.xlu0 %965
  %v967 = vrcp.pop %v945
  %v968 = vrcp.pop %v948
  %v969 = vrcp.pop %v951
  %v970 = vrcp.pop %v954
  %v971 = vrcp.pop %v957
  %v972 = vrcp.pop %v960
  %v973 = vrcp.pop %v963
  %v974 = vrcp.pop %v966
  %v975 = vmul.f32 %v928, %v967
  %v976 = vmul.f32 %v930, %v968
  %v977 = vmul.f32 %v932, %v969
  %v978 = vmul.f32 %v934, %v970
  %v979 = vmul.f32 %v936, %v971
  %v980 = vmul.f32 %v938, %v972
  %v981 = vmul.f32 %v940, %v973
  %v982 = vmul.f32 %v942, %v974
  %v983 = vpack.c.bf16 %v976, %v975
  %v984 = vpack.c.bf16 %v978, %v977
  %v985 = vpack.c.bf16 %v980, %v979
  %v986 = vpack.c.bf16 %v982, %v981
  %991 = vrot.lane.b32.xlu0 %v574, 64
  %v992 = vpop.permute.xlu0 %991
  %993 = vrot.lane.b32.xlu0 %v577, 64
  %v994 = vpop.permute.xlu0 %993
  %995 = vrot.lane.b32.xlu0 %v580, 64
  %v996 = vpop.permute.xlu0 %995
  %997 = vrot.lane.b32.xlu0 %v583, 64
  %v998 = vpop.permute.xlu0 %997
  %v1004 = vsel %vm338, %v983, 0
  %v1007 = vsel %vm338, %v984, 0
  %v1010 = vsel %vm338, %v985, 0
  %v1013 = vsel %vm338, %v986, 0
  %1015 = vmatprep.subr.bf16.mxu0 0
  %1016 = vmatpush1.bf16.msra.mxu0 0
  %1017 = vmatprep.subr.bf16.mxu0 0
  %1018 = vmatpush1.bf16.msra.mxu0 0
  %1019 = vmatprep.subr.bf16.mxu0 0
  %1020 = vmatpush1.bf16.msra.mxu0 0
  %1021 = vmatprep.subr.bf16.mxu0 0
  %1022 = vmatpush1.bf16.msra.mxu0 0
  %1023 = vmatprep.subr.bf16.mxu0 0
  %1024 = vmatpush1.bf16.msra.mxu0 %v998
  %1025 = vmatprep.subr.bf16.mxu0 0
  %1026 = vmatpush1.bf16.msra.mxu0 %v996
  %1027 = vmatprep.subr.bf16.mxu0 0
  %1028 = vmatpush1.bf16.msra.mxu0 %v994
  %1029 = vmatprep.subr.bf16.mxu0 0
  %1030 = vmatpush1.bf16.msra.mxu0 %v992
  %1031 = vmatprep.subr.bf16.mxu0 0
  %1032 = vmatpush2.bf16.msra.mxu0 0
  %1033 = vmatprep.subr.bf16.mxu0 0
  %1034 = vmatpush2.bf16.msra.mxu0 0
  %1035 = vmatprep.subr.bf16.mxu0 0
  %1036 = vmatpush2.bf16.msra.mxu0 0
  %1037 = vmatprep.subr.bf16.mxu0 0
  %1038 = vmatpush2.bf16.msra.mxu0 0
  %1039 = vmatprep.subr.bf16.mxu0 0
  %1040 = vmatpush2.bf16.msra.mxu0 0
  %1041 = vmatprep.subr.bf16.mxu0 0
  %1042 = vmatpush2.bf16.msra.mxu0 0
  %1043 = vmatprep.subr.bf16.mxu0 0
  %1044 = vmatpush2.bf16.msra.mxu0 0
  %1045 = vmatprep.subr.bf16.mxu0 0
  %1046 = vmatpush2.bf16.msra.mxu0 0
  %1047 = vmatprep.mubr.bf16.mxu0 0
  %1048 = vmatmul.mubr.bf16.gmra.mxu0 %v1004
  %v1049 = vpop.f32.mrf.mxu0
  %v1050 = vadd.f32 0.0, %v1049
  %v1051 = vpop.f32.mrf.mxu0
  %v1052 = vpop.f32.mrf.mxu0
  %v1053 = vadd.f32 0.0, %v1052
  %v1054 = vpop.f32.mrf.mxu0
  %1055 = vmatprep.mubr.bf16.mxu0 0
  %1056 = vmatmul.mubr.bf16.gmra.mxu0 %v1007
  %v1057 = vpop.f32.mrf.mxu0
  %v1058 = vadd.f32 0.0, %v1057
  %v1059 = vpop.f32.mrf.mxu0
  %v1060 = vpop.f32.mrf.mxu0
  %v1061 = vadd.f32 0.0, %v1060
  %v1062 = vpop.f32.mrf.mxu0
  %1063 = vmatprep.mubr.bf16.mxu0 0
  %1064 = vmatmul.mubr.bf16.gmra.mxu0 %v1010
  %v1065 = vpop.f32.mrf.mxu0
  %v1066 = vadd.f32 0.0, %v1065
  %v1067 = vpop.f32.mrf.mxu0
  %v1068 = vpop.f32.mrf.mxu0
  %v1069 = vadd.f32 0.0, %v1068
  %v1070 = vpop.f32.mrf.mxu0
  %1071 = vmatprep.mubr.bf16.mxu0 0
  %1072 = vmatmul.mubr.bf16.gmra.mxu0 %v1013
  %v1073 = vpop.f32.mrf.mxu0
  %v1074 = vadd.f32 0.0, %v1073
  %v1075 = vpop.f32.mrf.mxu0
  %v1076 = vpop.f32.mrf.mxu0
  %v1077 = vadd.f32 0.0, %v1076
  %v1078 = vpop.f32.mrf.mxu0
  %1079 = vdwg.mxu0
  %v1081 = vsel %vm338, %v786, 0
  %v1084 = vsel %vm338, %v787, 0
  %v1087 = vsel %vm338, %v788, 0
  %v1090 = vsel %vm338, %v789, 0
  %1092 = vmatprep.subr.bf16.mxu0 0
  %1093 = vmatpush1.bf16.msra.mxu0 0
  %1094 = vmatprep.subr.bf16.mxu0 0
  %1095 = vmatpush1.bf16.msra.mxu0 0
  %1096 = vmatprep.subr.bf16.mxu0 0
  %1097 = vmatpush1.bf16.msra.mxu0 0
  %1098 = vmatprep.subr.bf16.mxu0 0
  %1099 = vmatpush1.bf16.msra.mxu0 0
  %1100 = vmatprep.subr.bf16.mxu0 0
  %1101 = vmatpush1.bf16.msra.mxu0 %v583
  %1102 = vmatprep.subr.bf16.mxu0 0
  %1103 = vmatpush1.bf16.msra.mxu0 %v580
  %1104 = vmatprep.subr.bf16.mxu0 0
  %1105 = vmatpush1.bf16.msra.mxu0 %v577
  %1106 = vmatprep.subr.bf16.mxu0 0
  %1107 = vmatpush1.bf16.msra.mxu0 %v574
  %1108 = vmatprep.subr.bf16.mxu0 0
  %1109 = vmatpush2.bf16.msra.mxu0 0
  %1110 = vmatprep.subr.bf16.mxu0 0
  %1111 = vmatpush2.bf16.msra.mxu0 0
  %1112 = vmatprep.subr.bf16.mxu0 0
  %1113 = vmatpush2.bf16.msra.mxu0 0
  %1114 = vmatprep.subr.bf16.mxu0 0
  %1115 = vmatpush2.bf16.msra.mxu0 0
  %1116 = vmatprep.subr.bf16.mxu0 0
  %1117 = vmatpush2.bf16.msra.mxu0 0
  %1118 = vmatprep.subr.bf16.mxu0 0
  %1119 = vmatpush2.bf16.msra.mxu0 0
  %1120 = vmatprep.subr.bf16.mxu0 0
  %1121 = vmatpush2.bf16.msra.mxu0 0
  %1122 = vmatprep.subr.bf16.mxu0 0
  %1123 = vmatpush2.bf16.msra.mxu0 0
  %1124 = vmatprep.mubr.bf16.mxu0 0
  %1125 = vmatmul.mubr.bf16.gmra.mxu0 %v1081
  %v1126 = vpop.f32.mrf.mxu0
  %v1127 = vadd.f32 %v1050, %v1126
  %v1128 = vpop.f32.mrf.mxu0
  %v1129 = vpop.f32.mrf.mxu0
  %v1130 = vadd.f32 %v1053, %v1129
  %v1131 = vpop.f32.mrf.mxu0
  %1132 = vmatprep.mubr.bf16.mxu0 0
  %1133 = vmatmul.mubr.bf16.gmra.mxu0 %v1084
  %v1134 = vpop.f32.mrf.mxu0
  %v1135 = vadd.f32 %v1058, %v1134
  %v1136 = vpop.f32.mrf.mxu0
  %v1137 = vpop.f32.mrf.mxu0
  %v1138 = vadd.f32 %v1061, %v1137
  %v1139 = vpop.f32.mrf.mxu0
  %1140 = vmatprep.mubr.bf16.mxu0 0
  %1141 = vmatmul.mubr.bf16.gmra.mxu0 %v1087
  %v1142 = vpop.f32.mrf.mxu0
  %v1143 = vadd.f32 %v1066, %v1142
  %v1144 = vpop.f32.mrf.mxu0
  %v1145 = vpop.f32.mrf.mxu0
  %v1146 = vadd.f32 %v1069, %v1145
  %v1147 = vpop.f32.mrf.mxu0
  %1148 = vmatprep.mubr.bf16.mxu0 0
  %1149 = vmatmul.mubr.bf16.gmra.mxu0 %v1090
  %v1150 = vpop.f32.mrf.mxu0
  %v1151 = vadd.f32 %v1074, %v1150
  %v1152 = vpop.f32.mrf.mxu0
  %v1153 = vpop.f32.mrf.mxu0
  %v1154 = vadd.f32 %v1077, %v1153
  %v1155 = vpop.f32.mrf.mxu0
  %1156 = vdwg.mxu0
  %1157 = vrot.lane.b32.xlu0 %v573, 96
  %v1158 = vpop.permute.xlu0 %1157
  %1159 = vrot.lane.b32.xlu0 %v576, 96
  %v1160 = vpop.permute.xlu0 %1159
  %1161 = vrot.lane.b32.xlu0 %v579, 96
  %v1162 = vpop.permute.xlu0 %1161
  %1163 = vrot.lane.b32.xlu0 %v582, 96
  %v1164 = vpop.permute.xlu0 %1163
  %1165 = vrot.lane.b32.xlu0 %v573, 32
  %v1166 = vpop.permute.xlu0 %1165
  %1167 = vrot.lane.b32.xlu0 %v576, 32
  %v1168 = vpop.permute.xlu0 %1167
  %1169 = vrot.lane.b32.xlu0 %v579, 32
  %v1170 = vpop.permute.xlu0 %1169
  %1171 = vrot.lane.b32.xlu0 %v582, 32
  %v1172 = vpop.permute.xlu0 %1171
  %v1174 = vsel %vm104, %v1158, 0
  %v1177 = vsel %vm104, %v1160, 0
  %v1180 = vsel %vm104, %v1162, 0
  %v1183 = vsel %vm104, %v1164, 0
  %v1186 = vsel %vm104, %v1166, 0
  %v1189 = vsel %vm104, %v1168, 0
  %v1192 = vsel %vm104, %v1170, 0
  %v1195 = vsel %vm104, %v1172, 0
  %1197 = vmatprep.subr.bf16.mxu0 0
  %1198 = vmatpush1.bf16.xpose.msra.mxu0 0
  %1199 = vmatprep.subr.bf16.mxu0 0
  %1200 = vmatpush1.bf16.xpose.msra.mxu0 0
  %1201 = vmatprep.subr.bf16.mxu0 0
  %1202 = vmatpush1.bf16.xpose.msra.mxu0 0
  %1203 = vmatprep.subr.bf16.mxu0 0
  %1204 = vmatpush1.bf16.xpose.msra.mxu0 0
  %1205 = vmatprep.subr.bf16.mxu0 0
  %1206 = vmatpush1.bf16.xpose.msra.mxu0 %v1195
  %1207 = vmatprep.subr.bf16.mxu0 0
  %1208 = vmatpush1.bf16.xpose.msra.mxu0 %v1192
  %1209 = vmatprep.subr.bf16.mxu0 0
  %1210 = vmatpush1.bf16.xpose.msra.mxu0 %v1189
  %1211 = vmatprep.subr.bf16.mxu0 0
  %1212 = vmatpush1.bf16.xpose.msra.mxu0 %v1186
  %1213 = vmatprep.subr.bf16.mxu0 0
  %1214 = vmatpush2.bf16.xpose.msra.mxu0 0
  %1215 = vmatprep.subr.bf16.mxu0 0
  %1216 = vmatpush2.bf16.xpose.msra.mxu0 0
  %1217 = vmatprep.subr.bf16.mxu0 0
  %1218 = vmatpush2.bf16.xpose.msra.mxu0 0
  %1219 = vmatprep.subr.bf16.mxu0 0
  %1220 = vmatpush2.bf16.xpose.msra.mxu0 0
  %1221 = vmatprep.subr.bf16.mxu0 0
  %1222 = vmatpush2.bf16.xpose.msra.mxu0 0
  %1223 = vmatprep.subr.bf16.mxu0 0
  %1224 = vmatpush2.bf16.xpose.msra.mxu0 0
  %1225 = vmatprep.subr.bf16.mxu0 0
  %1226 = vmatpush2.bf16.xpose.msra.mxu0 0
  %1227 = vmatprep.subr.bf16.mxu0 0
  %1228 = vmatpush2.bf16.xpose.msra.mxu0 0
  %1229 = vmatprep.mubr.bf16.mxu0 0
  %1230 = vmatmul.mubr.bf16.gmra.mxu0 %v1174
  %v1231 = vpop.f32.mrf.mxu0
  %v1232 = vadd.f32 %v31, %v1231
  %v1233 = vpop.f32.mrf.mxu0
  %v1234 = vpop.f32.mrf.mxu0
  %v1235 = vadd.f32 %v31, %v1234
  %v1236 = vpop.f32.mrf.mxu0
  %1237 = vmatprep.mubr.bf16.mxu0 0
  %1238 = vmatmul.mubr.bf16.gmra.mxu0 %v1177
  %v1239 = vpop.f32.mrf.mxu0
  %v1240 = vadd.f32 %v31, %v1239
  %v1241 = vpop.f32.mrf.mxu0
  %v1242 = vpop.f32.mrf.mxu0
  %v1243 = vadd.f32 %v31, %v1242
  %v1244 = vpop.f32.mrf.mxu0
  %1245 = vmatprep.mubr.bf16.mxu0 0
  %1246 = vmatmul.mubr.bf16.gmra.mxu0 %v1180
  %v1247 = vpop.f32.mrf.mxu0
  %v1248 = vadd.f32 %v31, %v1247
  %v1249 = vpop.f32.mrf.mxu0
  %v1250 = vpop.f32.mrf.mxu0
  %v1251 = vadd.f32 %v31, %v1250
  %v1252 = vpop.f32.mrf.mxu0
  %1253 = vmatprep.mubr.bf16.mxu0 0
  %1254 = vmatmul.mubr.bf16.gmra.mxu0 %v1183
  %v1255 = vpop.f32.mrf.mxu0
  %v1256 = vadd.f32 %v31, %v1255
  %v1257 = vpop.f32.mrf.mxu0
  %v1258 = vpop.f32.mrf.mxu0
  %v1259 = vadd.f32 %v31, %v1258
  %v1260 = vpop.f32.mrf.mxu0
  %1261 = vdwg.mxu0
  %v1262 = vsel %vm338, %v1232, -inf
  %1263 = vmax.xlane.f32.xlu0 %v1262
  %v1264 = vpop.xlane.xlu0 %1263
  %v1265 = vsel %vm338, %v1235, -inf
  %1266 = vmax.xlane.f32.xlu0 %v1265
  %v1267 = vpop.xlane.xlu0 %1266
  %v1268 = vsel %vm338, %v1240, -inf
  %1269 = vmax.xlane.f32.xlu0 %v1268
  %v1270 = vpop.xlane.xlu0 %1269
  %v1271 = vsel %vm338, %v1243, -inf
  %1272 = vmax.xlane.f32.xlu0 %v1271
  %v1273 = vpop.xlane.xlu0 %1272
  %v1274 = vsel %vm338, %v1248, -inf
  %1275 = vmax.xlane.f32.xlu0 %v1274
  %v1276 = vpop.xlane.xlu0 %1275
  %v1277 = vsel %vm338, %v1251, -inf
  %1278 = vmax.xlane.f32.xlu0 %v1277
  %v1279 = vpop.xlane.xlu0 %1278
  %v1280 = vsel %vm338, %v1256, -inf
  %1281 = vmax.xlane.f32.xlu0 %v1280
  %v1282 = vpop.xlane.xlu0 %1281
  %v1283 = vsel %vm338, %v1259, -inf
  %1284 = vmax.xlane.f32.xlu0 %v1283
  %v1285 = vpop.xlane.xlu0 %1284
  %v1286 = vsub.f32 %v1232, %v1264
  %v1287 = vsub.f32 %v1235, %v1267
  %v1288 = vsub.f32 %v1240, %v1270
  %v1289 = vsub.f32 %v1243, %v1273
  %v1290 = vsub.f32 %v1248, %v1276
  %v1291 = vsub.f32 %v1251, %v1279
  %v1292 = vsub.f32 %v1256, %v1282
  %v1293 = vsub.f32 %v1259, %v1285
  %v1294 = vmul.f32 %v1286, 1.442695
  %v1295 = vpow.pop %v1294
  %v1296 = vmul.f32 %v1287, 1.442695
  %v1297 = vpow.pop %v1296
  %v1298 = vmul.f32 %v1288, 1.442695
  %v1299 = vpow.pop %v1298
  %v1300 = vmul.f32 %v1289, 1.442695
  %v1301 = vpow.pop %v1300
  %v1302 = vmul.f32 %v1290, 1.442695
  %v1303 = vpow.pop %v1302
  %v1304 = vmul.f32 %v1291, 1.442695
  %v1305 = vpow.pop %v1304
  %v1306 = vmul.f32 %v1292, 1.442695
  %v1307 = vpow.pop %v1306
  %v1308 = vmul.f32 %v1293, 1.442695
  %v1309 = vpow.pop %v1308
  %v1310 = vsel %vm338, %v1295, 0.0
  %1311 = vadd.xlane.f32.xlu0 %v1310
  %v1312 = vpop.xlane.xlu0 %1311
  %v1313 = vsel %vm338, %v1297, 0.0
  %1314 = vadd.xlane.f32.xlu0 %v1313
  %v1315 = vpop.xlane.xlu0 %1314
  %v1316 = vsel %vm338, %v1299, 0.0
  %1317 = vadd.xlane.f32.xlu0 %v1316
  %v1318 = vpop.xlane.xlu0 %1317
  %v1319 = vsel %vm338, %v1301, 0.0
  %1320 = vadd.xlane.f32.xlu0 %v1319
  %v1321 = vpop.xlane.xlu0 %1320
  %v1322 = vsel %vm338, %v1303, 0.0
  %1323 = vadd.xlane.f32.xlu0 %v1322
  %v1324 = vpop.xlane.xlu0 %1323
  %v1325 = vsel %vm338, %v1305, 0.0
  %1326 = vadd.xlane.f32.xlu0 %v1325
  %v1327 = vpop.xlane.xlu0 %1326
  %v1328 = vsel %vm338, %v1307, 0.0
  %1329 = vadd.xlane.f32.xlu0 %v1328
  %v1330 = vpop.xlane.xlu0 %1329
  %v1331 = vsel %vm338, %v1309, 0.0
  %1332 = vadd.xlane.f32.xlu0 %v1331
  %v1333 = vpop.xlane.xlu0 %1332
  %v1334 = vrcp.pop %v1312
  %v1335 = vrcp.pop %v1315
  %v1336 = vrcp.pop %v1318
  %v1337 = vrcp.pop %v1321
  %v1338 = vrcp.pop %v1324
  %v1339 = vrcp.pop %v1327
  %v1340 = vrcp.pop %v1330
  %v1341 = vrcp.pop %v1333
  %v1342 = vmul.f32 %v1295, %v1334
  %v1343 = vmul.f32 %v1297, %v1335
  %v1344 = vmul.f32 %v1299, %v1336
  %v1345 = vmul.f32 %v1301, %v1337
  %v1346 = vmul.f32 %v1303, %v1338
  %v1347 = vmul.f32 %v1305, %v1339
  %v1348 = vmul.f32 %v1307, %v1340
  %v1349 = vmul.f32 %v1309, %v1341
  %v1350 = vpack.c.bf16 %v1343, %v1342
  %v1351 = vpack.c.bf16 %v1345, %v1344
  %v1352 = vpack.c.bf16 %v1347, %v1346
  %v1353 = vpack.c.bf16 %v1349, %v1348
  %v1355 = vsel %vm338, %v1350, 0
  %v1358 = vsel %vm338, %v1351, 0
  %v1361 = vsel %vm338, %v1352, 0
  %v1364 = vsel %vm338, %v1353, 0
  %1366 = vmatprep.subr.bf16.mxu0 0
  %1367 = vmatpush1.bf16.msra.mxu0 0
  %1368 = vmatprep.subr.bf16.mxu0 0
  %1369 = vmatpush1.bf16.msra.mxu0 0
  %1370 = vmatprep.subr.bf16.mxu0 0
  %1371 = vmatpush1.bf16.msra.mxu0 0
  %1372 = vmatprep.subr.bf16.mxu0 0
  %1373 = vmatpush1.bf16.msra.mxu0 0
  %1374 = vmatprep.subr.bf16.mxu0 0
  %1375 = vmatpush1.bf16.msra.mxu0 %v584
  %1376 = vmatprep.subr.bf16.mxu0 0
  %1377 = vmatpush1.bf16.msra.mxu0 %v581
  %1378 = vmatprep.subr.bf16.mxu0 0
  %1379 = vmatpush1.bf16.msra.mxu0 %v578
  %1380 = vmatprep.subr.bf16.mxu0 0
  %1381 = vmatpush1.bf16.msra.mxu0 %v575
  %1382 = vmatprep.subr.bf16.mxu0 0
  %1383 = vmatpush2.bf16.msra.mxu0 0
  %1384 = vmatprep.subr.bf16.mxu0 0
  %1385 = vmatpush2.bf16.msra.mxu0 0
  %1386 = vmatprep.subr.bf16.mxu0 0
  %1387 = vmatpush2.bf16.msra.mxu0 0
  %1388 = vmatprep.subr.bf16.mxu0 0
  %1389 = vmatpush2.bf16.msra.mxu0 0
  %1390 = vmatprep.subr.bf16.mxu0 0
  %1391 = vmatpush2.bf16.msra.mxu0 0
  %1392 = vmatprep.subr.bf16.mxu0 0
  %1393 = vmatpush2.bf16.msra.mxu0 0
  %1394 = vmatprep.subr.bf16.mxu0 0
  %1395 = vmatpush2.bf16.msra.mxu0 0
  %1396 = vmatprep.subr.bf16.mxu0 0
  %1397 = vmatpush2.bf16.msra.mxu0 0
  %1398 = vmatprep.mubr.bf16.mxu0 0
  %1399 = vmatmul.mubr.bf16.gmra.mxu0 %v1355
  %v1400 = vpop.f32.mrf.mxu0
  %v1401 = vadd.f32 0.0, %v1400
  %v1402 = vpop.f32.mrf.mxu0
  %v1403 = vpop.f32.mrf.mxu0
  %v1404 = vadd.f32 0.0, %v1403
  %v1405 = vpop.f32.mrf.mxu0
  %1406 = vmatprep.mubr.bf16.mxu0 0
  %1407 = vmatmul.mubr.bf16.gmra.mxu0 %v1358
  %v1408 = vpop.f32.mrf.mxu0
  %v1409 = vadd.f32 0.0, %v1408
  %v1410 = vpop.f32.mrf.mxu0
  %v1411 = vpop.f32.mrf.mxu0
  %v1412 = vadd.f32 0.0, %v1411
  %v1413 = vpop.f32.mrf.mxu0
  %1414 = vmatprep.mubr.bf16.mxu0 0
  %1415 = vmatmul.mubr.bf16.gmra.mxu0 %v1361
  %v1416 = vpop.f32.mrf.mxu0
  %v1417 = vadd.f32 0.0, %v1416
  %v1418 = vpop.f32.mrf.mxu0
  %v1419 = vpop.f32.mrf.mxu0
  %v1420 = vadd.f32 0.0, %v1419
  %v1421 = vpop.f32.mrf.mxu0
  %1422 = vmatprep.mubr.bf16.mxu0 0
  %1423 = vmatmul.mubr.bf16.gmra.mxu0 %v1364
  %v1424 = vpop.f32.mrf.mxu0
  %v1425 = vadd.f32 0.0, %v1424
  %v1426 = vpop.f32.mrf.mxu0
  %v1427 = vpop.f32.mrf.mxu0
  %v1428 = vadd.f32 0.0, %v1427
  %v1429 = vpop.f32.mrf.mxu0
  %1430 = vdwg.mxu0
  %v1431 = vadd.f32 %v1127, %v1401
  %v1432 = vadd.f32 %v1130, %v1404
  %v1433 = vadd.f32 %v1135, %v1409
  %v1434 = vadd.f32 %v1138, %v1412
  %v1435 = vadd.f32 %v1143, %v1417
  %v1436 = vadd.f32 %v1146, %v1420
  %v1437 = vadd.f32 %v1151, %v1425
  %v1438 = vadd.f32 %v1154, %v1428
  %1439 = vrot.lane.b32.xlu0 %v573, 80
  %v1440 = vpop.permute.xlu0 %1439
  %1441 = vrot.lane.b32.xlu0 %v576, 80
  %v1442 = vpop.permute.xlu0 %1441
  %1443 = vrot.lane.b32.xlu0 %v579, 80
  %v1444 = vpop.permute.xlu0 %1443
  %1445 = vrot.lane.b32.xlu0 %v582, 80
  %v1446 = vpop.permute.xlu0 %1445
  %1447 = vrot.lane.b32.xlu0 %v573, 16
  %v1448 = vpop.permute.xlu0 %1447
  %1449 = vrot.lane.b32.xlu0 %v576, 16
  %v1450 = vpop.permute.xlu0 %1449
  %1451 = vrot.lane.b32.xlu0 %v579, 16
  %v1452 = vpop.permute.xlu0 %1451
  %1453 = vrot.lane.b32.xlu0 %v582, 16
  %v1454 = vpop.permute.xlu0 %1453
  %v1456 = vsel %vm104, %v1440, 0
  %v1459 = vsel %vm104, %v1442, 0
  %v1462 = vsel %vm104, %v1444, 0
  %v1465 = vsel %vm104, %v1446, 0
  %v1468 = vsel %vm104, %v1448, 0
  %v1471 = vsel %vm104, %v1450, 0
  %v1474 = vsel %vm104, %v1452, 0
  %v1477 = vsel %vm104, %v1454, 0
  %1479 = vmatprep.subr.bf16.mxu0 0
  %1480 = vmatpush1.bf16.xpose.msra.mxu0 0
  %1481 = vmatprep.subr.bf16.mxu0 0
  %1482 = vmatpush1.bf16.xpose.msra.mxu0 0
  %1483 = vmatprep.subr.bf16.mxu0 0
  %1484 = vmatpush1.bf16.xpose.msra.mxu0 0
  %1485 = vmatprep.subr.bf16.mxu0 0
  %1486 = vmatpush1.bf16.xpose.msra.mxu0 0
  %1487 = vmatprep.subr.bf16.mxu0 0
  %1488 = vmatpush1.bf16.xpose.msra.mxu0 %v1477
  %1489 = vmatprep.subr.bf16.mxu0 0
  %1490 = vmatpush1.bf16.xpose.msra.mxu0 %v1474
  %1491 = vmatprep.subr.bf16.mxu0 0
  %1492 = vmatpush1.bf16.xpose.msra.mxu0 %v1471
  %1493 = vmatprep.subr.bf16.mxu0 0
  %1494 = vmatpush1.bf16.xpose.msra.mxu0 %v1468
  %1495 = vmatprep.subr.bf16.mxu0 0
  %1496 = vmatpush2.bf16.xpose.msra.mxu0 0
  %1497 = vmatprep.subr.bf16.mxu0 0
  %1498 = vmatpush2.bf16.xpose.msra.mxu0 0
  %1499 = vmatprep.subr.bf16.mxu0 0
  %1500 = vmatpush2.bf16.xpose.msra.mxu0 0
  %1501 = vmatprep.subr.bf16.mxu0 0
  %1502 = vmatpush2.bf16.xpose.msra.mxu0 0
  %1503 = vmatprep.subr.bf16.mxu0 0
  %1504 = vmatpush2.bf16.xpose.msra.mxu0 0
  %1505 = vmatprep.subr.bf16.mxu0 0
  %1506 = vmatpush2.bf16.xpose.msra.mxu0 0
  %1507 = vmatprep.subr.bf16.mxu0 0
  %1508 = vmatpush2.bf16.xpose.msra.mxu0 0
  %1509 = vmatprep.subr.bf16.mxu0 0
  %1510 = vmatpush2.bf16.xpose.msra.mxu0 0
  %1511 = vmatprep.mubr.bf16.mxu0 0
  %1512 = vmatmul.mubr.bf16.gmra.mxu0 %v1456
  %v1513 = vpop.f32.mrf.mxu0
  %v1514 = vadd.f32 %v31, %v1513
  %v1515 = vpop.f32.mrf.mxu0
  %v1516 = vpop.f32.mrf.mxu0
  %v1517 = vadd.f32 %v31, %v1516
  %v1518 = vpop.f32.mrf.mxu0
  %1519 = vmatprep.mubr.bf16.mxu0 0
  %1520 = vmatmul.mubr.bf16.gmra.mxu0 %v1459
  %v1521 = vpop.f32.mrf.mxu0
  %v1522 = vadd.f32 %v31, %v1521
  %v1523 = vpop.f32.mrf.mxu0
  %v1524 = vpop.f32.mrf.mxu0
  %v1525 = vadd.f32 %v31, %v1524
  %v1526 = vpop.f32.mrf.mxu0
  %1527 = vmatprep.mubr.bf16.mxu0 0
  %1528 = vmatmul.mubr.bf16.gmra.mxu0 %v1462
  %v1529 = vpop.f32.mrf.mxu0
  %v1530 = vadd.f32 %v31, %v1529
  %v1531 = vpop.f32.mrf.mxu0
  %v1532 = vpop.f32.mrf.mxu0
  %v1533 = vadd.f32 %v31, %v1532
  %v1534 = vpop.f32.mrf.mxu0
  %1535 = vmatprep.mubr.bf16.mxu0 0
  %1536 = vmatmul.mubr.bf16.gmra.mxu0 %v1465
  %v1537 = vpop.f32.mrf.mxu0
  %v1538 = vadd.f32 %v31, %v1537
  %v1539 = vpop.f32.mrf.mxu0
  %v1540 = vpop.f32.mrf.mxu0
  %v1541 = vadd.f32 %v31, %v1540
  %v1542 = vpop.f32.mrf.mxu0
  %1543 = vdwg.mxu0
  %v1544 = vsel %vm338, %v1514, -inf
  %1545 = vmax.xlane.f32.xlu0 %v1544
  %v1546 = vpop.xlane.xlu0 %1545
  %v1547 = vsel %vm338, %v1517, -inf
  %1548 = vmax.xlane.f32.xlu0 %v1547
  %v1549 = vpop.xlane.xlu0 %1548
  %v1550 = vsel %vm338, %v1522, -inf
  %1551 = vmax.xlane.f32.xlu0 %v1550
  %v1552 = vpop.xlane.xlu0 %1551
  %v1553 = vsel %vm338, %v1525, -inf
  %1554 = vmax.xlane.f32.xlu0 %v1553
  %v1555 = vpop.xlane.xlu0 %1554
  %v1556 = vsel %vm338, %v1530, -inf
  %1557 = vmax.xlane.f32.xlu0 %v1556
  %v1558 = vpop.xlane.xlu0 %1557
  %v1559 = vsel %vm338, %v1533, -inf
  %1560 = vmax.xlane.f32.xlu0 %v1559
  %v1561 = vpop.xlane.xlu0 %1560
  %v1562 = vsel %vm338, %v1538, -inf
  %1563 = vmax.xlane.f32.xlu0 %v1562
  %v1564 = vpop.xlane.xlu0 %1563
  %v1565 = vsel %vm338, %v1541, -inf
  %1566 = vmax.xlane.f32.xlu0 %v1565
  %v1567 = vpop.xlane.xlu0 %1566
  %v1568 = vsub.f32 %v1514, %v1546
  %v1569 = vsub.f32 %v1517, %v1549
  %v1570 = vsub.f32 %v1522, %v1552
  %v1571 = vsub.f32 %v1525, %v1555
  %v1572 = vsub.f32 %v1530, %v1558
  %v1573 = vsub.f32 %v1533, %v1561
  %v1574 = vsub.f32 %v1538, %v1564
  %v1575 = vsub.f32 %v1541, %v1567
  %v1576 = vmul.f32 %v1568, 1.442695
  %v1577 = vpow.pop %v1576
  %v1578 = vmul.f32 %v1569, 1.442695
  %v1579 = vpow.pop %v1578
  %v1580 = vmul.f32 %v1570, 1.442695
  %v1581 = vpow.pop %v1580
  %v1582 = vmul.f32 %v1571, 1.442695
  %v1583 = vpow.pop %v1582
  %v1584 = vmul.f32 %v1572, 1.442695
  %v1585 = vpow.pop %v1584
  %v1586 = vmul.f32 %v1573, 1.442695
  %v1587 = vpow.pop %v1586
  %v1588 = vmul.f32 %v1574, 1.442695
  %v1589 = vpow.pop %v1588
  %v1590 = vmul.f32 %v1575, 1.442695
  %v1591 = vpow.pop %v1590
  %v1592 = vsel %vm338, %v1577, 0.0
  %1593 = vadd.xlane.f32.xlu0 %v1592
  %v1594 = vpop.xlane.xlu0 %1593
  %v1595 = vsel %vm338, %v1579, 0.0
  %1596 = vadd.xlane.f32.xlu0 %v1595
  %v1597 = vpop.xlane.xlu0 %1596
  %v1598 = vsel %vm338, %v1581, 0.0
  %1599 = vadd.xlane.f32.xlu0 %v1598
  %v1600 = vpop.xlane.xlu0 %1599
  %v1601 = vsel %vm338, %v1583, 0.0
  %1602 = vadd.xlane.f32.xlu0 %v1601
  %v1603 = vpop.xlane.xlu0 %1602
  %v1604 = vsel %vm338, %v1585, 0.0
  %1605 = vadd.xlane.f32.xlu0 %v1604
  %v1606 = vpop.xlane.xlu0 %1605
  %v1607 = vsel %vm338, %v1587, 0.0
  %1608 = vadd.xlane.f32.xlu0 %v1607
  %v1609 = vpop.xlane.xlu0 %1608
  %v1610 = vsel %vm338, %v1589, 0.0
  %1611 = vadd.xlane.f32.xlu0 %v1610
  %v1612 = vpop.xlane.xlu0 %1611
  %v1613 = vsel %vm338, %v1591, 0.0
  %1614 = vadd.xlane.f32.xlu0 %v1613
  %v1615 = vpop.xlane.xlu0 %1614
  %v1616 = vrcp.pop %v1594
  %v1617 = vrcp.pop %v1597
  %v1618 = vrcp.pop %v1600
  %v1619 = vrcp.pop %v1603
  %v1620 = vrcp.pop %v1606
  %v1621 = vrcp.pop %v1609
  %v1622 = vrcp.pop %v1612
  %v1623 = vrcp.pop %v1615
  %v1624 = vmul.f32 %v1577, %v1616
  %v1625 = vmul.f32 %v1579, %v1617
  %v1626 = vmul.f32 %v1581, %v1618
  %v1627 = vmul.f32 %v1583, %v1619
  %v1628 = vmul.f32 %v1585, %v1620
  %v1629 = vmul.f32 %v1587, %v1621
  %v1630 = vmul.f32 %v1589, %v1622
  %v1631 = vmul.f32 %v1591, %v1623
  %v1632 = vpack.c.bf16 %v1625, %v1624
  %v1633 = vpack.c.bf16 %v1627, %v1626
  %v1634 = vpack.c.bf16 %v1629, %v1628
  %v1635 = vpack.c.bf16 %v1631, %v1630
  %1640 = vrot.lane.b32.xlu0 %v575, 64
  %v1641 = vpop.permute.xlu0 %1640
  %1642 = vrot.lane.b32.xlu0 %v578, 64
  %v1643 = vpop.permute.xlu0 %1642
  %1644 = vrot.lane.b32.xlu0 %v581, 64
  %v1645 = vpop.permute.xlu0 %1644
  %1646 = vrot.lane.b32.xlu0 %v584, 64
  %v1647 = vpop.permute.xlu0 %1646
  %v1653 = vsel %vm338, %v1632, 0
  %v1656 = vsel %vm338, %v1633, 0
  %v1659 = vsel %vm338, %v1634, 0
  %v1662 = vsel %vm338, %v1635, 0
  %1664 = vmatprep.subr.bf16.mxu0 0
  %1665 = vmatpush1.bf16.msra.mxu0 0
  %1666 = vmatprep.subr.bf16.mxu0 0
  %1667 = vmatpush1.bf16.msra.mxu0 0
  %1668 = vmatprep.subr.bf16.mxu0 0
  %1669 = vmatpush1.bf16.msra.mxu0 0
  %1670 = vmatprep.subr.bf16.mxu0 0
  %1671 = vmatpush1.bf16.msra.mxu0 0
  %1672 = vmatprep.subr.bf16.mxu0 0
  %1673 = vmatpush1.bf16.msra.mxu0 %v1647
  %1674 = vmatprep.subr.bf16.mxu0 0
  %1675 = vmatpush1.bf16.msra.mxu0 %v1645
  %1676 = vmatprep.subr.bf16.mxu0 0
  %1677 = vmatpush1.bf16.msra.mxu0 %v1643
  %1678 = vmatprep.subr.bf16.mxu0 0
  %1679 = vmatpush1.bf16.msra.mxu0 %v1641
  %1680 = vmatprep.subr.bf16.mxu0 0
  %1681 = vmatpush2.bf16.msra.mxu0 0
  %1682 = vmatprep.subr.bf16.mxu0 0
  %1683 = vmatpush2.bf16.msra.mxu0 0
  %1684 = vmatprep.subr.bf16.mxu0 0
  %1685 = vmatpush2.bf16.msra.mxu0 0
  %1686 = vmatprep.subr.bf16.mxu0 0
  %1687 = vmatpush2.bf16.msra.mxu0 0
  %1688 = vmatprep.subr.bf16.mxu0 0
  %1689 = vmatpush2.bf16.msra.mxu0 0
  %1690 = vmatprep.subr.bf16.mxu0 0
  %1691 = vmatpush2.bf16.msra.mxu0 0
  %1692 = vmatprep.subr.bf16.mxu0 0
  %1693 = vmatpush2.bf16.msra.mxu0 0
  %1694 = vmatprep.subr.bf16.mxu0 0
  %1695 = vmatpush2.bf16.msra.mxu0 0
  %1696 = vmatprep.mubr.bf16.mxu0 0
  %1697 = vmatmul.mubr.bf16.gmra.mxu0 %v1653
  %v1698 = vpop.f32.mrf.mxu0
  %v1699 = vadd.f32 0.0, %v1698
  %v1700 = vpop.f32.mrf.mxu0
  %v1701 = vpop.f32.mrf.mxu0
  %v1702 = vadd.f32 0.0, %v1701
  %v1703 = vpop.f32.mrf.mxu0
  %1704 = vmatprep.mubr.bf16.mxu0 0
  %1705 = vmatmul.mubr.bf16.gmra.mxu0 %v1656
  %v1706 = vpop.f32.mrf.mxu0
  %v1707 = vadd.f32 0.0, %v1706
  %v1708 = vpop.f32.mrf.mxu0
  %v1709 = vpop.f32.mrf.mxu0
  %v1710 = vadd.f32 0.0, %v1709
  %v1711 = vpop.f32.mrf.mxu0
  %1712 = vmatprep.mubr.bf16.mxu0 0
  %1713 = vmatmul.mubr.bf16.gmra.mxu0 %v1659
  %v1714 = vpop.f32.mrf.mxu0
  %v1715 = vadd.f32 0.0, %v1714
  %v1716 = vpop.f32.mrf.mxu0
  %v1717 = vpop.f32.mrf.mxu0
  %v1718 = vadd.f32 0.0, %v1717
  %v1719 = vpop.f32.mrf.mxu0
  %1720 = vmatprep.mubr.bf16.mxu0 0
  %1721 = vmatmul.mubr.bf16.gmra.mxu0 %v1662
  %v1722 = vpop.f32.mrf.mxu0
  %v1723 = vadd.f32 0.0, %v1722
  %v1724 = vpop.f32.mrf.mxu0
  %v1725 = vpop.f32.mrf.mxu0
  %v1726 = vadd.f32 0.0, %v1725
  %v1727 = vpop.f32.mrf.mxu0
  %1728 = vdwg.mxu0
  %v1729 = vadd.f32 %v1431, %v1699
  %v1730 = vadd.f32 %v1432, %v1702
  %v1731 = vadd.f32 %v1433, %v1707
  %v1732 = vadd.f32 %v1434, %v1710
  %v1733 = vadd.f32 %v1435, %v1715
  %v1734 = vadd.f32 %v1436, %v1718
  %v1735 = vadd.f32 %v1437, %v1723
  %v1736 = vadd.f32 %v1438, %v1726
  %1741 = vrot.lane.b32.xlu0 %v585, 64
  %v1742 = vpop.permute.xlu0 %1741
  %1743 = vrot.lane.b32.xlu0 %v588, 64
  %v1744 = vpop.permute.xlu0 %1743
  %1745 = vrot.lane.b32.xlu0 %v591, 64
  %v1746 = vpop.permute.xlu0 %1745
  %1747 = vrot.lane.b32.xlu0 %v594, 64
  %v1748 = vpop.permute.xlu0 %1747
  %v1750 = vsel %vm104, %v585, 0
  %v1753 = vsel %vm104, %v588, 0
  %v1756 = vsel %vm104, %v591, 0
  %v1759 = vsel %vm104, %v594, 0
  %v1762 = vsel %vm104, %v1742, 0
  %v1765 = vsel %vm104, %v1744, 0
  %v1768 = vsel %vm104, %v1746, 0
  %v1771 = vsel %vm104, %v1748, 0
  %1773 = vmatprep.subr.bf16.mxu0 0
  %1774 = vmatpush1.bf16.xpose.msra.mxu0 0
  %1775 = vmatprep.subr.bf16.mxu0 0
  %1776 = vmatpush1.bf16.xpose.msra.mxu0 0
  %1777 = vmatprep.subr.bf16.mxu0 0
  %1778 = vmatpush1.bf16.xpose.msra.mxu0 0
  %1779 = vmatprep.subr.bf16.mxu0 0
  %1780 = vmatpush1.bf16.xpose.msra.mxu0 0
  %1781 = vmatprep.subr.bf16.mxu0 0
  %1782 = vmatpush1.bf16.xpose.msra.mxu0 %v1771
  %1783 = vmatprep.subr.bf16.mxu0 0
  %1784 = vmatpush1.bf16.xpose.msra.mxu0 %v1768
  %1785 = vmatprep.subr.bf16.mxu0 0
  %1786 = vmatpush1.bf16.xpose.msra.mxu0 %v1765
  %1787 = vmatprep.subr.bf16.mxu0 0
  %1788 = vmatpush1.bf16.xpose.msra.mxu0 %v1762
  %1789 = vmatprep.subr.bf16.mxu0 0
  %1790 = vmatpush2.bf16.xpose.msra.mxu0 0
  %1791 = vmatprep.subr.bf16.mxu0 0
  %1792 = vmatpush2.bf16.xpose.msra.mxu0 0
  %1793 = vmatprep.subr.bf16.mxu0 0
  %1794 = vmatpush2.bf16.xpose.msra.mxu0 0
  %1795 = vmatprep.subr.bf16.mxu0 0
  %1796 = vmatpush2.bf16.xpose.msra.mxu0 0
  %1797 = vmatprep.subr.bf16.mxu0 0
  %1798 = vmatpush2.bf16.xpose.msra.mxu0 0
  %1799 = vmatprep.subr.bf16.mxu0 0
  %1800 = vmatpush2.bf16.xpose.msra.mxu0 0
  %1801 = vmatprep.subr.bf16.mxu0 0
  %1802 = vmatpush2.bf16.xpose.msra.mxu0 0
  %1803 = vmatprep.subr.bf16.mxu0 0
  %1804 = vmatpush2.bf16.xpose.msra.mxu0 0
  %1805 = vmatprep.mubr.bf16.mxu0 0
  %1806 = vmatmul.mubr.bf16.gmra.mxu0 %v1750
  %v1807 = vpop.f32.mrf.mxu0
  %v1808 = vadd.f32 %v31, %v1807
  %v1809 = vpop.f32.mrf.mxu0
  %v1810 = vpop.f32.mrf.mxu0
  %v1811 = vadd.f32 %v31, %v1810
  %v1812 = vpop.f32.mrf.mxu0
  %1813 = vmatprep.mubr.bf16.mxu0 0
  %1814 = vmatmul.mubr.bf16.gmra.mxu0 %v1753
  %v1815 = vpop.f32.mrf.mxu0
  %v1816 = vadd.f32 %v31, %v1815
  %v1817 = vpop.f32.mrf.mxu0
  %v1818 = vpop.f32.mrf.mxu0
  %v1819 = vadd.f32 %v31, %v1818
  %v1820 = vpop.f32.mrf.mxu0
  %1821 = vmatprep.mubr.bf16.mxu0 0
  %1822 = vmatmul.mubr.bf16.gmra.mxu0 %v1756
  %v1823 = vpop.f32.mrf.mxu0
  %v1824 = vadd.f32 %v31, %v1823
  %v1825 = vpop.f32.mrf.mxu0
  %v1826 = vpop.f32.mrf.mxu0
  %v1827 = vadd.f32 %v31, %v1826
  %v1828 = vpop.f32.mrf.mxu0
  %1829 = vmatprep.mubr.bf16.mxu0 0
  %1830 = vmatmul.mubr.bf16.gmra.mxu0 %v1759
  %v1831 = vpop.f32.mrf.mxu0
  %v1832 = vadd.f32 %v31, %v1831
  %v1833 = vpop.f32.mrf.mxu0
  %v1834 = vpop.f32.mrf.mxu0
  %v1835 = vadd.f32 %v31, %v1834
  %v1836 = vpop.f32.mrf.mxu0
  %1837 = vdwg.mxu0
  %v1838 = vsel %vm338, %v1808, -inf
  %1839 = vmax.xlane.f32.xlu0 %v1838
  %v1840 = vpop.xlane.xlu0 %1839
  %v1841 = vsel %vm338, %v1811, -inf
  %1842 = vmax.xlane.f32.xlu0 %v1841
  %v1843 = vpop.xlane.xlu0 %1842
  %v1844 = vsel %vm338, %v1816, -inf
  %1845 = vmax.xlane.f32.xlu0 %v1844
  %v1846 = vpop.xlane.xlu0 %1845
  %v1847 = vsel %vm338, %v1819, -inf
  %1848 = vmax.xlane.f32.xlu0 %v1847
  %v1849 = vpop.xlane.xlu0 %1848
  %v1850 = vsel %vm338, %v1824, -inf
  %1851 = vmax.xlane.f32.xlu0 %v1850
  %v1852 = vpop.xlane.xlu0 %1851
  %v1853 = vsel %vm338, %v1827, -inf
  %1854 = vmax.xlane.f32.xlu0 %v1853
  %v1855 = vpop.xlane.xlu0 %1854
  %v1856 = vsel %vm338, %v1832, -inf
  %1857 = vmax.xlane.f32.xlu0 %v1856
  %v1858 = vpop.xlane.xlu0 %1857
  %v1859 = vsel %vm338, %v1835, -inf
  %1860 = vmax.xlane.f32.xlu0 %v1859
  %v1861 = vpop.xlane.xlu0 %1860
  %v1862 = vsub.f32 %v1808, %v1840
  %v1863 = vsub.f32 %v1811, %v1843
  %v1864 = vsub.f32 %v1816, %v1846
  %v1865 = vsub.f32 %v1819, %v1849
  %v1866 = vsub.f32 %v1824, %v1852
  %v1867 = vsub.f32 %v1827, %v1855
  %v1868 = vsub.f32 %v1832, %v1858
  %v1869 = vsub.f32 %v1835, %v1861
  %v1870 = vmul.f32 %v1862, 1.442695
  %v1871 = vpow.pop %v1870
  %v1872 = vmul.f32 %v1863, 1.442695
  %v1873 = vpow.pop %v1872
  %v1874 = vmul.f32 %v1864, 1.442695
  %v1875 = vpow.pop %v1874
  %v1876 = vmul.f32 %v1865, 1.442695
  %v1877 = vpow.pop %v1876
  %v1878 = vmul.f32 %v1866, 1.442695
  %v1879 = vpow.pop %v1878
  %v1880 = vmul.f32 %v1867, 1.442695
  %v1881 = vpow.pop %v1880
  %v1882 = vmul.f32 %v1868, 1.442695
  %v1883 = vpow.pop %v1882
  %v1884 = vmul.f32 %v1869, 1.442695
  %v1885 = vpow.pop %v1884
  %v1886 = vsel %vm338, %v1871, 0.0
  %1887 = vadd.xlane.f32.xlu0 %v1886
  %v1888 = vpop.xlane.xlu0 %1887
  %v1889 = vsel %vm338, %v1873, 0.0
  %1890 = vadd.xlane.f32.xlu0 %v1889
  %v1891 = vpop.xlane.xlu0 %1890
  %v1892 = vsel %vm338, %v1875, 0.0
  %1893 = vadd.xlane.f32.xlu0 %v1892
  %v1894 = vpop.xlane.xlu0 %1893
  %v1895 = vsel %vm338, %v1877, 0.0
  %1896 = vadd.xlane.f32.xlu0 %v1895
  %v1897 = vpop.xlane.xlu0 %1896
  %v1898 = vsel %vm338, %v1879, 0.0
  %1899 = vadd.xlane.f32.xlu0 %v1898
  %v1900 = vpop.xlane.xlu0 %1899
  %v1901 = vsel %vm338, %v1881, 0.0
  %1902 = vadd.xlane.f32.xlu0 %v1901
  %v1903 = vpop.xlane.xlu0 %1902
  %v1904 = vsel %vm338, %v1883, 0.0
  %1905 = vadd.xlane.f32.xlu0 %v1904
  %v1906 = vpop.xlane.xlu0 %1905
  %v1907 = vsel %vm338, %v1885, 0.0
  %1908 = vadd.xlane.f32.xlu0 %v1907
  %v1909 = vpop.xlane.xlu0 %1908
  %v1910 = vrcp.pop %v1888
  %v1911 = vrcp.pop %v1891
  %v1912 = vrcp.pop %v1894
  %v1913 = vrcp.pop %v1897
  %v1914 = vrcp.pop %v1900
  %v1915 = vrcp.pop %v1903
  %v1916 = vrcp.pop %v1906
  %v1917 = vrcp.pop %v1909
  %v1918 = vmul.f32 %v1871, %v1910
  %v1919 = vmul.f32 %v1873, %v1911
  %v1920 = vmul.f32 %v1875, %v1912
  %v1921 = vmul.f32 %v1877, %v1913
  %v1922 = vmul.f32 %v1879, %v1914
  %v1923 = vmul.f32 %v1881, %v1915
  %v1924 = vmul.f32 %v1883, %v1916
  %v1925 = vmul.f32 %v1885, %v1917
  %v1926 = vpack.c.bf16 %v1919, %v1918
  %v1927 = vpack.c.bf16 %v1921, %v1920
  %v1928 = vpack.c.bf16 %v1923, %v1922
  %v1929 = vpack.c.bf16 %v1925, %v1924
  %1930 = vrot.lane.b32.xlu0 %v585, 112
  %v1931 = vpop.permute.xlu0 %1930
  %1932 = vrot.lane.b32.xlu0 %v588, 112
  %v1933 = vpop.permute.xlu0 %1932
  %1934 = vrot.lane.b32.xlu0 %v591, 112
  %v1935 = vpop.permute.xlu0 %1934
  %1936 = vrot.lane.b32.xlu0 %v594, 112
  %v1937 = vpop.permute.xlu0 %1936
  %1938 = vrot.lane.b32.xlu0 %v585, 48
  %v1939 = vpop.permute.xlu0 %1938
  %1940 = vrot.lane.b32.xlu0 %v588, 48
  %v1941 = vpop.permute.xlu0 %1940
  %1942 = vrot.lane.b32.xlu0 %v591, 48
  %v1943 = vpop.permute.xlu0 %1942
  %1944 = vrot.lane.b32.xlu0 %v594, 48
  %v1945 = vpop.permute.xlu0 %1944
  %v1947 = vsel %vm104, %v1931, 0
  %v1950 = vsel %vm104, %v1933, 0
  %v1953 = vsel %vm104, %v1935, 0
  %v1956 = vsel %vm104, %v1937, 0
  %v1959 = vsel %vm104, %v1939, 0
  %v1962 = vsel %vm104, %v1941, 0
  %v1965 = vsel %vm104, %v1943, 0
  %v1968 = vsel %vm104, %v1945, 0
  %1970 = vmatprep.subr.bf16.mxu0 0
  %1971 = vmatpush1.bf16.xpose.msra.mxu0 0
  %1972 = vmatprep.subr.bf16.mxu0 0
  %1973 = vmatpush1.bf16.xpose.msra.mxu0 0
  %1974 = vmatprep.subr.bf16.mxu0 0
  %1975 = vmatpush1.bf16.xpose.msra.mxu0 0
  %1976 = vmatprep.subr.bf16.mxu0 0
  %1977 = vmatpush1.bf16.xpose.msra.mxu0 0
  %1978 = vmatprep.subr.bf16.mxu0 0
  %1979 = vmatpush1.bf16.xpose.msra.mxu0 %v1968
  %1980 = vmatprep.subr.bf16.mxu0 0
  %1981 = vmatpush1.bf16.xpose.msra.mxu0 %v1965
  %1982 = vmatprep.subr.bf16.mxu0 0
  %1983 = vmatpush1.bf16.xpose.msra.mxu0 %v1962
  %1984 = vmatprep.subr.bf16.mxu0 0
  %1985 = vmatpush1.bf16.xpose.msra.mxu0 %v1959
  %1986 = vmatprep.subr.bf16.mxu0 0
  %1987 = vmatpush2.bf16.xpose.msra.mxu0 0
  %1988 = vmatprep.subr.bf16.mxu0 0
  %1989 = vmatpush2.bf16.xpose.msra.mxu0 0
  %1990 = vmatprep.subr.bf16.mxu0 0
  %1991 = vmatpush2.bf16.xpose.msra.mxu0 0
  %1992 = vmatprep.subr.bf16.mxu0 0
  %1993 = vmatpush2.bf16.xpose.msra.mxu0 0
  %1994 = vmatprep.subr.bf16.mxu0 0
  %1995 = vmatpush2.bf16.xpose.msra.mxu0 0
  %1996 = vmatprep.subr.bf16.mxu0 0
  %1997 = vmatpush2.bf16.xpose.msra.mxu0 0
  %1998 = vmatprep.subr.bf16.mxu0 0
  %1999 = vmatpush2.bf16.xpose.msra.mxu0 0
  %2000 = vmatprep.subr.bf16.mxu0 0
  %2001 = vmatpush2.bf16.xpose.msra.mxu0 0
  %2002 = vmatprep.mubr.bf16.mxu0 0
  %2003 = vmatmul.mubr.bf16.gmra.mxu0 %v1947
  %v2004 = vpop.f32.mrf.mxu0
  %v2005 = vadd.f32 %v31, %v2004
  %v2006 = vpop.f32.mrf.mxu0
  %v2007 = vpop.f32.mrf.mxu0
  %v2008 = vadd.f32 %v31, %v2007
  %v2009 = vpop.f32.mrf.mxu0
  %2010 = vmatprep.mubr.bf16.mxu0 0
  %2011 = vmatmul.mubr.bf16.gmra.mxu0 %v1950
  %v2012 = vpop.f32.mrf.mxu0
  %v2013 = vadd.f32 %v31, %v2012
  %v2014 = vpop.f32.mrf.mxu0
  %v2015 = vpop.f32.mrf.mxu0
  %v2016 = vadd.f32 %v31, %v2015
  %v2017 = vpop.f32.mrf.mxu0
  %2018 = vmatprep.mubr.bf16.mxu0 0
  %2019 = vmatmul.mubr.bf16.gmra.mxu0 %v1953
  %v2020 = vpop.f32.mrf.mxu0
  %v2021 = vadd.f32 %v31, %v2020
  %v2022 = vpop.f32.mrf.mxu0
  %v2023 = vpop.f32.mrf.mxu0
  %v2024 = vadd.f32 %v31, %v2023
  %v2025 = vpop.f32.mrf.mxu0
  %2026 = vmatprep.mubr.bf16.mxu0 0
  %2027 = vmatmul.mubr.bf16.gmra.mxu0 %v1956
  %v2028 = vpop.f32.mrf.mxu0
  %v2029 = vadd.f32 %v31, %v2028
  %v2030 = vpop.f32.mrf.mxu0
  %v2031 = vpop.f32.mrf.mxu0
  %v2032 = vadd.f32 %v31, %v2031
  %v2033 = vpop.f32.mrf.mxu0
  %2034 = vdwg.mxu0
  %v2035 = vsel %vm338, %v2005, -inf
  %2036 = vmax.xlane.f32.xlu0 %v2035
  %v2037 = vpop.xlane.xlu0 %2036
  %v2038 = vsel %vm338, %v2008, -inf
  %2039 = vmax.xlane.f32.xlu0 %v2038
  %v2040 = vpop.xlane.xlu0 %2039
  %v2041 = vsel %vm338, %v2013, -inf
  %2042 = vmax.xlane.f32.xlu0 %v2041
  %v2043 = vpop.xlane.xlu0 %2042
  %v2044 = vsel %vm338, %v2016, -inf
  %2045 = vmax.xlane.f32.xlu0 %v2044
  %v2046 = vpop.xlane.xlu0 %2045
  %v2047 = vsel %vm338, %v2021, -inf
  %2048 = vmax.xlane.f32.xlu0 %v2047
  %v2049 = vpop.xlane.xlu0 %2048
  %v2050 = vsel %vm338, %v2024, -inf
  %2051 = vmax.xlane.f32.xlu0 %v2050
  %v2052 = vpop.xlane.xlu0 %2051
  %v2053 = vsel %vm338, %v2029, -inf
  %2054 = vmax.xlane.f32.xlu0 %v2053
  %v2055 = vpop.xlane.xlu0 %2054
  %v2056 = vsel %vm338, %v2032, -inf
  %2057 = vmax.xlane.f32.xlu0 %v2056
  %v2058 = vpop.xlane.xlu0 %2057
  %v2059 = vsub.f32 %v2005, %v2037
  %v2060 = vsub.f32 %v2008, %v2040
  %v2061 = vsub.f32 %v2013, %v2043
  %v2062 = vsub.f32 %v2016, %v2046
  %v2063 = vsub.f32 %v2021, %v2049
  %v2064 = vsub.f32 %v2024, %v2052
  %v2065 = vsub.f32 %v2029, %v2055
  %v2066 = vsub.f32 %v2032, %v2058
  %v2067 = vmul.f32 %v2059, 1.442695
  %v2068 = vpow.pop %v2067
  %v2069 = vmul.f32 %v2060, 1.442695
  %v2070 = vpow.pop %v2069
  %v2071 = vmul.f32 %v2061, 1.442695
  %v2072 = vpow.pop %v2071
  %v2073 = vmul.f32 %v2062, 1.442695
  %v2074 = vpow.pop %v2073
  %v2075 = vmul.f32 %v2063, 1.442695
  %v2076 = vpow.pop %v2075
  %v2077 = vmul.f32 %v2064, 1.442695
  %v2078 = vpow.pop %v2077
  %v2079 = vmul.f32 %v2065, 1.442695
  %v2080 = vpow.pop %v2079
  %v2081 = vmul.f32 %v2066, 1.442695
  %v2082 = vpow.pop %v2081
  %v2083 = vsel %vm338, %v2068, 0.0
  %2084 = vadd.xlane.f32.xlu0 %v2083
  %v2085 = vpop.xlane.xlu0 %2084
  %v2086 = vsel %vm338, %v2070, 0.0
  %2087 = vadd.xlane.f32.xlu0 %v2086
  %v2088 = vpop.xlane.xlu0 %2087
  %v2089 = vsel %vm338, %v2072, 0.0
  %2090 = vadd.xlane.f32.xlu0 %v2089
  %v2091 = vpop.xlane.xlu0 %2090
  %v2092 = vsel %vm338, %v2074, 0.0
  %2093 = vadd.xlane.f32.xlu0 %v2092
  %v2094 = vpop.xlane.xlu0 %2093
  %v2095 = vsel %vm338, %v2076, 0.0
  %2096 = vadd.xlane.f32.xlu0 %v2095
  %v2097 = vpop.xlane.xlu0 %2096
  %v2098 = vsel %vm338, %v2078, 0.0
  %2099 = vadd.xlane.f32.xlu0 %v2098
  %v2100 = vpop.xlane.xlu0 %2099
  %v2101 = vsel %vm338, %v2080, 0.0
  %2102 = vadd.xlane.f32.xlu0 %v2101
  %v2103 = vpop.xlane.xlu0 %2102
  %v2104 = vsel %vm338, %v2082, 0.0
  %2105 = vadd.xlane.f32.xlu0 %v2104
  %v2106 = vpop.xlane.xlu0 %2105
  %v2107 = vrcp.pop %v2085
  %v2108 = vrcp.pop %v2088
  %v2109 = vrcp.pop %v2091
  %v2110 = vrcp.pop %v2094
  %v2111 = vrcp.pop %v2097
  %v2112 = vrcp.pop %v2100
  %v2113 = vrcp.pop %v2103
  %v2114 = vrcp.pop %v2106
  %v2115 = vmul.f32 %v2068, %v2107
  %v2116 = vmul.f32 %v2070, %v2108
  %v2117 = vmul.f32 %v2072, %v2109
  %v2118 = vmul.f32 %v2074, %v2110
  %v2119 = vmul.f32 %v2076, %v2111
  %v2120 = vmul.f32 %v2078, %v2112
  %v2121 = vmul.f32 %v2080, %v2113
  %v2122 = vmul.f32 %v2082, %v2114
  %v2123 = vpack.c.bf16 %v2116, %v2115
  %v2124 = vpack.c.bf16 %v2118, %v2117
  %v2125 = vpack.c.bf16 %v2120, %v2119
  %v2126 = vpack.c.bf16 %v2122, %v2121
  %2131 = vrot.lane.b32.xlu0 %v586, 64
  %v2132 = vpop.permute.xlu0 %2131
  %2133 = vrot.lane.b32.xlu0 %v589, 64
  %v2134 = vpop.permute.xlu0 %2133
  %2135 = vrot.lane.b32.xlu0 %v592, 64
  %v2136 = vpop.permute.xlu0 %2135
  %2137 = vrot.lane.b32.xlu0 %v595, 64
  %v2138 = vpop.permute.xlu0 %2137
  %v2144 = vsel %vm338, %v2123, 0
  %v2147 = vsel %vm338, %v2124, 0
  %v2150 = vsel %vm338, %v2125, 0
  %v2153 = vsel %vm338, %v2126, 0
  %2155 = vmatprep.subr.bf16.mxu0 0
  %2156 = vmatpush1.bf16.msra.mxu0 0
  %2157 = vmatprep.subr.bf16.mxu0 0
  %2158 = vmatpush1.bf16.msra.mxu0 0
  %2159 = vmatprep.subr.bf16.mxu0 0
  %2160 = vmatpush1.bf16.msra.mxu0 0
  %2161 = vmatprep.subr.bf16.mxu0 0
  %2162 = vmatpush1.bf16.msra.mxu0 0
  %2163 = vmatprep.subr.bf16.mxu0 0
  %2164 = vmatpush1.bf16.msra.mxu0 %v2138
  %2165 = vmatprep.subr.bf16.mxu0 0
  %2166 = vmatpush1.bf16.msra.mxu0 %v2136
  %2167 = vmatprep.subr.bf16.mxu0 0
  %2168 = vmatpush1.bf16.msra.mxu0 %v2134
  %2169 = vmatprep.subr.bf16.mxu0 0
  %2170 = vmatpush1.bf16.msra.mxu0 %v2132
  %2171 = vmatprep.subr.bf16.mxu0 0
  %2172 = vmatpush2.bf16.msra.mxu0 0
  %2173 = vmatprep.subr.bf16.mxu0 0
  %2174 = vmatpush2.bf16.msra.mxu0 0
  %2175 = vmatprep.subr.bf16.mxu0 0
  %2176 = vmatpush2.bf16.msra.mxu0 0
  %2177 = vmatprep.subr.bf16.mxu0 0
  %2178 = vmatpush2.bf16.msra.mxu0 0
  %2179 = vmatprep.subr.bf16.mxu0 0
  %2180 = vmatpush2.bf16.msra.mxu0 0
  %2181 = vmatprep.subr.bf16.mxu0 0
  %2182 = vmatpush2.bf16.msra.mxu0 0
  %2183 = vmatprep.subr.bf16.mxu0 0
  %2184 = vmatpush2.bf16.msra.mxu0 0
  %2185 = vmatprep.subr.bf16.mxu0 0
  %2186 = vmatpush2.bf16.msra.mxu0 0
  %2187 = vmatprep.mubr.bf16.mxu0 0
  %2188 = vmatmul.mubr.bf16.gmra.mxu0 %v2144
  %v2189 = vpop.f32.mrf.mxu0
  %v2190 = vadd.f32 0.0, %v2189
  %v2191 = vpop.f32.mrf.mxu0
  %v2192 = vpop.f32.mrf.mxu0
  %v2193 = vadd.f32 0.0, %v2192
  %v2194 = vpop.f32.mrf.mxu0
  %2195 = vmatprep.mubr.bf16.mxu0 0
  %2196 = vmatmul.mubr.bf16.gmra.mxu0 %v2147
  %v2197 = vpop.f32.mrf.mxu0
  %v2198 = vadd.f32 0.0, %v2197
  %v2199 = vpop.f32.mrf.mxu0
  %v2200 = vpop.f32.mrf.mxu0
  %v2201 = vadd.f32 0.0, %v2200
  %v2202 = vpop.f32.mrf.mxu0
  %2203 = vmatprep.mubr.bf16.mxu0 0
  %2204 = vmatmul.mubr.bf16.gmra.mxu0 %v2150
  %v2205 = vpop.f32.mrf.mxu0
  %v2206 = vadd.f32 0.0, %v2205
  %v2207 = vpop.f32.mrf.mxu0
  %v2208 = vpop.f32.mrf.mxu0
  %v2209 = vadd.f32 0.0, %v2208
  %v2210 = vpop.f32.mrf.mxu0
  %2211 = vmatprep.mubr.bf16.mxu0 0
  %2212 = vmatmul.mubr.bf16.gmra.mxu0 %v2153
  %v2213 = vpop.f32.mrf.mxu0
  %v2214 = vadd.f32 0.0, %v2213
  %v2215 = vpop.f32.mrf.mxu0
  %v2216 = vpop.f32.mrf.mxu0
  %v2217 = vadd.f32 0.0, %v2216
  %v2218 = vpop.f32.mrf.mxu0
  %2219 = vdwg.mxu0
  %v2221 = vsel %vm338, %v1926, 0
  %v2224 = vsel %vm338, %v1927, 0
  %v2227 = vsel %vm338, %v1928, 0
  %v2230 = vsel %vm338, %v1929, 0
  %2232 = vmatprep.subr.bf16.mxu0 0
  %2233 = vmatpush1.bf16.msra.mxu0 0
  %2234 = vmatprep.subr.bf16.mxu0 0
  %2235 = vmatpush1.bf16.msra.mxu0 0
  %2236 = vmatprep.subr.bf16.mxu0 0
  %2237 = vmatpush1.bf16.msra.mxu0 0
  %2238 = vmatprep.subr.bf16.mxu0 0
  %2239 = vmatpush1.bf16.msra.mxu0 0
  %2240 = vmatprep.subr.bf16.mxu0 0
  %2241 = vmatpush1.bf16.msra.mxu0 %v595
  %2242 = vmatprep.subr.bf16.mxu0 0
  %2243 = vmatpush1.bf16.msra.mxu0 %v592
  %2244 = vmatprep.subr.bf16.mxu0 0
  %2245 = vmatpush1.bf16.msra.mxu0 %v589
  %2246 = vmatprep.subr.bf16.mxu0 0
  %2247 = vmatpush1.bf16.msra.mxu0 %v586
  %2248 = vmatprep.subr.bf16.mxu0 0
  %2249 = vmatpush2.bf16.msra.mxu0 0
  %2250 = vmatprep.subr.bf16.mxu0 0
  %2251 = vmatpush2.bf16.msra.mxu0 0
  %2252 = vmatprep.subr.bf16.mxu0 0
  %2253 = vmatpush2.bf16.msra.mxu0 0
  %2254 = vmatprep.subr.bf16.mxu0 0
  %2255 = vmatpush2.bf16.msra.mxu0 0
  %2256 = vmatprep.subr.bf16.mxu0 0
  %2257 = vmatpush2.bf16.msra.mxu0 0
  %2258 = vmatprep.subr.bf16.mxu0 0
  %2259 = vmatpush2.bf16.msra.mxu0 0
  %2260 = vmatprep.subr.bf16.mxu0 0
  %2261 = vmatpush2.bf16.msra.mxu0 0
  %2262 = vmatprep.subr.bf16.mxu0 0
  %2263 = vmatpush2.bf16.msra.mxu0 0
  %2264 = vmatprep.mubr.bf16.mxu0 0
  %2265 = vmatmul.mubr.bf16.gmra.mxu0 %v2221
  %v2266 = vpop.f32.mrf.mxu0
  %v2267 = vadd.f32 %v2190, %v2266
  %v2268 = vpop.f32.mrf.mxu0
  %v2269 = vpop.f32.mrf.mxu0
  %v2270 = vadd.f32 %v2193, %v2269
  %v2271 = vpop.f32.mrf.mxu0
  %2272 = vmatprep.mubr.bf16.mxu0 0
  %2273 = vmatmul.mubr.bf16.gmra.mxu0 %v2224
  %v2274 = vpop.f32.mrf.mxu0
  %v2275 = vadd.f32 %v2198, %v2274
  %v2276 = vpop.f32.mrf.mxu0
  %v2277 = vpop.f32.mrf.mxu0
  %v2278 = vadd.f32 %v2201, %v2277
  %v2279 = vpop.f32.mrf.mxu0
  %2280 = vmatprep.mubr.bf16.mxu0 0
  %2281 = vmatmul.mubr.bf16.gmra.mxu0 %v2227
  %v2282 = vpop.f32.mrf.mxu0
  %v2283 = vadd.f32 %v2206, %v2282
  %v2284 = vpop.f32.mrf.mxu0
  %v2285 = vpop.f32.mrf.mxu0
  %v2286 = vadd.f32 %v2209, %v2285
  %v2287 = vpop.f32.mrf.mxu0
  %2288 = vmatprep.mubr.bf16.mxu0 0
  %2289 = vmatmul.mubr.bf16.gmra.mxu0 %v2230
  %v2290 = vpop.f32.mrf.mxu0
  %v2291 = vadd.f32 %v2214, %v2290
  %v2292 = vpop.f32.mrf.mxu0
  %v2293 = vpop.f32.mrf.mxu0
  %v2294 = vadd.f32 %v2217, %v2293
  %v2295 = vpop.f32.mrf.mxu0
  %2296 = vdwg.mxu0
  %2297 = vrot.lane.b32.xlu0 %v585, 96
  %v2298 = vpop.permute.xlu0 %2297
  %2299 = vrot.lane.b32.xlu0 %v588, 96
  %v2300 = vpop.permute.xlu0 %2299
  %2301 = vrot.lane.b32.xlu0 %v591, 96
  %v2302 = vpop.permute.xlu0 %2301
  %2303 = vrot.lane.b32.xlu0 %v594, 96
  %v2304 = vpop.permute.xlu0 %2303
  %2305 = vrot.lane.b32.xlu0 %v585, 32
  %v2306 = vpop.permute.xlu0 %2305
  %2307 = vrot.lane.b32.xlu0 %v588, 32
  %v2308 = vpop.permute.xlu0 %2307
  %2309 = vrot.lane.b32.xlu0 %v591, 32
  %v2310 = vpop.permute.xlu0 %2309
  %2311 = vrot.lane.b32.xlu0 %v594, 32
  %v2312 = vpop.permute.xlu0 %2311
  %v2314 = vsel %vm104, %v2298, 0
  %v2317 = vsel %vm104, %v2300, 0
  %v2320 = vsel %vm104, %v2302, 0
  %v2323 = vsel %vm104, %v2304, 0
  %v2326 = vsel %vm104, %v2306, 0
  %v2329 = vsel %vm104, %v2308, 0
  %v2332 = vsel %vm104, %v2310, 0
  %v2335 = vsel %vm104, %v2312, 0
  %2337 = vmatprep.subr.bf16.mxu0 0
  %2338 = vmatpush1.bf16.xpose.msra.mxu0 0
  %2339 = vmatprep.subr.bf16.mxu0 0
  %2340 = vmatpush1.bf16.xpose.msra.mxu0 0
  %2341 = vmatprep.subr.bf16.mxu0 0
  %2342 = vmatpush1.bf16.xpose.msra.mxu0 0
  %2343 = vmatprep.subr.bf16.mxu0 0
  %2344 = vmatpush1.bf16.xpose.msra.mxu0 0
  %2345 = vmatprep.subr.bf16.mxu0 0
  %2346 = vmatpush1.bf16.xpose.msra.mxu0 %v2335
  %2347 = vmatprep.subr.bf16.mxu0 0
  %2348 = vmatpush1.bf16.xpose.msra.mxu0 %v2332
  %2349 = vmatprep.subr.bf16.mxu0 0
  %2350 = vmatpush1.bf16.xpose.msra.mxu0 %v2329
  %2351 = vmatprep.subr.bf16.mxu0 0
  %2352 = vmatpush1.bf16.xpose.msra.mxu0 %v2326
  %2353 = vmatprep.subr.bf16.mxu0 0
  %2354 = vmatpush2.bf16.xpose.msra.mxu0 0
  %2355 = vmatprep.subr.bf16.mxu0 0
  %2356 = vmatpush2.bf16.xpose.msra.mxu0 0
  %2357 = vmatprep.subr.bf16.mxu0 0
  %2358 = vmatpush2.bf16.xpose.msra.mxu0 0
  %2359 = vmatprep.subr.bf16.mxu0 0
  %2360 = vmatpush2.bf16.xpose.msra.mxu0 0
  %2361 = vmatprep.subr.bf16.mxu0 0
  %2362 = vmatpush2.bf16.xpose.msra.mxu0 0
  %2363 = vmatprep.subr.bf16.mxu0 0
  %2364 = vmatpush2.bf16.xpose.msra.mxu0 0
  %2365 = vmatprep.subr.bf16.mxu0 0
  %2366 = vmatpush2.bf16.xpose.msra.mxu0 0
  %2367 = vmatprep.subr.bf16.mxu0 0
  %2368 = vmatpush2.bf16.xpose.msra.mxu0 0
  %2369 = vmatprep.mubr.bf16.mxu0 0
  %2370 = vmatmul.mubr.bf16.gmra.mxu0 %v2314
  %v2371 = vpop.f32.mrf.mxu0
  %v2372 = vadd.f32 %v31, %v2371
  %v2373 = vpop.f32.mrf.mxu0
  %v2374 = vpop.f32.mrf.mxu0
  %v2375 = vadd.f32 %v31, %v2374
  %v2376 = vpop.f32.mrf.mxu0
  %2377 = vmatprep.mubr.bf16.mxu0 0
  %2378 = vmatmul.mubr.bf16.gmra.mxu0 %v2317
  %v2379 = vpop.f32.mrf.mxu0
  %v2380 = vadd.f32 %v31, %v2379
  %v2381 = vpop.f32.mrf.mxu0
  %v2382 = vpop.f32.mrf.mxu0
  %v2383 = vadd.f32 %v31, %v2382
  %v2384 = vpop.f32.mrf.mxu0
  %2385 = vmatprep.mubr.bf16.mxu0 0
  %2386 = vmatmul.mubr.bf16.gmra.mxu0 %v2320
  %v2387 = vpop.f32.mrf.mxu0
  %v2388 = vadd.f32 %v31, %v2387
  %v2389 = vpop.f32.mrf.mxu0
  %v2390 = vpop.f32.mrf.mxu0
  %v2391 = vadd.f32 %v31, %v2390
  %v2392 = vpop.f32.mrf.mxu0
  %2393 = vmatprep.mubr.bf16.mxu0 0
  %2394 = vmatmul.mubr.bf16.gmra.mxu0 %v2323
  %v2395 = vpop.f32.mrf.mxu0
  %v2396 = vadd.f32 %v31, %v2395
  %v2397 = vpop.f32.mrf.mxu0
  %v2398 = vpop.f32.mrf.mxu0
  %v2399 = vadd.f32 %v31, %v2398
  %v2400 = vpop.f32.mrf.mxu0
  %2401 = vdwg.mxu0
  %v2402 = vsel %vm338, %v2372, -inf
  %2403 = vmax.xlane.f32.xlu0 %v2402
  %v2404 = vpop.xlane.xlu0 %2403
  %v2405 = vsel %vm338, %v2375, -inf
  %2406 = vmax.xlane.f32.xlu0 %v2405
  %v2407 = vpop.xlane.xlu0 %2406
  %v2408 = vsel %vm338, %v2380, -inf
  %2409 = vmax.xlane.f32.xlu0 %v2408
  %v2410 = vpop.xlane.xlu0 %2409
  %v2411 = vsel %vm338, %v2383, -inf
  %2412 = vmax.xlane.f32.xlu0 %v2411
  %v2413 = vpop.xlane.xlu0 %2412
  %v2414 = vsel %vm338, %v2388, -inf
  %2415 = vmax.xlane.f32.xlu0 %v2414
  %v2416 = vpop.xlane.xlu0 %2415
  %v2417 = vsel %vm338, %v2391, -inf
  %2418 = vmax.xlane.f32.xlu0 %v2417
  %v2419 = vpop.xlane.xlu0 %2418
  %v2420 = vsel %vm338, %v2396, -inf
  %2421 = vmax.xlane.f32.xlu0 %v2420
  %v2422 = vpop.xlane.xlu0 %2421
  %v2423 = vsel %vm338, %v2399, -inf
  %2424 = vmax.xlane.f32.xlu0 %v2423
  %v2425 = vpop.xlane.xlu0 %2424
  %v2426 = vsub.f32 %v2372, %v2404
  %v2427 = vsub.f32 %v2375, %v2407
  %v2428 = vsub.f32 %v2380, %v2410
  %v2429 = vsub.f32 %v2383, %v2413
  %v2430 = vsub.f32 %v2388, %v2416
  %v2431 = vsub.f32 %v2391, %v2419
  %v2432 = vsub.f32 %v2396, %v2422
  %v2433 = vsub.f32 %v2399, %v2425
  %v2434 = vmul.f32 %v2426, 1.442695
  %v2435 = vpow.pop %v2434
  %v2436 = vmul.f32 %v2427, 1.442695
  %v2437 = vpow.pop %v2436
  %v2438 = vmul.f32 %v2428, 1.442695
  %v2439 = vpow.pop %v2438
  %v2440 = vmul.f32 %v2429, 1.442695
  %v2441 = vpow.pop %v2440
  %v2442 = vmul.f32 %v2430, 1.442695
  %v2443 = vpow.pop %v2442
  %v2444 = vmul.f32 %v2431, 1.442695
  %v2445 = vpow.pop %v2444
  %v2446 = vmul.f32 %v2432, 1.442695
  %v2447 = vpow.pop %v2446
  %v2448 = vmul.f32 %v2433, 1.442695
  %v2449 = vpow.pop %v2448
  %v2450 = vsel %vm338, %v2435, 0.0
  %2451 = vadd.xlane.f32.xlu0 %v2450
  %v2452 = vpop.xlane.xlu0 %2451
  %v2453 = vsel %vm338, %v2437, 0.0
  %2454 = vadd.xlane.f32.xlu0 %v2453
  %v2455 = vpop.xlane.xlu0 %2454
  %v2456 = vsel %vm338, %v2439, 0.0
  %2457 = vadd.xlane.f32.xlu0 %v2456
  %v2458 = vpop.xlane.xlu0 %2457
  %v2459 = vsel %vm338, %v2441, 0.0
  %2460 = vadd.xlane.f32.xlu0 %v2459
  %v2461 = vpop.xlane.xlu0 %2460
  %v2462 = vsel %vm338, %v2443, 0.0
  %2463 = vadd.xlane.f32.xlu0 %v2462
  %v2464 = vpop.xlane.xlu0 %2463
  %v2465 = vsel %vm338, %v2445, 0.0
  %2466 = vadd.xlane.f32.xlu0 %v2465
  %v2467 = vpop.xlane.xlu0 %2466
  %v2468 = vsel %vm338, %v2447, 0.0
  %2469 = vadd.xlane.f32.xlu0 %v2468
  %v2470 = vpop.xlane.xlu0 %2469
  %v2471 = vsel %vm338, %v2449, 0.0
  %2472 = vadd.xlane.f32.xlu0 %v2471
  %v2473 = vpop.xlane.xlu0 %2472
  %v2474 = vrcp.pop %v2452
  %v2475 = vrcp.pop %v2455
  %v2476 = vrcp.pop %v2458
  %v2477 = vrcp.pop %v2461
  %v2478 = vrcp.pop %v2464
  %v2479 = vrcp.pop %v2467
  %v2480 = vrcp.pop %v2470
  %v2481 = vrcp.pop %v2473
  %v2482 = vmul.f32 %v2435, %v2474
  %v2483 = vmul.f32 %v2437, %v2475
  %v2484 = vmul.f32 %v2439, %v2476
  %v2485 = vmul.f32 %v2441, %v2477
  %v2486 = vmul.f32 %v2443, %v2478
  %v2487 = vmul.f32 %v2445, %v2479
  %v2488 = vmul.f32 %v2447, %v2480
  %v2489 = vmul.f32 %v2449, %v2481
  %v2490 = vpack.c.bf16 %v2483, %v2482
  %v2491 = vpack.c.bf16 %v2485, %v2484
  %v2492 = vpack.c.bf16 %v2487, %v2486
  %v2493 = vpack.c.bf16 %v2489, %v2488
  %v2495 = vsel %vm338, %v2490, 0
  %v2498 = vsel %vm338, %v2491, 0
  %v2501 = vsel %vm338, %v2492, 0
  %v2504 = vsel %vm338, %v2493, 0
  %2506 = vmatprep.subr.bf16.mxu0 0
  %2507 = vmatpush1.bf16.msra.mxu0 0
  %2508 = vmatprep.subr.bf16.mxu0 0
  %2509 = vmatpush1.bf16.msra.mxu0 0
  %2510 = vmatprep.subr.bf16.mxu0 0
  %2511 = vmatpush1.bf16.msra.mxu0 0
  %2512 = vmatprep.subr.bf16.mxu0 0
  %2513 = vmatpush1.bf16.msra.mxu0 0
  %2514 = vmatprep.subr.bf16.mxu0 0
  %2515 = vmatpush1.bf16.msra.mxu0 %v596
  %2516 = vmatprep.subr.bf16.mxu0 0
  %2517 = vmatpush1.bf16.msra.mxu0 %v593
  %2518 = vmatprep.subr.bf16.mxu0 0
  %2519 = vmatpush1.bf16.msra.mxu0 %v590
  %2520 = vmatprep.subr.bf16.mxu0 0
  %2521 = vmatpush1.bf16.msra.mxu0 %v587
  %2522 = vmatprep.subr.bf16.mxu0 0
  %2523 = vmatpush2.bf16.msra.mxu0 0
  %2524 = vmatprep.subr.bf16.mxu0 0
  %2525 = vmatpush2.bf16.msra.mxu0 0
  %2526 = vmatprep.subr.bf16.mxu0 0
  %2527 = vmatpush2.bf16.msra.mxu0 0
  %2528 = vmatprep.subr.bf16.mxu0 0
  %2529 = vmatpush2.bf16.msra.mxu0 0
  %2530 = vmatprep.subr.bf16.mxu0 0
  %2531 = vmatpush2.bf16.msra.mxu0 0
  %2532 = vmatprep.subr.bf16.mxu0 0
  %2533 = vmatpush2.bf16.msra.mxu0 0
  %2534 = vmatprep.subr.bf16.mxu0 0
  %2535 = vmatpush2.bf16.msra.mxu0 0
  %2536 = vmatprep.subr.bf16.mxu0 0
  %2537 = vmatpush2.bf16.msra.mxu0 0
  %2538 = vmatprep.mubr.bf16.mxu0 0
  %2539 = vmatmul.mubr.bf16.gmra.mxu0 %v2495
  %v2540 = vpop.f32.mrf.mxu0
  %v2541 = vadd.f32 0.0, %v2540
  %v2542 = vpop.f32.mrf.mxu0
  %v2543 = vpop.f32.mrf.mxu0
  %v2544 = vadd.f32 0.0, %v2543
  %v2545 = vpop.f32.mrf.mxu0
  %2546 = vmatprep.mubr.bf16.mxu0 0
  %2547 = vmatmul.mubr.bf16.gmra.mxu0 %v2498
  %v2548 = vpop.f32.mrf.mxu0
  %v2549 = vadd.f32 0.0, %v2548
  %v2550 = vpop.f32.mrf.mxu0
  %v2551 = vpop.f32.mrf.mxu0
  %v2552 = vadd.f32 0.0, %v2551
  %v2553 = vpop.f32.mrf.mxu0
  %2554 = vmatprep.mubr.bf16.mxu0 0
  %2555 = vmatmul.mubr.bf16.gmra.mxu0 %v2501
  %v2556 = vpop.f32.mrf.mxu0
  %v2557 = vadd.f32 0.0, %v2556
  %v2558 = vpop.f32.mrf.mxu0
  %v2559 = vpop.f32.mrf.mxu0
  %v2560 = vadd.f32 0.0, %v2559
  %v2561 = vpop.f32.mrf.mxu0
  %2562 = vmatprep.mubr.bf16.mxu0 0
  %2563 = vmatmul.mubr.bf16.gmra.mxu0 %v2504
  %v2564 = vpop.f32.mrf.mxu0
  %v2565 = vadd.f32 0.0, %v2564
  %v2566 = vpop.f32.mrf.mxu0
  %v2567 = vpop.f32.mrf.mxu0
  %v2568 = vadd.f32 0.0, %v2567
  %v2569 = vpop.f32.mrf.mxu0
  %2570 = vdwg.mxu0
  %v2571 = vadd.f32 %v2267, %v2541
  %v2572 = vadd.f32 %v2270, %v2544
  %v2573 = vadd.f32 %v2275, %v2549
  %v2574 = vadd.f32 %v2278, %v2552
  %v2575 = vadd.f32 %v2283, %v2557
  %v2576 = vadd.f32 %v2286, %v2560
  %v2577 = vadd.f32 %v2291, %v2565
  %v2578 = vadd.f32 %v2294, %v2568
  %2579 = vrot.lane.b32.xlu0 %v585, 80
  %v2580 = vpop.permute.xlu0 %2579
  %2581 = vrot.lane.b32.xlu0 %v588, 80
  %v2582 = vpop.permute.xlu0 %2581
  %2583 = vrot.lane.b32.xlu0 %v591, 80
  %v2584 = vpop.permute.xlu0 %2583
  %2585 = vrot.lane.b32.xlu0 %v594, 80
  %v2586 = vpop.permute.xlu0 %2585
  %2587 = vrot.lane.b32.xlu0 %v585, 16
  %v2588 = vpop.permute.xlu0 %2587
  %2589 = vrot.lane.b32.xlu0 %v588, 16
  %v2590 = vpop.permute.xlu0 %2589
  %2591 = vrot.lane.b32.xlu0 %v591, 16
  %v2592 = vpop.permute.xlu0 %2591
  %2593 = vrot.lane.b32.xlu0 %v594, 16
  %v2594 = vpop.permute.xlu0 %2593
  %v2596 = vsel %vm104, %v2580, 0
  %v2599 = vsel %vm104, %v2582, 0
  %v2602 = vsel %vm104, %v2584, 0
  %v2605 = vsel %vm104, %v2586, 0
  %v2608 = vsel %vm104, %v2588, 0
  %v2611 = vsel %vm104, %v2590, 0
  %v2614 = vsel %vm104, %v2592, 0
  %v2617 = vsel %vm104, %v2594, 0
  %2619 = vmatprep.subr.bf16.mxu0 0
  %2620 = vmatpush1.bf16.xpose.msra.mxu0 0
  %2621 = vmatprep.subr.bf16.mxu0 0
  %2622 = vmatpush1.bf16.xpose.msra.mxu0 0
  %2623 = vmatprep.subr.bf16.mxu0 0
  %2624 = vmatpush1.bf16.xpose.msra.mxu0 0
  %2625 = vmatprep.subr.bf16.mxu0 0
  %2626 = vmatpush1.bf16.xpose.msra.mxu0 0
  %2627 = vmatprep.subr.bf16.mxu0 0
  %2628 = vmatpush1.bf16.xpose.msra.mxu0 %v2617
  %2629 = vmatprep.subr.bf16.mxu0 0
  %2630 = vmatpush1.bf16.xpose.msra.mxu0 %v2614
  %2631 = vmatprep.subr.bf16.mxu0 0
  %2632 = vmatpush1.bf16.xpose.msra.mxu0 %v2611
  %2633 = vmatprep.subr.bf16.mxu0 0
  %2634 = vmatpush1.bf16.xpose.msra.mxu0 %v2608
  %2635 = vmatprep.subr.bf16.mxu0 0
  %2636 = vmatpush2.bf16.xpose.msra.mxu0 0
  %2637 = vmatprep.subr.bf16.mxu0 0
  %2638 = vmatpush2.bf16.xpose.msra.mxu0 0
  %2639 = vmatprep.subr.bf16.mxu0 0
  %2640 = vmatpush2.bf16.xpose.msra.mxu0 0
  %2641 = vmatprep.subr.bf16.mxu0 0
  %2642 = vmatpush2.bf16.xpose.msra.mxu0 0
  %2643 = vmatprep.subr.bf16.mxu0 0
  %2644 = vmatpush2.bf16.xpose.msra.mxu0 0
  %2645 = vmatprep.subr.bf16.mxu0 0
  %2646 = vmatpush2.bf16.xpose.msra.mxu0 0
  %2647 = vmatprep.subr.bf16.mxu0 0
  %2648 = vmatpush2.bf16.xpose.msra.mxu0 0
  %2649 = vmatprep.subr.bf16.mxu0 0
  %2650 = vmatpush2.bf16.xpose.msra.mxu0 0
  %2651 = vmatprep.mubr.bf16.mxu0 0
  %2652 = vmatmul.mubr.bf16.gmra.mxu0 %v2596
  %v2653 = vpop.f32.mrf.mxu0
  %v2654 = vadd.f32 %v31, %v2653
  %v2655 = vpop.f32.mrf.mxu0
  %v2656 = vpop.f32.mrf.mxu0
  %v2657 = vadd.f32 %v31, %v2656
  %v2658 = vpop.f32.mrf.mxu0
  %2659 = vmatprep.mubr.bf16.mxu0 0
  %2660 = vmatmul.mubr.bf16.gmra.mxu0 %v2599
  %v2661 = vpop.f32.mrf.mxu0
  %v2662 = vadd.f32 %v31, %v2661
  %v2663 = vpop.f32.mrf.mxu0
  %v2664 = vpop.f32.mrf.mxu0
  %v2665 = vadd.f32 %v31, %v2664
  %v2666 = vpop.f32.mrf.mxu0
  %2667 = vmatprep.mubr.bf16.mxu0 0
  %2668 = vmatmul.mubr.bf16.gmra.mxu0 %v2602
  %v2669 = vpop.f32.mrf.mxu0
  %v2670 = vadd.f32 %v31, %v2669
  %v2671 = vpop.f32.mrf.mxu0
  %v2672 = vpop.f32.mrf.mxu0
  %v2673 = vadd.f32 %v31, %v2672
  %v2674 = vpop.f32.mrf.mxu0
  %2675 = vmatprep.mubr.bf16.mxu0 0
  %2676 = vmatmul.mubr.bf16.gmra.mxu0 %v2605
  %v2677 = vpop.f32.mrf.mxu0
  %v2678 = vadd.f32 %v31, %v2677
  %v2679 = vpop.f32.mrf.mxu0
  %v2680 = vpop.f32.mrf.mxu0
  %v2681 = vadd.f32 %v31, %v2680
  %v2682 = vpop.f32.mrf.mxu0
  %2683 = vdwg.mxu0
  %v2684 = vsel %vm338, %v2654, -inf
  %2685 = vmax.xlane.f32.xlu0 %v2684
  %v2686 = vpop.xlane.xlu0 %2685
  %v2687 = vsel %vm338, %v2657, -inf
  %2688 = vmax.xlane.f32.xlu0 %v2687
  %v2689 = vpop.xlane.xlu0 %2688
  %v2690 = vsel %vm338, %v2662, -inf
  %2691 = vmax.xlane.f32.xlu0 %v2690
  %v2692 = vpop.xlane.xlu0 %2691
  %v2693 = vsel %vm338, %v2665, -inf
  %2694 = vmax.xlane.f32.xlu0 %v2693
  %v2695 = vpop.xlane.xlu0 %2694
  %v2696 = vsel %vm338, %v2670, -inf
  %2697 = vmax.xlane.f32.xlu0 %v2696
  %v2698 = vpop.xlane.xlu0 %2697
  %v2699 = vsel %vm338, %v2673, -inf
  %2700 = vmax.xlane.f32.xlu0 %v2699
  %v2701 = vpop.xlane.xlu0 %2700
  %v2702 = vsel %vm338, %v2678, -inf
  %2703 = vmax.xlane.f32.xlu0 %v2702
  %v2704 = vpop.xlane.xlu0 %2703
  %v2705 = vsel %vm338, %v2681, -inf
  %2706 = vmax.xlane.f32.xlu0 %v2705
  %v2707 = vpop.xlane.xlu0 %2706
  %v2708 = vsub.f32 %v2654, %v2686
  %v2709 = vsub.f32 %v2657, %v2689
  %v2710 = vsub.f32 %v2662, %v2692
  %v2711 = vsub.f32 %v2665, %v2695
  %v2712 = vsub.f32 %v2670, %v2698
  %v2713 = vsub.f32 %v2673, %v2701
  %v2714 = vsub.f32 %v2678, %v2704
  %v2715 = vsub.f32 %v2681, %v2707
  %v2716 = vmul.f32 %v2708, 1.442695
  %v2717 = vpow.pop %v2716
  %v2718 = vmul.f32 %v2709, 1.442695
  %v2719 = vpow.pop %v2718
  %v2720 = vmul.f32 %v2710, 1.442695
  %v2721 = vpow.pop %v2720
  %v2722 = vmul.f32 %v2711, 1.442695
  %v2723 = vpow.pop %v2722
  %v2724 = vmul.f32 %v2712, 1.442695
  %v2725 = vpow.pop %v2724
  %v2726 = vmul.f32 %v2713, 1.442695
  %v2727 = vpow.pop %v2726
  %v2728 = vmul.f32 %v2714, 1.442695
  %v2729 = vpow.pop %v2728
  %v2730 = vmul.f32 %v2715, 1.442695
  %v2731 = vpow.pop %v2730
  %v2732 = vsel %vm338, %v2717, 0.0
  %2733 = vadd.xlane.f32.xlu0 %v2732
  %v2734 = vpop.xlane.xlu0 %2733
  %v2735 = vsel %vm338, %v2719, 0.0
  %2736 = vadd.xlane.f32.xlu0 %v2735
  %v2737 = vpop.xlane.xlu0 %2736
  %v2738 = vsel %vm338, %v2721, 0.0
  %2739 = vadd.xlane.f32.xlu0 %v2738
  %v2740 = vpop.xlane.xlu0 %2739
  %v2741 = vsel %vm338, %v2723, 0.0
  %2742 = vadd.xlane.f32.xlu0 %v2741
  %v2743 = vpop.xlane.xlu0 %2742
  %v2744 = vsel %vm338, %v2725, 0.0
  %2745 = vadd.xlane.f32.xlu0 %v2744
  %v2746 = vpop.xlane.xlu0 %2745
  %v2747 = vsel %vm338, %v2727, 0.0
  %2748 = vadd.xlane.f32.xlu0 %v2747
  %v2749 = vpop.xlane.xlu0 %2748
  %v2750 = vsel %vm338, %v2729, 0.0
  %2751 = vadd.xlane.f32.xlu0 %v2750
  %v2752 = vpop.xlane.xlu0 %2751
  %v2753 = vsel %vm338, %v2731, 0.0
  %2754 = vadd.xlane.f32.xlu0 %v2753
  %v2755 = vpop.xlane.xlu0 %2754
  %v2756 = vrcp.pop %v2734
  %v2757 = vrcp.pop %v2737
  %v2758 = vrcp.pop %v2740
  %v2759 = vrcp.pop %v2743
  %v2760 = vrcp.pop %v2746
  %v2761 = vrcp.pop %v2749
  %v2762 = vrcp.pop %v2752
  %v2763 = vrcp.pop %v2755
  %v2764 = vmul.f32 %v2717, %v2756
  %v2765 = vmul.f32 %v2719, %v2757
  %v2766 = vmul.f32 %v2721, %v2758
  %v2767 = vmul.f32 %v2723, %v2759
  %v2768 = vmul.f32 %v2725, %v2760
  %v2769 = vmul.f32 %v2727, %v2761
  %v2770 = vmul.f32 %v2729, %v2762
  %v2771 = vmul.f32 %v2731, %v2763
  %v2772 = vpack.c.bf16 %v2765, %v2764
  %v2773 = vpack.c.bf16 %v2767, %v2766
  %v2774 = vpack.c.bf16 %v2769, %v2768
  %v2775 = vpack.c.bf16 %v2771, %v2770
  %2780 = vrot.lane.b32.xlu0 %v587, 64
  %v2781 = vpop.permute.xlu0 %2780
  %2782 = vrot.lane.b32.xlu0 %v590, 64
  %v2783 = vpop.permute.xlu0 %2782
  %2784 = vrot.lane.b32.xlu0 %v593, 64
  %v2785 = vpop.permute.xlu0 %2784
  %2786 = vrot.lane.b32.xlu0 %v596, 64
  %v2787 = vpop.permute.xlu0 %2786
  %v2793 = vsel %vm338, %v2772, 0
  %v2796 = vsel %vm338, %v2773, 0
  %v2799 = vsel %vm338, %v2774, 0
  %v2802 = vsel %vm338, %v2775, 0
  %2804 = vmatprep.subr.bf16.mxu0 0
  %2805 = vmatpush1.bf16.msra.mxu0 0
  %2806 = vmatprep.subr.bf16.mxu0 0
  %2807 = vmatpush1.bf16.msra.mxu0 0
  %2808 = vmatprep.subr.bf16.mxu0 0
  %2809 = vmatpush1.bf16.msra.mxu0 0
  %2810 = vmatprep.subr.bf16.mxu0 0
  %2811 = vmatpush1.bf16.msra.mxu0 0
  %2812 = vmatprep.subr.bf16.mxu0 0
  %2813 = vmatpush1.bf16.msra.mxu0 %v2787
  %2814 = vmatprep.subr.bf16.mxu0 0
  %2815 = vmatpush1.bf16.msra.mxu0 %v2785
  %2816 = vmatprep.subr.bf16.mxu0 0
  %2817 = vmatpush1.bf16.msra.mxu0 %v2783
  %2818 = vmatprep.subr.bf16.mxu0 0
  %2819 = vmatpush1.bf16.msra.mxu0 %v2781
  %2820 = vmatprep.subr.bf16.mxu0 0
  %2821 = vmatpush2.bf16.msra.mxu0 0
  %2822 = vmatprep.subr.bf16.mxu0 0
  %2823 = vmatpush2.bf16.msra.mxu0 0
  %2824 = vmatprep.subr.bf16.mxu0 0
  %2825 = vmatpush2.bf16.msra.mxu0 0
  %2826 = vmatprep.subr.bf16.mxu0 0
  %2827 = vmatpush2.bf16.msra.mxu0 0
  %2828 = vmatprep.subr.bf16.mxu0 0
  %2829 = vmatpush2.bf16.msra.mxu0 0
  %2830 = vmatprep.subr.bf16.mxu0 0
  %2831 = vmatpush2.bf16.msra.mxu0 0
  %2832 = vmatprep.subr.bf16.mxu0 0
  %2833 = vmatpush2.bf16.msra.mxu0 0
  %2834 = vmatprep.subr.bf16.mxu0 0
  %2835 = vmatpush2.bf16.msra.mxu0 0
  %2836 = vmatprep.mubr.bf16.mxu0 0
  %2837 = vmatmul.mubr.bf16.gmra.mxu0 %v2793
  %v2838 = vpop.f32.mrf.mxu0
  %v2839 = vadd.f32 0.0, %v2838
  %v2840 = vpop.f32.mrf.mxu0
  %v2841 = vpop.f32.mrf.mxu0
  %v2842 = vadd.f32 0.0, %v2841
  %v2843 = vpop.f32.mrf.mxu0
  %2844 = vmatprep.mubr.bf16.mxu0 0
  %2845 = vmatmul.mubr.bf16.gmra.mxu0 %v2796
  %v2846 = vpop.f32.mrf.mxu0
  %v2847 = vadd.f32 0.0, %v2846
  %v2848 = vpop.f32.mrf.mxu0
  %v2849 = vpop.f32.mrf.mxu0
  %v2850 = vadd.f32 0.0, %v2849
  %v2851 = vpop.f32.mrf.mxu0
  %2852 = vmatprep.mubr.bf16.mxu0 0
  %2853 = vmatmul.mubr.bf16.gmra.mxu0 %v2799
  %v2854 = vpop.f32.mrf.mxu0
  %v2855 = vadd.f32 0.0, %v2854
  %v2856 = vpop.f32.mrf.mxu0
  %v2857 = vpop.f32.mrf.mxu0
  %v2858 = vadd.f32 0.0, %v2857
  %v2859 = vpop.f32.mrf.mxu0
  %2860 = vmatprep.mubr.bf16.mxu0 0
  %2861 = vmatmul.mubr.bf16.gmra.mxu0 %v2802
  %v2862 = vpop.f32.mrf.mxu0
  %v2863 = vadd.f32 0.0, %v2862
  %v2864 = vpop.f32.mrf.mxu0
  %v2865 = vpop.f32.mrf.mxu0
  %v2866 = vadd.f32 0.0, %v2865
  %v2867 = vpop.f32.mrf.mxu0
  %2868 = vdwg.mxu0
  %v2869 = vadd.f32 %v2571, %v2839
  %v2870 = vadd.f32 %v2572, %v2842
  %v2871 = vadd.f32 %v2573, %v2847
  %v2872 = vadd.f32 %v2574, %v2850
  %v2873 = vadd.f32 %v2575, %v2855
  %v2874 = vadd.f32 %v2576, %v2858
  %v2875 = vadd.f32 %v2577, %v2863
  %v2876 = vadd.f32 %v2578, %v2866
  %v2877 = vadd.f32 %v1729, %v227
  %v2878 = vadd.f32 %v1730, %v227
  %v2879 = vadd.f32 %v1731, %v227
  %v2880 = vadd.f32 %v1732, %v227
  %v2881 = vadd.f32 %v1733, %v227
  %v2882 = vadd.f32 %v1734, %v227
  %v2883 = vadd.f32 %v1735, %v227
  %v2884 = vadd.f32 %v1736, %v227
  %v2885 = vadd.f32 %v2869, %v227
  %v2886 = vadd.f32 %v2870, %v227
  %v2887 = vadd.f32 %v2871, %v227
  %v2888 = vadd.f32 %v2872, %v227
  %v2889 = vadd.f32 %v2873, %v227
  %v2890 = vadd.f32 %v2874, %v227
  %v2891 = vadd.f32 %v2875, %v227
  %v2892 = vadd.f32 %v2876, %v227
  %v2893 = vadd.f32 %v164, %v2877
  %v2894 = vadd.f32 %v167, %v2878
  %v2895 = vadd.f32 %v172, %v2879
  %v2896 = vadd.f32 %v175, %v2880
  %v2897 = vadd.f32 %v180, %v2881
  %v2898 = vadd.f32 %v183, %v2882
  %v2899 = vadd.f32 %v188, %v2883
  %v2900 = vadd.f32 %v191, %v2884
  %v2901 = vadd.f32 %v196, %v2885
  %v2902 = vadd.f32 %v199, %v2886
  %v2903 = vadd.f32 %v204, %v2887
  %v2904 = vadd.f32 %v207, %v2888
  %v2905 = vadd.f32 %v212, %v2889
  %v2906 = vadd.f32 %v215, %v2890
  %v2907 = vadd.f32 %v220, %v2891
  %v2908 = vadd.f32 %v223, %v2892
  %v2909 = vsel %vm338, %v2893, 0.0
  %2910 = vadd.xlane.f32.xlu0 %v2909
  %v2911 = vpop.xlane.xlu0 %2910
  %v2912 = vsel %vm338, %v2894, 0.0
  %2913 = vadd.xlane.f32.xlu0 %v2912
  %v2914 = vpop.xlane.xlu0 %2913
  %v2915 = vsel %vm338, %v2895, 0.0
  %2916 = vadd.xlane.f32.xlu0 %v2915
  %v2917 = vpop.xlane.xlu0 %2916
  %v2918 = vsel %vm338, %v2896, 0.0
  %2919 = vadd.xlane.f32.xlu0 %v2918
  %v2920 = vpop.xlane.xlu0 %2919
  %v2921 = vsel %vm338, %v2897, 0.0
  %2922 = vadd.xlane.f32.xlu0 %v2921
  %v2923 = vpop.xlane.xlu0 %2922
  %v2924 = vsel %vm338, %v2898, 0.0
  %2925 = vadd.xlane.f32.xlu0 %v2924
  %v2926 = vpop.xlane.xlu0 %2925
  %v2927 = vsel %vm338, %v2899, 0.0
  %2928 = vadd.xlane.f32.xlu0 %v2927
  %v2929 = vpop.xlane.xlu0 %2928
  %v2930 = vsel %vm338, %v2900, 0.0
  %2931 = vadd.xlane.f32.xlu0 %v2930
  %v2932 = vpop.xlane.xlu0 %2931
  %v2933 = vsel %vm338, %v2901, 0.0
  %2934 = vadd.xlane.f32.xlu0 %v2933
  %v2935 = vpop.xlane.xlu0 %2934
  %v2936 = vsel %vm338, %v2902, 0.0
  %2937 = vadd.xlane.f32.xlu0 %v2936
  %v2938 = vpop.xlane.xlu0 %2937
  %v2939 = vsel %vm338, %v2903, 0.0
  %2940 = vadd.xlane.f32.xlu0 %v2939
  %v2941 = vpop.xlane.xlu0 %2940
  %v2942 = vsel %vm338, %v2904, 0.0
  %2943 = vadd.xlane.f32.xlu0 %v2942
  %v2944 = vpop.xlane.xlu0 %2943
  %v2945 = vsel %vm338, %v2905, 0.0
  %2946 = vadd.xlane.f32.xlu0 %v2945
  %v2947 = vpop.xlane.xlu0 %2946
  %v2948 = vsel %vm338, %v2906, 0.0
  %2949 = vadd.xlane.f32.xlu0 %v2948
  %v2950 = vpop.xlane.xlu0 %2949
  %v2951 = vsel %vm338, %v2907, 0.0
  %2952 = vadd.xlane.f32.xlu0 %v2951
  %v2953 = vpop.xlane.xlu0 %2952
  %v2954 = vsel %vm338, %v2908, 0.0
  %2955 = vadd.xlane.f32.xlu0 %v2954
  %v2956 = vpop.xlane.xlu0 %2955
  %v2957 = vrcp.pop 64.0
  %v2958 = vmul.f32 %v2911, %v2957
  %v2959 = vmul.f32 %v2914, %v2957
  %v2960 = vmul.f32 %v2917, %v2957
  %v2961 = vmul.f32 %v2920, %v2957
  %v2962 = vmul.f32 %v2923, %v2957
  %v2963 = vmul.f32 %v2926, %v2957
  %v2964 = vmul.f32 %v2929, %v2957
  %v2965 = vmul.f32 %v2932, %v2957
  %v2966 = vmul.f32 %v2935, %v2957
  %v2967 = vmul.f32 %v2938, %v2957
  %v2968 = vmul.f32 %v2941, %v2957
  %v2969 = vmul.f32 %v2944, %v2957
  %v2970 = vmul.f32 %v2947, %v2957
  %v2971 = vmul.f32 %v2950, %v2957
  %v2972 = vmul.f32 %v2953, %v2957
  %v2973 = vmul.f32 %v2956, %v2957
  %v2974 = vsub.f32 %v2893, %v2958
  %v2975 = vsub.f32 %v2894, %v2959
  %v2976 = vsub.f32 %v2895, %v2960
  %v2977 = vsub.f32 %v2896, %v2961
  %v2978 = vsub.f32 %v2897, %v2962
  %v2979 = vsub.f32 %v2898, %v2963
  %v2980 = vsub.f32 %v2899, %v2964
  %v2981 = vsub.f32 %v2900, %v2965
  %v2982 = vsub.f32 %v2901, %v2966
  %v2983 = vsub.f32 %v2902, %v2967
  %v2984 = vsub.f32 %v2903, %v2968
  %v2985 = vsub.f32 %v2904, %v2969
  %v2986 = vsub.f32 %v2905, %v2970
  %v2987 = vsub.f32 %v2906, %v2971
  %v2988 = vsub.f32 %v2907, %v2972
  %v2989 = vsub.f32 %v2908, %v2973
  %v2990 = vmul.f32 %v2974, %v2974
  %v2991 = vmul.f32 %v2975, %v2975
  %v2992 = vmul.f32 %v2976, %v2976
  %v2993 = vmul.f32 %v2977, %v2977
  %v2994 = vmul.f32 %v2978, %v2978
  %v2995 = vmul.f32 %v2979, %v2979
  %v2996 = vmul.f32 %v2980, %v2980
  %v2997 = vmul.f32 %v2981, %v2981
  %v2998 = vmul.f32 %v2982, %v2982
  %v2999 = vmul.f32 %v2983, %v2983
  %v3000 = vmul.f32 %v2984, %v2984
  %v3001 = vmul.f32 %v2985, %v2985
  %v3002 = vmul.f32 %v2986, %v2986
  %v3003 = vmul.f32 %v2987, %v2987
  %v3004 = vmul.f32 %v2988, %v2988
  %v3005 = vmul.f32 %v2989, %v2989
  %v3006 = vsel %vm338, %v2990, 0.0
  %3007 = vadd.xlane.f32.xlu0 %v3006
  %v3008 = vpop.xlane.xlu0 %3007
  %v3009 = vsel %vm338, %v2991, 0.0
  %3010 = vadd.xlane.f32.xlu0 %v3009
  %v3011 = vpop.xlane.xlu0 %3010
  %v3012 = vsel %vm338, %v2992, 0.0
  %3013 = vadd.xlane.f32.xlu0 %v3012
  %v3014 = vpop.xlane.xlu0 %3013
  %v3015 = vsel %vm338, %v2993, 0.0
  %3016 = vadd.xlane.f32.xlu0 %v3015
  %v3017 = vpop.xlane.xlu0 %3016
  %v3018 = vsel %vm338, %v2994, 0.0
  %3019 = vadd.xlane.f32.xlu0 %v3018
  %v3020 = vpop.xlane.xlu0 %3019
  %v3021 = vsel %vm338, %v2995, 0.0
  %3022 = vadd.xlane.f32.xlu0 %v3021
  %v3023 = vpop.xlane.xlu0 %3022
  %v3024 = vsel %vm338, %v2996, 0.0
  %3025 = vadd.xlane.f32.xlu0 %v3024
  %v3026 = vpop.xlane.xlu0 %3025
  %v3027 = vsel %vm338, %v2997, 0.0
  %3028 = vadd.xlane.f32.xlu0 %v3027
  %v3029 = vpop.xlane.xlu0 %3028
  %v3030 = vsel %vm338, %v2998, 0.0
  %3031 = vadd.xlane.f32.xlu0 %v3030
  %v3032 = vpop.xlane.xlu0 %3031
  %v3033 = vsel %vm338, %v2999, 0.0
  %3034 = vadd.xlane.f32.xlu0 %v3033
  %v3035 = vpop.xlane.xlu0 %3034
  %v3036 = vsel %vm338, %v3000, 0.0
  %3037 = vadd.xlane.f32.xlu0 %v3036
  %v3038 = vpop.xlane.xlu0 %3037
  %v3039 = vsel %vm338, %v3001, 0.0
  %3040 = vadd.xlane.f32.xlu0 %v3039
  %v3041 = vpop.xlane.xlu0 %3040
  %v3042 = vsel %vm338, %v3002, 0.0
  %3043 = vadd.xlane.f32.xlu0 %v3042
  %v3044 = vpop.xlane.xlu0 %3043
  %v3045 = vsel %vm338, %v3003, 0.0
  %3046 = vadd.xlane.f32.xlu0 %v3045
  %v3047 = vpop.xlane.xlu0 %3046
  %v3048 = vsel %vm338, %v3004, 0.0
  %3049 = vadd.xlane.f32.xlu0 %v3048
  %v3050 = vpop.xlane.xlu0 %3049
  %v3051 = vsel %vm338, %v3005, 0.0
  %3052 = vadd.xlane.f32.xlu0 %v3051
  %v3053 = vpop.xlane.xlu0 %3052
  %v3054 = vmul.f32 %v3008, %v2957
  %v3055 = vmul.f32 %v3011, %v2957
  %v3056 = vmul.f32 %v3014, %v2957
  %v3057 = vmul.f32 %v3017, %v2957
  %v3058 = vmul.f32 %v3020, %v2957
  %v3059 = vmul.f32 %v3023, %v2957
  %v3060 = vmul.f32 %v3026, %v2957
  %v3061 = vmul.f32 %v3029, %v2957
  %v3062 = vmul.f32 %v3032, %v2957
  %v3063 = vmul.f32 %v3035, %v2957
  %v3064 = vmul.f32 %v3038, %v2957
  %v3065 = vmul.f32 %v3041, %v2957
  %v3066 = vmul.f32 %v3044, %v2957
  %v3067 = vmul.f32 %v3047, %v2957
  %v3068 = vmul.f32 %v3050, %v2957
  %v3069 = vmul.f32 %v3053, %v2957
  %v3070 = vadd.f32 %v3054, 1e-05
  %v3071 = vadd.f32 %v3055, 1e-05
  %v3072 = vadd.f32 %v3056, 1e-05
  %v3073 = vadd.f32 %v3057, 1e-05
  %v3074 = vadd.f32 %v3058, 1e-05
  %v3075 = vadd.f32 %v3059, 1e-05
  %v3076 = vadd.f32 %v3060, 1e-05
  %v3077 = vadd.f32 %v3061, 1e-05
  %v3078 = vadd.f32 %v3062, 1e-05
  %v3079 = vadd.f32 %v3063, 1e-05
  %v3080 = vadd.f32 %v3064, 1e-05
  %v3081 = vadd.f32 %v3065, 1e-05
  %v3082 = vadd.f32 %v3066, 1e-05
  %v3083 = vadd.f32 %v3067, 1e-05
  %v3084 = vadd.f32 %v3068, 1e-05
  %v3085 = vadd.f32 %v3069, 1e-05
  %v3086 = vrsqrt.pop %v3070
  %v3087 = vrsqrt.pop %v3071
  %v3088 = vrsqrt.pop %v3072
  %v3089 = vrsqrt.pop %v3073
  %v3090 = vrsqrt.pop %v3074
  %v3091 = vrsqrt.pop %v3075
  %v3092 = vrsqrt.pop %v3076
  %v3093 = vrsqrt.pop %v3077
  %v3094 = vrsqrt.pop %v3078
  %v3095 = vrsqrt.pop %v3079
  %v3096 = vrsqrt.pop %v3080
  %v3097 = vrsqrt.pop %v3081
  %v3098 = vrsqrt.pop %v3082
  %v3099 = vrsqrt.pop %v3083
  %v3100 = vrsqrt.pop %v3084
  %v3101 = vrsqrt.pop %v3085
  %v3102 = vmul.f32 %v2974, %v3086
  %v3103 = vmul.f32 %v2975, %v3087
  %v3104 = vmul.f32 %v2976, %v3088
  %v3105 = vmul.f32 %v2977, %v3089
  %v3106 = vmul.f32 %v2978, %v3090
  %v3107 = vmul.f32 %v2979, %v3091
  %v3108 = vmul.f32 %v2980, %v3092
  %v3109 = vmul.f32 %v2981, %v3093
  %v3110 = vmul.f32 %v2982, %v3094
  %v3111 = vmul.f32 %v2983, %v3095
  %v3112 = vmul.f32 %v2984, %v3096
  %v3113 = vmul.f32 %v2985, %v3097
  %v3114 = vmul.f32 %v2986, %v3098
  %v3115 = vmul.f32 %v2987, %v3099
  %v3116 = vmul.f32 %v2988, %v3100
  %v3117 = vmul.f32 %v2989, %v3101
  %v3118 = vmul.f32 %v3102, %v228
  %v3119 = vmul.f32 %v3103, %v228
  %v3120 = vmul.f32 %v3104, %v228
  %v3121 = vmul.f32 %v3105, %v228
  %v3122 = vmul.f32 %v3106, %v228
  %v3123 = vmul.f32 %v3107, %v228
  %v3124 = vmul.f32 %v3108, %v228
  %v3125 = vmul.f32 %v3109, %v228
  %v3126 = vmul.f32 %v3110, %v228
  %v3127 = vmul.f32 %v3111, %v228
  %v3128 = vmul.f32 %v3112, %v228
  %v3129 = vmul.f32 %v3113, %v228
  %v3130 = vmul.f32 %v3114, %v228
  %v3131 = vmul.f32 %v3115, %v228
  %v3132 = vmul.f32 %v3116, %v228
  %v3133 = vmul.f32 %v3117, %v228
  %v3134 = vadd.f32 %v3118, %v229
  %v3135 = vadd.f32 %v3119, %v229
  %v3136 = vadd.f32 %v3120, %v229
  %v3137 = vadd.f32 %v3121, %v229
  %v3138 = vadd.f32 %v3122, %v229
  %v3139 = vadd.f32 %v3123, %v229
  %v3140 = vadd.f32 %v3124, %v229
  %v3141 = vadd.f32 %v3125, %v229
  %v3142 = vadd.f32 %v3126, %v229
  %v3143 = vadd.f32 %v3127, %v229
  %v3144 = vadd.f32 %v3128, %v229
  %v3145 = vadd.f32 %v3129, %v229
  %v3146 = vadd.f32 %v3130, %v229
  %v3147 = vadd.f32 %v3131, %v229
  %v3148 = vadd.f32 %v3132, %v229
  %v3149 = vadd.f32 %v3133, %v229
  %v3150 = vld [vmem:[%s4] sm:$0xf]
  %v3151 = vld [vmem:[%s4 + $0x4] sm:$0xf]
  %v3152 = vld [vmem:[%s4 + $0x8] sm:$0xf]
  %v3153 = vld [vmem:[%s4 + $0xc] sm:$0xf]
  %v3154 = vld [vmem:[%s4 + $0x10] sm:$0xf]
  %v3155 = vld [vmem:[%s4 + $0x14] sm:$0xf]
  %v3156 = vld [vmem:[%s4 + $0x18] sm:$0xf]
  %v3157 = vld [vmem:[%s4 + $0x1c] sm:$0xf]
  %v3158 = vpack.c.bf16 %v3135, %v3134
  %v3159 = vpack.c.bf16 %v3137, %v3136
  %v3160 = vpack.c.bf16 %v3139, %v3138
  %v3161 = vpack.c.bf16 %v3141, %v3140
  %v3162 = vpack.c.bf16 %v3143, %v3142
  %v3163 = vpack.c.bf16 %v3145, %v3144
  %v3164 = vpack.c.bf16 %v3147, %v3146
  %v3165 = vpack.c.bf16 %v3149, %v3148
  %v3174 = vunpack.c.l.b16 %v3150
  %v3175 = vunpack.c.l.b16 %v3151
  %v3176 = vunpack.c.l.b16 %v3152
  %v3177 = vunpack.c.l.b16 %v3153
  %v3178 = vunpack.c.l.b16 %v3154
  %v3179 = vunpack.c.l.b16 %v3155
  %v3180 = vunpack.c.l.b16 %v3156
  %v3181 = vunpack.c.l.b16 %v3157
  %v3182 = vpack.c.b16 %v3175, %v3174
  %v3183 = vpack.c.b16 %v3177, %v3176
  %v3184 = vpack.c.b16 %v3179, %v3178
  %v3185 = vpack.c.b16 %v3181, %v3180
  %v3191 = vsel %vm338, %v3158, 0
  %v3194 = vsel %vm338, %v3159, 0
  %v3197 = vsel %vm338, %v3160, 0
  %v3200 = vsel %vm338, %v3161, 0
  %v3203 = vsel %vm338, %v3162, 0
  %v3206 = vsel %vm338, %v3163, 0
  %v3209 = vsel %vm338, %v3164, 0
  %v3212 = vsel %vm338, %v3165, 0
  %3214 = vmatprep.subr.bf16.mxu0 0
  %3215 = vmatpush1.bf16.msra.mxu0 0
  %3216 = vmatprep.subr.bf16.mxu0 0
  %3217 = vmatpush1.bf16.msra.mxu0 0
  %3218 = vmatprep.subr.bf16.mxu0 0
  %3219 = vmatpush1.bf16.msra.mxu0 0
  %3220 = vmatprep.subr.bf16.mxu0 0
  %3221 = vmatpush1.bf16.msra.mxu0 0
  %3222 = vmatprep.subr.bf16.mxu0 0
  %3223 = vmatpush1.bf16.msra.mxu0 %v3185
  %3224 = vmatprep.subr.bf16.mxu0 0
  %3225 = vmatpush1.bf16.msra.mxu0 %v3184
  %3226 = vmatprep.subr.bf16.mxu0 0
  %3227 = vmatpush1.bf16.msra.mxu0 %v3183
  %3228 = vmatprep.subr.bf16.mxu0 0
  %3229 = vmatpush1.bf16.msra.mxu0 %v3182
  %3230 = vmatprep.subr.bf16.mxu0 0
  %3231 = vmatpush2.bf16.msra.mxu0 0
  %3232 = vmatprep.subr.bf16.mxu0 0
  %3233 = vmatpush2.bf16.msra.mxu0 0
  %3234 = vmatprep.subr.bf16.mxu0 0
  %3235 = vmatpush2.bf16.msra.mxu0 0
  %3236 = vmatprep.subr.bf16.mxu0 0
  %3237 = vmatpush2.bf16.msra.mxu0 0
  %3238 = vmatprep.subr.bf16.mxu0 0
  %3239 = vmatpush2.bf16.msra.mxu0 0
  %3240 = vmatprep.subr.bf16.mxu0 0
  %3241 = vmatpush2.bf16.msra.mxu0 0
  %3242 = vmatprep.subr.bf16.mxu0 0
  %3243 = vmatpush2.bf16.msra.mxu0 0
  %3244 = vmatprep.subr.bf16.mxu0 0
  %3245 = vmatpush2.bf16.msra.mxu0 0
  %3246 = vmatprep.mubr.bf16.mxu0 0
  %3247 = vmatmul.mubr.bf16.gmra.mxu0 %v3191
  %v3248 = vpop.f32.mrf.mxu0
  %v3249 = vadd.f32 %v230, %v3248
  %v3250 = vpop.f32.mrf.mxu0
  %v3251 = vpop.f32.mrf.mxu0
  %v3252 = vadd.f32 %v230, %v3251
  %v3253 = vpop.f32.mrf.mxu0
  %3254 = vmatprep.mubr.bf16.mxu0 0
  %3255 = vmatmul.mubr.bf16.gmra.mxu0 %v3194
  %v3256 = vpop.f32.mrf.mxu0
  %v3257 = vadd.f32 %v230, %v3256
  %v3258 = vpop.f32.mrf.mxu0
  %v3259 = vpop.f32.mrf.mxu0
  %v3260 = vadd.f32 %v230, %v3259
  %v3261 = vpop.f32.mrf.mxu0
  %3262 = vmatprep.mubr.bf16.mxu0 0
  %3263 = vmatmul.mubr.bf16.gmra.mxu0 %v3197
  %v3264 = vpop.f32.mrf.mxu0
  %v3265 = vadd.f32 %v230, %v3264
  %v3266 = vpop.f32.mrf.mxu0
  %v3267 = vpop.f32.mrf.mxu0
  %v3268 = vadd.f32 %v230, %v3267
  %v3269 = vpop.f32.mrf.mxu0
  %3270 = vmatprep.mubr.bf16.mxu0 0
  %3271 = vmatmul.mubr.bf16.gmra.mxu0 %v3200
  %v3272 = vpop.f32.mrf.mxu0
  %v3273 = vadd.f32 %v230, %v3272
  %v3274 = vpop.f32.mrf.mxu0
  %v3275 = vpop.f32.mrf.mxu0
  %v3276 = vadd.f32 %v230, %v3275
  %v3277 = vpop.f32.mrf.mxu0
  %3278 = vmatprep.mubr.bf16.mxu0 0
  %3279 = vmatmul.mubr.bf16.gmra.mxu0 %v3203
  %v3280 = vpop.f32.mrf.mxu0
  %v3281 = vadd.f32 %v230, %v3280
  %v3282 = vpop.f32.mrf.mxu0
  %v3283 = vpop.f32.mrf.mxu0
  %v3284 = vadd.f32 %v230, %v3283
  %v3285 = vpop.f32.mrf.mxu0
  %3286 = vmatprep.mubr.bf16.mxu0 0
  %3287 = vmatmul.mubr.bf16.gmra.mxu0 %v3206
  %v3288 = vpop.f32.mrf.mxu0
  %v3289 = vadd.f32 %v230, %v3288
  %v3290 = vpop.f32.mrf.mxu0
  %v3291 = vpop.f32.mrf.mxu0
  %v3292 = vadd.f32 %v230, %v3291
  %v3293 = vpop.f32.mrf.mxu0
  %3294 = vmatprep.mubr.bf16.mxu0 0
  %3295 = vmatmul.mubr.bf16.gmra.mxu0 %v3209
  %v3296 = vpop.f32.mrf.mxu0
  %v3297 = vadd.f32 %v230, %v3296
  %v3298 = vpop.f32.mrf.mxu0
  %v3299 = vpop.f32.mrf.mxu0
  %v3300 = vadd.f32 %v230, %v3299
  %v3301 = vpop.f32.mrf.mxu0
  %3302 = vmatprep.mubr.bf16.mxu0 0
  %3303 = vmatmul.mubr.bf16.gmra.mxu0 %v3212
  %v3304 = vpop.f32.mrf.mxu0
  %v3305 = vadd.f32 %v230, %v3304
  %v3306 = vpop.f32.mrf.mxu0
  %v3307 = vpop.f32.mrf.mxu0
  %v3308 = vadd.f32 %v230, %v3307
  %v3309 = vpop.f32.mrf.mxu0
  %3310 = vdwg.mxu0
  %v3311 = vmax.f32 %v3249, 0.0
  %v3312 = vmax.f32 %v3252, 0.0
  %v3313 = vmax.f32 %v3257, 0.0
  %v3314 = vmax.f32 %v3260, 0.0
  %v3315 = vmax.f32 %v3265, 0.0
  %v3316 = vmax.f32 %v3268, 0.0
  %v3317 = vmax.f32 %v3273, 0.0
  %v3318 = vmax.f32 %v3276, 0.0
  %v3319 = vmax.f32 %v3281, 0.0
  %v3320 = vmax.f32 %v3284, 0.0
  %v3321 = vmax.f32 %v3289, 0.0
  %v3322 = vmax.f32 %v3292, 0.0
  %v3323 = vmax.f32 %v3297, 0.0
  %v3324 = vmax.f32 %v3300, 0.0
  %v3325 = vmax.f32 %v3305, 0.0
  %v3326 = vmax.f32 %v3308, 0.0
  %v3327 = vld [vmem:[%s5] sm:$0xf]
  %v3328 = vld [vmem:[%s5 + $0x4] sm:$0xf]
  %v3329 = vld [vmem:[%s5 + $0x8] sm:$0xf]
  %v3330 = vld [vmem:[%s5 + $0xc] sm:$0xf]
  %v3331 = vld [vmem:[%s5 + $0x10] sm:$0xf]
  %v3332 = vld [vmem:[%s5 + $0x14] sm:$0xf]
  %v3333 = vld [vmem:[%s5 + $0x18] sm:$0xf]
  %v3334 = vld [vmem:[%s5 + $0x1c] sm:$0xf]
  %v3335 = vld [vmem:[%s5 + $0x20] sm:$0xf]
  %v3336 = vld [vmem:[%s5 + $0x24] sm:$0xf]
  %v3337 = vld [vmem:[%s5 + $0x28] sm:$0xf]
  %v3338 = vld [vmem:[%s5 + $0x2c] sm:$0xf]
  %v3339 = vld [vmem:[%s5 + $0x30] sm:$0xf]
  %v3340 = vld [vmem:[%s5 + $0x34] sm:$0xf]
  %v3341 = vld [vmem:[%s5 + $0x38] sm:$0xf]
  %v3342 = vld [vmem:[%s5 + $0x3c] sm:$0xf]
  %v3343 = vpack.c.bf16 %v3312, %v3311
  %v3344 = vpack.c.bf16 %v3314, %v3313
  %v3345 = vpack.c.bf16 %v3316, %v3315
  %v3346 = vpack.c.bf16 %v3318, %v3317
  %v3347 = vpack.c.bf16 %v3320, %v3319
  %v3348 = vpack.c.bf16 %v3322, %v3321
  %v3349 = vpack.c.bf16 %v3324, %v3323
  %v3350 = vpack.c.bf16 %v3326, %v3325
  %v3367 = vunpack.c.l.b16 %v3327
  %v3368 = vunpack.c.l.b16 %v3328
  %v3369 = vunpack.c.l.b16 %v3329
  %v3370 = vunpack.c.l.b16 %v3330
  %v3371 = vunpack.c.l.b16 %v3331
  %v3372 = vunpack.c.l.b16 %v3332
  %v3373 = vunpack.c.l.b16 %v3333
  %v3374 = vunpack.c.l.b16 %v3334
  %v3375 = vunpack.c.l.b16 %v3335
  %v3376 = vunpack.c.l.b16 %v3336
  %v3377 = vunpack.c.l.b16 %v3337
  %v3378 = vunpack.c.l.b16 %v3338
  %v3379 = vunpack.c.l.b16 %v3339
  %v3380 = vunpack.c.l.b16 %v3340
  %v3381 = vunpack.c.l.b16 %v3341
  %v3382 = vunpack.c.l.b16 %v3342
  %v3383 = vpack.c.b16 %v3368, %v3367
  %v3384 = vpack.c.b16 %v3370, %v3369
  %v3385 = vpack.c.b16 %v3372, %v3371
  %v3386 = vpack.c.b16 %v3374, %v3373
  %v3387 = vpack.c.b16 %v3376, %v3375
  %v3388 = vpack.c.b16 %v3378, %v3377
  %v3389 = vpack.c.b16 %v3380, %v3379
  %v3390 = vpack.c.b16 %v3382, %v3381
  %3399 = vmatprep.subr.bf16.mxu0 0
  %3400 = vmatpush1.bf16.msra.mxu0 %v3390
  %3401 = vmatprep.subr.bf16.mxu0 0
  %3402 = vmatpush1.bf16.msra.mxu0 %v3389
  %3403 = vmatprep.subr.bf16.mxu0 0
  %3404 = vmatpush1.bf16.msra.mxu0 %v3388
  %3405 = vmatprep.subr.bf16.mxu0 0
  %3406 = vmatpush1.bf16.msra.mxu0 %v3387
  %3407 = vmatprep.subr.bf16.mxu0 0
  %3408 = vmatpush1.bf16.msra.mxu0 %v3386
  %3409 = vmatprep.subr.bf16.mxu0 0
  %3410 = vmatpush1.bf16.msra.mxu0 %v3385
  %3411 = vmatprep.subr.bf16.mxu0 0
  %3412 = vmatpush1.bf16.msra.mxu0 %v3384
  %3413 = vmatprep.subr.bf16.mxu0 0
  %3414 = vmatpush1.bf16.msra.mxu0 %v3383
  %3415 = vmatprep.subr.bf16.mxu0 0
  %3416 = vmatpush2.bf16.msra.mxu0 0
  %3417 = vmatprep.subr.bf16.mxu0 0
  %3418 = vmatpush2.bf16.msra.mxu0 0
  %3419 = vmatprep.subr.bf16.mxu0 0
  %3420 = vmatpush2.bf16.msra.mxu0 0
  %3421 = vmatprep.subr.bf16.mxu0 0
  %3422 = vmatpush2.bf16.msra.mxu0 0
  %3423 = vmatprep.subr.bf16.mxu0 0
  %3424 = vmatpush2.bf16.msra.mxu0 0
  %3425 = vmatprep.subr.bf16.mxu0 0
  %3426 = vmatpush2.bf16.msra.mxu0 0
  %3427 = vmatprep.subr.bf16.mxu0 0
  %3428 = vmatpush2.bf16.msra.mxu0 0
  %3429 = vmatprep.subr.bf16.mxu0 0
  %3430 = vmatpush2.bf16.msra.mxu0 0
  %3431 = vmatprep.mubr.bf16.mxu0 0
  %3432 = vmatmul.mubr.bf16.gmra.mxu0 %v3343
  %v3433 = vpop.f32.mrf.mxu0
  %v3434 = vadd.f32 %v231, %v3433
  %v3435 = vpop.f32.mrf.mxu0
  %v3436 = vpop.f32.mrf.mxu0
  %v3437 = vadd.f32 %v231, %v3436
  %v3438 = vpop.f32.mrf.mxu0
  %3439 = vmatprep.mubr.bf16.mxu0 0
  %3440 = vmatmul.mubr.bf16.gmra.mxu0 %v3344
  %v3441 = vpop.f32.mrf.mxu0
  %v3442 = vadd.f32 %v231, %v3441
  %v3443 = vpop.f32.mrf.mxu0
  %v3444 = vpop.f32.mrf.mxu0
  %v3445 = vadd.f32 %v231, %v3444
  %v3446 = vpop.f32.mrf.mxu0
  %3447 = vmatprep.mubr.bf16.mxu0 0
  %3448 = vmatmul.mubr.bf16.gmra.mxu0 %v3345
  %v3449 = vpop.f32.mrf.mxu0
  %v3450 = vadd.f32 %v231, %v3449
  %v3451 = vpop.f32.mrf.mxu0
  %v3452 = vpop.f32.mrf.mxu0
  %v3453 = vadd.f32 %v231, %v3452
  %v3454 = vpop.f32.mrf.mxu0
  %3455 = vmatprep.mubr.bf16.mxu0 0
  %3456 = vmatmul.mubr.bf16.gmra.mxu0 %v3346
  %v3457 = vpop.f32.mrf.mxu0
  %v3458 = vadd.f32 %v231, %v3457
  %v3459 = vpop.f32.mrf.mxu0
  %v3460 = vpop.f32.mrf.mxu0
  %v3461 = vadd.f32 %v231, %v3460
  %v3462 = vpop.f32.mrf.mxu0
  %3463 = vmatprep.mubr.bf16.mxu0 0
  %3464 = vmatmul.mubr.bf16.gmra.mxu0 %v3347
  %v3465 = vpop.f32.mrf.mxu0
  %v3466 = vadd.f32 %v231, %v3465
  %v3467 = vpop.f32.mrf.mxu0
  %v3468 = vpop.f32.mrf.mxu0
  %v3469 = vadd.f32 %v231, %v3468
  %v3470 = vpop.f32.mrf.mxu0
  %3471 = vmatprep.mubr.bf16.mxu0 0
  %3472 = vmatmul.mubr.bf16.gmra.mxu0 %v3348
  %v3473 = vpop.f32.mrf.mxu0
  %v3474 = vadd.f32 %v231, %v3473
  %v3475 = vpop.f32.mrf.mxu0
  %v3476 = vpop.f32.mrf.mxu0
  %v3477 = vadd.f32 %v231, %v3476
  %v3478 = vpop.f32.mrf.mxu0
  %3479 = vmatprep.mubr.bf16.mxu0 0
  %3480 = vmatmul.mubr.bf16.gmra.mxu0 %v3349
  %v3481 = vpop.f32.mrf.mxu0
  %v3482 = vadd.f32 %v231, %v3481
  %v3483 = vpop.f32.mrf.mxu0
  %v3484 = vpop.f32.mrf.mxu0
  %v3485 = vadd.f32 %v231, %v3484
  %v3486 = vpop.f32.mrf.mxu0
  %3487 = vmatprep.mubr.bf16.mxu0 0
  %3488 = vmatmul.mubr.bf16.gmra.mxu0 %v3350
  %v3489 = vpop.f32.mrf.mxu0
  %v3490 = vadd.f32 %v231, %v3489
  %v3491 = vpop.f32.mrf.mxu0
  %v3492 = vpop.f32.mrf.mxu0
  %v3493 = vadd.f32 %v231, %v3492
  %v3494 = vpop.f32.mrf.mxu0
  %3495 = vdwg.mxu0
  %v3496 = vadd.f32 %v3134, %v3434
  %v3497 = vadd.f32 %v3135, %v3437
  %v3498 = vadd.f32 %v3136, %v3442
  %v3499 = vadd.f32 %v3137, %v3445
  %v3500 = vadd.f32 %v3138, %v3450
  %v3501 = vadd.f32 %v3139, %v3453
  %v3502 = vadd.f32 %v3140, %v3458
  %v3503 = vadd.f32 %v3141, %v3461
  %v3504 = vadd.f32 %v3142, %v3466
  %v3505 = vadd.f32 %v3143, %v3469
  %v3506 = vadd.f32 %v3144, %v3474
  %v3507 = vadd.f32 %v3145, %v3477
  %v3508 = vadd.f32 %v3146, %v3482
  %v3509 = vadd.f32 %v3147, %v3485
  %v3510 = vadd.f32 %v3148, %v3490
  %v3511 = vadd.f32 %v3149, %v3493
  %v3512 = vsel %vm338, %v3496, 0.0
  %3513 = vadd.xlane.f32.xlu0 %v3512
  %v3514 = vpop.xlane.xlu0 %3513
  %v3515 = vsel %vm338, %v3497, 0.0
  %3516 = vadd.xlane.f32.xlu0 %v3515
  %v3517 = vpop.xlane.xlu0 %3516
  %v3518 = vsel %vm338, %v3498, 0.0
  %3519 = vadd.xlane.f32.xlu0 %v3518
  %v3520 = vpop.xlane.xlu0 %3519
  %v3521 = vsel %vm338, %v3499, 0.0
  %3522 = vadd.xlane.f32.xlu0 %v3521
  %v3523 = vpop.xlane.xlu0 %3522
  %v3524 = vsel %vm338, %v3500, 0.0
  %3525 = vadd.xlane.f32.xlu0 %v3524
  %v3526 = vpop.xlane.xlu0 %3525
  %v3527 = vsel %vm338, %v3501, 0.0
  %3528 = vadd.xlane.f32.xlu0 %v3527
  %v3529 = vpop.xlane.xlu0 %3528
  %v3530 = vsel %vm338, %v3502, 0.0
  %3531 = vadd.xlane.f32.xlu0 %v3530
  %v3532 = vpop.xlane.xlu0 %3531
  %v3533 = vsel %vm338, %v3503, 0.0
  %3534 = vadd.xlane.f32.xlu0 %v3533
  %v3535 = vpop.xlane.xlu0 %3534
  %v3536 = vsel %vm338, %v3504, 0.0
  %3537 = vadd.xlane.f32.xlu0 %v3536
  %v3538 = vpop.xlane.xlu0 %3537
  %v3539 = vsel %vm338, %v3505, 0.0
  %3540 = vadd.xlane.f32.xlu0 %v3539
  %v3541 = vpop.xlane.xlu0 %3540
  %v3542 = vsel %vm338, %v3506, 0.0
  %3543 = vadd.xlane.f32.xlu0 %v3542
  %v3544 = vpop.xlane.xlu0 %3543
  %v3545 = vsel %vm338, %v3507, 0.0
  %3546 = vadd.xlane.f32.xlu0 %v3545
  %v3547 = vpop.xlane.xlu0 %3546
  %v3548 = vsel %vm338, %v3508, 0.0
  %3549 = vadd.xlane.f32.xlu0 %v3548
  %v3550 = vpop.xlane.xlu0 %3549
  %v3551 = vsel %vm338, %v3509, 0.0
  %3552 = vadd.xlane.f32.xlu0 %v3551
  %v3553 = vpop.xlane.xlu0 %3552
  %v3554 = vsel %vm338, %v3510, 0.0
  %3555 = vadd.xlane.f32.xlu0 %v3554
  %v3556 = vpop.xlane.xlu0 %3555
  %v3557 = vsel %vm338, %v3511, 0.0
  %3558 = vadd.xlane.f32.xlu0 %v3557
  %v3559 = vpop.xlane.xlu0 %3558
  %v3560 = vmul.f32 %v3514, %v2957
  %v3561 = vmul.f32 %v3517, %v2957
  %v3562 = vmul.f32 %v3520, %v2957
  %v3563 = vmul.f32 %v3523, %v2957
  %v3564 = vmul.f32 %v3526, %v2957
  %v3565 = vmul.f32 %v3529, %v2957
  %v3566 = vmul.f32 %v3532, %v2957
  %v3567 = vmul.f32 %v3535, %v2957
  %v3568 = vmul.f32 %v3538, %v2957
  %v3569 = vmul.f32 %v3541, %v2957
  %v3570 = vmul.f32 %v3544, %v2957
  %v3571 = vmul.f32 %v3547, %v2957
  %v3572 = vmul.f32 %v3550, %v2957
  %v3573 = vmul.f32 %v3553, %v2957
  %v3574 = vmul.f32 %v3556, %v2957
  %v3575 = vmul.f32 %v3559, %v2957
  %v3576 = vsub.f32 %v3496, %v3560
  %v3577 = vsub.f32 %v3497, %v3561
  %v3578 = vsub.f32 %v3498, %v3562
  %v3579 = vsub.f32 %v3499, %v3563
  %v3580 = vsub.f32 %v3500, %v3564
  %v3581 = vsub.f32 %v3501, %v3565
  %v3582 = vsub.f32 %v3502, %v3566
  %v3583 = vsub.f32 %v3503, %v3567
  %v3584 = vsub.f32 %v3504, %v3568
  %v3585 = vsub.f32 %v3505, %v3569
  %v3586 = vsub.f32 %v3506, %v3570
  %v3587 = vsub.f32 %v3507, %v3571
  %v3588 = vsub.f32 %v3508, %v3572
  %v3589 = vsub.f32 %v3509, %v3573
  %v3590 = vsub.f32 %v3510, %v3574
  %v3591 = vsub.f32 %v3511, %v3575
  %v3592 = vmul.f32 %v3576, %v3576
  %v3593 = vmul.f32 %v3577, %v3577
  %v3594 = vmul.f32 %v3578, %v3578
  %v3595 = vmul.f32 %v3579, %v3579
  %v3596 = vmul.f32 %v3580, %v3580
  %v3597 = vmul.f32 %v3581, %v3581
  %v3598 = vmul.f32 %v3582, %v3582
  %v3599 = vmul.f32 %v3583, %v3583
  %v3600 = vmul.f32 %v3584, %v3584
  %v3601 = vmul.f32 %v3585, %v3585
  %v3602 = vmul.f32 %v3586, %v3586
  %v3603 = vmul.f32 %v3587, %v3587
  %v3604 = vmul.f32 %v3588, %v3588
  %v3605 = vmul.f32 %v3589, %v3589
  %v3606 = vmul.f32 %v3590, %v3590
  %v3607 = vmul.f32 %v3591, %v3591
  %v3608 = vsel %vm338, %v3592, 0.0
  %3609 = vadd.xlane.f32.xlu0 %v3608
  %v3610 = vpop.xlane.xlu0 %3609
  %v3611 = vsel %vm338, %v3593, 0.0
  %3612 = vadd.xlane.f32.xlu0 %v3611
  %v3613 = vpop.xlane.xlu0 %3612
  %v3614 = vsel %vm338, %v3594, 0.0
  %3615 = vadd.xlane.f32.xlu0 %v3614
  %v3616 = vpop.xlane.xlu0 %3615
  %v3617 = vsel %vm338, %v3595, 0.0
  %3618 = vadd.xlane.f32.xlu0 %v3617
  %v3619 = vpop.xlane.xlu0 %3618
  %v3620 = vsel %vm338, %v3596, 0.0
  %3621 = vadd.xlane.f32.xlu0 %v3620
  %v3622 = vpop.xlane.xlu0 %3621
  %v3623 = vsel %vm338, %v3597, 0.0
  %3624 = vadd.xlane.f32.xlu0 %v3623
  %v3625 = vpop.xlane.xlu0 %3624
  %v3626 = vsel %vm338, %v3598, 0.0
  %3627 = vadd.xlane.f32.xlu0 %v3626
  %v3628 = vpop.xlane.xlu0 %3627
  %v3629 = vsel %vm338, %v3599, 0.0
  %3630 = vadd.xlane.f32.xlu0 %v3629
  %v3631 = vpop.xlane.xlu0 %3630
  %v3632 = vsel %vm338, %v3600, 0.0
  %3633 = vadd.xlane.f32.xlu0 %v3632
  %v3634 = vpop.xlane.xlu0 %3633
  %v3635 = vsel %vm338, %v3601, 0.0
  %3636 = vadd.xlane.f32.xlu0 %v3635
  %v3637 = vpop.xlane.xlu0 %3636
  %v3638 = vsel %vm338, %v3602, 0.0
  %3639 = vadd.xlane.f32.xlu0 %v3638
  %v3640 = vpop.xlane.xlu0 %3639
  %v3641 = vsel %vm338, %v3603, 0.0
  %3642 = vadd.xlane.f32.xlu0 %v3641
  %v3643 = vpop.xlane.xlu0 %3642
  %v3644 = vsel %vm338, %v3604, 0.0
  %3645 = vadd.xlane.f32.xlu0 %v3644
  %v3646 = vpop.xlane.xlu0 %3645
  %v3647 = vsel %vm338, %v3605, 0.0
  %3648 = vadd.xlane.f32.xlu0 %v3647
  %v3649 = vpop.xlane.xlu0 %3648
  %v3650 = vsel %vm338, %v3606, 0.0
  %3651 = vadd.xlane.f32.xlu0 %v3650
  %v3652 = vpop.xlane.xlu0 %3651
  %v3653 = vsel %vm338, %v3607, 0.0
  %3654 = vadd.xlane.f32.xlu0 %v3653
  %v3655 = vpop.xlane.xlu0 %3654
  %v3656 = vmul.f32 %v3610, %v2957
  %v3657 = vmul.f32 %v3613, %v2957
  %v3658 = vmul.f32 %v3616, %v2957
  %v3659 = vmul.f32 %v3619, %v2957
  %v3660 = vmul.f32 %v3622, %v2957
  %v3661 = vmul.f32 %v3625, %v2957
  %v3662 = vmul.f32 %v3628, %v2957
  %v3663 = vmul.f32 %v3631, %v2957
  %v3664 = vmul.f32 %v3634, %v2957
  %v3665 = vmul.f32 %v3637, %v2957
  %v3666 = vmul.f32 %v3640, %v2957
  %v3667 = vmul.f32 %v3643, %v2957
  %v3668 = vmul.f32 %v3646, %v2957
  %v3669 = vmul.f32 %v3649, %v2957
  %v3670 = vmul.f32 %v3652, %v2957
  %v3671 = vmul.f32 %v3655, %v2957
  %v3672 = vadd.f32 %v3656, 1e-05
  %v3673 = vadd.f32 %v3657, 1e-05
  %v3674 = vadd.f32 %v3658, 1e-05
  %v3675 = vadd.f32 %v3659, 1e-05
  %v3676 = vadd.f32 %v3660, 1e-05
  %v3677 = vadd.f32 %v3661, 1e-05
  %v3678 = vadd.f32 %v3662, 1e-05
  %v3679 = vadd.f32 %v3663, 1e-05
  %v3680 = vadd.f32 %v3664, 1e-05
  %v3681 = vadd.f32 %v3665, 1e-05
  %v3682 = vadd.f32 %v3666, 1e-05
  %v3683 = vadd.f32 %v3667, 1e-05
  %v3684 = vadd.f32 %v3668, 1e-05
  %v3685 = vadd.f32 %v3669, 1e-05
  %v3686 = vadd.f32 %v3670, 1e-05
  %v3687 = vadd.f32 %v3671, 1e-05
  %v3688 = vrsqrt.pop %v3672
  %v3689 = vrsqrt.pop %v3673
  %v3690 = vrsqrt.pop %v3674
  %v3691 = vrsqrt.pop %v3675
  %v3692 = vrsqrt.pop %v3676
  %v3693 = vrsqrt.pop %v3677
  %v3694 = vrsqrt.pop %v3678
  %v3695 = vrsqrt.pop %v3679
  %v3696 = vrsqrt.pop %v3680
  %v3697 = vrsqrt.pop %v3681
  %v3698 = vrsqrt.pop %v3682
  %v3699 = vrsqrt.pop %v3683
  %v3700 = vrsqrt.pop %v3684
  %v3701 = vrsqrt.pop %v3685
  %v3702 = vrsqrt.pop %v3686
  %v3703 = vrsqrt.pop %v3687
  %v3704 = vmul.f32 %v3576, %v3688
  %v3705 = vmul.f32 %v3577, %v3689
  %v3706 = vmul.f32 %v3578, %v3690
  %v3707 = vmul.f32 %v3579, %v3691
  %v3708 = vmul.f32 %v3580, %v3692
  %v3709 = vmul.f32 %v3581, %v3693
  %v3710 = vmul.f32 %v3582, %v3694
  %v3711 = vmul.f32 %v3583, %v3695
  %v3712 = vmul.f32 %v3584, %v3696
  %v3713 = vmul.f32 %v3585, %v3697
  %v3714 = vmul.f32 %v3586, %v3698
  %v3715 = vmul.f32 %v3587, %v3699
  %v3716 = vmul.f32 %v3588, %v3700
  %v3717 = vmul.f32 %v3589, %v3701
  %v3718 = vmul.f32 %v3590, %v3702
  %v3719 = vmul.f32 %v3591, %v3703
  %v3720 = vmul.f32 %v3704, %v232
  %v3721 = vmul.f32 %v3705, %v232
  %v3722 = vmul.f32 %v3706, %v232
  %v3723 = vmul.f32 %v3707, %v232
  %v3724 = vmul.f32 %v3708, %v232
  %v3725 = vmul.f32 %v3709, %v232
  %v3726 = vmul.f32 %v3710, %v232
  %v3727 = vmul.f32 %v3711, %v232
  %v3728 = vmul.f32 %v3712, %v232
  %v3729 = vmul.f32 %v3713, %v232
  %v3730 = vmul.f32 %v3714, %v232
  %v3731 = vmul.f32 %v3715, %v232
  %v3732 = vmul.f32 %v3716, %v232
  %v3733 = vmul.f32 %v3717, %v232
  %v3734 = vmul.f32 %v3718, %v232
  %v3735 = vmul.f32 %v3719, %v232
  %v3736 = vadd.f32 %v3720, %v233
  %v3737 = vadd.f32 %v3721, %v233
  %v3738 = vadd.f32 %v3722, %v233
  %v3739 = vadd.f32 %v3723, %v233
  %v3740 = vadd.f32 %v3724, %v233
  %v3741 = vadd.f32 %v3725, %v233
  %v3742 = vadd.f32 %v3726, %v233
  %v3743 = vadd.f32 %v3727, %v233
  %v3744 = vadd.f32 %v3728, %v233
  %v3745 = vadd.f32 %v3729, %v233
  %v3746 = vadd.f32 %v3730, %v233
  %v3747 = vadd.f32 %v3731, %v233
  %v3748 = vadd.f32 %v3732, %v233
  %v3749 = vadd.f32 %v3733, %v233
  %v3750 = vadd.f32 %v3734, %v233
  %v3751 = vadd.f32 %v3735, %v233
  %s3752 = scalar_lea.vmem %s7, 24
  %v3753 = vld [vmem:[%s3752] ss:$8 sm:$0x7]
  %v3754 = vld [vmem:[%s3752 + $0x1] ss:$0 sm:$0xff]
  %v3755 = vld [vmem:[%s3752 + $0x2] ss:$0 sm:$0xff]
  %v3756 = vld [vmem:[%s3752 + $0x3] ss:$0 sm:$0xff]
  %v3757 = vld [vmem:[%s3752 + $0x4] ss:$0 sm:$0xff]
  %v3758 = vld [vmem:[%s3752 + $0x5] ss:$0 sm:$0xff]
  %v3759 = vld [vmem:[%s3752 + $0x6] ss:$0 sm:$0xff]
  %v3760 = vld [vmem:[%s3752 + $0x7] ss:$0 sm:$0xff]
  %s3761 = scalar_lea.vmem %s3, 96
  %v3762 = vld [vmem:[%s3761] sm:$0xff]
  %v3763 = vld [vmem:[%s3761 + $0x8] sm:$0xf]
  %v3764 = vld [vmem:[%s3761 + $0xc] sm:$0xff]
  %v3765 = vld [vmem:[%s3761 + $0x14] sm:$0xf]
  %v3766 = vld [vmem:[%s3761 + $0x18] sm:$0xff]
  %v3767 = vld [vmem:[%s3761 + $0x20] sm:$0xf]
  %v3768 = vld [vmem:[%s3761 + $0x24] sm:$0xff]
  %v3769 = vld [vmem:[%s3761 + $0x2c] sm:$0xf]
  %v3770 = vld [vmem:[%s3761 + $0x30] sm:$0xff]
  %v3771 = vld [vmem:[%s3761 + $0x38] sm:$0xf]
  %v3772 = vld [vmem:[%s3761 + $0x3c] sm:$0xff]
  %v3773 = vld [vmem:[%s3761 + $0x44] sm:$0xf]
  %v3774 = vld [vmem:[%s3761 + $0x48] sm:$0xff]
  %v3775 = vld [vmem:[%s3761 + $0x50] sm:$0xf]
  %v3776 = vld [vmem:[%s3761 + $0x54] sm:$0xff]
  %v3777 = vld [vmem:[%s3761 + $0x5c] sm:$0xf]
  %v3778 = vpack.c.bf16 %v3737, %v3736
  %v3779 = vpack.c.bf16 %v3739, %v3738
  %v3780 = vpack.c.bf16 %v3741, %v3740
  %v3781 = vpack.c.bf16 %v3743, %v3742
  %v3782 = vpack.c.bf16 %v3745, %v3744
  %v3783 = vpack.c.bf16 %v3747, %v3746
  %v3784 = vpack.c.bf16 %v3749, %v3748
  %v3785 = vpack.c.bf16 %v3751, %v3750
  %v3787 = vlaneseq
  %v3788 = vshrl.u32 %v3787, 7
  %v3789 = vsub.s32 0, %v3788
  %v3790 = vrot.slane %v3753, %v3789
  %v3791 = vlaneseq
  %v3792 = vshrl.u32 %v3791, 7
  %v3793 = vsub.s32 1, %v3792
  %v3794 = vrot.slane %v3753, %v3793
  %v3795 = vlaneseq
  %v3796 = vshrl.u32 %v3795, 7
  %v3797 = vsub.s32 2, %v3796
  %v3798 = vrot.slane %v3753, %v3797
  %v3818 = vunpack.c.l.b16 %v3762
  %v3819 = vunpack.c.h.b16 %v3762
  %v3820 = vunpack.c.l.b16 %v3763
  %v3821 = vunpack.c.l.b16 %v3764
  %v3822 = vunpack.c.h.b16 %v3764
  %v3823 = vunpack.c.l.b16 %v3765
  %v3824 = vunpack.c.l.b16 %v3766
  %v3825 = vunpack.c.h.b16 %v3766
  %v3826 = vunpack.c.l.b16 %v3767
  %v3827 = vunpack.c.l.b16 %v3768
  %v3828 = vunpack.c.h.b16 %v3768
  %v3829 = vunpack.c.l.b16 %v3769
  %v3830 = vunpack.c.l.b16 %v3770
  %v3831 = vunpack.c.h.b16 %v3770
  %v3832 = vunpack.c.l.b16 %v3771
  %v3833 = vunpack.c.l.b16 %v3772
  %v3834 = vunpack.c.h.b16 %v3772
  %v3835 = vunpack.c.l.b16 %v3773
  %v3836 = vunpack.c.l.b16 %v3774
  %v3837 = vunpack.c.h.b16 %v3774
  %v3838 = vunpack.c.l.b16 %v3775
  %v3839 = vunpack.c.l.b16 %v3776
  %v3840 = vunpack.c.h.b16 %v3776
  %v3841 = vunpack.c.l.b16 %v3777
  %v3842 = vpack.c.b16 %v3821, %v3818
  %v3843 = vpack.c.b16 %v3822, %v3819
  %v3844 = vpack.c.b16 %v3823, %v3820
  %v3845 = vpack.c.b16 %v3827, %v3824
  %v3846 = vpack.c.b16 %v3828, %v3825
  %v3847 = vpack.c.b16 %v3829, %v3826
  %v3848 = vpack.c.b16 %v3833, %v3830
  %v3849 = vpack.c.b16 %v3834, %v3831
  %v3850 = vpack.c.b16 %v3835, %v3832
  %v3851 = vpack.c.b16 %v3839, %v3836
  %v3852 = vpack.c.b16 %v3840, %v3837
  %v3853 = vpack.c.b16 %v3841, %v3838
  %v3867 = vsel %vm338, %v3778, 0
  %v3870 = vsel %vm338, %v3779, 0
  %v3873 = vsel %vm338, %v3780, 0
  %v3876 = vsel %vm338, %v3781, 0
  %v3879 = vsel %vm338, %v3782, 0
  %v3882 = vsel %vm338, %v3783, 0
  %v3885 = vsel %vm338, %v3784, 0
  %v3888 = vsel %vm338, %v3785, 0
  %3890 = vmatprep.subr.bf16.mxu0 0
  %3891 = vmatpush1.bf16.msra.mxu0 0
  %3892 = vmatprep.subr.bf16.mxu0 0
  %3893 = vmatpush1.bf16.msra.mxu0 0
  %3894 = vmatprep.subr.bf16.mxu0 0
  %3895 = vmatpush1.bf16.msra.mxu0 0
  %3896 = vmatprep.subr.bf16.mxu0 0
  %3897 = vmatpush1.bf16.msra.mxu0 0
  %3898 = vmatprep.subr.bf16.mxu0 %v3852
  %3899 = vmatpush1.bf16.msra.mxu0 %v3851
  %3900 = vmatprep.subr.bf16.mxu0 %v3849
  %3901 = vmatpush1.bf16.msra.mxu0 %v3848
  %3902 = vmatprep.subr.bf16.mxu0 %v3846
  %3903 = vmatpush1.bf16.msra.mxu0 %v3845
  %3904 = vmatprep.subr.bf16.mxu0 %v3843
  %3905 = vmatpush1.bf16.msra.mxu0 %v3842
  %3906 = vmatprep.subr.bf16.mxu0 0
  %3907 = vmatpush2.bf16.msra.mxu0 0
  %3908 = vmatprep.subr.bf16.mxu0 0
  %3909 = vmatpush2.bf16.msra.mxu0 0
  %3910 = vmatprep.subr.bf16.mxu0 0
  %3911 = vmatpush2.bf16.msra.mxu0 0
  %3912 = vmatprep.subr.bf16.mxu0 0
  %3913 = vmatpush2.bf16.msra.mxu0 0
  %3914 = vmatprep.subr.bf16.mxu0 0
  %3915 = vmatpush2.bf16.msra.mxu0 0
  %3916 = vmatprep.subr.bf16.mxu0 0
  %3917 = vmatpush2.bf16.msra.mxu0 0
  %3918 = vmatprep.subr.bf16.mxu0 0
  %3919 = vmatpush2.bf16.msra.mxu0 0
  %3920 = vmatprep.subr.bf16.mxu0 0
  %3921 = vmatpush2.bf16.msra.mxu0 0
  %3922 = vmatprep.mubr.bf16.mxu0 0
  %3923 = vmatmul.mubr.bf16.gmra.mxu0 %v3867
  %v3924 = vpop.f32.mrf.mxu0
  %v3925 = vadd.f32 %v3790, %v3924
  %v3926 = vpop.f32.mrf.mxu0
  %v3927 = vadd.f32 %v3794, %v3926
  %v3928 = vpop.f32.mrf.mxu0
  %v3929 = vadd.f32 %v3790, %v3928
  %v3930 = vpop.f32.mrf.mxu0
  %v3931 = vadd.f32 %v3794, %v3930
  %3932 = vmatprep.mubr.bf16.mxu0 0
  %3933 = vmatmul.mubr.bf16.gmra.mxu0 %v3870
  %v3934 = vpop.f32.mrf.mxu0
  %v3935 = vadd.f32 %v3790, %v3934
  %v3936 = vpop.f32.mrf.mxu0
  %v3937 = vadd.f32 %v3794, %v3936
  %v3938 = vpop.f32.mrf.mxu0
  %v3939 = vadd.f32 %v3790, %v3938
  %v3940 = vpop.f32.mrf.mxu0
  %v3941 = vadd.f32 %v3794, %v3940
  %3942 = vmatprep.mubr.bf16.mxu0 0
  %3943 = vmatmul.mubr.bf16.gmra.mxu0 %v3873
  %v3944 = vpop.f32.mrf.mxu0
  %v3945 = vadd.f32 %v3790, %v3944
  %v3946 = vpop.f32.mrf.mxu0
  %v3947 = vadd.f32 %v3794, %v3946
  %v3948 = vpop.f32.mrf.mxu0
  %v3949 = vadd.f32 %v3790, %v3948
  %v3950 = vpop.f32.mrf.mxu0
  %v3951 = vadd.f32 %v3794, %v3950
  %3952 = vmatprep.mubr.bf16.mxu0 0
  %3953 = vmatmul.mubr.bf16.gmra.mxu0 %v3876
  %v3954 = vpop.f32.mrf.mxu0
  %v3955 = vadd.f32 %v3790, %v3954
  %v3956 = vpop.f32.mrf.mxu0
  %v3957 = vadd.f32 %v3794, %v3956
  %v3958 = vpop.f32.mrf.mxu0
  %v3959 = vadd.f32 %v3790, %v3958
  %v3960 = vpop.f32.mrf.mxu0
  %v3961 = vadd.f32 %v3794, %v3960
  %3962 = vmatprep.mubr.bf16.mxu0 0
  %3963 = vmatmul.mubr.bf16.gmra.mxu0 %v3879
  %v3964 = vpop.f32.mrf.mxu0
  %v3965 = vadd.f32 %v3790, %v3964
  %v3966 = vpop.f32.mrf.mxu0
  %v3967 = vadd.f32 %v3794, %v3966
  %v3968 = vpop.f32.mrf.mxu0
  %v3969 = vadd.f32 %v3790, %v3968
  %v3970 = vpop.f32.mrf.mxu0
  %v3971 = vadd.f32 %v3794, %v3970
  %3972 = vmatprep.mubr.bf16.mxu0 0
  %3973 = vmatmul.mubr.bf16.gmra.mxu0 %v3882
  %v3974 = vpop.f32.mrf.mxu0
  %v3975 = vadd.f32 %v3790, %v3974
  %v3976 = vpop.f32.mrf.mxu0
  %v3977 = vadd.f32 %v3794, %v3976
  %v3978 = vpop.f32.mrf.mxu0
  %v3979 = vadd.f32 %v3790, %v3978
  %v3980 = vpop.f32.mrf.mxu0
  %v3981 = vadd.f32 %v3794, %v3980
  %3982 = vmatprep.mubr.bf16.mxu0 0
  %3983 = vmatmul.mubr.bf16.gmra.mxu0 %v3885
  %v3984 = vpop.f32.mrf.mxu0
  %v3985 = vadd.f32 %v3790, %v3984
  %v3986 = vpop.f32.mrf.mxu0
  %v3987 = vadd.f32 %v3794, %v3986
  %v3988 = vpop.f32.mrf.mxu0
  %v3989 = vadd.f32 %v3790, %v3988
  %v3990 = vpop.f32.mrf.mxu0
  %v3991 = vadd.f32 %v3794, %v3990
  %3992 = vmatprep.mubr.bf16.mxu0 0
  %3993 = vmatmul.mubr.bf16.gmra.mxu0 %v3888
  %v3994 = vpop.f32.mrf.mxu0
  %v3995 = vadd.f32 %v3790, %v3994
  %v3996 = vpop.f32.mrf.mxu0
  %v3997 = vadd.f32 %v3794, %v3996
  %v3998 = vpop.f32.mrf.mxu0
  %v3999 = vadd.f32 %v3790, %v3998
  %v4000 = vpop.f32.mrf.mxu0
  %v4001 = vadd.f32 %v3794, %v4000
  %4002 = vdwg.mxu0
  %4003 = vmatprep.subr.bf16.mxu0 0
  %4004 = vmatpush1.bf16.msra.mxu0 0
  %4005 = vmatprep.subr.bf16.mxu0 0
  %4006 = vmatpush1.bf16.msra.mxu0 0
  %4007 = vmatprep.subr.bf16.mxu0 0
  %4008 = vmatpush1.bf16.msra.mxu0 0
  %4009 = vmatprep.subr.bf16.mxu0 0
  %4010 = vmatpush1.bf16.msra.mxu0 0
  %4011 = vmatprep.subr.bf16.mxu0 0
  %4012 = vmatpush1.bf16.msra.mxu0 %v3853
  %4013 = vmatprep.subr.bf16.mxu0 0
  %4014 = vmatpush1.bf16.msra.mxu0 %v3850
  %4015 = vmatprep.subr.bf16.mxu0 0
  %4016 = vmatpush1.bf16.msra.mxu0 %v3847
  %4017 = vmatprep.subr.bf16.mxu0 0
  %4018 = vmatpush1.bf16.msra.mxu0 %v3844
  %4019 = vmatprep.subr.bf16.mxu0 0
  %4020 = vmatpush2.bf16.msra.mxu0 0
  %4021 = vmatprep.subr.bf16.mxu0 0
  %4022 = vmatpush2.bf16.msra.mxu0 0
  %4023 = vmatprep.subr.bf16.mxu0 0
  %4024 = vmatpush2.bf16.msra.mxu0 0
  %4025 = vmatprep.subr.bf16.mxu0 0
  %4026 = vmatpush2.bf16.msra.mxu0 0
  %4027 = vmatprep.subr.bf16.mxu0 0
  %4028 = vmatpush2.bf16.msra.mxu0 0
  %4029 = vmatprep.subr.bf16.mxu0 0
  %4030 = vmatpush2.bf16.msra.mxu0 0
  %4031 = vmatprep.subr.bf16.mxu0 0
  %4032 = vmatpush2.bf16.msra.mxu0 0
  %4033 = vmatprep.subr.bf16.mxu0 0
  %4034 = vmatpush2.bf16.msra.mxu0 0
  %4035 = vmatprep.mubr.bf16.mxu0 0
  %4036 = vmatmul.mubr.bf16.gmra.mxu0 %v3867
  %v4037 = vpop.f32.mrf.mxu0
  %v4038 = vadd.f32 %v3798, %v4037
  %v4039 = vpop.f32.mrf.mxu0
  %v4040 = vpop.f32.mrf.mxu0
  %v4041 = vadd.f32 %v3798, %v4040
  %v4042 = vpop.f32.mrf.mxu0
  %4043 = vmatprep.mubr.bf16.mxu0 0
  %4044 = vmatmul.mubr.bf16.gmra.mxu0 %v3870
  %v4045 = vpop.f32.mrf.mxu0
  %v4046 = vadd.f32 %v3798, %v4045
  %v4047 = vpop.f32.mrf.mxu0
  %v4048 = vpop.f32.mrf.mxu0
  %v4049 = vadd.f32 %v3798, %v4048
  %v4050 = vpop.f32.mrf.mxu0
  %4051 = vmatprep.mubr.bf16.mxu0 0
  %4052 = vmatmul.mubr.bf16.gmra.mxu0 %v3873
  %v4053 = vpop.f32.mrf.mxu0
  %v4054 = vadd.f32 %v3798, %v4053
  %v4055 = vpop.f32.mrf.mxu0
  %v4056 = vpop.f32.mrf.mxu0
  %v4057 = vadd.f32 %v3798, %v4056
  %v4058 = vpop.f32.mrf.mxu0
  %4059 = vmatprep.mubr.bf16.mxu0 0
  %4060 = vmatmul.mubr.bf16.gmra.mxu0 %v3876
  %v4061 = vpop.f32.mrf.mxu0
  %v4062 = vadd.f32 %v3798, %v4061
  %v4063 = vpop.f32.mrf.mxu0
  %v4064 = vpop.f32.mrf.mxu0
  %v4065 = vadd.f32 %v3798, %v4064
  %v4066 = vpop.f32.mrf.mxu0
  %4067 = vmatprep.mubr.bf16.mxu0 0
  %4068 = vmatmul.mubr.bf16.gmra.mxu0 %v3879
  %v4069 = vpop.f32.mrf.mxu0
  %v4070 = vadd.f32 %v3798, %v4069
  %v4071 = vpop.f32.mrf.mxu0
  %v4072 = vpop.f32.mrf.mxu0
  %v4073 = vadd.f32 %v3798, %v4072
  %v4074 = vpop.f32.mrf.mxu0
  %4075 = vmatprep.mubr.bf16.mxu0 0
  %4076 = vmatmul.mubr.bf16.gmra.mxu0 %v3882
  %v4077 = vpop.f32.mrf.mxu0
  %v4078 = vadd.f32 %v3798, %v4077
  %v4079 = vpop.f32.mrf.mxu0
  %v4080 = vpop.f32.mrf.mxu0
  %v4081 = vadd.f32 %v3798, %v4080
  %v4082 = vpop.f32.mrf.mxu0
  %4083 = vmatprep.mubr.bf16.mxu0 0
  %4084 = vmatmul.mubr.bf16.gmra.mxu0 %v3885
  %v4085 = vpop.f32.mrf.mxu0
  %v4086 = vadd.f32 %v3798, %v4085
  %v4087 = vpop.f32.mrf.mxu0
  %v4088 = vpop.f32.mrf.mxu0
  %v4089 = vadd.f32 %v3798, %v4088
  %v4090 = vpop.f32.mrf.mxu0
  %4091 = vmatprep.mubr.bf16.mxu0 0
  %4092 = vmatmul.mubr.bf16.gmra.mxu0 %v3888
  %v4093 = vpop.f32.mrf.mxu0
  %v4094 = vadd.f32 %v3798, %v4093
  %v4095 = vpop.f32.mrf.mxu0
  %v4096 = vpop.f32.mrf.mxu0
  %v4097 = vadd.f32 %v3798, %v4096
  %v4098 = vpop.f32.mrf.mxu0
  %4099 = vdwg.mxu0
  %v4100 = vpack.c.bf16 %v3929, %v3925
  %v4101 = vpack.c.bf16 %v3931, %v3927
  %v4102 = vpack.c.bf16 %v4041, %v4038
  %v4103 = vpack.c.bf16 %v3939, %v3935
  %v4104 = vpack.c.bf16 %v3941, %v3937
  %v4105 = vpack.c.bf16 %v4049, %v4046
  %v4106 = vpack.c.bf16 %v3949, %v3945
  %v4107 = vpack.c.bf16 %v3951, %v3947
  %v4108 = vpack.c.bf16 %v4057, %v4054
  %v4109 = vpack.c.bf16 %v3959, %v3955
  %v4110 = vpack.c.bf16 %v3961, %v3957
  %v4111 = vpack.c.bf16 %v4065, %v4062
  %v4112 = vpack.c.bf16 %v3969, %v3965
  %v4113 = vpack.c.bf16 %v3971, %v3967
  %v4114 = vpack.c.bf16 %v4073, %v4070
  %v4115 = vpack.c.bf16 %v3979, %v3975
  %v4116 = vpack.c.bf16 %v3981, %v3977
  %v4117 = vpack.c.bf16 %v4081, %v4078
  %v4118 = vpack.c.bf16 %v3989, %v3985
  %v4119 = vpack.c.bf16 %v3991, %v3987
  %v4120 = vpack.c.bf16 %v4089, %v4086
  %v4121 = vpack.c.bf16 %v3999, %v3995
  %v4122 = vpack.c.bf16 %v4001, %v3997
  %v4123 = vpack.c.bf16 %v4097, %v4094
  %4128 = vrot.lane.b32.xlu0 %v4100, 64
  %v4129 = vpop.permute.xlu0 %4128
  %4130 = vrot.lane.b32.xlu0 %v4103, 64
  %v4131 = vpop.permute.xlu0 %4130
  %4132 = vrot.lane.b32.xlu0 %v4106, 64
  %v4133 = vpop.permute.xlu0 %4132
  %4134 = vrot.lane.b32.xlu0 %v4109, 64
  %v4135 = vpop.permute.xlu0 %4134
  %v4137 = vsel %vm104, %v4100, 0
  %v4140 = vsel %vm104, %v4103, 0
  %v4143 = vsel %vm104, %v4106, 0
  %v4146 = vsel %vm104, %v4109, 0
  %v4149 = vsel %vm104, %v4129, 0
  %v4152 = vsel %vm104, %v4131, 0
  %v4155 = vsel %vm104, %v4133, 0
  %v4158 = vsel %vm104, %v4135, 0
  %4160 = vmatprep.subr.bf16.mxu0 0
  %4161 = vmatpush1.bf16.xpose.msra.mxu0 0
  %4162 = vmatprep.subr.bf16.mxu0 0
  %4163 = vmatpush1.bf16.xpose.msra.mxu0 0
  %4164 = vmatprep.subr.bf16.mxu0 0
  %4165 = vmatpush1.bf16.xpose.msra.mxu0 0
  %4166 = vmatprep.subr.bf16.mxu0 0
  %4167 = vmatpush1.bf16.xpose.msra.mxu0 0
  %4168 = vmatprep.subr.bf16.mxu0 0
  %4169 = vmatpush1.bf16.xpose.msra.mxu0 %v4158
  %4170 = vmatprep.subr.bf16.mxu0 0
  %4171 = vmatpush1.bf16.xpose.msra.mxu0 %v4155
  %4172 = vmatprep.subr.bf16.mxu0 0
  %4173 = vmatpush1.bf16.xpose.msra.mxu0 %v4152
  %4174 = vmatprep.subr.bf16.mxu0 0
  %4175 = vmatpush1.bf16.xpose.msra.mxu0 %v4149
  %4176 = vmatprep.subr.bf16.mxu0 0
  %4177 = vmatpush2.bf16.xpose.msra.mxu0 0
  %4178 = vmatprep.subr.bf16.mxu0 0
  %4179 = vmatpush2.bf16.xpose.msra.mxu0 0
  %4180 = vmatprep.subr.bf16.mxu0 0
  %4181 = vmatpush2.bf16.xpose.msra.mxu0 0
  %4182 = vmatprep.subr.bf16.mxu0 0
  %4183 = vmatpush2.bf16.xpose.msra.mxu0 0
  %4184 = vmatprep.subr.bf16.mxu0 0
  %4185 = vmatpush2.bf16.xpose.msra.mxu0 0
  %4186 = vmatprep.subr.bf16.mxu0 0
  %4187 = vmatpush2.bf16.xpose.msra.mxu0 0
  %4188 = vmatprep.subr.bf16.mxu0 0
  %4189 = vmatpush2.bf16.xpose.msra.mxu0 0
  %4190 = vmatprep.subr.bf16.mxu0 0
  %4191 = vmatpush2.bf16.xpose.msra.mxu0 0
  %4192 = vmatprep.mubr.bf16.mxu0 0
  %4193 = vmatmul.mubr.bf16.gmra.mxu0 %v4137
  %v4194 = vpop.f32.mrf.mxu0
  %v4195 = vadd.f32 %v31, %v4194
  %v4196 = vpop.f32.mrf.mxu0
  %v4197 = vpop.f32.mrf.mxu0
  %v4198 = vadd.f32 %v31, %v4197
  %v4199 = vpop.f32.mrf.mxu0
  %4200 = vmatprep.mubr.bf16.mxu0 0
  %4201 = vmatmul.mubr.bf16.gmra.mxu0 %v4140
  %v4202 = vpop.f32.mrf.mxu0
  %v4203 = vadd.f32 %v31, %v4202
  %v4204 = vpop.f32.mrf.mxu0
  %v4205 = vpop.f32.mrf.mxu0
  %v4206 = vadd.f32 %v31, %v4205
  %v4207 = vpop.f32.mrf.mxu0
  %4208 = vmatprep.mubr.bf16.mxu0 0
  %4209 = vmatmul.mubr.bf16.gmra.mxu0 %v4143
  %v4210 = vpop.f32.mrf.mxu0
  %v4211 = vadd.f32 %v31, %v4210
  %v4212 = vpop.f32.mrf.mxu0
  %v4213 = vpop.f32.mrf.mxu0
  %v4214 = vadd.f32 %v31, %v4213
  %v4215 = vpop.f32.mrf.mxu0
  %4216 = vmatprep.mubr.bf16.mxu0 0
  %4217 = vmatmul.mubr.bf16.gmra.mxu0 %v4146
  %v4218 = vpop.f32.mrf.mxu0
  %v4219 = vadd.f32 %v31, %v4218
  %v4220 = vpop.f32.mrf.mxu0
  %v4221 = vpop.f32.mrf.mxu0
  %v4222 = vadd.f32 %v31, %v4221
  %v4223 = vpop.f32.mrf.mxu0
  %4224 = vdwg.mxu0
  %v4225 = vsel %vm338, %v4195, -inf
  %4226 = vmax.xlane.f32.xlu0 %v4225
  %v4227 = vpop.xlane.xlu0 %4226
  %v4228 = vsel %vm338, %v4198, -inf
  %4229 = vmax.xlane.f32.xlu0 %v4228
  %v4230 = vpop.xlane.xlu0 %4229
  %v4231 = vsel %vm338, %v4203, -inf
  %4232 = vmax.xlane.f32.xlu0 %v4231
  %v4233 = vpop.xlane.xlu0 %4232
  %v4234 = vsel %vm338, %v4206, -inf
  %4235 = vmax.xlane.f32.xlu0 %v4234
  %v4236 = vpop.xlane.xlu0 %4235
  %v4237 = vsel %vm338, %v4211, -inf
  %4238 = vmax.xlane.f32.xlu0 %v4237
  %v4239 = vpop.xlane.xlu0 %4238
  %v4240 = vsel %vm338, %v4214, -inf
  %4241 = vmax.xlane.f32.xlu0 %v4240
  %v4242 = vpop.xlane.xlu0 %4241
  %v4243 = vsel %vm338, %v4219, -inf
  %4244 = vmax.xlane.f32.xlu0 %v4243
  %v4245 = vpop.xlane.xlu0 %4244
  %v4246 = vsel %vm338, %v4222, -inf
  %4247 = vmax.xlane.f32.xlu0 %v4246
  %v4248 = vpop.xlane.xlu0 %4247
  %v4249 = vsub.f32 %v4195, %v4227
  %v4250 = vsub.f32 %v4198, %v4230
  %v4251 = vsub.f32 %v4203, %v4233
  %v4252 = vsub.f32 %v4206, %v4236
  %v4253 = vsub.f32 %v4211, %v4239
  %v4254 = vsub.f32 %v4214, %v4242
  %v4255 = vsub.f32 %v4219, %v4245
  %v4256 = vsub.f32 %v4222, %v4248
  %v4257 = vmul.f32 %v4249, 1.442695
  %v4258 = vpow.pop %v4257
  %v4259 = vmul.f32 %v4250, 1.442695
  %v4260 = vpow.pop %v4259
  %v4261 = vmul.f32 %v4251, 1.442695
  %v4262 = vpow.pop %v4261
  %v4263 = vmul.f32 %v4252, 1.442695
  %v4264 = vpow.pop %v4263
  %v4265 = vmul.f32 %v4253, 1.442695
  %v4266 = vpow.pop %v4265
  %v4267 = vmul.f32 %v4254, 1.442695
  %v4268 = vpow.pop %v4267
  %v4269 = vmul.f32 %v4255, 1.442695
  %v4270 = vpow.pop %v4269
  %v4271 = vmul.f32 %v4256, 1.442695
  %v4272 = vpow.pop %v4271
  %v4273 = vsel %vm338, %v4258, 0.0
  %4274 = vadd.xlane.f32.xlu0 %v4273
  %v4275 = vpop.xlane.xlu0 %4274
  %v4276 = vsel %vm338, %v4260, 0.0
  %4277 = vadd.xlane.f32.xlu0 %v4276
  %v4278 = vpop.xlane.xlu0 %4277
  %v4279 = vsel %vm338, %v4262, 0.0
  %4280 = vadd.xlane.f32.xlu0 %v4279
  %v4281 = vpop.xlane.xlu0 %4280
  %v4282 = vsel %vm338, %v4264, 0.0
  %4283 = vadd.xlane.f32.xlu0 %v4282
  %v4284 = vpop.xlane.xlu0 %4283
  %v4285 = vsel %vm338, %v4266, 0.0
  %4286 = vadd.xlane.f32.xlu0 %v4285
  %v4287 = vpop.xlane.xlu0 %4286
  %v4288 = vsel %vm338, %v4268, 0.0
  %4289 = vadd.xlane.f32.xlu0 %v4288
  %v4290 = vpop.xlane.xlu0 %4289
  %v4291 = vsel %vm338, %v4270, 0.0
  %4292 = vadd.xlane.f32.xlu0 %v4291
  %v4293 = vpop.xlane.xlu0 %4292
  %v4294 = vsel %vm338, %v4272, 0.0
  %4295 = vadd.xlane.f32.xlu0 %v4294
  %v4296 = vpop.xlane.xlu0 %4295
  %v4297 = vrcp.pop %v4275
  %v4298 = vrcp.pop %v4278
  %v4299 = vrcp.pop %v4281
  %v4300 = vrcp.pop %v4284
  %v4301 = vrcp.pop %v4287
  %v4302 = vrcp.pop %v4290
  %v4303 = vrcp.pop %v4293
  %v4304 = vrcp.pop %v4296
  %v4305 = vmul.f32 %v4258, %v4297
  %v4306 = vmul.f32 %v4260, %v4298
  %v4307 = vmul.f32 %v4262, %v4299
  %v4308 = vmul.f32 %v4264, %v4300
  %v4309 = vmul.f32 %v4266, %v4301
  %v4310 = vmul.f32 %v4268, %v4302
  %v4311 = vmul.f32 %v4270, %v4303
  %v4312 = vmul.f32 %v4272, %v4304
  %v4313 = vpack.c.bf16 %v4306, %v4305
  %v4314 = vpack.c.bf16 %v4308, %v4307
  %v4315 = vpack.c.bf16 %v4310, %v4309
  %v4316 = vpack.c.bf16 %v4312, %v4311
  %4317 = vrot.lane.b32.xlu0 %v4100, 112
  %v4318 = vpop.permute.xlu0 %4317
  %4319 = vrot.lane.b32.xlu0 %v4103, 112
  %v4320 = vpop.permute.xlu0 %4319
  %4321 = vrot.lane.b32.xlu0 %v4106, 112
  %v4322 = vpop.permute.xlu0 %4321
  %4323 = vrot.lane.b32.xlu0 %v4109, 112
  %v4324 = vpop.permute.xlu0 %4323
  %4325 = vrot.lane.b32.xlu0 %v4100, 48
  %v4326 = vpop.permute.xlu0 %4325
  %4327 = vrot.lane.b32.xlu0 %v4103, 48
  %v4328 = vpop.permute.xlu0 %4327
  %4329 = vrot.lane.b32.xlu0 %v4106, 48
  %v4330 = vpop.permute.xlu0 %4329
  %4331 = vrot.lane.b32.xlu0 %v4109, 48
  %v4332 = vpop.permute.xlu0 %4331
  %v4334 = vsel %vm104, %v4318, 0
  %v4337 = vsel %vm104, %v4320, 0
  %v4340 = vsel %vm104, %v4322, 0
  %v4343 = vsel %vm104, %v4324, 0
  %v4346 = vsel %vm104, %v4326, 0
  %v4349 = vsel %vm104, %v4328, 0
  %v4352 = vsel %vm104, %v4330, 0
  %v4355 = vsel %vm104, %v4332, 0
  %4357 = vmatprep.subr.bf16.mxu0 0
  %4358 = vmatpush1.bf16.xpose.msra.mxu0 0
  %4359 = vmatprep.subr.bf16.mxu0 0
  %4360 = vmatpush1.bf16.xpose.msra.mxu0 0
  %4361 = vmatprep.subr.bf16.mxu0 0
  %4362 = vmatpush1.bf16.xpose.msra.mxu0 0
  %4363 = vmatprep.subr.bf16.mxu0 0
  %4364 = vmatpush1.bf16.xpose.msra.mxu0 0
  %4365 = vmatprep.subr.bf16.mxu0 0
  %4366 = vmatpush1.bf16.xpose.msra.mxu0 %v4355
  %4367 = vmatprep.subr.bf16.mxu0 0
  %4368 = vmatpush1.bf16.xpose.msra.mxu0 %v4352
  %4369 = vmatprep.subr.bf16.mxu0 0
  %4370 = vmatpush1.bf16.xpose.msra.mxu0 %v4349
  %4371 = vmatprep.subr.bf16.mxu0 0
  %4372 = vmatpush1.bf16.xpose.msra.mxu0 %v4346
  %4373 = vmatprep.subr.bf16.mxu0 0
  %4374 = vmatpush2.bf16.xpose.msra.mxu0 0
  %4375 = vmatprep.subr.bf16.mxu0 0
  %4376 = vmatpush2.bf16.xpose.msra.mxu0 0
  %4377 = vmatprep.subr.bf16.mxu0 0
  %4378 = vmatpush2.bf16.xpose.msra.mxu0 0
  %4379 = vmatprep.subr.bf16.mxu0 0
  %4380 = vmatpush2.bf16.xpose.msra.mxu0 0
  %4381 = vmatprep.subr.bf16.mxu0 0
  %4382 = vmatpush2.bf16.xpose.msra.mxu0 0
  %4383 = vmatprep.subr.bf16.mxu0 0
  %4384 = vmatpush2.bf16.xpose.msra.mxu0 0
  %4385 = vmatprep.subr.bf16.mxu0 0
  %4386 = vmatpush2.bf16.xpose.msra.mxu0 0
  %4387 = vmatprep.subr.bf16.mxu0 0
  %4388 = vmatpush2.bf16.xpose.msra.mxu0 0
  %4389 = vmatprep.mubr.bf16.mxu0 0
  %4390 = vmatmul.mubr.bf16.gmra.mxu0 %v4334
  %v4391 = vpop.f32.mrf.mxu0
  %v4392 = vadd.f32 %v31, %v4391
  %v4393 = vpop.f32.mrf.mxu0
  %v4394 = vpop.f32.mrf.mxu0
  %v4395 = vadd.f32 %v31, %v4394
  %v4396 = vpop.f32.mrf.mxu0
  %4397 = vmatprep.mubr.bf16.mxu0 0
  %4398 = vmatmul.mubr.bf16.gmra.mxu0 %v4337
  %v4399 = vpop.f32.mrf.mxu0
  %v4400 = vadd.f32 %v31, %v4399
  %v4401 = vpop.f32.mrf.mxu0
  %v4402 = vpop.f32.mrf.mxu0
  %v4403 = vadd.f32 %v31, %v4402
  %v4404 = vpop.f32.mrf.mxu0
  %4405 = vmatprep.mubr.bf16.mxu0 0
  %4406 = vmatmul.mubr.bf16.gmra.mxu0 %v4340
  %v4407 = vpop.f32.mrf.mxu0
  %v4408 = vadd.f32 %v31, %v4407
  %v4409 = vpop.f32.mrf.mxu0
  %v4410 = vpop.f32.mrf.mxu0
  %v4411 = vadd.f32 %v31, %v4410
  %v4412 = vpop.f32.mrf.mxu0
  %4413 = vmatprep.mubr.bf16.mxu0 0
  %4414 = vmatmul.mubr.bf16.gmra.mxu0 %v4343
  %v4415 = vpop.f32.mrf.mxu0
  %v4416 = vadd.f32 %v31, %v4415
  %v4417 = vpop.f32.mrf.mxu0
  %v4418 = vpop.f32.mrf.mxu0
  %v4419 = vadd.f32 %v31, %v4418
  %v4420 = vpop.f32.mrf.mxu0
  %4421 = vdwg.mxu0
  %v4422 = vsel %vm338, %v4392, -inf
  %4423 = vmax.xlane.f32.xlu0 %v4422
  %v4424 = vpop.xlane.xlu0 %4423
  %v4425 = vsel %vm338, %v4395, -inf
  %4426 = vmax.xlane.f32.xlu0 %v4425
  %v4427 = vpop.xlane.xlu0 %4426
  %v4428 = vsel %vm338, %v4400, -inf
  %4429 = vmax.xlane.f32.xlu0 %v4428
  %v4430 = vpop.xlane.xlu0 %4429
  %v4431 = vsel %vm338, %v4403, -inf
  %4432 = vmax.xlane.f32.xlu0 %v4431
  %v4433 = vpop.xlane.xlu0 %4432
  %v4434 = vsel %vm338, %v4408, -inf
  %4435 = vmax.xlane.f32.xlu0 %v4434
  %v4436 = vpop.xlane.xlu0 %4435
  %v4437 = vsel %vm338, %v4411, -inf
  %4438 = vmax.xlane.f32.xlu0 %v4437
  %v4439 = vpop.xlane.xlu0 %4438
  %v4440 = vsel %vm338, %v4416, -inf
  %4441 = vmax.xlane.f32.xlu0 %v4440
  %v4442 = vpop.xlane.xlu0 %4441
  %v4443 = vsel %vm338, %v4419, -inf
  %4444 = vmax.xlane.f32.xlu0 %v4443
  %v4445 = vpop.xlane.xlu0 %4444
  %v4446 = vsub.f32 %v4392, %v4424
  %v4447 = vsub.f32 %v4395, %v4427
  %v4448 = vsub.f32 %v4400, %v4430
  %v4449 = vsub.f32 %v4403, %v4433
  %v4450 = vsub.f32 %v4408, %v4436
  %v4451 = vsub.f32 %v4411, %v4439
  %v4452 = vsub.f32 %v4416, %v4442
  %v4453 = vsub.f32 %v4419, %v4445
  %v4454 = vmul.f32 %v4446, 1.442695
  %v4455 = vpow.pop %v4454
  %v4456 = vmul.f32 %v4447, 1.442695
  %v4457 = vpow.pop %v4456
  %v4458 = vmul.f32 %v4448, 1.442695
  %v4459 = vpow.pop %v4458
  %v4460 = vmul.f32 %v4449, 1.442695
  %v4461 = vpow.pop %v4460
  %v4462 = vmul.f32 %v4450, 1.442695
  %v4463 = vpow.pop %v4462
  %v4464 = vmul.f32 %v4451, 1.442695
  %v4465 = vpow.pop %v4464
  %v4466 = vmul.f32 %v4452, 1.442695
  %v4467 = vpow.pop %v4466
  %v4468 = vmul.f32 %v4453, 1.442695
  %v4469 = vpow.pop %v4468
  %v4470 = vsel %vm338, %v4455, 0.0
  %4471 = vadd.xlane.f32.xlu0 %v4470
  %v4472 = vpop.xlane.xlu0 %4471
  %v4473 = vsel %vm338, %v4457, 0.0
  %4474 = vadd.xlane.f32.xlu0 %v4473
  %v4475 = vpop.xlane.xlu0 %4474
  %v4476 = vsel %vm338, %v4459, 0.0
  %4477 = vadd.xlane.f32.xlu0 %v4476
  %v4478 = vpop.xlane.xlu0 %4477
  %v4479 = vsel %vm338, %v4461, 0.0
  %4480 = vadd.xlane.f32.xlu0 %v4479
  %v4481 = vpop.xlane.xlu0 %4480
  %v4482 = vsel %vm338, %v4463, 0.0
  %4483 = vadd.xlane.f32.xlu0 %v4482
  %v4484 = vpop.xlane.xlu0 %4483
  %v4485 = vsel %vm338, %v4465, 0.0
  %4486 = vadd.xlane.f32.xlu0 %v4485
  %v4487 = vpop.xlane.xlu0 %4486
  %v4488 = vsel %vm338, %v4467, 0.0
  %4489 = vadd.xlane.f32.xlu0 %v4488
  %v4490 = vpop.xlane.xlu0 %4489
  %v4491 = vsel %vm338, %v4469, 0.0
  %4492 = vadd.xlane.f32.xlu0 %v4491
  %v4493 = vpop.xlane.xlu0 %4492
  %v4494 = vrcp.pop %v4472
  %v4495 = vrcp.pop %v4475
  %v4496 = vrcp.pop %v4478
  %v4497 = vrcp.pop %v4481
  %v4498 = vrcp.pop %v4484
  %v4499 = vrcp.pop %v4487
  %v4500 = vrcp.pop %v4490
  %v4501 = vrcp.pop %v4493
  %v4502 = vmul.f32 %v4455, %v4494
  %v4503 = vmul.f32 %v4457, %v4495
  %v4504 = vmul.f32 %v4459, %v4496
  %v4505 = vmul.f32 %v4461, %v4497
  %v4506 = vmul.f32 %v4463, %v4498
  %v4507 = vmul.f32 %v4465, %v4499
  %v4508 = vmul.f32 %v4467, %v4500
  %v4509 = vmul.f32 %v4469, %v4501
  %v4510 = vpack.c.bf16 %v4503, %v4502
  %v4511 = vpack.c.bf16 %v4505, %v4504
  %v4512 = vpack.c.bf16 %v4507, %v4506
  %v4513 = vpack.c.bf16 %v4509, %v4508
  %4518 = vrot.lane.b32.xlu0 %v4101, 64
  %v4519 = vpop.permute.xlu0 %4518
  %4520 = vrot.lane.b32.xlu0 %v4104, 64
  %v4521 = vpop.permute.xlu0 %4520
  %4522 = vrot.lane.b32.xlu0 %v4107, 64
  %v4523 = vpop.permute.xlu0 %4522
  %4524 = vrot.lane.b32.xlu0 %v4110, 64
  %v4525 = vpop.permute.xlu0 %4524
  %v4531 = vsel %vm338, %v4510, 0
  %v4534 = vsel %vm338, %v4511, 0
  %v4537 = vsel %vm338, %v4512, 0
  %v4540 = vsel %vm338, %v4513, 0
  %4542 = vmatprep.subr.bf16.mxu0 0
  %4543 = vmatpush1.bf16.msra.mxu0 0
  %4544 = vmatprep.subr.bf16.mxu0 0
  %4545 = vmatpush1.bf16.msra.mxu0 0
  %4546 = vmatprep.subr.bf16.mxu0 0
  %4547 = vmatpush1.bf16.msra.mxu0 0
  %4548 = vmatprep.subr.bf16.mxu0 0
  %4549 = vmatpush1.bf16.msra.mxu0 0
  %4550 = vmatprep.subr.bf16.mxu0 0
  %4551 = vmatpush1.bf16.msra.mxu0 %v4525
  %4552 = vmatprep.subr.bf16.mxu0 0
  %4553 = vmatpush1.bf16.msra.mxu0 %v4523
  %4554 = vmatprep.subr.bf16.mxu0 0
  %4555 = vmatpush1.bf16.msra.mxu0 %v4521
  %4556 = vmatprep.subr.bf16.mxu0 0
  %4557 = vmatpush1.bf16.msra.mxu0 %v4519
  %4558 = vmatprep.subr.bf16.mxu0 0
  %4559 = vmatpush2.bf16.msra.mxu0 0
  %4560 = vmatprep.subr.bf16.mxu0 0
  %4561 = vmatpush2.bf16.msra.mxu0 0
  %4562 = vmatprep.subr.bf16.mxu0 0
  %4563 = vmatpush2.bf16.msra.mxu0 0
  %4564 = vmatprep.subr.bf16.mxu0 0
  %4565 = vmatpush2.bf16.msra.mxu0 0
  %4566 = vmatprep.subr.bf16.mxu0 0
  %4567 = vmatpush2.bf16.msra.mxu0 0
  %4568 = vmatprep.subr.bf16.mxu0 0
  %4569 = vmatpush2.bf16.msra.mxu0 0
  %4570 = vmatprep.subr.bf16.mxu0 0
  %4571 = vmatpush2.bf16.msra.mxu0 0
  %4572 = vmatprep.subr.bf16.mxu0 0
  %4573 = vmatpush2.bf16.msra.mxu0 0
  %4574 = vmatprep.mubr.bf16.mxu0 0
  %4575 = vmatmul.mubr.bf16.gmra.mxu0 %v4531
  %v4576 = vpop.f32.mrf.mxu0
  %v4577 = vadd.f32 0.0, %v4576
  %v4578 = vpop.f32.mrf.mxu0
  %v4579 = vpop.f32.mrf.mxu0
  %v4580 = vadd.f32 0.0, %v4579
  %v4581 = vpop.f32.mrf.mxu0
  %4582 = vmatprep.mubr.bf16.mxu0 0
  %4583 = vmatmul.mubr.bf16.gmra.mxu0 %v4534
  %v4584 = vpop.f32.mrf.mxu0
  %v4585 = vadd.f32 0.0, %v4584
  %v4586 = vpop.f32.mrf.mxu0
  %v4587 = vpop.f32.mrf.mxu0
  %v4588 = vadd.f32 0.0, %v4587
  %v4589 = vpop.f32.mrf.mxu0
  %4590 = vmatprep.mubr.bf16.mxu0 0
  %4591 = vmatmul.mubr.bf16.gmra.mxu0 %v4537
  %v4592 = vpop.f32.mrf.mxu0
  %v4593 = vadd.f32 0.0, %v4592
  %v4594 = vpop.f32.mrf.mxu0
  %v4595 = vpop.f32.mrf.mxu0
  %v4596 = vadd.f32 0.0, %v4595
  %v4597 = vpop.f32.mrf.mxu0
  %4598 = vmatprep.mubr.bf16.mxu0 0
  %4599 = vmatmul.mubr.bf16.gmra.mxu0 %v4540
  %v4600 = vpop.f32.mrf.mxu0
  %v4601 = vadd.f32 0.0, %v4600
  %v4602 = vpop.f32.mrf.mxu0
  %v4603 = vpop.f32.mrf.mxu0
  %v4604 = vadd.f32 0.0, %v4603
  %v4605 = vpop.f32.mrf.mxu0
  %4606 = vdwg.mxu0
  %v4608 = vsel %vm338, %v4313, 0
  %v4611 = vsel %vm338, %v4314, 0
  %v4614 = vsel %vm338, %v4315, 0
  %v4617 = vsel %vm338, %v4316, 0
  %4619 = vmatprep.subr.bf16.mxu0 0
  %4620 = vmatpush1.bf16.msra.mxu0 0
  %4621 = vmatprep.subr.bf16.mxu0 0
  %4622 = vmatpush1.bf16.msra.mxu0 0
  %4623 = vmatprep.subr.bf16.mxu0 0
  %4624 = vmatpush1.bf16.msra.mxu0 0
  %4625 = vmatprep.subr.bf16.mxu0 0
  %4626 = vmatpush1.bf16.msra.mxu0 0
  %4627 = vmatprep.subr.bf16.mxu0 0
  %4628 = vmatpush1.bf16.msra.mxu0 %v4110
  %4629 = vmatprep.subr.bf16.mxu0 0
  %4630 = vmatpush1.bf16.msra.mxu0 %v4107
  %4631 = vmatprep.subr.bf16.mxu0 0
  %4632 = vmatpush1.bf16.msra.mxu0 %v4104
  %4633 = vmatprep.subr.bf16.mxu0 0
  %4634 = vmatpush1.bf16.msra.mxu0 %v4101
  %4635 = vmatprep.subr.bf16.mxu0 0
  %4636 = vmatpush2.bf16.msra.mxu0 0
  %4637 = vmatprep.subr.bf16.mxu0 0
  %4638 = vmatpush2.bf16.msra.mxu0 0
  %4639 = vmatprep.subr.bf16.mxu0 0
  %4640 = vmatpush2.bf16.msra.mxu0 0
  %4641 = vmatprep.subr.bf16.mxu0 0
  %4642 = vmatpush2.bf16.msra.mxu0 0
  %4643 = vmatprep.subr.bf16.mxu0 0
  %4644 = vmatpush2.bf16.msra.mxu0 0
  %4645 = vmatprep.subr.bf16.mxu0 0
  %4646 = vmatpush2.bf16.msra.mxu0 0
  %4647 = vmatprep.subr.bf16.mxu0 0
  %4648 = vmatpush2.bf16.msra.mxu0 0
  %4649 = vmatprep.subr.bf16.mxu0 0
  %4650 = vmatpush2.bf16.msra.mxu0 0
  %4651 = vmatprep.mubr.bf16.mxu0 0
  %4652 = vmatmul.mubr.bf16.gmra.mxu0 %v4608
  %v4653 = vpop.f32.mrf.mxu0
  %v4654 = vadd.f32 %v4577, %v4653
  %v4655 = vpop.f32.mrf.mxu0
  %v4656 = vpop.f32.mrf.mxu0
  %v4657 = vadd.f32 %v4580, %v4656
  %v4658 = vpop.f32.mrf.mxu0
  %4659 = vmatprep.mubr.bf16.mxu0 0
  %4660 = vmatmul.mubr.bf16.gmra.mxu0 %v4611
  %v4661 = vpop.f32.mrf.mxu0
  %v4662 = vadd.f32 %v4585, %v4661
  %v4663 = vpop.f32.mrf.mxu0
  %v4664 = vpop.f32.mrf.mxu0
  %v4665 = vadd.f32 %v4588, %v4664
  %v4666 = vpop.f32.mrf.mxu0
  %4667 = vmatprep.mubr.bf16.mxu0 0
  %4668 = vmatmul.mubr.bf16.gmra.mxu0 %v4614
  %v4669 = vpop.f32.mrf.mxu0
  %v4670 = vadd.f32 %v4593, %v4669
  %v4671 = vpop.f32.mrf.mxu0
  %v4672 = vpop.f32.mrf.mxu0
  %v4673 = vadd.f32 %v4596, %v4672
  %v4674 = vpop.f32.mrf.mxu0
  %4675 = vmatprep.mubr.bf16.mxu0 0
  %4676 = vmatmul.mubr.bf16.gmra.mxu0 %v4617
  %v4677 = vpop.f32.mrf.mxu0
  %v4678 = vadd.f32 %v4601, %v4677
  %v4679 = vpop.f32.mrf.mxu0
  %v4680 = vpop.f32.mrf.mxu0
  %v4681 = vadd.f32 %v4604, %v4680
  %v4682 = vpop.f32.mrf.mxu0
  %4683 = vdwg.mxu0
  %4684 = vrot.lane.b32.xlu0 %v4100, 96
  %v4685 = vpop.permute.xlu0 %4684
  %4686 = vrot.lane.b32.xlu0 %v4103, 96
  %v4687 = vpop.permute.xlu0 %4686
  %4688 = vrot.lane.b32.xlu0 %v4106, 96
  %v4689 = vpop.permute.xlu0 %4688
  %4690 = vrot.lane.b32.xlu0 %v4109, 96
  %v4691 = vpop.permute.xlu0 %4690
  %4692 = vrot.lane.b32.xlu0 %v4100, 32
  %v4693 = vpop.permute.xlu0 %4692
  %4694 = vrot.lane.b32.xlu0 %v4103, 32
  %v4695 = vpop.permute.xlu0 %4694
  %4696 = vrot.lane.b32.xlu0 %v4106, 32
  %v4697 = vpop.permute.xlu0 %4696
  %4698 = vrot.lane.b32.xlu0 %v4109, 32
  %v4699 = vpop.permute.xlu0 %4698
  %v4701 = vsel %vm104, %v4685, 0
  %v4704 = vsel %vm104, %v4687, 0
  %v4707 = vsel %vm104, %v4689, 0
  %v4710 = vsel %vm104, %v4691, 0
  %v4713 = vsel %vm104, %v4693, 0
  %v4716 = vsel %vm104, %v4695, 0
  %v4719 = vsel %vm104, %v4697, 0
  %v4722 = vsel %vm104, %v4699, 0
  %4724 = vmatprep.subr.bf16.mxu0 0
  %4725 = vmatpush1.bf16.xpose.msra.mxu0 0
  %4726 = vmatprep.subr.bf16.mxu0 0
  %4727 = vmatpush1.bf16.xpose.msra.mxu0 0
  %4728 = vmatprep.subr.bf16.mxu0 0
  %4729 = vmatpush1.bf16.xpose.msra.mxu0 0
  %4730 = vmatprep.subr.bf16.mxu0 0
  %4731 = vmatpush1.bf16.xpose.msra.mxu0 0
  %4732 = vmatprep.subr.bf16.mxu0 0
  %4733 = vmatpush1.bf16.xpose.msra.mxu0 %v4722
  %4734 = vmatprep.subr.bf16.mxu0 0
  %4735 = vmatpush1.bf16.xpose.msra.mxu0 %v4719
  %4736 = vmatprep.subr.bf16.mxu0 0
  %4737 = vmatpush1.bf16.xpose.msra.mxu0 %v4716
  %4738 = vmatprep.subr.bf16.mxu0 0
  %4739 = vmatpush1.bf16.xpose.msra.mxu0 %v4713
  %4740 = vmatprep.subr.bf16.mxu0 0
  %4741 = vmatpush2.bf16.xpose.msra.mxu0 0
  %4742 = vmatprep.subr.bf16.mxu0 0
  %4743 = vmatpush2.bf16.xpose.msra.mxu0 0
  %4744 = vmatprep.subr.bf16.mxu0 0
  %4745 = vmatpush2.bf16.xpose.msra.mxu0 0
  %4746 = vmatprep.subr.bf16.mxu0 0
  %4747 = vmatpush2.bf16.xpose.msra.mxu0 0
  %4748 = vmatprep.subr.bf16.mxu0 0
  %4749 = vmatpush2.bf16.xpose.msra.mxu0 0
  %4750 = vmatprep.subr.bf16.mxu0 0
  %4751 = vmatpush2.bf16.xpose.msra.mxu0 0
  %4752 = vmatprep.subr.bf16.mxu0 0
  %4753 = vmatpush2.bf16.xpose.msra.mxu0 0
  %4754 = vmatprep.subr.bf16.mxu0 0
  %4755 = vmatpush2.bf16.xpose.msra.mxu0 0
  %4756 = vmatprep.mubr.bf16.mxu0 0
  %4757 = vmatmul.mubr.bf16.gmra.mxu0 %v4701
  %v4758 = vpop.f32.mrf.mxu0
  %v4759 = vadd.f32 %v31, %v4758
  %v4760 = vpop.f32.mrf.mxu0
  %v4761 = vpop.f32.mrf.mxu0
  %v4762 = vadd.f32 %v31, %v4761
  %v4763 = vpop.f32.mrf.mxu0
  %4764 = vmatprep.mubr.bf16.mxu0 0
  %4765 = vmatmul.mubr.bf16.gmra.mxu0 %v4704
  %v4766 = vpop.f32.mrf.mxu0
  %v4767 = vadd.f32 %v31, %v4766
  %v4768 = vpop.f32.mrf.mxu0
  %v4769 = vpop.f32.mrf.mxu0
  %v4770 = vadd.f32 %v31, %v4769
  %v4771 = vpop.f32.mrf.mxu0
  %4772 = vmatprep.mubr.bf16.mxu0 0
  %4773 = vmatmul.mubr.bf16.gmra.mxu0 %v4707
  %v4774 = vpop.f32.mrf.mxu0
  %v4775 = vadd.f32 %v31, %v4774
  %v4776 = vpop.f32.mrf.mxu0
  %v4777 = vpop.f32.mrf.mxu0
  %v4778 = vadd.f32 %v31, %v4777
  %v4779 = vpop.f32.mrf.mxu0
  %4780 = vmatprep.mubr.bf16.mxu0 0
  %4781 = vmatmul.mubr.bf16.gmra.mxu0 %v4710
  %v4782 = vpop.f32.mrf.mxu0
  %v4783 = vadd.f32 %v31, %v4782
  %v4784 = vpop.f32.mrf.mxu0
  %v4785 = vpop.f32.mrf.mxu0
  %v4786 = vadd.f32 %v31, %v4785
  %v4787 = vpop.f32.mrf.mxu0
  %4788 = vdwg.mxu0
  %v4789 = vsel %vm338, %v4759, -inf
  %4790 = vmax.xlane.f32.xlu0 %v4789
  %v4791 = vpop.xlane.xlu0 %4790
  %v4792 = vsel %vm338, %v4762, -inf
  %4793 = vmax.xlane.f32.xlu0 %v4792
  %v4794 = vpop.xlane.xlu0 %4793
  %v4795 = vsel %vm338, %v4767, -inf
  %4796 = vmax.xlane.f32.xlu0 %v4795
  %v4797 = vpop.xlane.xlu0 %4796
  %v4798 = vsel %vm338, %v4770, -inf
  %4799 = vmax.xlane.f32.xlu0 %v4798
  %v4800 = vpop.xlane.xlu0 %4799
  %v4801 = vsel %vm338, %v4775, -inf
  %4802 = vmax.xlane.f32.xlu0 %v4801
  %v4803 = vpop.xlane.xlu0 %4802
  %v4804 = vsel %vm338, %v4778, -inf
  %4805 = vmax.xlane.f32.xlu0 %v4804
  %v4806 = vpop.xlane.xlu0 %4805
  %v4807 = vsel %vm338, %v4783, -inf
  %4808 = vmax.xlane.f32.xlu0 %v4807
  %v4809 = vpop.xlane.xlu0 %4808
  %v4810 = vsel %vm338, %v4786, -inf
  %4811 = vmax.xlane.f32.xlu0 %v4810
  %v4812 = vpop.xlane.xlu0 %4811
  %v4813 = vsub.f32 %v4759, %v4791
  %v4814 = vsub.f32 %v4762, %v4794
  %v4815 = vsub.f32 %v4767, %v4797
  %v4816 = vsub.f32 %v4770, %v4800
  %v4817 = vsub.f32 %v4775, %v4803
  %v4818 = vsub.f32 %v4778, %v4806
  %v4819 = vsub.f32 %v4783, %v4809
  %v4820 = vsub.f32 %v4786, %v4812
  %v4821 = vmul.f32 %v4813, 1.442695
  %v4822 = vpow.pop %v4821
  %v4823 = vmul.f32 %v4814, 1.442695
  %v4824 = vpow.pop %v4823
  %v4825 = vmul.f32 %v4815, 1.442695
  %v4826 = vpow.pop %v4825
  %v4827 = vmul.f32 %v4816, 1.442695
  %v4828 = vpow.pop %v4827
  %v4829 = vmul.f32 %v4817, 1.442695
  %v4830 = vpow.pop %v4829
  %v4831 = vmul.f32 %v4818, 1.442695
  %v4832 = vpow.pop %v4831
  %v4833 = vmul.f32 %v4819, 1.442695
  %v4834 = vpow.pop %v4833
  %v4835 = vmul.f32 %v4820, 1.442695
  %v4836 = vpow.pop %v4835
  %v4837 = vsel %vm338, %v4822, 0.0
  %4838 = vadd.xlane.f32.xlu0 %v4837
  %v4839 = vpop.xlane.xlu0 %4838
  %v4840 = vsel %vm338, %v4824, 0.0
  %4841 = vadd.xlane.f32.xlu0 %v4840
  %v4842 = vpop.xlane.xlu0 %4841
  %v4843 = vsel %vm338, %v4826, 0.0
  %4844 = vadd.xlane.f32.xlu0 %v4843
  %v4845 = vpop.xlane.xlu0 %4844
  %v4846 = vsel %vm338, %v4828, 0.0
  %4847 = vadd.xlane.f32.xlu0 %v4846
  %v4848 = vpop.xlane.xlu0 %4847
  %v4849 = vsel %vm338, %v4830, 0.0
  %4850 = vadd.xlane.f32.xlu0 %v4849
  %v4851 = vpop.xlane.xlu0 %4850
  %v4852 = vsel %vm338, %v4832, 0.0
  %4853 = vadd.xlane.f32.xlu0 %v4852
  %v4854 = vpop.xlane.xlu0 %4853
  %v4855 = vsel %vm338, %v4834, 0.0
  %4856 = vadd.xlane.f32.xlu0 %v4855
  %v4857 = vpop.xlane.xlu0 %4856
  %v4858 = vsel %vm338, %v4836, 0.0
  %4859 = vadd.xlane.f32.xlu0 %v4858
  %v4860 = vpop.xlane.xlu0 %4859
  %v4861 = vrcp.pop %v4839
  %v4862 = vrcp.pop %v4842
  %v4863 = vrcp.pop %v4845
  %v4864 = vrcp.pop %v4848
  %v4865 = vrcp.pop %v4851
  %v4866 = vrcp.pop %v4854
  %v4867 = vrcp.pop %v4857
  %v4868 = vrcp.pop %v4860
  %v4869 = vmul.f32 %v4822, %v4861
  %v4870 = vmul.f32 %v4824, %v4862
  %v4871 = vmul.f32 %v4826, %v4863
  %v4872 = vmul.f32 %v4828, %v4864
  %v4873 = vmul.f32 %v4830, %v4865
  %v4874 = vmul.f32 %v4832, %v4866
  %v4875 = vmul.f32 %v4834, %v4867
  %v4876 = vmul.f32 %v4836, %v4868
  %v4877 = vpack.c.bf16 %v4870, %v4869
  %v4878 = vpack.c.bf16 %v4872, %v4871
  %v4879 = vpack.c.bf16 %v4874, %v4873
  %v4880 = vpack.c.bf16 %v4876, %v4875
  %v4882 = vsel %vm338, %v4877, 0
  %v4885 = vsel %vm338, %v4878, 0
  %v4888 = vsel %vm338, %v4879, 0
  %v4891 = vsel %vm338, %v4880, 0
  %4893 = vmatprep.subr.bf16.mxu0 0
  %4894 = vmatpush1.bf16.msra.mxu0 0
  %4895 = vmatprep.subr.bf16.mxu0 0
  %4896 = vmatpush1.bf16.msra.mxu0 0
  %4897 = vmatprep.subr.bf16.mxu0 0
  %4898 = vmatpush1.bf16.msra.mxu0 0
  %4899 = vmatprep.subr.bf16.mxu0 0
  %4900 = vmatpush1.bf16.msra.mxu0 0
  %4901 = vmatprep.subr.bf16.mxu0 0
  %4902 = vmatpush1.bf16.msra.mxu0 %v4111
  %4903 = vmatprep.subr.bf16.mxu0 0
  %4904 = vmatpush1.bf16.msra.mxu0 %v4108
  %4905 = vmatprep.subr.bf16.mxu0 0
  %4906 = vmatpush1.bf16.msra.mxu0 %v4105
  %4907 = vmatprep.subr.bf16.mxu0 0
  %4908 = vmatpush1.bf16.msra.mxu0 %v4102
  %4909 = vmatprep.subr.bf16.mxu0 0
  %4910 = vmatpush2.bf16.msra.mxu0 0
  %4911 = vmatprep.subr.bf16.mxu0 0
  %4912 = vmatpush2.bf16.msra.mxu0 0
  %4913 = vmatprep.subr.bf16.mxu0 0
  %4914 = vmatpush2.bf16.msra.mxu0 0
  %4915 = vmatprep.subr.bf16.mxu0 0
  %4916 = vmatpush2.bf16.msra.mxu0 0
  %4917 = vmatprep.subr.bf16.mxu0 0
  %4918 = vmatpush2.bf16.msra.mxu0 0
  %4919 = vmatprep.subr.bf16.mxu0 0
  %4920 = vmatpush2.bf16.msra.mxu0 0
  %4921 = vmatprep.subr.bf16.mxu0 0
  %4922 = vmatpush2.bf16.msra.mxu0 0
  %4923 = vmatprep.subr.bf16.mxu0 0
  %4924 = vmatpush2.bf16.msra.mxu0 0
  %4925 = vmatprep.mubr.bf16.mxu0 0
  %4926 = vmatmul.mubr.bf16.gmra.mxu0 %v4882
  %v4927 = vpop.f32.mrf.mxu0
  %v4928 = vadd.f32 0.0, %v4927
  %v4929 = vpop.f32.mrf.mxu0
  %v4930 = vpop.f32.mrf.mxu0
  %v4931 = vadd.f32 0.0, %v4930
  %v4932 = vpop.f32.mrf.mxu0
  %4933 = vmatprep.mubr.bf16.mxu0 0
  %4934 = vmatmul.mubr.bf16.gmra.mxu0 %v4885
  %v4935 = vpop.f32.mrf.mxu0
  %v4936 = vadd.f32 0.0, %v4935
  %v4937 = vpop.f32.mrf.mxu0
  %v4938 = vpop.f32.mrf.mxu0
  %v4939 = vadd.f32 0.0, %v4938
  %v4940 = vpop.f32.mrf.mxu0
  %4941 = vmatprep.mubr.bf16.mxu0 0
  %4942 = vmatmul.mubr.bf16.gmra.mxu0 %v4888
  %v4943 = vpop.f32.mrf.mxu0
  %v4944 = vadd.f32 0.0, %v4943
  %v4945 = vpop.f32.mrf.mxu0
  %v4946 = vpop.f32.mrf.mxu0
  %v4947 = vadd.f32 0.0, %v4946
  %v4948 = vpop.f32.mrf.mxu0
  %4949 = vmatprep.mubr.bf16.mxu0 0
  %4950 = vmatmul.mubr.bf16.gmra.mxu0 %v4891
  %v4951 = vpop.f32.mrf.mxu0
  %v4952 = vadd.f32 0.0, %v4951
  %v4953 = vpop.f32.mrf.mxu0
  %v4954 = vpop.f32.mrf.mxu0
  %v4955 = vadd.f32 0.0, %v4954
  %v4956 = vpop.f32.mrf.mxu0
  %4957 = vdwg.mxu0
  %v4958 = vadd.f32 %v4654, %v4928
  %v4959 = vadd.f32 %v4657, %v4931
  %v4960 = vadd.f32 %v4662, %v4936
  %v4961 = vadd.f32 %v4665, %v4939
  %v4962 = vadd.f32 %v4670, %v4944
  %v4963 = vadd.f32 %v4673, %v4947
  %v4964 = vadd.f32 %v4678, %v4952
  %v4965 = vadd.f32 %v4681, %v4955
  %4966 = vrot.lane.b32.xlu0 %v4100, 80
  %v4967 = vpop.permute.xlu0 %4966
  %4968 = vrot.lane.b32.xlu0 %v4103, 80
  %v4969 = vpop.permute.xlu0 %4968
  %4970 = vrot.lane.b32.xlu0 %v4106, 80
  %v4971 = vpop.permute.xlu0 %4970
  %4972 = vrot.lane.b32.xlu0 %v4109, 80
  %v4973 = vpop.permute.xlu0 %4972
  %4974 = vrot.lane.b32.xlu0 %v4100, 16
  %v4975 = vpop.permute.xlu0 %4974
  %4976 = vrot.lane.b32.xlu0 %v4103, 16
  %v4977 = vpop.permute.xlu0 %4976
  %4978 = vrot.lane.b32.xlu0 %v4106, 16
  %v4979 = vpop.permute.xlu0 %4978
  %4980 = vrot.lane.b32.xlu0 %v4109, 16
  %v4981 = vpop.permute.xlu0 %4980
  %v4983 = vsel %vm104, %v4967, 0
  %v4986 = vsel %vm104, %v4969, 0
  %v4989 = vsel %vm104, %v4971, 0
  %v4992 = vsel %vm104, %v4973, 0
  %v4995 = vsel %vm104, %v4975, 0
  %v4998 = vsel %vm104, %v4977, 0
  %v5001 = vsel %vm104, %v4979, 0
  %v5004 = vsel %vm104, %v4981, 0
  %5006 = vmatprep.subr.bf16.mxu0 0
  %5007 = vmatpush1.bf16.xpose.msra.mxu0 0
  %5008 = vmatprep.subr.bf16.mxu0 0
  %5009 = vmatpush1.bf16.xpose.msra.mxu0 0
  %5010 = vmatprep.subr.bf16.mxu0 0
  %5011 = vmatpush1.bf16.xpose.msra.mxu0 0
  %5012 = vmatprep.subr.bf16.mxu0 0
  %5013 = vmatpush1.bf16.xpose.msra.mxu0 0
  %5014 = vmatprep.subr.bf16.mxu0 0
  %5015 = vmatpush1.bf16.xpose.msra.mxu0 %v5004
  %5016 = vmatprep.subr.bf16.mxu0 0
  %5017 = vmatpush1.bf16.xpose.msra.mxu0 %v5001
  %5018 = vmatprep.subr.bf16.mxu0 0
  %5019 = vmatpush1.bf16.xpose.msra.mxu0 %v4998
  %5020 = vmatprep.subr.bf16.mxu0 0
  %5021 = vmatpush1.bf16.xpose.msra.mxu0 %v4995
  %5022 = vmatprep.subr.bf16.mxu0 0
  %5023 = vmatpush2.bf16.xpose.msra.mxu0 0
  %5024 = vmatprep.subr.bf16.mxu0 0
  %5025 = vmatpush2.bf16.xpose.msra.mxu0 0
  %5026 = vmatprep.subr.bf16.mxu0 0
  %5027 = vmatpush2.bf16.xpose.msra.mxu0 0
  %5028 = vmatprep.subr.bf16.mxu0 0
  %5029 = vmatpush2.bf16.xpose.msra.mxu0 0
  %5030 = vmatprep.subr.bf16.mxu0 0
  %5031 = vmatpush2.bf16.xpose.msra.mxu0 0
  %5032 = vmatprep.subr.bf16.mxu0 0
  %5033 = vmatpush2.bf16.xpose.msra.mxu0 0
  %5034 = vmatprep.subr.bf16.mxu0 0
  %5035 = vmatpush2.bf16.xpose.msra.mxu0 0
  %5036 = vmatprep.subr.bf16.mxu0 0
  %5037 = vmatpush2.bf16.xpose.msra.mxu0 0
  %5038 = vmatprep.mubr.bf16.mxu0 0
  %5039 = vmatmul.mubr.bf16.gmra.mxu0 %v4983
  %v5040 = vpop.f32.mrf.mxu0
  %v5041 = vadd.f32 %v31, %v5040
  %v5042 = vpop.f32.mrf.mxu0
  %v5043 = vpop.f32.mrf.mxu0
  %v5044 = vadd.f32 %v31, %v5043
  %v5045 = vpop.f32.mrf.mxu0
  %5046 = vmatprep.mubr.bf16.mxu0 0
  %5047 = vmatmul.mubr.bf16.gmra.mxu0 %v4986
  %v5048 = vpop.f32.mrf.mxu0
  %v5049 = vadd.f32 %v31, %v5048
  %v5050 = vpop.f32.mrf.mxu0
  %v5051 = vpop.f32.mrf.mxu0
  %v5052 = vadd.f32 %v31, %v5051
  %v5053 = vpop.f32.mrf.mxu0
  %5054 = vmatprep.mubr.bf16.mxu0 0
  %5055 = vmatmul.mubr.bf16.gmra.mxu0 %v4989
  %v5056 = vpop.f32.mrf.mxu0
  %v5057 = vadd.f32 %v31, %v5056
  %v5058 = vpop.f32.mrf.mxu0
  %v5059 = vpop.f32.mrf.mxu0
  %v5060 = vadd.f32 %v31, %v5059
  %v5061 = vpop.f32.mrf.mxu0
  %5062 = vmatprep.mubr.bf16.mxu0 0
  %5063 = vmatmul.mubr.bf16.gmra.mxu0 %v4992
  %v5064 = vpop.f32.mrf.mxu0
  %v5065 = vadd.f32 %v31, %v5064
  %v5066 = vpop.f32.mrf.mxu0
  %v5067 = vpop.f32.mrf.mxu0
  %v5068 = vadd.f32 %v31, %v5067
  %v5069 = vpop.f32.mrf.mxu0
  %5070 = vdwg.mxu0
  %v5071 = vsel %vm338, %v5041, -inf
  %5072 = vmax.xlane.f32.xlu0 %v5071
  %v5073 = vpop.xlane.xlu0 %5072
  %v5074 = vsel %vm338, %v5044, -inf
  %5075 = vmax.xlane.f32.xlu0 %v5074
  %v5076 = vpop.xlane.xlu0 %5075
  %v5077 = vsel %vm338, %v5049, -inf
  %5078 = vmax.xlane.f32.xlu0 %v5077
  %v5079 = vpop.xlane.xlu0 %5078
  %v5080 = vsel %vm338, %v5052, -inf
  %5081 = vmax.xlane.f32.xlu0 %v5080
  %v5082 = vpop.xlane.xlu0 %5081
  %v5083 = vsel %vm338, %v5057, -inf
  %5084 = vmax.xlane.f32.xlu0 %v5083
  %v5085 = vpop.xlane.xlu0 %5084
  %v5086 = vsel %vm338, %v5060, -inf
  %5087 = vmax.xlane.f32.xlu0 %v5086
  %v5088 = vpop.xlane.xlu0 %5087
  %v5089 = vsel %vm338, %v5065, -inf
  %5090 = vmax.xlane.f32.xlu0 %v5089
  %v5091 = vpop.xlane.xlu0 %5090
  %v5092 = vsel %vm338, %v5068, -inf
  %5093 = vmax.xlane.f32.xlu0 %v5092
  %v5094 = vpop.xlane.xlu0 %5093
  %v5095 = vsub.f32 %v5041, %v5073
  %v5096 = vsub.f32 %v5044, %v5076
  %v5097 = vsub.f32 %v5049, %v5079
  %v5098 = vsub.f32 %v5052, %v5082
  %v5099 = vsub.f32 %v5057, %v5085
  %v5100 = vsub.f32 %v5060, %v5088
  %v5101 = vsub.f32 %v5065, %v5091
  %v5102 = vsub.f32 %v5068, %v5094
  %v5103 = vmul.f32 %v5095, 1.442695
  %v5104 = vpow.pop %v5103
  %v5105 = vmul.f32 %v5096, 1.442695
  %v5106 = vpow.pop %v5105
  %v5107 = vmul.f32 %v5097, 1.442695
  %v5108 = vpow.pop %v5107
  %v5109 = vmul.f32 %v5098, 1.442695
  %v5110 = vpow.pop %v5109
  %v5111 = vmul.f32 %v5099, 1.442695
  %v5112 = vpow.pop %v5111
  %v5113 = vmul.f32 %v5100, 1.442695
  %v5114 = vpow.pop %v5113
  %v5115 = vmul.f32 %v5101, 1.442695
  %v5116 = vpow.pop %v5115
  %v5117 = vmul.f32 %v5102, 1.442695
  %v5118 = vpow.pop %v5117
  %v5119 = vsel %vm338, %v5104, 0.0
  %5120 = vadd.xlane.f32.xlu0 %v5119
  %v5121 = vpop.xlane.xlu0 %5120
  %v5122 = vsel %vm338, %v5106, 0.0
  %5123 = vadd.xlane.f32.xlu0 %v5122
  %v5124 = vpop.xlane.xlu0 %5123
  %v5125 = vsel %vm338, %v5108, 0.0
  %5126 = vadd.xlane.f32.xlu0 %v5125
  %v5127 = vpop.xlane.xlu0 %5126
  %v5128 = vsel %vm338, %v5110, 0.0
  %5129 = vadd.xlane.f32.xlu0 %v5128
  %v5130 = vpop.xlane.xlu0 %5129
  %v5131 = vsel %vm338, %v5112, 0.0
  %5132 = vadd.xlane.f32.xlu0 %v5131
  %v5133 = vpop.xlane.xlu0 %5132
  %v5134 = vsel %vm338, %v5114, 0.0
  %5135 = vadd.xlane.f32.xlu0 %v5134
  %v5136 = vpop.xlane.xlu0 %5135
  %v5137 = vsel %vm338, %v5116, 0.0
  %5138 = vadd.xlane.f32.xlu0 %v5137
  %v5139 = vpop.xlane.xlu0 %5138
  %v5140 = vsel %vm338, %v5118, 0.0
  %5141 = vadd.xlane.f32.xlu0 %v5140
  %v5142 = vpop.xlane.xlu0 %5141
  %v5143 = vrcp.pop %v5121
  %v5144 = vrcp.pop %v5124
  %v5145 = vrcp.pop %v5127
  %v5146 = vrcp.pop %v5130
  %v5147 = vrcp.pop %v5133
  %v5148 = vrcp.pop %v5136
  %v5149 = vrcp.pop %v5139
  %v5150 = vrcp.pop %v5142
  %v5151 = vmul.f32 %v5104, %v5143
  %v5152 = vmul.f32 %v5106, %v5144
  %v5153 = vmul.f32 %v5108, %v5145
  %v5154 = vmul.f32 %v5110, %v5146
  %v5155 = vmul.f32 %v5112, %v5147
  %v5156 = vmul.f32 %v5114, %v5148
  %v5157 = vmul.f32 %v5116, %v5149
  %v5158 = vmul.f32 %v5118, %v5150
  %v5159 = vpack.c.bf16 %v5152, %v5151
  %v5160 = vpack.c.bf16 %v5154, %v5153
  %v5161 = vpack.c.bf16 %v5156, %v5155
  %v5162 = vpack.c.bf16 %v5158, %v5157
  %5167 = vrot.lane.b32.xlu0 %v4102, 64
  %v5168 = vpop.permute.xlu0 %5167
  %5169 = vrot.lane.b32.xlu0 %v4105, 64
  %v5170 = vpop.permute.xlu0 %5169
  %5171 = vrot.lane.b32.xlu0 %v4108, 64
  %v5172 = vpop.permute.xlu0 %5171
  %5173 = vrot.lane.b32.xlu0 %v4111, 64
  %v5174 = vpop.permute.xlu0 %5173
  %v5180 = vsel %vm338, %v5159, 0
  %v5183 = vsel %vm338, %v5160, 0
  %v5186 = vsel %vm338, %v5161, 0
  %v5189 = vsel %vm338, %v5162, 0
  %5191 = vmatprep.subr.bf16.mxu0 0
  %5192 = vmatpush1.bf16.msra.mxu0 0
  %5193 = vmatprep.subr.bf16.mxu0 0
  %5194 = vmatpush1.bf16.msra.mxu0 0
  %5195 = vmatprep.subr.bf16.mxu0 0
  %5196 = vmatpush1.bf16.msra.mxu0 0
  %5197 = vmatprep.subr.bf16.mxu0 0
  %5198 = vmatpush1.bf16.msra.mxu0 0
  %5199 = vmatprep.subr.bf16.mxu0 0
  %5200 = vmatpush1.bf16.msra.mxu0 %v5174
  %5201 = vmatprep.subr.bf16.mxu0 0
  %5202 = vmatpush1.bf16.msra.mxu0 %v5172
  %5203 = vmatprep.subr.bf16.mxu0 0
  %5204 = vmatpush1.bf16.msra.mxu0 %v5170
  %5205 = vmatprep.subr.bf16.mxu0 0
  %5206 = vmatpush1.bf16.msra.mxu0 %v5168
  %5207 = vmatprep.subr.bf16.mxu0 0
  %5208 = vmatpush2.bf16.msra.mxu0 0
  %5209 = vmatprep.subr.bf16.mxu0 0
  %5210 = vmatpush2.bf16.msra.mxu0 0
  %5211 = vmatprep.subr.bf16.mxu0 0
  %5212 = vmatpush2.bf16.msra.mxu0 0
  %5213 = vmatprep.subr.bf16.mxu0 0
  %5214 = vmatpush2.bf16.msra.mxu0 0
  %5215 = vmatprep.subr.bf16.mxu0 0
  %5216 = vmatpush2.bf16.msra.mxu0 0
  %5217 = vmatprep.subr.bf16.mxu0 0
  %5218 = vmatpush2.bf16.msra.mxu0 0
  %5219 = vmatprep.subr.bf16.mxu0 0
  %5220 = vmatpush2.bf16.msra.mxu0 0
  %5221 = vmatprep.subr.bf16.mxu0 0
  %5222 = vmatpush2.bf16.msra.mxu0 0
  %5223 = vmatprep.mubr.bf16.mxu0 0
  %5224 = vmatmul.mubr.bf16.gmra.mxu0 %v5180
  %v5225 = vpop.f32.mrf.mxu0
  %v5226 = vadd.f32 0.0, %v5225
  %v5227 = vpop.f32.mrf.mxu0
  %v5228 = vpop.f32.mrf.mxu0
  %v5229 = vadd.f32 0.0, %v5228
  %v5230 = vpop.f32.mrf.mxu0
  %5231 = vmatprep.mubr.bf16.mxu0 0
  %5232 = vmatmul.mubr.bf16.gmra.mxu0 %v5183
  %v5233 = vpop.f32.mrf.mxu0
  %v5234 = vadd.f32 0.0, %v5233
  %v5235 = vpop.f32.mrf.mxu0
  %v5236 = vpop.f32.mrf.mxu0
  %v5237 = vadd.f32 0.0, %v5236
  %v5238 = vpop.f32.mrf.mxu0
  %5239 = vmatprep.mubr.bf16.mxu0 0
  %5240 = vmatmul.mubr.bf16.gmra.mxu0 %v5186
  %v5241 = vpop.f32.mrf.mxu0
  %v5242 = vadd.f32 0.0, %v5241
  %v5243 = vpop.f32.mrf.mxu0
  %v5244 = vpop.f32.mrf.mxu0
  %v5245 = vadd.f32 0.0, %v5244
  %v5246 = vpop.f32.mrf.mxu0
  %5247 = vmatprep.mubr.bf16.mxu0 0
  %5248 = vmatmul.mubr.bf16.gmra.mxu0 %v5189
  %v5249 = vpop.f32.mrf.mxu0
  %v5250 = vadd.f32 0.0, %v5249
  %v5251 = vpop.f32.mrf.mxu0
  %v5252 = vpop.f32.mrf.mxu0
  %v5253 = vadd.f32 0.0, %v5252
  %v5254 = vpop.f32.mrf.mxu0
  %5255 = vdwg.mxu0
  %v5256 = vadd.f32 %v4958, %v5226
  %v5257 = vadd.f32 %v4959, %v5229
  %v5258 = vadd.f32 %v4960, %v5234
  %v5259 = vadd.f32 %v4961, %v5237
  %v5260 = vadd.f32 %v4962, %v5242
  %v5261 = vadd.f32 %v4963, %v5245
  %v5262 = vadd.f32 %v4964, %v5250
  %v5263 = vadd.f32 %v4965, %v5253
  %5268 = vrot.lane.b32.xlu0 %v4112, 64
  %v5269 = vpop.permute.xlu0 %5268
  %5270 = vrot.lane.b32.xlu0 %v4115, 64
  %v5271 = vpop.permute.xlu0 %5270
  %5272 = vrot.lane.b32.xlu0 %v4118, 64
  %v5273 = vpop.permute.xlu0 %5272
  %5274 = vrot.lane.b32.xlu0 %v4121, 64
  %v5275 = vpop.permute.xlu0 %5274
  %v5277 = vsel %vm104, %v4112, 0
  %v5280 = vsel %vm104, %v4115, 0
  %v5283 = vsel %vm104, %v4118, 0
  %v5286 = vsel %vm104, %v4121, 0
  %v5289 = vsel %vm104, %v5269, 0
  %v5292 = vsel %vm104, %v5271, 0
  %v5295 = vsel %vm104, %v5273, 0
  %v5298 = vsel %vm104, %v5275, 0
  %5300 = vmatprep.subr.bf16.mxu0 0
  %5301 = vmatpush1.bf16.xpose.msra.mxu0 0
  %5302 = vmatprep.subr.bf16.mxu0 0
  %5303 = vmatpush1.bf16.xpose.msra.mxu0 0
  %5304 = vmatprep.subr.bf16.mxu0 0
  %5305 = vmatpush1.bf16.xpose.msra.mxu0 0
  %5306 = vmatprep.subr.bf16.mxu0 0
  %5307 = vmatpush1.bf16.xpose.msra.mxu0 0
  %5308 = vmatprep.subr.bf16.mxu0 0
  %5309 = vmatpush1.bf16.xpose.msra.mxu0 %v5298
  %5310 = vmatprep.subr.bf16.mxu0 0
  %5311 = vmatpush1.bf16.xpose.msra.mxu0 %v5295
  %5312 = vmatprep.subr.bf16.mxu0 0
  %5313 = vmatpush1.bf16.xpose.msra.mxu0 %v5292
  %5314 = vmatprep.subr.bf16.mxu0 0
  %5315 = vmatpush1.bf16.xpose.msra.mxu0 %v5289
  %5316 = vmatprep.subr.bf16.mxu0 0
  %5317 = vmatpush2.bf16.xpose.msra.mxu0 0
  %5318 = vmatprep.subr.bf16.mxu0 0
  %5319 = vmatpush2.bf16.xpose.msra.mxu0 0
  %5320 = vmatprep.subr.bf16.mxu0 0
  %5321 = vmatpush2.bf16.xpose.msra.mxu0 0
  %5322 = vmatprep.subr.bf16.mxu0 0
  %5323 = vmatpush2.bf16.xpose.msra.mxu0 0
  %5324 = vmatprep.subr.bf16.mxu0 0
  %5325 = vmatpush2.bf16.xpose.msra.mxu0 0
  %5326 = vmatprep.subr.bf16.mxu0 0
  %5327 = vmatpush2.bf16.xpose.msra.mxu0 0
  %5328 = vmatprep.subr.bf16.mxu0 0
  %5329 = vmatpush2.bf16.xpose.msra.mxu0 0
  %5330 = vmatprep.subr.bf16.mxu0 0
  %5331 = vmatpush2.bf16.xpose.msra.mxu0 0
  %5332 = vmatprep.mubr.bf16.mxu0 0
  %5333 = vmatmul.mubr.bf16.gmra.mxu0 %v5277
  %v5334 = vpop.f32.mrf.mxu0
  %v5335 = vadd.f32 %v31, %v5334
  %v5336 = vpop.f32.mrf.mxu0
  %v5337 = vpop.f32.mrf.mxu0
  %v5338 = vadd.f32 %v31, %v5337
  %v5339 = vpop.f32.mrf.mxu0
  %5340 = vmatprep.mubr.bf16.mxu0 0
  %5341 = vmatmul.mubr.bf16.gmra.mxu0 %v5280
  %v5342 = vpop.f32.mrf.mxu0
  %v5343 = vadd.f32 %v31, %v5342
  %v5344 = vpop.f32.mrf.mxu0
  %v5345 = vpop.f32.mrf.mxu0
  %v5346 = vadd.f32 %v31, %v5345
  %v5347 = vpop.f32.mrf.mxu0
  %5348 = vmatprep.mubr.bf16.mxu0 0
  %5349 = vmatmul.mubr.bf16.gmra.mxu0 %v5283
  %v5350 = vpop.f32.mrf.mxu0
  %v5351 = vadd.f32 %v31, %v5350
  %v5352 = vpop.f32.mrf.mxu0
  %v5353 = vpop.f32.mrf.mxu0
  %v5354 = vadd.f32 %v31, %v5353
  %v5355 = vpop.f32.mrf.mxu0
  %5356 = vmatprep.mubr.bf16.mxu0 0
  %5357 = vmatmul.mubr.bf16.gmra.mxu0 %v5286
  %v5358 = vpop.f32.mrf.mxu0
  %v5359 = vadd.f32 %v31, %v5358
  %v5360 = vpop.f32.mrf.mxu0
  %v5361 = vpop.f32.mrf.mxu0
  %v5362 = vadd.f32 %v31, %v5361
  %v5363 = vpop.f32.mrf.mxu0
  %5364 = vdwg.mxu0
  %v5365 = vsel %vm338, %v5335, -inf
  %5366 = vmax.xlane.f32.xlu0 %v5365
  %v5367 = vpop.xlane.xlu0 %5366
  %v5368 = vsel %vm338, %v5338, -inf
  %5369 = vmax.xlane.f32.xlu0 %v5368
  %v5370 = vpop.xlane.xlu0 %5369
  %v5371 = vsel %vm338, %v5343, -inf
  %5372 = vmax.xlane.f32.xlu0 %v5371
  %v5373 = vpop.xlane.xlu0 %5372
  %v5374 = vsel %vm338, %v5346, -inf
  %5375 = vmax.xlane.f32.xlu0 %v5374
  %v5376 = vpop.xlane.xlu0 %5375
  %v5377 = vsel %vm338, %v5351, -inf
  %5378 = vmax.xlane.f32.xlu0 %v5377
  %v5379 = vpop.xlane.xlu0 %5378
  %v5380 = vsel %vm338, %v5354, -inf
  %5381 = vmax.xlane.f32.xlu0 %v5380
  %v5382 = vpop.xlane.xlu0 %5381
  %v5383 = vsel %vm338, %v5359, -inf
  %5384 = vmax.xlane.f32.xlu0 %v5383
  %v5385 = vpop.xlane.xlu0 %5384
  %v5386 = vsel %vm338, %v5362, -inf
  %5387 = vmax.xlane.f32.xlu0 %v5386
  %v5388 = vpop.xlane.xlu0 %5387
  %v5389 = vsub.f32 %v5335, %v5367
  %v5390 = vsub.f32 %v5338, %v5370
  %v5391 = vsub.f32 %v5343, %v5373
  %v5392 = vsub.f32 %v5346, %v5376
  %v5393 = vsub.f32 %v5351, %v5379
  %v5394 = vsub.f32 %v5354, %v5382
  %v5395 = vsub.f32 %v5359, %v5385
  %v5396 = vsub.f32 %v5362, %v5388
  %v5397 = vmul.f32 %v5389, 1.442695
  %v5398 = vpow.pop %v5397
  %v5399 = vmul.f32 %v5390, 1.442695
  %v5400 = vpow.pop %v5399
  %v5401 = vmul.f32 %v5391, 1.442695
  %v5402 = vpow.pop %v5401
  %v5403 = vmul.f32 %v5392, 1.442695
  %v5404 = vpow.pop %v5403
  %v5405 = vmul.f32 %v5393, 1.442695
  %v5406 = vpow.pop %v5405
  %v5407 = vmul.f32 %v5394, 1.442695
  %v5408 = vpow.pop %v5407
  %v5409 = vmul.f32 %v5395, 1.442695
  %v5410 = vpow.pop %v5409
  %v5411 = vmul.f32 %v5396, 1.442695
  %v5412 = vpow.pop %v5411
  %v5413 = vsel %vm338, %v5398, 0.0
  %5414 = vadd.xlane.f32.xlu0 %v5413
  %v5415 = vpop.xlane.xlu0 %5414
  %v5416 = vsel %vm338, %v5400, 0.0
  %5417 = vadd.xlane.f32.xlu0 %v5416
  %v5418 = vpop.xlane.xlu0 %5417
  %v5419 = vsel %vm338, %v5402, 0.0
  %5420 = vadd.xlane.f32.xlu0 %v5419
  %v5421 = vpop.xlane.xlu0 %5420
  %v5422 = vsel %vm338, %v5404, 0.0
  %5423 = vadd.xlane.f32.xlu0 %v5422
  %v5424 = vpop.xlane.xlu0 %5423
  %v5425 = vsel %vm338, %v5406, 0.0
  %5426 = vadd.xlane.f32.xlu0 %v5425
  %v5427 = vpop.xlane.xlu0 %5426
  %v5428 = vsel %vm338, %v5408, 0.0
  %5429 = vadd.xlane.f32.xlu0 %v5428
  %v5430 = vpop.xlane.xlu0 %5429
  %v5431 = vsel %vm338, %v5410, 0.0
  %5432 = vadd.xlane.f32.xlu0 %v5431
  %v5433 = vpop.xlane.xlu0 %5432
  %v5434 = vsel %vm338, %v5412, 0.0
  %5435 = vadd.xlane.f32.xlu0 %v5434
  %v5436 = vpop.xlane.xlu0 %5435
  %v5437 = vrcp.pop %v5415
  %v5438 = vrcp.pop %v5418
  %v5439 = vrcp.pop %v5421
  %v5440 = vrcp.pop %v5424
  %v5441 = vrcp.pop %v5427
  %v5442 = vrcp.pop %v5430
  %v5443 = vrcp.pop %v5433
  %v5444 = vrcp.pop %v5436
  %v5445 = vmul.f32 %v5398, %v5437
  %v5446 = vmul.f32 %v5400, %v5438
  %v5447 = vmul.f32 %v5402, %v5439
  %v5448 = vmul.f32 %v5404, %v5440
  %v5449 = vmul.f32 %v5406, %v5441
  %v5450 = vmul.f32 %v5408, %v5442
  %v5451 = vmul.f32 %v5410, %v5443
  %v5452 = vmul.f32 %v5412, %v5444
  %v5453 = vpack.c.bf16 %v5446, %v5445
  %v5454 = vpack.c.bf16 %v5448, %v5447
  %v5455 = vpack.c.bf16 %v5450, %v5449
  %v5456 = vpack.c.bf16 %v5452, %v5451
  %5457 = vrot.lane.b32.xlu0 %v4112, 112
  %v5458 = vpop.permute.xlu0 %5457
  %5459 = vrot.lane.b32.xlu0 %v4115, 112
  %v5460 = vpop.permute.xlu0 %5459
  %5461 = vrot.lane.b32.xlu0 %v4118, 112
  %v5462 = vpop.permute.xlu0 %5461
  %5463 = vrot.lane.b32.xlu0 %v4121, 112
  %v5464 = vpop.permute.xlu0 %5463
  %5465 = vrot.lane.b32.xlu0 %v4112, 48
  %v5466 = vpop.permute.xlu0 %5465
  %5467 = vrot.lane.b32.xlu0 %v4115, 48
  %v5468 = vpop.permute.xlu0 %5467
  %5469 = vrot.lane.b32.xlu0 %v4118, 48
  %v5470 = vpop.permute.xlu0 %5469
  %5471 = vrot.lane.b32.xlu0 %v4121, 48
  %v5472 = vpop.permute.xlu0 %5471
  %v5474 = vsel %vm104, %v5458, 0
  %v5477 = vsel %vm104, %v5460, 0
  %v5480 = vsel %vm104, %v5462, 0
  %v5483 = vsel %vm104, %v5464, 0
  %v5486 = vsel %vm104, %v5466, 0
  %v5489 = vsel %vm104, %v5468, 0
  %v5492 = vsel %vm104, %v5470, 0
  %v5495 = vsel %vm104, %v5472, 0
  %5497 = vmatprep.subr.bf16.mxu0 0
  %5498 = vmatpush1.bf16.xpose.msra.mxu0 0
  %5499 = vmatprep.subr.bf16.mxu0 0
  %5500 = vmatpush1.bf16.xpose.msra.mxu0 0
  %5501 = vmatprep.subr.bf16.mxu0 0
  %5502 = vmatpush1.bf16.xpose.msra.mxu0 0
  %5503 = vmatprep.subr.bf16.mxu0 0
  %5504 = vmatpush1.bf16.xpose.msra.mxu0 0
  %5505 = vmatprep.subr.bf16.mxu0 0
  %5506 = vmatpush1.bf16.xpose.msra.mxu0 %v5495
  %5507 = vmatprep.subr.bf16.mxu0 0
  %5508 = vmatpush1.bf16.xpose.msra.mxu0 %v5492
  %5509 = vmatprep.subr.bf16.mxu0 0
  %5510 = vmatpush1.bf16.xpose.msra.mxu0 %v5489
  %5511 = vmatprep.subr.bf16.mxu0 0
  %5512 = vmatpush1.bf16.xpose.msra.mxu0 %v5486
  %5513 = vmatprep.subr.bf16.mxu0 0
  %5514 = vmatpush2.bf16.xpose.msra.mxu0 0
  %5515 = vmatprep.subr.bf16.mxu0 0
  %5516 = vmatpush2.bf16.xpose.msra.mxu0 0
  %5517 = vmatprep.subr.bf16.mxu0 0
  %5518 = vmatpush2.bf16.xpose.msra.mxu0 0
  %5519 = vmatprep.subr.bf16.mxu0 0
  %5520 = vmatpush2.bf16.xpose.msra.mxu0 0
  %5521 = vmatprep.subr.bf16.mxu0 0
  %5522 = vmatpush2.bf16.xpose.msra.mxu0 0
  %5523 = vmatprep.subr.bf16.mxu0 0
  %5524 = vmatpush2.bf16.xpose.msra.mxu0 0
  %5525 = vmatprep.subr.bf16.mxu0 0
  %5526 = vmatpush2.bf16.xpose.msra.mxu0 0
  %5527 = vmatprep.subr.bf16.mxu0 0
  %5528 = vmatpush2.bf16.xpose.msra.mxu0 0
  %5529 = vmatprep.mubr.bf16.mxu0 0
  %5530 = vmatmul.mubr.bf16.gmra.mxu0 %v5474
  %v5531 = vpop.f32.mrf.mxu0
  %v5532 = vadd.f32 %v31, %v5531
  %v5533 = vpop.f32.mrf.mxu0
  %v5534 = vpop.f32.mrf.mxu0
  %v5535 = vadd.f32 %v31, %v5534
  %v5536 = vpop.f32.mrf.mxu0
  %5537 = vmatprep.mubr.bf16.mxu0 0
  %5538 = vmatmul.mubr.bf16.gmra.mxu0 %v5477
  %v5539 = vpop.f32.mrf.mxu0
  %v5540 = vadd.f32 %v31, %v5539
  %v5541 = vpop.f32.mrf.mxu0
  %v5542 = vpop.f32.mrf.mxu0
  %v5543 = vadd.f32 %v31, %v5542
  %v5544 = vpop.f32.mrf.mxu0
  %5545 = vmatprep.mubr.bf16.mxu0 0
  %5546 = vmatmul.mubr.bf16.gmra.mxu0 %v5480
  %v5547 = vpop.f32.mrf.mxu0
  %v5548 = vadd.f32 %v31, %v5547
  %v5549 = vpop.f32.mrf.mxu0
  %v5550 = vpop.f32.mrf.mxu0
  %v5551 = vadd.f32 %v31, %v5550
  %v5552 = vpop.f32.mrf.mxu0
  %5553 = vmatprep.mubr.bf16.mxu0 0
  %5554 = vmatmul.mubr.bf16.gmra.mxu0 %v5483
  %v5555 = vpop.f32.mrf.mxu0
  %v5556 = vadd.f32 %v31, %v5555
  %v5557 = vpop.f32.mrf.mxu0
  %v5558 = vpop.f32.mrf.mxu0
  %v5559 = vadd.f32 %v31, %v5558
  %v5560 = vpop.f32.mrf.mxu0
  %5561 = vdwg.mxu0
  %v5562 = vsel %vm338, %v5532, -inf
  %5563 = vmax.xlane.f32.xlu0 %v5562
  %v5564 = vpop.xlane.xlu0 %5563
  %v5565 = vsel %vm338, %v5535, -inf
  %5566 = vmax.xlane.f32.xlu0 %v5565
  %v5567 = vpop.xlane.xlu0 %5566
  %v5568 = vsel %vm338, %v5540, -inf
  %5569 = vmax.xlane.f32.xlu0 %v5568
  %v5570 = vpop.xlane.xlu0 %5569
  %v5571 = vsel %vm338, %v5543, -inf
  %5572 = vmax.xlane.f32.xlu0 %v5571
  %v5573 = vpop.xlane.xlu0 %5572
  %v5574 = vsel %vm338, %v5548, -inf
  %5575 = vmax.xlane.f32.xlu0 %v5574
  %v5576 = vpop.xlane.xlu0 %5575
  %v5577 = vsel %vm338, %v5551, -inf
  %5578 = vmax.xlane.f32.xlu0 %v5577
  %v5579 = vpop.xlane.xlu0 %5578
  %v5580 = vsel %vm338, %v5556, -inf
  %5581 = vmax.xlane.f32.xlu0 %v5580
  %v5582 = vpop.xlane.xlu0 %5581
  %v5583 = vsel %vm338, %v5559, -inf
  %5584 = vmax.xlane.f32.xlu0 %v5583
  %v5585 = vpop.xlane.xlu0 %5584
  %v5586 = vsub.f32 %v5532, %v5564
  %v5587 = vsub.f32 %v5535, %v5567
  %v5588 = vsub.f32 %v5540, %v5570
  %v5589 = vsub.f32 %v5543, %v5573
  %v5590 = vsub.f32 %v5548, %v5576
  %v5591 = vsub.f32 %v5551, %v5579
  %v5592 = vsub.f32 %v5556, %v5582
  %v5593 = vsub.f32 %v5559, %v5585
  %v5594 = vmul.f32 %v5586, 1.442695
  %v5595 = vpow.pop %v5594
  %v5596 = vmul.f32 %v5587, 1.442695
  %v5597 = vpow.pop %v5596
  %v5598 = vmul.f32 %v5588, 1.442695
  %v5599 = vpow.pop %v5598
  %v5600 = vmul.f32 %v5589, 1.442695
  %v5601 = vpow.pop %v5600
  %v5602 = vmul.f32 %v5590, 1.442695
  %v5603 = vpow.pop %v5602
  %v5604 = vmul.f32 %v5591, 1.442695
  %v5605 = vpow.pop %v5604
  %v5606 = vmul.f32 %v5592, 1.442695
  %v5607 = vpow.pop %v5606
  %v5608 = vmul.f32 %v5593, 1.442695
  %v5609 = vpow.pop %v5608
  %v5610 = vsel %vm338, %v5595, 0.0
  %5611 = vadd.xlane.f32.xlu0 %v5610
  %v5612 = vpop.xlane.xlu0 %5611
  %v5613 = vsel %vm338, %v5597, 0.0
  %5614 = vadd.xlane.f32.xlu0 %v5613
  %v5615 = vpop.xlane.xlu0 %5614
  %v5616 = vsel %vm338, %v5599, 0.0
  %5617 = vadd.xlane.f32.xlu0 %v5616
  %v5618 = vpop.xlane.xlu0 %5617
  %v5619 = vsel %vm338, %v5601, 0.0
  %5620 = vadd.xlane.f32.xlu0 %v5619
  %v5621 = vpop.xlane.xlu0 %5620
  %v5622 = vsel %vm338, %v5603, 0.0
  %5623 = vadd.xlane.f32.xlu0 %v5622
  %v5624 = vpop.xlane.xlu0 %5623
  %v5625 = vsel %vm338, %v5605, 0.0
  %5626 = vadd.xlane.f32.xlu0 %v5625
  %v5627 = vpop.xlane.xlu0 %5626
  %v5628 = vsel %vm338, %v5607, 0.0
  %5629 = vadd.xlane.f32.xlu0 %v5628
  %v5630 = vpop.xlane.xlu0 %5629
  %v5631 = vsel %vm338, %v5609, 0.0
  %5632 = vadd.xlane.f32.xlu0 %v5631
  %v5633 = vpop.xlane.xlu0 %5632
  %v5634 = vrcp.pop %v5612
  %v5635 = vrcp.pop %v5615
  %v5636 = vrcp.pop %v5618
  %v5637 = vrcp.pop %v5621
  %v5638 = vrcp.pop %v5624
  %v5639 = vrcp.pop %v5627
  %v5640 = vrcp.pop %v5630
  %v5641 = vrcp.pop %v5633
  %v5642 = vmul.f32 %v5595, %v5634
  %v5643 = vmul.f32 %v5597, %v5635
  %v5644 = vmul.f32 %v5599, %v5636
  %v5645 = vmul.f32 %v5601, %v5637
  %v5646 = vmul.f32 %v5603, %v5638
  %v5647 = vmul.f32 %v5605, %v5639
  %v5648 = vmul.f32 %v5607, %v5640
  %v5649 = vmul.f32 %v5609, %v5641
  %v5650 = vpack.c.bf16 %v5643, %v5642
  %v5651 = vpack.c.bf16 %v5645, %v5644
  %v5652 = vpack.c.bf16 %v5647, %v5646
  %v5653 = vpack.c.bf16 %v5649, %v5648
  %5658 = vrot.lane.b32.xlu0 %v4113, 64
  %v5659 = vpop.permute.xlu0 %5658
  %5660 = vrot.lane.b32.xlu0 %v4116, 64
  %v5661 = vpop.permute.xlu0 %5660
  %5662 = vrot.lane.b32.xlu0 %v4119, 64
  %v5663 = vpop.permute.xlu0 %5662
  %5664 = vrot.lane.b32.xlu0 %v4122, 64
  %v5665 = vpop.permute.xlu0 %5664
  %v5671 = vsel %vm338, %v5650, 0
  %v5674 = vsel %vm338, %v5651, 0
  %v5677 = vsel %vm338, %v5652, 0
  %v5680 = vsel %vm338, %v5653, 0
  %5682 = vmatprep.subr.bf16.mxu0 0
  %5683 = vmatpush1.bf16.msra.mxu0 0
  %5684 = vmatprep.subr.bf16.mxu0 0
  %5685 = vmatpush1.bf16.msra.mxu0 0
  %5686 = vmatprep.subr.bf16.mxu0 0
  %5687 = vmatpush1.bf16.msra.mxu0 0
  %5688 = vmatprep.subr.bf16.mxu0 0
  %5689 = vmatpush1.bf16.msra.mxu0 0
  %5690 = vmatprep.subr.bf16.mxu0 0
  %5691 = vmatpush1.bf16.msra.mxu0 %v5665
  %5692 = vmatprep.subr.bf16.mxu0 0
  %5693 = vmatpush1.bf16.msra.mxu0 %v5663
  %5694 = vmatprep.subr.bf16.mxu0 0
  %5695 = vmatpush1.bf16.msra.mxu0 %v5661
  %5696 = vmatprep.subr.bf16.mxu0 0
  %5697 = vmatpush1.bf16.msra.mxu0 %v5659
  %5698 = vmatprep.subr.bf16.mxu0 0
  %5699 = vmatpush2.bf16.msra.mxu0 0
  %5700 = vmatprep.subr.bf16.mxu0 0
  %5701 = vmatpush2.bf16.msra.mxu0 0
  %5702 = vmatprep.subr.bf16.mxu0 0
  %5703 = vmatpush2.bf16.msra.mxu0 0
  %5704 = vmatprep.subr.bf16.mxu0 0
  %5705 = vmatpush2.bf16.msra.mxu0 0
  %5706 = vmatprep.subr.bf16.mxu0 0
  %5707 = vmatpush2.bf16.msra.mxu0 0
  %5708 = vmatprep.subr.bf16.mxu0 0
  %5709 = vmatpush2.bf16.msra.mxu0 0
  %5710 = vmatprep.subr.bf16.mxu0 0
  %5711 = vmatpush2.bf16.msra.mxu0 0
  %5712 = vmatprep.subr.bf16.mxu0 0
  %5713 = vmatpush2.bf16.msra.mxu0 0
  %5714 = vmatprep.mubr.bf16.mxu0 0
  %5715 = vmatmul.mubr.bf16.gmra.mxu0 %v5671
  %v5716 = vpop.f32.mrf.mxu0
  %v5717 = vadd.f32 0.0, %v5716
  %v5718 = vpop.f32.mrf.mxu0
  %v5719 = vpop.f32.mrf.mxu0
  %v5720 = vadd.f32 0.0, %v5719
  %v5721 = vpop.f32.mrf.mxu0
  %5722 = vmatprep.mubr.bf16.mxu0 0
  %5723 = vmatmul.mubr.bf16.gmra.mxu0 %v5674
  %v5724 = vpop.f32.mrf.mxu0
  %v5725 = vadd.f32 0.0, %v5724
  %v5726 = vpop.f32.mrf.mxu0
  %v5727 = vpop.f32.mrf.mxu0
  %v5728 = vadd.f32 0.0, %v5727
  %v5729 = vpop.f32.mrf.mxu0
  %5730 = vmatprep.mubr.bf16.mxu0 0
  %5731 = vmatmul.mubr.bf16.gmra.mxu0 %v5677
  %v5732 = vpop.f32.mrf.mxu0
  %v5733 = vadd.f32 0.0, %v5732
  %v5734 = vpop.f32.mrf.mxu0
  %v5735 = vpop.f32.mrf.mxu0
  %v5736 = vadd.f32 0.0, %v5735
  %v5737 = vpop.f32.mrf.mxu0
  %5738 = vmatprep.mubr.bf16.mxu0 0
  %5739 = vmatmul.mubr.bf16.gmra.mxu0 %v5680
  %v5740 = vpop.f32.mrf.mxu0
  %v5741 = vadd.f32 0.0, %v5740
  %v5742 = vpop.f32.mrf.mxu0
  %v5743 = vpop.f32.mrf.mxu0
  %v5744 = vadd.f32 0.0, %v5743
  %v5745 = vpop.f32.mrf.mxu0
  %5746 = vdwg.mxu0
  %v5748 = vsel %vm338, %v5453, 0
  %v5751 = vsel %vm338, %v5454, 0
  %v5754 = vsel %vm338, %v5455, 0
  %v5757 = vsel %vm338, %v5456, 0
  %5759 = vmatprep.subr.bf16.mxu0 0
  %5760 = vmatpush1.bf16.msra.mxu0 0
  %5761 = vmatprep.subr.bf16.mxu0 0
  %5762 = vmatpush1.bf16.msra.mxu0 0
  %5763 = vmatprep.subr.bf16.mxu0 0
  %5764 = vmatpush1.bf16.msra.mxu0 0
  %5765 = vmatprep.subr.bf16.mxu0 0
  %5766 = vmatpush1.bf16.msra.mxu0 0
  %5767 = vmatprep.subr.bf16.mxu0 0
  %5768 = vmatpush1.bf16.msra.mxu0 %v4122
  %5769 = vmatprep.subr.bf16.mxu0 0
  %5770 = vmatpush1.bf16.msra.mxu0 %v4119
  %5771 = vmatprep.subr.bf16.mxu0 0
  %5772 = vmatpush1.bf16.msra.mxu0 %v4116
  %5773 = vmatprep.subr.bf16.mxu0 0
  %5774 = vmatpush1.bf16.msra.mxu0 %v4113
  %5775 = vmatprep.subr.bf16.mxu0 0
  %5776 = vmatpush2.bf16.msra.mxu0 0
  %5777 = vmatprep.subr.bf16.mxu0 0
  %5778 = vmatpush2.bf16.msra.mxu0 0
  %5779 = vmatprep.subr.bf16.mxu0 0
  %5780 = vmatpush2.bf16.msra.mxu0 0
  %5781 = vmatprep.subr.bf16.mxu0 0
  %5782 = vmatpush2.bf16.msra.mxu0 0
  %5783 = vmatprep.subr.bf16.mxu0 0
  %5784 = vmatpush2.bf16.msra.mxu0 0
  %5785 = vmatprep.subr.bf16.mxu0 0
  %5786 = vmatpush2.bf16.msra.mxu0 0
  %5787 = vmatprep.subr.bf16.mxu0 0
  %5788 = vmatpush2.bf16.msra.mxu0 0
  %5789 = vmatprep.subr.bf16.mxu0 0
  %5790 = vmatpush2.bf16.msra.mxu0 0
  %5791 = vmatprep.mubr.bf16.mxu0 0
  %5792 = vmatmul.mubr.bf16.gmra.mxu0 %v5748
  %v5793 = vpop.f32.mrf.mxu0
  %v5794 = vadd.f32 %v5717, %v5793
  %v5795 = vpop.f32.mrf.mxu0
  %v5796 = vpop.f32.mrf.mxu0
  %v5797 = vadd.f32 %v5720, %v5796
  %v5798 = vpop.f32.mrf.mxu0
  %5799 = vmatprep.mubr.bf16.mxu0 0
  %5800 = vmatmul.mubr.bf16.gmra.mxu0 %v5751
  %v5801 = vpop.f32.mrf.mxu0
  %v5802 = vadd.f32 %v5725, %v5801
  %v5803 = vpop.f32.mrf.mxu0
  %v5804 = vpop.f32.mrf.mxu0
  %v5805 = vadd.f32 %v5728, %v5804
  %v5806 = vpop.f32.mrf.mxu0
  %5807 = vmatprep.mubr.bf16.mxu0 0
  %5808 = vmatmul.mubr.bf16.gmra.mxu0 %v5754
  %v5809 = vpop.f32.mrf.mxu0
  %v5810 = vadd.f32 %v5733, %v5809
  %v5811 = vpop.f32.mrf.mxu0
  %v5812 = vpop.f32.mrf.mxu0
  %v5813 = vadd.f32 %v5736, %v5812
  %v5814 = vpop.f32.mrf.mxu0
  %5815 = vmatprep.mubr.bf16.mxu0 0
  %5816 = vmatmul.mubr.bf16.gmra.mxu0 %v5757
  %v5817 = vpop.f32.mrf.mxu0
  %v5818 = vadd.f32 %v5741, %v5817
  %v5819 = vpop.f32.mrf.mxu0
  %v5820 = vpop.f32.mrf.mxu0
  %v5821 = vadd.f32 %v5744, %v5820
  %v5822 = vpop.f32.mrf.mxu0
  %5823 = vdwg.mxu0
  %5824 = vrot.lane.b32.xlu0 %v4112, 96
  %v5825 = vpop.permute.xlu0 %5824
  %5826 = vrot.lane.b32.xlu0 %v4115, 96
  %v5827 = vpop.permute.xlu0 %5826
  %5828 = vrot.lane.b32.xlu0 %v4118, 96
  %v5829 = vpop.permute.xlu0 %5828
  %5830 = vrot.lane.b32.xlu0 %v4121, 96
  %v5831 = vpop.permute.xlu0 %5830
  %5832 = vrot.lane.b32.xlu0 %v4112, 32
  %v5833 = vpop.permute.xlu0 %5832
  %5834 = vrot.lane.b32.xlu0 %v4115, 32
  %v5835 = vpop.permute.xlu0 %5834
  %5836 = vrot.lane.b32.xlu0 %v4118, 32
  %v5837 = vpop.permute.xlu0 %5836
  %5838 = vrot.lane.b32.xlu0 %v4121, 32
  %v5839 = vpop.permute.xlu0 %5838
  %v5841 = vsel %vm104, %v5825, 0
  %v5844 = vsel %vm104, %v5827, 0
  %v5847 = vsel %vm104, %v5829, 0
  %v5850 = vsel %vm104, %v5831, 0
  %v5853 = vsel %vm104, %v5833, 0
  %v5856 = vsel %vm104, %v5835, 0
  %v5859 = vsel %vm104, %v5837, 0
  %v5862 = vsel %vm104, %v5839, 0
  %5864 = vmatprep.subr.bf16.mxu0 0
  %5865 = vmatpush1.bf16.xpose.msra.mxu0 0
  %5866 = vmatprep.subr.bf16.mxu0 0
  %5867 = vmatpush1.bf16.xpose.msra.mxu0 0
  %5868 = vmatprep.subr.bf16.mxu0 0
  %5869 = vmatpush1.bf16.xpose.msra.mxu0 0
  %5870 = vmatprep.subr.bf16.mxu0 0
  %5871 = vmatpush1.bf16.xpose.msra.mxu0 0
  %5872 = vmatprep.subr.bf16.mxu0 0
  %5873 = vmatpush1.bf16.xpose.msra.mxu0 %v5862
  %5874 = vmatprep.subr.bf16.mxu0 0
  %5875 = vmatpush1.bf16.xpose.msra.mxu0 %v5859
  %5876 = vmatprep.subr.bf16.mxu0 0
  %5877 = vmatpush1.bf16.xpose.msra.mxu0 %v5856
  %5878 = vmatprep.subr.bf16.mxu0 0
  %5879 = vmatpush1.bf16.xpose.msra.mxu0 %v5853
  %5880 = vmatprep.subr.bf16.mxu0 0
  %5881 = vmatpush2.bf16.xpose.msra.mxu0 0
  %5882 = vmatprep.subr.bf16.mxu0 0
  %5883 = vmatpush2.bf16.xpose.msra.mxu0 0
  %5884 = vmatprep.subr.bf16.mxu0 0
  %5885 = vmatpush2.bf16.xpose.msra.mxu0 0
  %5886 = vmatprep.subr.bf16.mxu0 0
  %5887 = vmatpush2.bf16.xpose.msra.mxu0 0
  %5888 = vmatprep.subr.bf16.mxu0 0
  %5889 = vmatpush2.bf16.xpose.msra.mxu0 0
  %5890 = vmatprep.subr.bf16.mxu0 0
  %5891 = vmatpush2.bf16.xpose.msra.mxu0 0
  %5892 = vmatprep.subr.bf16.mxu0 0
  %5893 = vmatpush2.bf16.xpose.msra.mxu0 0
  %5894 = vmatprep.subr.bf16.mxu0 0
  %5895 = vmatpush2.bf16.xpose.msra.mxu0 0
  %5896 = vmatprep.mubr.bf16.mxu0 0
  %5897 = vmatmul.mubr.bf16.gmra.mxu0 %v5841
  %v5898 = vpop.f32.mrf.mxu0
  %v5899 = vadd.f32 %v31, %v5898
  %v5900 = vpop.f32.mrf.mxu0
  %v5901 = vpop.f32.mrf.mxu0
  %v5902 = vadd.f32 %v31, %v5901
  %v5903 = vpop.f32.mrf.mxu0
  %5904 = vmatprep.mubr.bf16.mxu0 0
  %5905 = vmatmul.mubr.bf16.gmra.mxu0 %v5844
  %v5906 = vpop.f32.mrf.mxu0
  %v5907 = vadd.f32 %v31, %v5906
  %v5908 = vpop.f32.mrf.mxu0
  %v5909 = vpop.f32.mrf.mxu0
  %v5910 = vadd.f32 %v31, %v5909
  %v5911 = vpop.f32.mrf.mxu0
  %5912 = vmatprep.mubr.bf16.mxu0 0
  %5913 = vmatmul.mubr.bf16.gmra.mxu0 %v5847
  %v5914 = vpop.f32.mrf.mxu0
  %v5915 = vadd.f32 %v31, %v5914
  %v5916 = vpop.f32.mrf.mxu0
  %v5917 = vpop.f32.mrf.mxu0
  %v5918 = vadd.f32 %v31, %v5917
  %v5919 = vpop.f32.mrf.mxu0
  %5920 = vmatprep.mubr.bf16.mxu0 0
  %5921 = vmatmul.mubr.bf16.gmra.mxu0 %v5850
  %v5922 = vpop.f32.mrf.mxu0
  %v5923 = vadd.f32 %v31, %v5922
  %v5924 = vpop.f32.mrf.mxu0
  %v5925 = vpop.f32.mrf.mxu0
  %v5926 = vadd.f32 %v31, %v5925
  %v5927 = vpop.f32.mrf.mxu0
  %5928 = vdwg.mxu0
  %v5929 = vsel %vm338, %v5899, -inf
  %5930 = vmax.xlane.f32.xlu0 %v5929
  %v5931 = vpop.xlane.xlu0 %5930
  %v5932 = vsel %vm338, %v5902, -inf
  %5933 = vmax.xlane.f32.xlu0 %v5932
  %v5934 = vpop.xlane.xlu0 %5933
  %v5935 = vsel %vm338, %v5907, -inf
  %5936 = vmax.xlane.f32.xlu0 %v5935
  %v5937 = vpop.xlane.xlu0 %5936
  %v5938 = vsel %vm338, %v5910, -inf
  %5939 = vmax.xlane.f32.xlu0 %v5938
  %v5940 = vpop.xlane.xlu0 %5939
  %v5941 = vsel %vm338, %v5915, -inf
  %5942 = vmax.xlane.f32.xlu0 %v5941
  %v5943 = vpop.xlane.xlu0 %5942
  %v5944 = vsel %vm338, %v5918, -inf
  %5945 = vmax.xlane.f32.xlu0 %v5944
  %v5946 = vpop.xlane.xlu0 %5945
  %v5947 = vsel %vm338, %v5923, -inf
  %5948 = vmax.xlane.f32.xlu0 %v5947
  %v5949 = vpop.xlane.xlu0 %5948
  %v5950 = vsel %vm338, %v5926, -inf
  %5951 = vmax.xlane.f32.xlu0 %v5950
  %v5952 = vpop.xlane.xlu0 %5951
  %v5953 = vsub.f32 %v5899, %v5931
  %v5954 = vsub.f32 %v5902, %v5934
  %v5955 = vsub.f32 %v5907, %v5937
  %v5956 = vsub.f32 %v5910, %v5940
  %v5957 = vsub.f32 %v5915, %v5943
  %v5958 = vsub.f32 %v5918, %v5946
  %v5959 = vsub.f32 %v5923, %v5949
  %v5960 = vsub.f32 %v5926, %v5952
  %v5961 = vmul.f32 %v5953, 1.442695
  %v5962 = vpow.pop %v5961
  %v5963 = vmul.f32 %v5954, 1.442695
  %v5964 = vpow.pop %v5963
  %v5965 = vmul.f32 %v5955, 1.442695
  %v5966 = vpow.pop %v5965
  %v5967 = vmul.f32 %v5956, 1.442695
  %v5968 = vpow.pop %v5967
  %v5969 = vmul.f32 %v5957, 1.442695
  %v5970 = vpow.pop %v5969
  %v5971 = vmul.f32 %v5958, 1.442695
  %v5972 = vpow.pop %v5971
  %v5973 = vmul.f32 %v5959, 1.442695
  %v5974 = vpow.pop %v5973
  %v5975 = vmul.f32 %v5960, 1.442695
  %v5976 = vpow.pop %v5975
  %v5977 = vsel %vm338, %v5962, 0.0
  %5978 = vadd.xlane.f32.xlu0 %v5977
  %v5979 = vpop.xlane.xlu0 %5978
  %v5980 = vsel %vm338, %v5964, 0.0
  %5981 = vadd.xlane.f32.xlu0 %v5980
  %v5982 = vpop.xlane.xlu0 %5981
  %v5983 = vsel %vm338, %v5966, 0.0
  %5984 = vadd.xlane.f32.xlu0 %v5983
  %v5985 = vpop.xlane.xlu0 %5984
  %v5986 = vsel %vm338, %v5968, 0.0
  %5987 = vadd.xlane.f32.xlu0 %v5986
  %v5988 = vpop.xlane.xlu0 %5987
  %v5989 = vsel %vm338, %v5970, 0.0
  %5990 = vadd.xlane.f32.xlu0 %v5989
  %v5991 = vpop.xlane.xlu0 %5990
  %v5992 = vsel %vm338, %v5972, 0.0
  %5993 = vadd.xlane.f32.xlu0 %v5992
  %v5994 = vpop.xlane.xlu0 %5993
  %v5995 = vsel %vm338, %v5974, 0.0
  %5996 = vadd.xlane.f32.xlu0 %v5995
  %v5997 = vpop.xlane.xlu0 %5996
  %v5998 = vsel %vm338, %v5976, 0.0
  %5999 = vadd.xlane.f32.xlu0 %v5998
  %v6000 = vpop.xlane.xlu0 %5999
  %v6001 = vrcp.pop %v5979
  %v6002 = vrcp.pop %v5982
  %v6003 = vrcp.pop %v5985
  %v6004 = vrcp.pop %v5988
  %v6005 = vrcp.pop %v5991
  %v6006 = vrcp.pop %v5994
  %v6007 = vrcp.pop %v5997
  %v6008 = vrcp.pop %v6000
  %v6009 = vmul.f32 %v5962, %v6001
  %v6010 = vmul.f32 %v5964, %v6002
  %v6011 = vmul.f32 %v5966, %v6003
  %v6012 = vmul.f32 %v5968, %v6004
  %v6013 = vmul.f32 %v5970, %v6005
  %v6014 = vmul.f32 %v5972, %v6006
  %v6015 = vmul.f32 %v5974, %v6007
  %v6016 = vmul.f32 %v5976, %v6008
  %v6017 = vpack.c.bf16 %v6010, %v6009
  %v6018 = vpack.c.bf16 %v6012, %v6011
  %v6019 = vpack.c.bf16 %v6014, %v6013
  %v6020 = vpack.c.bf16 %v6016, %v6015
  %v6022 = vsel %vm338, %v6017, 0
  %v6025 = vsel %vm338, %v6018, 0
  %v6028 = vsel %vm338, %v6019, 0
  %v6031 = vsel %vm338, %v6020, 0
  %6033 = vmatprep.subr.bf16.mxu0 0
  %6034 = vmatpush1.bf16.msra.mxu0 0
  %6035 = vmatprep.subr.bf16.mxu0 0
  %6036 = vmatpush1.bf16.msra.mxu0 0
  %6037 = vmatprep.subr.bf16.mxu0 0
  %6038 = vmatpush1.bf16.msra.mxu0 0
  %6039 = vmatprep.subr.bf16.mxu0 0
  %6040 = vmatpush1.bf16.msra.mxu0 0
  %6041 = vmatprep.subr.bf16.mxu0 0
  %6042 = vmatpush1.bf16.msra.mxu0 %v4123
  %6043 = vmatprep.subr.bf16.mxu0 0
  %6044 = vmatpush1.bf16.msra.mxu0 %v4120
  %6045 = vmatprep.subr.bf16.mxu0 0
  %6046 = vmatpush1.bf16.msra.mxu0 %v4117
  %6047 = vmatprep.subr.bf16.mxu0 0
  %6048 = vmatpush1.bf16.msra.mxu0 %v4114
  %6049 = vmatprep.subr.bf16.mxu0 0
  %6050 = vmatpush2.bf16.msra.mxu0 0
  %6051 = vmatprep.subr.bf16.mxu0 0
  %6052 = vmatpush2.bf16.msra.mxu0 0
  %6053 = vmatprep.subr.bf16.mxu0 0
  %6054 = vmatpush2.bf16.msra.mxu0 0
  %6055 = vmatprep.subr.bf16.mxu0 0
  %6056 = vmatpush2.bf16.msra.mxu0 0
  %6057 = vmatprep.subr.bf16.mxu0 0
  %6058 = vmatpush2.bf16.msra.mxu0 0
  %6059 = vmatprep.subr.bf16.mxu0 0
  %6060 = vmatpush2.bf16.msra.mxu0 0
  %6061 = vmatprep.subr.bf16.mxu0 0
  %6062 = vmatpush2.bf16.msra.mxu0 0
  %6063 = vmatprep.subr.bf16.mxu0 0
  %6064 = vmatpush2.bf16.msra.mxu0 0
  %6065 = vmatprep.mubr.bf16.mxu0 0
  %6066 = vmatmul.mubr.bf16.gmra.mxu0 %v6022
  %v6067 = vpop.f32.mrf.mxu0
  %v6068 = vadd.f32 0.0, %v6067
  %v6069 = vpop.f32.mrf.mxu0
  %v6070 = vpop.f32.mrf.mxu0
  %v6071 = vadd.f32 0.0, %v6070
  %v6072 = vpop.f32.mrf.mxu0
  %6073 = vmatprep.mubr.bf16.mxu0 0
  %6074 = vmatmul.mubr.bf16.gmra.mxu0 %v6025
  %v6075 = vpop.f32.mrf.mxu0
  %v6076 = vadd.f32 0.0, %v6075
  %v6077 = vpop.f32.mrf.mxu0
  %v6078 = vpop.f32.mrf.mxu0
  %v6079 = vadd.f32 0.0, %v6078
  %v6080 = vpop.f32.mrf.mxu0
  %6081 = vmatprep.mubr.bf16.mxu0 0
  %6082 = vmatmul.mubr.bf16.gmra.mxu0 %v6028
  %v6083 = vpop.f32.mrf.mxu0
  %v6084 = vadd.f32 0.0, %v6083
  %v6085 = vpop.f32.mrf.mxu0
  %v6086 = vpop.f32.mrf.mxu0
  %v6087 = vadd.f32 0.0, %v6086
  %v6088 = vpop.f32.mrf.mxu0
  %6089 = vmatprep.mubr.bf16.mxu0 0
  %6090 = vmatmul.mubr.bf16.gmra.mxu0 %v6031
  %v6091 = vpop.f32.mrf.mxu0
  %v6092 = vadd.f32 0.0, %v6091
  %v6093 = vpop.f32.mrf.mxu0
  %v6094 = vpop.f32.mrf.mxu0
  %v6095 = vadd.f32 0.0, %v6094
  %v6096 = vpop.f32.mrf.mxu0
  %6097 = vdwg.mxu0
  %v6098 = vadd.f32 %v5794, %v6068
  %v6099 = vadd.f32 %v5797, %v6071
  %v6100 = vadd.f32 %v5802, %v6076
  %v6101 = vadd.f32 %v5805, %v6079
  %v6102 = vadd.f32 %v5810, %v6084
  %v6103 = vadd.f32 %v5813, %v6087
  %v6104 = vadd.f32 %v5818, %v6092
  %v6105 = vadd.f32 %v5821, %v6095
  %6106 = vrot.lane.b32.xlu0 %v4112, 80
  %v6107 = vpop.permute.xlu0 %6106
  %6108 = vrot.lane.b32.xlu0 %v4115, 80
  %v6109 = vpop.permute.xlu0 %6108
  %6110 = vrot.lane.b32.xlu0 %v4118, 80
  %v6111 = vpop.permute.xlu0 %6110
  %6112 = vrot.lane.b32.xlu0 %v4121, 80
  %v6113 = vpop.permute.xlu0 %6112
  %6114 = vrot.lane.b32.xlu0 %v4112, 16
  %v6115 = vpop.permute.xlu0 %6114
  %6116 = vrot.lane.b32.xlu0 %v4115, 16
  %v6117 = vpop.permute.xlu0 %6116
  %6118 = vrot.lane.b32.xlu0 %v4118, 16
  %v6119 = vpop.permute.xlu0 %6118
  %6120 = vrot.lane.b32.xlu0 %v4121, 16
  %v6121 = vpop.permute.xlu0 %6120
  %v6123 = vsel %vm104, %v6107, 0
  %v6126 = vsel %vm104, %v6109, 0
  %v6129 = vsel %vm104, %v6111, 0
  %v6132 = vsel %vm104, %v6113, 0
  %v6135 = vsel %vm104, %v6115, 0
  %v6138 = vsel %vm104, %v6117, 0
  %v6141 = vsel %vm104, %v6119, 0
  %v6144 = vsel %vm104, %v6121, 0
  %6146 = vmatprep.subr.bf16.mxu0 0
  %6147 = vmatpush1.bf16.xpose.msra.mxu0 0
  %6148 = vmatprep.subr.bf16.mxu0 0
  %6149 = vmatpush1.bf16.xpose.msra.mxu0 0
  %6150 = vmatprep.subr.bf16.mxu0 0
  %6151 = vmatpush1.bf16.xpose.msra.mxu0 0
  %6152 = vmatprep.subr.bf16.mxu0 0
  %6153 = vmatpush1.bf16.xpose.msra.mxu0 0
  %6154 = vmatprep.subr.bf16.mxu0 0
  %6155 = vmatpush1.bf16.xpose.msra.mxu0 %v6144
  %6156 = vmatprep.subr.bf16.mxu0 0
  %6157 = vmatpush1.bf16.xpose.msra.mxu0 %v6141
  %6158 = vmatprep.subr.bf16.mxu0 0
  %6159 = vmatpush1.bf16.xpose.msra.mxu0 %v6138
  %6160 = vmatprep.subr.bf16.mxu0 0
  %6161 = vmatpush1.bf16.xpose.msra.mxu0 %v6135
  %6162 = vmatprep.subr.bf16.mxu0 0
  %6163 = vmatpush2.bf16.xpose.msra.mxu0 0
  %6164 = vmatprep.subr.bf16.mxu0 0
  %6165 = vmatpush2.bf16.xpose.msra.mxu0 0
  %6166 = vmatprep.subr.bf16.mxu0 0
  %6167 = vmatpush2.bf16.xpose.msra.mxu0 0
  %6168 = vmatprep.subr.bf16.mxu0 0
  %6169 = vmatpush2.bf16.xpose.msra.mxu0 0
  %6170 = vmatprep.subr.bf16.mxu0 0
  %6171 = vmatpush2.bf16.xpose.msra.mxu0 0
  %6172 = vmatprep.subr.bf16.mxu0 0
  %6173 = vmatpush2.bf16.xpose.msra.mxu0 0
  %6174 = vmatprep.subr.bf16.mxu0 0
  %6175 = vmatpush2.bf16.xpose.msra.mxu0 0
  %6176 = vmatprep.subr.bf16.mxu0 0
  %6177 = vmatpush2.bf16.xpose.msra.mxu0 0
  %6178 = vmatprep.mubr.bf16.mxu0 0
  %6179 = vmatmul.mubr.bf16.gmra.mxu0 %v6123
  %v6180 = vpop.f32.mrf.mxu0
  %v6181 = vadd.f32 %v31, %v6180
  %v6182 = vpop.f32.mrf.mxu0
  %v6183 = vpop.f32.mrf.mxu0
  %v6184 = vadd.f32 %v31, %v6183
  %v6185 = vpop.f32.mrf.mxu0
  %6186 = vmatprep.mubr.bf16.mxu0 0
  %6187 = vmatmul.mubr.bf16.gmra.mxu0 %v6126
  %v6188 = vpop.f32.mrf.mxu0
  %v6189 = vadd.f32 %v31, %v6188
  %v6190 = vpop.f32.mrf.mxu0
  %v6191 = vpop.f32.mrf.mxu0
  %v6192 = vadd.f32 %v31, %v6191
  %v6193 = vpop.f32.mrf.mxu0
  %6194 = vmatprep.mubr.bf16.mxu0 0
  %6195 = vmatmul.mubr.bf16.gmra.mxu0 %v6129
  %v6196 = vpop.f32.mrf.mxu0
  %v6197 = vadd.f32 %v31, %v6196
  %v6198 = vpop.f32.mrf.mxu0
  %v6199 = vpop.f32.mrf.mxu0
  %v6200 = vadd.f32 %v31, %v6199
  %v6201 = vpop.f32.mrf.mxu0
  %6202 = vmatprep.mubr.bf16.mxu0 0
  %6203 = vmatmul.mubr.bf16.gmra.mxu0 %v6132
  %v6204 = vpop.f32.mrf.mxu0
  %v6205 = vadd.f32 %v31, %v6204
  %v6206 = vpop.f32.mrf.mxu0
  %v6207 = vpop.f32.mrf.mxu0
  %v6208 = vadd.f32 %v31, %v6207
  %v6209 = vpop.f32.mrf.mxu0
  %6210 = vdwg.mxu0
  %v6211 = vsel %vm338, %v6181, -inf
  %6212 = vmax.xlane.f32.xlu0 %v6211
  %v6213 = vpop.xlane.xlu0 %6212
  %v6214 = vsel %vm338, %v6184, -inf
  %6215 = vmax.xlane.f32.xlu0 %v6214
  %v6216 = vpop.xlane.xlu0 %6215
  %v6217 = vsel %vm338, %v6189, -inf
  %6218 = vmax.xlane.f32.xlu0 %v6217
  %v6219 = vpop.xlane.xlu0 %6218
  %v6220 = vsel %vm338, %v6192, -inf
  %6221 = vmax.xlane.f32.xlu0 %v6220
  %v6222 = vpop.xlane.xlu0 %6221
  %v6223 = vsel %vm338, %v6197, -inf
  %6224 = vmax.xlane.f32.xlu0 %v6223
  %v6225 = vpop.xlane.xlu0 %6224
  %v6226 = vsel %vm338, %v6200, -inf
  %6227 = vmax.xlane.f32.xlu0 %v6226
  %v6228 = vpop.xlane.xlu0 %6227
  %v6229 = vsel %vm338, %v6205, -inf
  %6230 = vmax.xlane.f32.xlu0 %v6229
  %v6231 = vpop.xlane.xlu0 %6230
  %v6232 = vsel %vm338, %v6208, -inf
  %6233 = vmax.xlane.f32.xlu0 %v6232
  %v6234 = vpop.xlane.xlu0 %6233
  %v6235 = vsub.f32 %v6181, %v6213
  %v6236 = vsub.f32 %v6184, %v6216
  %v6237 = vsub.f32 %v6189, %v6219
  %v6238 = vsub.f32 %v6192, %v6222
  %v6239 = vsub.f32 %v6197, %v6225
  %v6240 = vsub.f32 %v6200, %v6228
  %v6241 = vsub.f32 %v6205, %v6231
  %v6242 = vsub.f32 %v6208, %v6234
  %v6243 = vmul.f32 %v6235, 1.442695
  %v6244 = vpow.pop %v6243
  %v6245 = vmul.f32 %v6236, 1.442695
  %v6246 = vpow.pop %v6245
  %v6247 = vmul.f32 %v6237, 1.442695
  %v6248 = vpow.pop %v6247
  %v6249 = vmul.f32 %v6238, 1.442695
  %v6250 = vpow.pop %v6249
  %v6251 = vmul.f32 %v6239, 1.442695
  %v6252 = vpow.pop %v6251
  %v6253 = vmul.f32 %v6240, 1.442695
  %v6254 = vpow.pop %v6253
  %v6255 = vmul.f32 %v6241, 1.442695
  %v6256 = vpow.pop %v6255
  %v6257 = vmul.f32 %v6242, 1.442695
  %v6258 = vpow.pop %v6257
  %v6259 = vsel %vm338, %v6244, 0.0
  %6260 = vadd.xlane.f32.xlu0 %v6259
  %v6261 = vpop.xlane.xlu0 %6260
  %v6262 = vsel %vm338, %v6246, 0.0
  %6263 = vadd.xlane.f32.xlu0 %v6262
  %v6264 = vpop.xlane.xlu0 %6263
  %v6265 = vsel %vm338, %v6248, 0.0
  %6266 = vadd.xlane.f32.xlu0 %v6265
  %v6267 = vpop.xlane.xlu0 %6266
  %v6268 = vsel %vm338, %v6250, 0.0
  %6269 = vadd.xlane.f32.xlu0 %v6268
  %v6270 = vpop.xlane.xlu0 %6269
  %v6271 = vsel %vm338, %v6252, 0.0
  %6272 = vadd.xlane.f32.xlu0 %v6271
  %v6273 = vpop.xlane.xlu0 %6272
  %v6274 = vsel %vm338, %v6254, 0.0
  %6275 = vadd.xlane.f32.xlu0 %v6274
  %v6276 = vpop.xlane.xlu0 %6275
  %v6277 = vsel %vm338, %v6256, 0.0
  %6278 = vadd.xlane.f32.xlu0 %v6277
  %v6279 = vpop.xlane.xlu0 %6278
  %v6280 = vsel %vm338, %v6258, 0.0
  %6281 = vadd.xlane.f32.xlu0 %v6280
  %v6282 = vpop.xlane.xlu0 %6281
  %v6283 = vrcp.pop %v6261
  %v6284 = vrcp.pop %v6264
  %v6285 = vrcp.pop %v6267
  %v6286 = vrcp.pop %v6270
  %v6287 = vrcp.pop %v6273
  %v6288 = vrcp.pop %v6276
  %v6289 = vrcp.pop %v6279
  %v6290 = vrcp.pop %v6282
  %v6291 = vmul.f32 %v6244, %v6283
  %v6292 = vmul.f32 %v6246, %v6284
  %v6293 = vmul.f32 %v6248, %v6285
  %v6294 = vmul.f32 %v6250, %v6286
  %v6295 = vmul.f32 %v6252, %v6287
  %v6296 = vmul.f32 %v6254, %v6288
  %v6297 = vmul.f32 %v6256, %v6289
  %v6298 = vmul.f32 %v6258, %v6290
  %v6299 = vpack.c.bf16 %v6292, %v6291
  %v6300 = vpack.c.bf16 %v6294, %v6293
  %v6301 = vpack.c.bf16 %v6296, %v6295
  %v6302 = vpack.c.bf16 %v6298, %v6297
  %6307 = vrot.lane.b32.xlu0 %v4114, 64
  %v6308 = vpop.permute.xlu0 %6307
  %6309 = vrot.lane.b32.xlu0 %v4117, 64
  %v6310 = vpop.permute.xlu0 %6309
  %6311 = vrot.lane.b32.xlu0 %v4120, 64
  %v6312 = vpop.permute.xlu0 %6311
  %6313 = vrot.lane.b32.xlu0 %v4123, 64
  %v6314 = vpop.permute.xlu0 %6313
  %v6320 = vsel %vm338, %v6299, 0
  %v6323 = vsel %vm338, %v6300, 0
  %v6326 = vsel %vm338, %v6301, 0
  %v6329 = vsel %vm338, %v6302, 0
  %6331 = vmatprep.subr.bf16.mxu0 0
  %6332 = vmatpush1.bf16.msra.mxu0 0
  %6333 = vmatprep.subr.bf16.mxu0 0
  %6334 = vmatpush1.bf16.msra.mxu0 0
  %6335 = vmatprep.subr.bf16.mxu0 0
  %6336 = vmatpush1.bf16.msra.mxu0 0
  %6337 = vmatprep.subr.bf16.mxu0 0
  %6338 = vmatpush1.bf16.msra.mxu0 0
  %6339 = vmatprep.subr.bf16.mxu0 0
  %6340 = vmatpush1.bf16.msra.mxu0 %v6314
  %6341 = vmatprep.subr.bf16.mxu0 0
  %6342 = vmatpush1.bf16.msra.mxu0 %v6312
  %6343 = vmatprep.subr.bf16.mxu0 0
  %6344 = vmatpush1.bf16.msra.mxu0 %v6310
  %6345 = vmatprep.subr.bf16.mxu0 0
  %6346 = vmatpush1.bf16.msra.mxu0 %v6308
  %6347 = vmatprep.subr.bf16.mxu0 0
  %6348 = vmatpush2.bf16.msra.mxu0 0
  %6349 = vmatprep.subr.bf16.mxu0 0
  %6350 = vmatpush2.bf16.msra.mxu0 0
  %6351 = vmatprep.subr.bf16.mxu0 0
  %6352 = vmatpush2.bf16.msra.mxu0 0
  %6353 = vmatprep.subr.bf16.mxu0 0
  %6354 = vmatpush2.bf16.msra.mxu0 0
  %6355 = vmatprep.subr.bf16.mxu0 0
  %6356 = vmatpush2.bf16.msra.mxu0 0
  %6357 = vmatprep.subr.bf16.mxu0 0
  %6358 = vmatpush2.bf16.msra.mxu0 0
  %6359 = vmatprep.subr.bf16.mxu0 0
  %6360 = vmatpush2.bf16.msra.mxu0 0
  %6361 = vmatprep.subr.bf16.mxu0 0
  %6362 = vmatpush2.bf16.msra.mxu0 0
  %6363 = vmatprep.mubr.bf16.mxu0 0
  %6364 = vmatmul.mubr.bf16.gmra.mxu0 %v6320
  %v6365 = vpop.f32.mrf.mxu0
  %v6366 = vadd.f32 0.0, %v6365
  %v6367 = vpop.f32.mrf.mxu0
  %v6368 = vpop.f32.mrf.mxu0
  %v6369 = vadd.f32 0.0, %v6368
  %v6370 = vpop.f32.mrf.mxu0
  %6371 = vmatprep.mubr.bf16.mxu0 0
  %6372 = vmatmul.mubr.bf16.gmra.mxu0 %v6323
  %v6373 = vpop.f32.mrf.mxu0
  %v6374 = vadd.f32 0.0, %v6373
  %v6375 = vpop.f32.mrf.mxu0
  %v6376 = vpop.f32.mrf.mxu0
  %v6377 = vadd.f32 0.0, %v6376
  %v6378 = vpop.f32.mrf.mxu0
  %6379 = vmatprep.mubr.bf16.mxu0 0
  %6380 = vmatmul.mubr.bf16.gmra.mxu0 %v6326
  %v6381 = vpop.f32.mrf.mxu0
  %v6382 = vadd.f32 0.0, %v6381
  %v6383 = vpop.f32.mrf.mxu0
  %v6384 = vpop.f32.mrf.mxu0
  %v6385 = vadd.f32 0.0, %v6384
  %v6386 = vpop.f32.mrf.mxu0
  %6387 = vmatprep.mubr.bf16.mxu0 0
  %6388 = vmatmul.mubr.bf16.gmra.mxu0 %v6329
  %v6389 = vpop.f32.mrf.mxu0
  %v6390 = vadd.f32 0.0, %v6389
  %v6391 = vpop.f32.mrf.mxu0
  %v6392 = vpop.f32.mrf.mxu0
  %v6393 = vadd.f32 0.0, %v6392
  %v6394 = vpop.f32.mrf.mxu0
  %6395 = vdwg.mxu0
  %v6396 = vadd.f32 %v6098, %v6366
  %v6397 = vadd.f32 %v6099, %v6369
  %v6398 = vadd.f32 %v6100, %v6374
  %v6399 = vadd.f32 %v6101, %v6377
  %v6400 = vadd.f32 %v6102, %v6382
  %v6401 = vadd.f32 %v6103, %v6385
  %v6402 = vadd.f32 %v6104, %v6390
  %v6403 = vadd.f32 %v6105, %v6393
  %v6404 = vadd.f32 %v5256, %v3754
  %v6405 = vadd.f32 %v5257, %v3754
  %v6406 = vadd.f32 %v5258, %v3754
  %v6407 = vadd.f32 %v5259, %v3754
  %v6408 = vadd.f32 %v5260, %v3754
  %v6409 = vadd.f32 %v5261, %v3754
  %v6410 = vadd.f32 %v5262, %v3754
  %v6411 = vadd.f32 %v5263, %v3754
  %v6412 = vadd.f32 %v6396, %v3754
  %v6413 = vadd.f32 %v6397, %v3754
  %v6414 = vadd.f32 %v6398, %v3754
  %v6415 = vadd.f32 %v6399, %v3754
  %v6416 = vadd.f32 %v6400, %v3754
  %v6417 = vadd.f32 %v6401, %v3754
  %v6418 = vadd.f32 %v6402, %v3754
  %v6419 = vadd.f32 %v6403, %v3754
  %v6420 = vadd.f32 %v3736, %v6404
  %v6421 = vadd.f32 %v3737, %v6405
  %v6422 = vadd.f32 %v3738, %v6406
  %v6423 = vadd.f32 %v3739, %v6407
  %v6424 = vadd.f32 %v3740, %v6408
  %v6425 = vadd.f32 %v3741, %v6409
  %v6426 = vadd.f32 %v3742, %v6410
  %v6427 = vadd.f32 %v3743, %v6411
  %v6428 = vadd.f32 %v3744, %v6412
  %v6429 = vadd.f32 %v3745, %v6413
  %v6430 = vadd.f32 %v3746, %v6414
  %v6431 = vadd.f32 %v3747, %v6415
  %v6432 = vadd.f32 %v3748, %v6416
  %v6433 = vadd.f32 %v3749, %v6417
  %v6434 = vadd.f32 %v3750, %v6418
  %v6435 = vadd.f32 %v3751, %v6419
  %v6436 = vsel %vm338, %v6420, 0.0
  %6437 = vadd.xlane.f32.xlu0 %v6436
  %v6438 = vpop.xlane.xlu0 %6437
  %v6439 = vsel %vm338, %v6421, 0.0
  %6440 = vadd.xlane.f32.xlu0 %v6439
  %v6441 = vpop.xlane.xlu0 %6440
  %v6442 = vsel %vm338, %v6422, 0.0
  %6443 = vadd.xlane.f32.xlu0 %v6442
  %v6444 = vpop.xlane.xlu0 %6443
  %v6445 = vsel %vm338, %v6423, 0.0
  %6446 = vadd.xlane.f32.xlu0 %v6445
  %v6447 = vpop.xlane.xlu0 %6446
  %v6448 = vsel %vm338, %v6424, 0.0
  %6449 = vadd.xlane.f32.xlu0 %v6448
  %v6450 = vpop.xlane.xlu0 %6449
  %v6451 = vsel %vm338, %v6425, 0.0
  %6452 = vadd.xlane.f32.xlu0 %v6451
  %v6453 = vpop.xlane.xlu0 %6452
  %v6454 = vsel %vm338, %v6426, 0.0
  %6455 = vadd.xlane.f32.xlu0 %v6454
  %v6456 = vpop.xlane.xlu0 %6455
  %v6457 = vsel %vm338, %v6427, 0.0
  %6458 = vadd.xlane.f32.xlu0 %v6457
  %v6459 = vpop.xlane.xlu0 %6458
  %v6460 = vsel %vm338, %v6428, 0.0
  %6461 = vadd.xlane.f32.xlu0 %v6460
  %v6462 = vpop.xlane.xlu0 %6461
  %v6463 = vsel %vm338, %v6429, 0.0
  %6464 = vadd.xlane.f32.xlu0 %v6463
  %v6465 = vpop.xlane.xlu0 %6464
  %v6466 = vsel %vm338, %v6430, 0.0
  %6467 = vadd.xlane.f32.xlu0 %v6466
  %v6468 = vpop.xlane.xlu0 %6467
  %v6469 = vsel %vm338, %v6431, 0.0
  %6470 = vadd.xlane.f32.xlu0 %v6469
  %v6471 = vpop.xlane.xlu0 %6470
  %v6472 = vsel %vm338, %v6432, 0.0
  %6473 = vadd.xlane.f32.xlu0 %v6472
  %v6474 = vpop.xlane.xlu0 %6473
  %v6475 = vsel %vm338, %v6433, 0.0
  %6476 = vadd.xlane.f32.xlu0 %v6475
  %v6477 = vpop.xlane.xlu0 %6476
  %v6478 = vsel %vm338, %v6434, 0.0
  %6479 = vadd.xlane.f32.xlu0 %v6478
  %v6480 = vpop.xlane.xlu0 %6479
  %v6481 = vsel %vm338, %v6435, 0.0
  %6482 = vadd.xlane.f32.xlu0 %v6481
  %v6483 = vpop.xlane.xlu0 %6482
  %v6484 = vmul.f32 %v6438, %v2957
  %v6485 = vmul.f32 %v6441, %v2957
  %v6486 = vmul.f32 %v6444, %v2957
  %v6487 = vmul.f32 %v6447, %v2957
  %v6488 = vmul.f32 %v6450, %v2957
  %v6489 = vmul.f32 %v6453, %v2957
  %v6490 = vmul.f32 %v6456, %v2957
  %v6491 = vmul.f32 %v6459, %v2957
  %v6492 = vmul.f32 %v6462, %v2957
  %v6493 = vmul.f32 %v6465, %v2957
  %v6494 = vmul.f32 %v6468, %v2957
  %v6495 = vmul.f32 %v6471, %v2957
  %v6496 = vmul.f32 %v6474, %v2957
  %v6497 = vmul.f32 %v6477, %v2957
  %v6498 = vmul.f32 %v6480, %v2957
  %v6499 = vmul.f32 %v6483, %v2957
  %v6500 = vsub.f32 %v6420, %v6484
  %v6501 = vsub.f32 %v6421, %v6485
  %v6502 = vsub.f32 %v6422, %v6486
  %v6503 = vsub.f32 %v6423, %v6487
  %v6504 = vsub.f32 %v6424, %v6488
  %v6505 = vsub.f32 %v6425, %v6489
  %v6506 = vsub.f32 %v6426, %v6490
  %v6507 = vsub.f32 %v6427, %v6491
  %v6508 = vsub.f32 %v6428, %v6492
  %v6509 = vsub.f32 %v6429, %v6493
  %v6510 = vsub.f32 %v6430, %v6494
  %v6511 = vsub.f32 %v6431, %v6495
  %v6512 = vsub.f32 %v6432, %v6496
  %v6513 = vsub.f32 %v6433, %v6497
  %v6514 = vsub.f32 %v6434, %v6498
  %v6515 = vsub.f32 %v6435, %v6499
  %v6516 = vmul.f32 %v6500, %v6500
  %v6517 = vmul.f32 %v6501, %v6501
  %v6518 = vmul.f32 %v6502, %v6502
  %v6519 = vmul.f32 %v6503, %v6503
  %v6520 = vmul.f32 %v6504, %v6504
  %v6521 = vmul.f32 %v6505, %v6505
  %v6522 = vmul.f32 %v6506, %v6506
  %v6523 = vmul.f32 %v6507, %v6507
  %v6524 = vmul.f32 %v6508, %v6508
  %v6525 = vmul.f32 %v6509, %v6509
  %v6526 = vmul.f32 %v6510, %v6510
  %v6527 = vmul.f32 %v6511, %v6511
  %v6528 = vmul.f32 %v6512, %v6512
  %v6529 = vmul.f32 %v6513, %v6513
  %v6530 = vmul.f32 %v6514, %v6514
  %v6531 = vmul.f32 %v6515, %v6515
  %v6532 = vsel %vm338, %v6516, 0.0
  %6533 = vadd.xlane.f32.xlu0 %v6532
  %v6534 = vpop.xlane.xlu0 %6533
  %v6535 = vsel %vm338, %v6517, 0.0
  %6536 = vadd.xlane.f32.xlu0 %v6535
  %v6537 = vpop.xlane.xlu0 %6536
  %v6538 = vsel %vm338, %v6518, 0.0
  %6539 = vadd.xlane.f32.xlu0 %v6538
  %v6540 = vpop.xlane.xlu0 %6539
  %v6541 = vsel %vm338, %v6519, 0.0
  %6542 = vadd.xlane.f32.xlu0 %v6541
  %v6543 = vpop.xlane.xlu0 %6542
  %v6544 = vsel %vm338, %v6520, 0.0
  %6545 = vadd.xlane.f32.xlu0 %v6544
  %v6546 = vpop.xlane.xlu0 %6545
  %v6547 = vsel %vm338, %v6521, 0.0
  %6548 = vadd.xlane.f32.xlu0 %v6547
  %v6549 = vpop.xlane.xlu0 %6548
  %v6550 = vsel %vm338, %v6522, 0.0
  %6551 = vadd.xlane.f32.xlu0 %v6550
  %v6552 = vpop.xlane.xlu0 %6551
  %v6553 = vsel %vm338, %v6523, 0.0
  %6554 = vadd.xlane.f32.xlu0 %v6553
  %v6555 = vpop.xlane.xlu0 %6554
  %v6556 = vsel %vm338, %v6524, 0.0
  %6557 = vadd.xlane.f32.xlu0 %v6556
  %v6558 = vpop.xlane.xlu0 %6557
  %v6559 = vsel %vm338, %v6525, 0.0
  %6560 = vadd.xlane.f32.xlu0 %v6559
  %v6561 = vpop.xlane.xlu0 %6560
  %v6562 = vsel %vm338, %v6526, 0.0
  %6563 = vadd.xlane.f32.xlu0 %v6562
  %v6564 = vpop.xlane.xlu0 %6563
  %v6565 = vsel %vm338, %v6527, 0.0
  %6566 = vadd.xlane.f32.xlu0 %v6565
  %v6567 = vpop.xlane.xlu0 %6566
  %v6568 = vsel %vm338, %v6528, 0.0
  %6569 = vadd.xlane.f32.xlu0 %v6568
  %v6570 = vpop.xlane.xlu0 %6569
  %v6571 = vsel %vm338, %v6529, 0.0
  %6572 = vadd.xlane.f32.xlu0 %v6571
  %v6573 = vpop.xlane.xlu0 %6572
  %v6574 = vsel %vm338, %v6530, 0.0
  %6575 = vadd.xlane.f32.xlu0 %v6574
  %v6576 = vpop.xlane.xlu0 %6575
  %v6577 = vsel %vm338, %v6531, 0.0
  %6578 = vadd.xlane.f32.xlu0 %v6577
  %v6579 = vpop.xlane.xlu0 %6578
  %v6580 = vmul.f32 %v6534, %v2957
  %v6581 = vmul.f32 %v6537, %v2957
  %v6582 = vmul.f32 %v6540, %v2957
  %v6583 = vmul.f32 %v6543, %v2957
  %v6584 = vmul.f32 %v6546, %v2957
  %v6585 = vmul.f32 %v6549, %v2957
  %v6586 = vmul.f32 %v6552, %v2957
  %v6587 = vmul.f32 %v6555, %v2957
  %v6588 = vmul.f32 %v6558, %v2957
  %v6589 = vmul.f32 %v6561, %v2957
  %v6590 = vmul.f32 %v6564, %v2957
  %v6591 = vmul.f32 %v6567, %v2957
  %v6592 = vmul.f32 %v6570, %v2957
  %v6593 = vmul.f32 %v6573, %v2957
  %v6594 = vmul.f32 %v6576, %v2957
  %v6595 = vmul.f32 %v6579, %v2957
  %v6596 = vadd.f32 %v6580, 1e-05
  %v6597 = vadd.f32 %v6581, 1e-05
  %v6598 = vadd.f32 %v6582, 1e-05
  %v6599 = vadd.f32 %v6583, 1e-05
  %v6600 = vadd.f32 %v6584, 1e-05
  %v6601 = vadd.f32 %v6585, 1e-05
  %v6602 = vadd.f32 %v6586, 1e-05
  %v6603 = vadd.f32 %v6587, 1e-05
  %v6604 = vadd.f32 %v6588, 1e-05
  %v6605 = vadd.f32 %v6589, 1e-05
  %v6606 = vadd.f32 %v6590, 1e-05
  %v6607 = vadd.f32 %v6591, 1e-05
  %v6608 = vadd.f32 %v6592, 1e-05
  %v6609 = vadd.f32 %v6593, 1e-05
  %v6610 = vadd.f32 %v6594, 1e-05
  %v6611 = vadd.f32 %v6595, 1e-05
  %v6612 = vrsqrt.pop %v6596
  %v6613 = vrsqrt.pop %v6597
  %v6614 = vrsqrt.pop %v6598
  %v6615 = vrsqrt.pop %v6599
  %v6616 = vrsqrt.pop %v6600
  %v6617 = vrsqrt.pop %v6601
  %v6618 = vrsqrt.pop %v6602
  %v6619 = vrsqrt.pop %v6603
  %v6620 = vrsqrt.pop %v6604
  %v6621 = vrsqrt.pop %v6605
  %v6622 = vrsqrt.pop %v6606
  %v6623 = vrsqrt.pop %v6607
  %v6624 = vrsqrt.pop %v6608
  %v6625 = vrsqrt.pop %v6609
  %v6626 = vrsqrt.pop %v6610
  %v6627 = vrsqrt.pop %v6611
  %v6628 = vmul.f32 %v6500, %v6612
  %v6629 = vmul.f32 %v6501, %v6613
  %v6630 = vmul.f32 %v6502, %v6614
  %v6631 = vmul.f32 %v6503, %v6615
  %v6632 = vmul.f32 %v6504, %v6616
  %v6633 = vmul.f32 %v6505, %v6617
  %v6634 = vmul.f32 %v6506, %v6618
  %v6635 = vmul.f32 %v6507, %v6619
  %v6636 = vmul.f32 %v6508, %v6620
  %v6637 = vmul.f32 %v6509, %v6621
  %v6638 = vmul.f32 %v6510, %v6622
  %v6639 = vmul.f32 %v6511, %v6623
  %v6640 = vmul.f32 %v6512, %v6624
  %v6641 = vmul.f32 %v6513, %v6625
  %v6642 = vmul.f32 %v6514, %v6626
  %v6643 = vmul.f32 %v6515, %v6627
  %v6644 = vmul.f32 %v6628, %v3755
  %v6645 = vmul.f32 %v6629, %v3755
  %v6646 = vmul.f32 %v6630, %v3755
  %v6647 = vmul.f32 %v6631, %v3755
  %v6648 = vmul.f32 %v6632, %v3755
  %v6649 = vmul.f32 %v6633, %v3755
  %v6650 = vmul.f32 %v6634, %v3755
  %v6651 = vmul.f32 %v6635, %v3755
  %v6652 = vmul.f32 %v6636, %v3755
  %v6653 = vmul.f32 %v6637, %v3755
  %v6654 = vmul.f32 %v6638, %v3755
  %v6655 = vmul.f32 %v6639, %v3755
  %v6656 = vmul.f32 %v6640, %v3755
  %v6657 = vmul.f32 %v6641, %v3755
  %v6658 = vmul.f32 %v6642, %v3755
  %v6659 = vmul.f32 %v6643, %v3755
  %v6660 = vadd.f32 %v6644, %v3756
  %v6661 = vadd.f32 %v6645, %v3756
  %v6662 = vadd.f32 %v6646, %v3756
  %v6663 = vadd.f32 %v6647, %v3756
  %v6664 = vadd.f32 %v6648, %v3756
  %v6665 = vadd.f32 %v6649, %v3756
  %v6666 = vadd.f32 %v6650, %v3756
  %v6667 = vadd.f32 %v6651, %v3756
  %v6668 = vadd.f32 %v6652, %v3756
  %v6669 = vadd.f32 %v6653, %v3756
  %v6670 = vadd.f32 %v6654, %v3756
  %v6671 = vadd.f32 %v6655, %v3756
  %v6672 = vadd.f32 %v6656, %v3756
  %v6673 = vadd.f32 %v6657, %v3756
  %v6674 = vadd.f32 %v6658, %v3756
  %v6675 = vadd.f32 %v6659, %v3756
  %s6676 = scalar_lea.vmem %s4, 32
  %v6677 = vld [vmem:[%s6676] sm:$0xf]
  %v6678 = vld [vmem:[%s6676 + $0x4] sm:$0xf]
  %v6679 = vld [vmem:[%s6676 + $0x8] sm:$0xf]
  %v6680 = vld [vmem:[%s6676 + $0xc] sm:$0xf]
  %v6681 = vld [vmem:[%s6676 + $0x10] sm:$0xf]
  %v6682 = vld [vmem:[%s6676 + $0x14] sm:$0xf]
  %v6683 = vld [vmem:[%s6676 + $0x18] sm:$0xf]
  %v6684 = vld [vmem:[%s6676 + $0x1c] sm:$0xf]
  %v6685 = vpack.c.bf16 %v6661, %v6660
  %v6686 = vpack.c.bf16 %v6663, %v6662
  %v6687 = vpack.c.bf16 %v6665, %v6664
  %v6688 = vpack.c.bf16 %v6667, %v6666
  %v6689 = vpack.c.bf16 %v6669, %v6668
  %v6690 = vpack.c.bf16 %v6671, %v6670
  %v6691 = vpack.c.bf16 %v6673, %v6672
  %v6692 = vpack.c.bf16 %v6675, %v6674
  %v6701 = vunpack.c.l.b16 %v6677
  %v6702 = vunpack.c.l.b16 %v6678
  %v6703 = vunpack.c.l.b16 %v6679
  %v6704 = vunpack.c.l.b16 %v6680
  %v6705 = vunpack.c.l.b16 %v6681
  %v6706 = vunpack.c.l.b16 %v6682
  %v6707 = vunpack.c.l.b16 %v6683
  %v6708 = vunpack.c.l.b16 %v6684
  %v6709 = vpack.c.b16 %v6702, %v6701
  %v6710 = vpack.c.b16 %v6704, %v6703
  %v6711 = vpack.c.b16 %v6706, %v6705
  %v6712 = vpack.c.b16 %v6708, %v6707
  %v6718 = vsel %vm338, %v6685, 0
  %v6721 = vsel %vm338, %v6686, 0
  %v6724 = vsel %vm338, %v6687, 0
  %v6727 = vsel %vm338, %v6688, 0
  %v6730 = vsel %vm338, %v6689, 0
  %v6733 = vsel %vm338, %v6690, 0
  %v6736 = vsel %vm338, %v6691, 0
  %v6739 = vsel %vm338, %v6692, 0
  %6741 = vmatprep.subr.bf16.mxu0 0
  %6742 = vmatpush1.bf16.msra.mxu0 0
  %6743 = vmatprep.subr.bf16.mxu0 0
  %6744 = vmatpush1.bf16.msra.mxu0 0
  %6745 = vmatprep.subr.bf16.mxu0 0
  %6746 = vmatpush1.bf16.msra.mxu0 0
  %6747 = vmatprep.subr.bf16.mxu0 0
  %6748 = vmatpush1.bf16.msra.mxu0 0
  %6749 = vmatprep.subr.bf16.mxu0 0
  %6750 = vmatpush1.bf16.msra.mxu0 %v6712
  %6751 = vmatprep.subr.bf16.mxu0 0
  %6752 = vmatpush1.bf16.msra.mxu0 %v6711
  %6753 = vmatprep.subr.bf16.mxu0 0
  %6754 = vmatpush1.bf16.msra.mxu0 %v6710
  %6755 = vmatprep.subr.bf16.mxu0 0
  %6756 = vmatpush1.bf16.msra.mxu0 %v6709
  %6757 = vmatprep.subr.bf16.mxu0 0
  %6758 = vmatpush2.bf16.msra.mxu0 0
  %6759 = vmatprep.subr.bf16.mxu0 0
  %6760 = vmatpush2.bf16.msra.mxu0 0
  %6761 = vmatprep.subr.bf16.mxu0 0
  %6762 = vmatpush2.bf16.msra.mxu0 0
  %6763 = vmatprep.subr.bf16.mxu0 0
  %6764 = vmatpush2.bf16.msra.mxu0 0
  %6765 = vmatprep.subr.bf16.mxu0 0
  %6766 = vmatpush2.bf16.msra.mxu0 0
  %6767 = vmatprep.subr.bf16.mxu0 0
  %6768 = vmatpush2.bf16.msra.mxu0 0
  %6769 = vmatprep.subr.bf16.mxu0 0
  %6770 = vmatpush2.bf16.msra.mxu0 0
  %6771 = vmatprep.subr.bf16.mxu0 0
  %6772 = vmatpush2.bf16.msra.mxu0 0
  %6773 = vmatprep.mubr.bf16.mxu0 0
  %6774 = vmatmul.mubr.bf16.gmra.mxu0 %v6718
  %v6775 = vpop.f32.mrf.mxu0
  %v6776 = vadd.f32 %v3757, %v6775
  %v6777 = vpop.f32.mrf.mxu0
  %v6778 = vpop.f32.mrf.mxu0
  %v6779 = vadd.f32 %v3757, %v6778
  %v6780 = vpop.f32.mrf.mxu0
  %6781 = vmatprep.mubr.bf16.mxu0 0
  %6782 = vmatmul.mubr.bf16.gmra.mxu0 %v6721
  %v6783 = vpop.f32.mrf.mxu0
  %v6784 = vadd.f32 %v3757, %v6783
  %v6785 = vpop.f32.mrf.mxu0
  %v6786 = vpop.f32.mrf.mxu0
  %v6787 = vadd.f32 %v3757, %v6786
  %v6788 = vpop.f32.mrf.mxu0
  %6789 = vmatprep.mubr.bf16.mxu0 0
  %6790 = vmatmul.mubr.bf16.gmra.mxu0 %v6724
  %v6791 = vpop.f32.mrf.mxu0
  %v6792 = vadd.f32 %v3757, %v6791
  %v6793 = vpop.f32.mrf.mxu0
  %v6794 = vpop.f32.mrf.mxu0
  %v6795 = vadd.f32 %v3757, %v6794
  %v6796 = vpop.f32.mrf.mxu0
  %6797 = vmatprep.mubr.bf16.mxu0 0
  %6798 = vmatmul.mubr.bf16.gmra.mxu0 %v6727
  %v6799 = vpop.f32.mrf.mxu0
  %v6800 = vadd.f32 %v3757, %v6799
  %v6801 = vpop.f32.mrf.mxu0
  %v6802 = vpop.f32.mrf.mxu0
  %v6803 = vadd.f32 %v3757, %v6802
  %v6804 = vpop.f32.mrf.mxu0
  %6805 = vmatprep.mubr.bf16.mxu0 0
  %6806 = vmatmul.mubr.bf16.gmra.mxu0 %v6730
  %v6807 = vpop.f32.mrf.mxu0
  %v6808 = vadd.f32 %v3757, %v6807
  %v6809 = vpop.f32.mrf.mxu0
  %v6810 = vpop.f32.mrf.mxu0
  %v6811 = vadd.f32 %v3757, %v6810
  %v6812 = vpop.f32.mrf.mxu0
  %6813 = vmatprep.mubr.bf16.mxu0 0
  %6814 = vmatmul.mubr.bf16.gmra.mxu0 %v6733
  %v6815 = vpop.f32.mrf.mxu0
  %v6816 = vadd.f32 %v3757, %v6815
  %v6817 = vpop.f32.mrf.mxu0
  %v6818 = vpop.f32.mrf.mxu0
  %v6819 = vadd.f32 %v3757, %v6818
  %v6820 = vpop.f32.mrf.mxu0
  %6821 = vmatprep.mubr.bf16.mxu0 0
  %6822 = vmatmul.mubr.bf16.gmra.mxu0 %v6736
  %v6823 = vpop.f32.mrf.mxu0
  %v6824 = vadd.f32 %v3757, %v6823
  %v6825 = vpop.f32.mrf.mxu0
  %v6826 = vpop.f32.mrf.mxu0
  %v6827 = vadd.f32 %v3757, %v6826
  %v6828 = vpop.f32.mrf.mxu0
  %6829 = vmatprep.mubr.bf16.mxu0 0
  %6830 = vmatmul.mubr.bf16.gmra.mxu0 %v6739
  %v6831 = vpop.f32.mrf.mxu0
  %v6832 = vadd.f32 %v3757, %v6831
  %v6833 = vpop.f32.mrf.mxu0
  %v6834 = vpop.f32.mrf.mxu0
  %v6835 = vadd.f32 %v3757, %v6834
  %v6836 = vpop.f32.mrf.mxu0
  %6837 = vdwg.mxu0
  %v6838 = vmax.f32 %v6776, 0.0
  %v6839 = vmax.f32 %v6779, 0.0
  %v6840 = vmax.f32 %v6784, 0.0
  %v6841 = vmax.f32 %v6787, 0.0
  %v6842 = vmax.f32 %v6792, 0.0
  %v6843 = vmax.f32 %v6795, 0.0
  %v6844 = vmax.f32 %v6800, 0.0
  %v6845 = vmax.f32 %v6803, 0.0
  %v6846 = vmax.f32 %v6808, 0.0
  %v6847 = vmax.f32 %v6811, 0.0
  %v6848 = vmax.f32 %v6816, 0.0
  %v6849 = vmax.f32 %v6819, 0.0
  %v6850 = vmax.f32 %v6824, 0.0
  %v6851 = vmax.f32 %v6827, 0.0
  %v6852 = vmax.f32 %v6832, 0.0
  %v6853 = vmax.f32 %v6835, 0.0
  %s6854 = scalar_lea.vmem %s5, 64
  %v6855 = vld [vmem:[%s6854] sm:$0xf]
  %v6856 = vld [vmem:[%s6854 + $0x4] sm:$0xf]
  %v6857 = vld [vmem:[%s6854 + $0x8] sm:$0xf]
  %v6858 = vld [vmem:[%s6854 + $0xc] sm:$0xf]
  %v6859 = vld [vmem:[%s6854 + $0x10] sm:$0xf]
  %v6860 = vld [vmem:[%s6854 + $0x14] sm:$0xf]
  %v6861 = vld [vmem:[%s6854 + $0x18] sm:$0xf]
  %v6862 = vld [vmem:[%s6854 + $0x1c] sm:$0xf]
  %v6863 = vld [vmem:[%s6854 + $0x20] sm:$0xf]
  %v6864 = vld [vmem:[%s6854 + $0x24] sm:$0xf]
  %v6865 = vld [vmem:[%s6854 + $0x28] sm:$0xf]
  %v6866 = vld [vmem:[%s6854 + $0x2c] sm:$0xf]
  %v6867 = vld [vmem:[%s6854 + $0x30] sm:$0xf]
  %v6868 = vld [vmem:[%s6854 + $0x34] sm:$0xf]
  %v6869 = vld [vmem:[%s6854 + $0x38] sm:$0xf]
  %v6870 = vld [vmem:[%s6854 + $0x3c] sm:$0xf]
  %v6871 = vpack.c.bf16 %v6839, %v6838
  %v6872 = vpack.c.bf16 %v6841, %v6840
  %v6873 = vpack.c.bf16 %v6843, %v6842
  %v6874 = vpack.c.bf16 %v6845, %v6844
  %v6875 = vpack.c.bf16 %v6847, %v6846
  %v6876 = vpack.c.bf16 %v6849, %v6848
  %v6877 = vpack.c.bf16 %v6851, %v6850
  %v6878 = vpack.c.bf16 %v6853, %v6852
  %v6895 = vunpack.c.l.b16 %v6855
  %v6896 = vunpack.c.l.b16 %v6856
  %v6897 = vunpack.c.l.b16 %v6857
  %v6898 = vunpack.c.l.b16 %v6858
  %v6899 = vunpack.c.l.b16 %v6859
  %v6900 = vunpack.c.l.b16 %v6860
  %v6901 = vunpack.c.l.b16 %v6861
  %v6902 = vunpack.c.l.b16 %v6862
  %v6903 = vunpack.c.l.b16 %v6863
  %v6904 = vunpack.c.l.b16 %v6864
  %v6905 = vunpack.c.l.b16 %v6865
  %v6906 = vunpack.c.l.b16 %v6866
  %v6907 = vunpack.c.l.b16 %v6867
  %v6908 = vunpack.c.l.b16 %v6868
  %v6909 = vunpack.c.l.b16 %v6869
  %v6910 = vunpack.c.l.b16 %v6870
  %v6911 = vpack.c.b16 %v6896, %v6895
  %v6912 = vpack.c.b16 %v6898, %v6897
  %v6913 = vpack.c.b16 %v6900, %v6899
  %v6914 = vpack.c.b16 %v6902, %v6901
  %v6915 = vpack.c.b16 %v6904, %v6903
  %v6916 = vpack.c.b16 %v6906, %v6905
  %v6917 = vpack.c.b16 %v6908, %v6907
  %v6918 = vpack.c.b16 %v6910, %v6909
  %6927 = vmatprep.subr.bf16.mxu0 0
  %6928 = vmatpush1.bf16.msra.mxu0 %v6918
  %6929 = vmatprep.subr.bf16.mxu0 0
  %6930 = vmatpush1.bf16.msra.mxu0 %v6917
  %6931 = vmatprep.subr.bf16.mxu0 0
  %6932 = vmatpush1.bf16.msra.mxu0 %v6916
  %6933 = vmatprep.subr.bf16.mxu0 0
  %6934 = vmatpush1.bf16.msra.mxu0 %v6915
  %6935 = vmatprep.subr.bf16.mxu0 0
  %6936 = vmatpush1.bf16.msra.mxu0 %v6914
  %6937 = vmatprep.subr.bf16.mxu0 0
  %6938 = vmatpush1.bf16.msra.mxu0 %v6913
  %6939 = vmatprep.subr.bf16.mxu0 0
  %6940 = vmatpush1.bf16.msra.mxu0 %v6912
  %6941 = vmatprep.subr.bf16.mxu0 0
  %6942 = vmatpush1.bf16.msra.mxu0 %v6911
  %6943 = vmatprep.subr.bf16.mxu0 0
  %6944 = vmatpush2.bf16.msra.mxu0 0
  %6945 = vmatprep.subr.bf16.mxu0 0
  %6946 = vmatpush2.bf16.msra.mxu0 0
  %6947 = vmatprep.subr.bf16.mxu0 0
  %6948 = vmatpush2.bf16.msra.mxu0 0
  %6949 = vmatprep.subr.bf16.mxu0 0
  %6950 = vmatpush2.bf16.msra.mxu0 0
  %6951 = vmatprep.subr.bf16.mxu0 0
  %6952 = vmatpush2.bf16.msra.mxu0 0
  %6953 = vmatprep.subr.bf16.mxu0 0
  %6954 = vmatpush2.bf16.msra.mxu0 0
  %6955 = vmatprep.subr.bf16.mxu0 0
  %6956 = vmatpush2.bf16.msra.mxu0 0
  %6957 = vmatprep.subr.bf16.mxu0 0
  %6958 = vmatpush2.bf16.msra.mxu0 0
  %6959 = vmatprep.mubr.bf16.mxu0 0
  %6960 = vmatmul.mubr.bf16.gmra.mxu0 %v6871
  %v6961 = vpop.f32.mrf.mxu0
  %v6962 = vadd.f32 %v3758, %v6961
  %v6963 = vpop.f32.mrf.mxu0
  %v6964 = vpop.f32.mrf.mxu0
  %v6965 = vpop.f32.mrf.mxu0
  %6966 = vmatprep.mubr.bf16.mxu0 0
  %6967 = vmatmul.mubr.bf16.gmra.mxu0 %v6872
  %v6968 = vpop.f32.mrf.mxu0
  %v6969 = vpop.f32.mrf.mxu0
  %v6970 = vpop.f32.mrf.mxu0
  %v6971 = vpop.f32.mrf.mxu0
  %6972 = vmatprep.mubr.bf16.mxu0 0
  %6973 = vmatmul.mubr.bf16.gmra.mxu0 %v6873
  %v6974 = vpop.f32.mrf.mxu0
  %v6975 = vpop.f32.mrf.mxu0
  %v6976 = vpop.f32.mrf.mxu0
  %v6977 = vpop.f32.mrf.mxu0
  %6978 = vmatprep.mubr.bf16.mxu0 0
  %6979 = vmatmul.mubr.bf16.gmra.mxu0 %v6874
  %v6980 = vpop.f32.mrf.mxu0
  %v6981 = vpop.f32.mrf.mxu0
  %v6982 = vpop.f32.mrf.mxu0
  %v6983 = vpop.f32.mrf.mxu0
  %6984 = vmatprep.mubr.bf16.mxu0 0
  %6985 = vmatmul.mubr.bf16.gmra.mxu0 %v6875
  %v6986 = vpop.f32.mrf.mxu0
  %v6987 = vadd.f32 %v3758, %v6986
  %v6988 = vpop.f32.mrf.mxu0
  %v6989 = vpop.f32.mrf.mxu0
  %v6990 = vpop.f32.mrf.mxu0
  %6991 = vmatprep.mubr.bf16.mxu0 0
  %6992 = vmatmul.mubr.bf16.gmra.mxu0 %v6876
  %v6993 = vpop.f32.mrf.mxu0
  %v6994 = vpop.f32.mrf.mxu0
  %v6995 = vpop.f32.mrf.mxu0
  %v6996 = vpop.f32.mrf.mxu0
  %6997 = vmatprep.mubr.bf16.mxu0 0
  %6998 = vmatmul.mubr.bf16.gmra.mxu0 %v6877
  %v6999 = vpop.f32.mrf.mxu0
  %v7000 = vpop.f32.mrf.mxu0
  %v7001 = vpop.f32.mrf.mxu0
  %v7002 = vpop.f32.mrf.mxu0
  %7003 = vmatprep.mubr.bf16.mxu0 0
  %7004 = vmatmul.mubr.bf16.gmra.mxu0 %v6878
  %v7005 = vpop.f32.mrf.mxu0
  %v7006 = vpop.f32.mrf.mxu0
  %v7007 = vpop.f32.mrf.mxu0
  %v7008 = vpop.f32.mrf.mxu0
  %7009 = vdwg.mxu0
  %v7010 = vadd.f32 %v6660, %v6962
  %v7011 = vadd.f32 %v6668, %v6987
  %v7012 = vsel %vm338, %v7010, 0.0
  %7013 = vadd.xlane.f32.xlu0 %v7012
  %v7014 = vpop.xlane.xlu0 %7013
  %v7015 = vsel %vm338, %v7011, 0.0
  %7016 = vadd.xlane.f32.xlu0 %v7015
  %v7017 = vpop.xlane.xlu0 %7016
  %v7018 = vmul.f32 %v7014, %v2957
  %v7019 = vmul.f32 %v7017, %v2957
  %v7020 = vsub.f32 %v7010, %v7018
  %v7021 = vsub.f32 %v7011, %v7019
  %v7022 = vmul.f32 %v7020, %v7020
  %v7023 = vmul.f32 %v7021, %v7021
  %v7024 = vsel %vm338, %v7022, 0.0
  %7025 = vadd.xlane.f32.xlu0 %v7024
  %v7026 = vpop.xlane.xlu0 %7025
  %v7027 = vsel %vm338, %v7023, 0.0
  %7028 = vadd.xlane.f32.xlu0 %v7027
  %v7029 = vpop.xlane.xlu0 %7028
  %v7030 = vmul.f32 %v7026, %v2957
  %v7031 = vmul.f32 %v7029, %v2957
  %v7032 = vadd.f32 %v7030, 1e-05
  %v7033 = vadd.f32 %v7031, 1e-05
  %v7034 = vrsqrt.pop %v7032
  %v7035 = vrsqrt.pop %v7033
  %v7036 = vmul.f32 %v7020, %v7034
  %v7037 = vmul.f32 %v7021, %v7035
  %v7038 = vmul.f32 %v7036, %v3759
  %v7039 = vmul.f32 %v7037, %v3759
  %v7040 = vadd.f32 %v7038, %v3760
  %v7041 = vadd.f32 %v7039, %v3760
  %v7042 = vld [vmem:[%s30] ss:$0 sm:$0xff]
  %v7043 = vld [vmem:[%s30 + $0x1] ss:$0 sm:$0xff]
  %v7044 = vld [vmem:[%s30 + $0x2] ss:$0 sm:$0xff]
  %v7045 = vsel %vm338, %v7040, 0.0
  %7046 = vadd.xlane.f32.xlu0 %v7045
  %v7047 = vpop.xlane.xlu0 %7046
  %v7048 = vsel %vm338, %v7041, 0.0
  %7049 = vadd.xlane.f32.xlu0 %v7048
  %v7050 = vpop.xlane.xlu0 %7049
  %v7051 = vmul.f32 %v7047, %v2957
  %v7052 = vmul.f32 %v7050, %v2957
  %v7053 = vsub.f32 %v7040, %v7051
  %v7054 = vsub.f32 %v7041, %v7052
  %v7055 = vmul.f32 %v7053, %v7053
  %v7056 = vmul.f32 %v7054, %v7054
  %v7057 = vsel %vm338, %v7055, 0.0
  %7058 = vadd.xlane.f32.xlu0 %v7057
  %v7059 = vpop.xlane.xlu0 %7058
  %v7060 = vsel %vm338, %v7056, 0.0
  %7061 = vadd.xlane.f32.xlu0 %v7060
  %v7062 = vpop.xlane.xlu0 %7061
  %v7063 = vmul.f32 %v7059, %v2957
  %v7064 = vmul.f32 %v7062, %v2957
  %v7065 = vadd.f32 %v7063, 1e-05
  %v7066 = vadd.f32 %v7064, 1e-05
  %v7067 = vrsqrt.pop %v7065
  %v7068 = vrsqrt.pop %v7066
  %v7069 = vmul.f32 %v7053, %v7067
  %v7070 = vmul.f32 %v7054, %v7068
  %v7071 = vmul.f32 %v7069, %v7042
  %v7072 = vmul.f32 %v7070, %v7042
  %v7073 = vadd.f32 %v7071, %v7043
  %v7074 = vadd.f32 %v7072, %v7043
  %v7075 = vld [vmem:[%s6] sm:$0xf]
  %v7076 = vld [vmem:[%s6 + $0x4] sm:$0xf]
  %v7077 = vld [vmem:[%s6 + $0x8] sm:$0xf]
  %v7078 = vld [vmem:[%s6 + $0xc] sm:$0xf]
  %v7079 = vld [vmem:[%s6 + $0x10] sm:$0xf]
  %v7080 = vld [vmem:[%s6 + $0x14] sm:$0xf]
  %v7081 = vld [vmem:[%s6 + $0x18] sm:$0xf]
  %v7082 = vld [vmem:[%s6 + $0x1c] sm:$0xf]
  %v7083 = vpack.c.bf16 %v7074, %v7073
  %v7092 = vunpack.c.l.b16 %v7075
  %v7093 = vunpack.c.l.b16 %v7076
  %v7094 = vunpack.c.l.b16 %v7077
  %v7095 = vunpack.c.l.b16 %v7078
  %v7096 = vunpack.c.l.b16 %v7079
  %v7097 = vunpack.c.l.b16 %v7080
  %v7098 = vunpack.c.l.b16 %v7081
  %v7099 = vunpack.c.l.b16 %v7082
  %v7100 = vpack.c.b16 %v7093, %v7092
  %v7101 = vpack.c.b16 %v7095, %v7094
  %v7102 = vpack.c.b16 %v7097, %v7096
  %v7103 = vpack.c.b16 %v7099, %v7098
  %v7109 = vsel %vm338, %v7083, 0
  %7111 = vmatprep.subr.bf16.mxu0 0
  %7112 = vmatpush1.bf16.msra.mxu0 0
  %7113 = vmatprep.subr.bf16.mxu0 0
  %7114 = vmatpush1.bf16.msra.mxu0 0
  %7115 = vmatprep.subr.bf16.mxu0 0
  %7116 = vmatpush1.bf16.msra.mxu0 0
  %7117 = vmatprep.subr.bf16.mxu0 0
  %7118 = vmatpush1.bf16.msra.mxu0 0
  %7119 = vmatprep.subr.bf16.mxu0 0
  %7120 = vmatpush1.bf16.msra.mxu0 %v7103
  %7121 = vmatprep.subr.bf16.mxu0 0
  %7122 = vmatpush1.bf16.msra.mxu0 %v7102
  %7123 = vmatprep.subr.bf16.mxu0 0
  %7124 = vmatpush1.bf16.msra.mxu0 %v7101
  %7125 = vmatprep.subr.bf16.mxu0 0
  %7126 = vmatpush1.bf16.msra.mxu0 %v7100
  %7127 = vmatprep.subr.bf16.mxu0 0
  %7128 = vmatpush2.bf16.msra.mxu0 0
  %7129 = vmatprep.subr.bf16.mxu0 0
  %7130 = vmatpush2.bf16.msra.mxu0 0
  %7131 = vmatprep.subr.bf16.mxu0 0
  %7132 = vmatpush2.bf16.msra.mxu0 0
  %7133 = vmatprep.subr.bf16.mxu0 0
  %7134 = vmatpush2.bf16.msra.mxu0 0
  %7135 = vmatprep.subr.bf16.mxu0 0
  %7136 = vmatpush2.bf16.msra.mxu0 0
  %7137 = vmatprep.subr.bf16.mxu0 0
  %7138 = vmatpush2.bf16.msra.mxu0 0
  %7139 = vmatprep.subr.bf16.mxu0 0
  %7140 = vmatpush2.bf16.msra.mxu0 0
  %7141 = vmatprep.subr.bf16.mxu0 0
  %7142 = vmatpush2.bf16.msra.mxu0 0
  %7143 = vmatprep.mubr.bf16.mxu0 0
  %7144 = vmatmul.mubr.bf16.gmra.mxu0 %v7109
  %v7145 = vpop.f32.mrf.mxu0
  %v7146 = vadd.f32 %v7044, %v7145
  %v7147 = vpop.f32.mrf.mxu0
  %v7148 = vpop.f32.mrf.mxu0
  %v7149 = vadd.f32 %v7044, %v7148
  %v7150 = vpop.f32.mrf.mxu0
  %7151 = vdwg.mxu0
  %7152 = vst [vmem:[%s8] sm:$0xff] %v7146
  %7153 = vst [vmem:[%s8 + $0x8] sm:$0xff] %v7149
  // Predicated region
  $region34: #{vit_forward.1} parent=0 // pred_check
    _
  $region35: #{vit_forward.1} parent=0 // pred_check_branch
    %7155 = sbr.rel (0) target = $region37
  $region36: #{vit_forward.1} parent=0 // pred_region
    _
  $region37: #{vit_forward.1} parent=0 // pred_fallthru
    _
  // Predicated region
  $region38: #{vit_forward.1} parent=0 // pred_check
    _
  $region39: #{vit_forward.1} parent=0 // pred_check_branch
    %7157 = sbr.rel (0) target = $region41
  $region40: #{vit_forward.1} parent=0 // pred_region
    _
  $region41: #{vit_forward.1} parent=0 // pred_fallthru
    _

</llo_original>
